<compile_context>
chip_gen: v5e
topology: v5e:2x2
jax: 0.10.0
libtpu: 0.0.40
codegen_flags: <defaults>
</compile_context>

<pallas_src>
import numpy as np
import jax
import jax.numpy as jnp
from jax.experimental import pallas as pl
from jax.experimental.pallas import tpu as pltpu


# ------------------------------- fused Pallas kernel -------------------------------

def _backbone_kernel(
    x0_ref,
    mt0_ref, mt1_ref, mt2_ref,
    nm0_ref, nm1_ref, nm2_ref,
    w1_ref, w2_ref, w21_ref, w3_ref, w4_ref, w5_ref,
    w6_ref, w7_ref, w61_ref, w71_ref,
    sel21_ref, b21_ref, cm21_ref,
    sel5_ref, b5_ref, cm5_ref,
    selF_ref, bF_ref, cmF_ref,
    out_ref,
):
    f32 = jnp.float32

    def conv_elu_bn(x, mt_ref, wt_ref, nmask, inv_cnt):
        """SplineConv(dim=3, kernel_size=2, aggr='mean', no root/bias) + ELU + BatchNorm."""
        npn = x.shape[1]                      # padded node count (128)
        cout = wt_ref.shape[1]
        # one big MXU push: (Cin, Np) @ (Np, 8*Np), bf16 operands, f32 accumulate
        h = jnp.dot(x.astype(jnp.bfloat16), mt_ref[...],
                    preferred_element_type=f32)
        acc = jnp.zeros((cout, npn), f32)
        for s in range(8):                    # 8 tiny (Cout,Cin) x (Cin,Np) pushes
            acc = acc + jnp.dot(wt_ref[s], h[:, s * npn:(s + 1) * npn],
                                preferred_element_type=f32)
        # ELU(alpha=1)
        act = jnp.where(acc > 0, acc, jnp.exp(jnp.minimum(acc, 0.0)) - 1.0)
        # masked BatchNorm over valid nodes (training-mode batch stats, gamma=1, beta=0)
        mean = jnp.sum(act * nmask, axis=1, keepdims=True) * inv_cnt
        cen = act - mean
        var = jnp.sum(cen * cen * nmask, axis=1, keepdims=True) * inv_cnt
        return cen * jax.lax.rsqrt(var + 1e-5) * nmask

    def pool_max(x, sel_ref, bias_ref, cmask):
        """Cluster max-pool via slot-selection matmul + Kmax-way lane-block max."""
        ncp = cmask.shape[1]
        kmax = sel_ref.shape[1] // ncp
        y = jnp.dot(x, sel_ref[...], preferred_element_type=f32) + bias_ref[...]
        red = y[:, 0:ncp]
        for j in range(1, kmax):
            red = jnp.maximum(red, y[:, j * ncp:(j + 1) * ncp])
        # empty / padded clusters -> 0 (matches PyG scatter-max zero fill)
        return jnp.where(cmask > 0, red, 0.0)

    nm0 = nm0_ref[...]
    nm1 = nm1_ref[...]
    nm2 = nm2_ref[...]
    inv0 = 1.0 / jnp.maximum(jnp.sum(nm0), 1.0)   # hoisted per-stage 1/count
    inv1 = 1.0 / jnp.maximum(jnp.sum(nm1), 1.0)
    inv2 = 1.0 / jnp.maximum(jnp.sum(nm2), 1.0)

    x = x0_ref[...]
    x = conv_elu_bn(x, mt0_ref, w1_ref, nm0, inv0)        # conv1 + norm1 : 1 -> 8
    x = conv_elu_bn(x, mt0_ref, w2_ref, nm0, inv0)        # conv2 + norm2 : 8 -> 16
    x = conv_elu_bn(x, mt0_ref, w21_ref, nm0, inv0)       # conv2_1 + norm2_1
    x = pool_max(x, sel21_ref, b21_ref, cm21_ref[...])    # pool2_1 (pooling_after_conv2)
    x_sc = x
    x = conv_elu_bn(x, mt1_ref, w3_ref, nm1, inv1)        # conv3 + norm3
    x = conv_elu_bn(x, mt1_ref, w4_ref, nm1, inv1)        # conv4 + norm4
    x = x + x_sc
    x = conv_elu_bn(x, mt1_ref, w5_ref, nm1, inv1)        # conv5 + norm5 : 16 -> 32
    x = pool_max(x, sel5_ref, b5_ref, cm5_ref[...])       # pool5
    x_sc = x
    x = conv_elu_bn(x, mt2_ref, w6_ref, nm2, inv2)        # conv6 + norm6
    x = conv_elu_bn(x, mt2_ref, w7_ref, nm2, inv2)        # conv7 + norm7
    x = x + x_sc
    x = conv_elu_bn(x, mt2_ref, w61_ref, nm2, inv2)       # conv6_1 + norm6_1 (more_block)
    x = conv_elu_bn(x, mt2_ref, w71_ref, nm2, inv2)       # conv7_1 + norm7_1
    x = x + x_sc
    x = pool_max(x, selF_ref, bF_ref, cmF_ref[...])       # MaxPoolingX -> (32, 128)
    out_ref[...] = x.astype(out_ref.dtype)


def fused_forward(inputs, cout, ncp):
    vm = pl.BlockSpec(memory_space=pltpu.MemorySpace.VMEM)
    return pl.pallas_call(
        _backbone_kernel,
        out_shape=jax.ShapeDtypeStruct((cout, ncp), jnp.float32),
        in_specs=[vm] * len(inputs),
        out_specs=vm,
    )(*inputs)


# ---------------------------- host-side graph structure -----------------------------

def cartesian_attr(pos, edge_index):
    """Cartesian(norm=True, cat=False): normalized relative positions in [0, 1]."""
    src, dst = edge_index
    cart = pos[dst] - pos[src]
    mx = np.abs(cart).max() if cart.size else 0.0
    if mx > 0:
        cart = cart / (2.0 * mx) + 0.5
    else:
        cart = np.full_like(cart, 0.5)
    return cart.astype(np.float32)


def spline_basis(attr):
    """Degree-1 open B-spline basis, kernel_size=2 per dim, dim=3 -> 8 values per edge."""
    E = attr.shape[0]
    Bsp = np.ones((E, 8), np.float32)
    for s in range(8):
        for d in range(3):
            bit = (s >> d) & 1
            Bsp[:, s] *= attr[:, d] if bit else (1.0 - attr[:, d])
    return Bsp


def build_stage(pos, edge_index, np_pad):
    """Fold SplineConv's gather + basis weighting + mean aggregation into 8 per-spline
    propagation matrices, returned transposed & lane-concatenated (Np, 8*Np) in bf16."""
    N = pos.shape[0]
    E = edge_index.shape[1]
    Mt = np.zeros((8, np_pad, np_pad), np.float32)
    if E > 0:
        src, dst = edge_index
        attr = cartesian_attr(pos, edge_index)
        Bsp = spline_basis(attr)                                   # (E, 8)
        deg = np.bincount(dst, minlength=N).astype(np.float32)
        invdeg = 1.0 / np.maximum(deg, 1.0)
        for s in range(8):
            np.add.at(Mt[s], (src, dst), Bsp[:, s] * invdeg[dst])  # Mt_s[src, dst]
    mtcat = np.concatenate(list(Mt), axis=1)                       # (Np, 8*Np)
    nmask = np.zeros((1, np_pad), np.float32)
    nmask[0, :N] = 1.0
    return jnp.asarray(mtcat, dtype=jnp.bfloat16), jnp.asarray(nmask)


def build_pool_select(cluster, num_clusters, np_in, ncp):
    """Slot-selection form of scatter-max pooling: member j of cluster c is routed to
    lane block j, lane c; empty slots get a -1e30 bias so a Kmax-way lane-block max in
    the kernel reproduces the per-cluster max without any (Nc, N, C) broadcast."""
    members = [[] for _ in range(num_clusters)]
    for n, c in enumerate(np.asarray(cluster).tolist()):
        members[int(c)].append(n)
    kmax = max(1, max((len(m) for m in members), default=1))
    sel = np.zeros((np_in, kmax * ncp), np.float32)
    bias = np.full((1, kmax * ncp), -1e30, np.float32)
    cmask = np.zeros((1, ncp), np.float32)
    for c, mem in enumerate(members):
        if mem:
            cmask[0, c] = 1.0
        for j, n in enumerate(mem):
            sel[n, j * ncp + c] = 1.0
            bias[0, j * ncp + c] = 0.0
    return jnp.asarray(sel), jnp.asarray(bias), jnp.asarray(cmask)


def knn_edges(pos, batch, k):
    src_list, dst_list = [], []
    for b in np.unique(batch):
        idx = np.where(batch == b)[0]
        P = pos[idx]
        d2 = ((P[:, None, :] - P[None, :, :]) ** 2).sum(-1)
        np.fill_diagonal(d2, np.inf)
        nn = np.argsort(d2, axis=1)[:, :k]
        for i in range(len(idx)):
            for j in nn[i]:
                src_list.append(idx[j])
                dst_list.append(idx[i])
    return np.array([src_list, dst_list], dtype=np.int64)


def voxel_pool(pos, batch, edge_index, size_xy):
    """torch_geometric max_pool with voxel_grid clustering: new pos = cluster mean,
    edges mapped to clusters (self-loops removed, coalesced)."""
    # TODO(synk): pooling sizes are 2-D while pos is 3-D (x, y, t); clustering uses pos[:, :2].
    xy = pos[:, :2]
    start = xy.min(axis=0)
    cells = np.floor((xy - start) / np.asarray(size_xy)).astype(np.int64)
    keys = np.stack([batch, cells[:, 0], cells[:, 1]], axis=1)
    _, inverse, counts = np.unique(keys, axis=0, return_inverse=True, return_counts=True)
    cluster = np.asarray(inverse).reshape(-1)
    Nc = counts.shape[0]

    new_pos = np.zeros((Nc, pos.shape[1]), np.float64)
    np.add.at(new_pos, cluster, pos.astype(np.float64))
    new_pos /= counts[:, None]
    new_batch = np.zeros(Nc, np.int64)
    new_batch[cluster] = batch

    src, dst = edge_index
    csrc, cdst = cluster[src], cluster[dst]
    keep = csrc != cdst
    if keep.any():
        pairs = np.unique(np.stack([csrc[keep], cdst[keep]], axis=1), axis=0)
        new_edge_index = pairs.T.copy()
    else:
        new_edge_index = np.zeros((2, 0), np.int64)
    return new_pos.astype(np.float32), new_batch, new_edge_index, cluster


def final_bins(pos, batch, grid=4, voxel=0.25):
    """MaxPoolingX(0.25, size=16): 4x4 spatial bins per graph on pos[:, :2]."""
    xy = pos[:, :2]
    start = xy.min(axis=0)
    cells = np.floor((xy - start) / voxel).astype(np.int64)
    cells = np.clip(cells, 0, grid - 1)
    return cells[:, 0] + grid * cells[:, 1] + grid * grid * batch


# ------------------------------------- main -----------------------------------------

if __name__ == "__main__":
    B = 2
    NODES_PER_GRAPH = 48
    K_NN = 8
    POOLING_OUTPUTS = 32
    pooling_size = np.array([0.023121387283236993, 0.011538461538461539])

    key = jax.random.PRNGKey(0)
    k_pos, k_feat, k_w = jax.random.split(key, 3)

    # synthetic event graph: 3-D positions (x, y, t) in [0, 0.96), 1 feature per node
    pos0 = np.asarray(jax.random.uniform(k_pos, (B * NODES_PER_GRAPH, 3),
                                         minval=0.0, maxval=0.96), dtype=np.float64)
    batch0 = np.repeat(np.arange(B), NODES_PER_GRAPH)
    edge_index0 = knn_edges(pos0, batch0, K_NN)
    x0 = np.asarray(jax.random.uniform(k_feat, (B * NODES_PER_GRAPH, 1)), dtype=np.float32)

    N0 = pos0.shape[0]
    NP = ((N0 + 127) // 128) * 128                     # lane-dense node padding (128)

    # ---- host-precomputed structure (positions / connectivity only) ----
    mt0, nm0 = build_stage(pos0.astype(np.float32), edge_index0, NP)

    pos1, batch1, edge_index1, cl01 = voxel_pool(pos0.astype(np.float32), batch0,
                                                 edge_index0, pooling_size / 2.0)
    N1 = pos1.shape[0]
    assert N1 <= NP
    mt1, nm1 = build_stage(pos1, edge_index1, NP)

    pos2, batch2, edge_index2, cl12 = voxel_pool(pos1, batch1, edge_index1, pooling_size)
    N2 = pos2.shape[0]
    assert N2 <= NP
    mt2, nm2 = build_stage(pos2, edge_index2, NP)

    sel21, b21, cm21 = build_pool_select(cl01, N1, NP, NP)          # pool2_1
    sel5, b5, cm5 = build_pool_select(cl12, N2, NP, NP)             # pool5
    binsF = final_bins(pos2, batch2)                                # MaxPoolingX bins
    selF, bF, cmF = build_pool_select(binsF, B * 16, NP, NP)

    # ---- SplineConv weights: (8 spline kernels, Cin, Cout), stored transposed (8, Cout, Cin)
    wkeys = jax.random.split(k_w, 10)

    def winit(k, cin, cout):
        bound = 1.0 / np.sqrt(8 * cin)
        w = jax.random.uniform(k, (8, cin, cout), jnp.float32, minval=-bound, maxval=bound)
        return jnp.transpose(w, (0, 2, 1))              # (8, Cout, Cin)

    wt1 = jnp.zeros((8, 8, 8), jnp.float32).at[:, :, :1].set(winit(wkeys[0], 1, 8))
    wt2 = winit(wkeys[1], 8, 16)
    wt21 = winit(wkeys[2], 16, 16)
    wt3 = winit(wkeys[3], 16, 16)
    wt4 = winit(wkeys[4], 16, 16)
    wt5 = winit(wkeys[5], 16, POOLING_OUTPUTS)
    wt6 = winit(wkeys[6], POOLING_OUTPUTS, POOLING_OUTPUTS)
    wt7 = winit(wkeys[7], POOLING_OUTPUTS, POOLING_OUTPUTS)
    wt61 = winit(wkeys[8], POOLING_OUTPUTS, POOLING_OUTPUTS)
    wt71 = winit(wkeys[9], POOLING_OUTPUTS, POOLING_OUTPUTS)
    # (self.fc is defined in the module but not applied in backbone.forward -> omitted.)

    # input features, channel-major (Cin padded 1 -> 8), nodes in lanes
    x0_cm = np.zeros((8, NP), np.float32)
    x0_cm[0, :N0] = x0[:, 0]
    x0_cm = jnp.asarray(x0_cm)

    inputs = (x0_cm,
              mt0, mt1, mt2,
              nm0, nm1, nm2,
              wt1, wt2, wt21, wt3, wt4, wt5, wt6, wt7, wt61, wt71,
              sel21, b21, cm21,
              sel5, b5, cm5,
              selF, bF, cmF)

    pooled = fused_forward(inputs, POOLING_OUTPUTS, NP)    # (32, 128), lanes 0..B*16-1 valid
    out = pooled[:, :B * 16].T.reshape(B, -1)              # (B, 32*16) = (B, 512)
    out = jax.block_until_ready(out)

    assert out.shape == (B, POOLING_OUTPUTS * 16), out.shape
    assert bool(jnp.all(jnp.isfinite(out)))
    print("KERNEL_OK")
</pallas_src>

<mosaic_0001>
module attributes {stable_mosaic.version = 11 : i64} {
  func.func @_backbone_kernel(%arg0: memref<8x128xf32, #tpu.memory_space<vmem>>, %arg1: memref<128x1024xbf16, #tpu.memory_space<vmem>>, %arg2: memref<128x1024xbf16, #tpu.memory_space<vmem>>, %arg3: memref<128x1024xbf16, #tpu.memory_space<vmem>>, %arg4: memref<1x128xf32, #tpu.memory_space<vmem>>, %arg5: memref<1x128xf32, #tpu.memory_space<vmem>>, %arg6: memref<1x128xf32, #tpu.memory_space<vmem>>, %arg7: memref<8x8x8xf32, #tpu.memory_space<vmem>>, %arg8: memref<8x16x8xf32, #tpu.memory_space<vmem>>, %arg9: memref<8x16x16xf32, #tpu.memory_space<vmem>>, %arg10: memref<8x16x16xf32, #tpu.memory_space<vmem>>, %arg11: memref<8x16x16xf32, #tpu.memory_space<vmem>>, %arg12: memref<8x32x16xf32, #tpu.memory_space<vmem>>, %arg13: memref<8x32x32xf32, #tpu.memory_space<vmem>>, %arg14: memref<8x32x32xf32, #tpu.memory_space<vmem>>, %arg15: memref<8x32x32xf32, #tpu.memory_space<vmem>>, %arg16: memref<8x32x32xf32, #tpu.memory_space<vmem>>, %arg17: memref<128x128xf32, #tpu.memory_space<vmem>>, %arg18: memref<1x128xf32, #tpu.memory_space<vmem>>, %arg19: memref<1x128xf32, #tpu.memory_space<vmem>>, %arg20: memref<128x128xf32, #tpu.memory_space<vmem>>, %arg21: memref<1x128xf32, #tpu.memory_space<vmem>>, %arg22: memref<1x128xf32, #tpu.memory_space<vmem>>, %arg23: memref<128x768xf32, #tpu.memory_space<vmem>>, %arg24: memref<1x768xf32, #tpu.memory_space<vmem>>, %arg25: memref<1x128xf32, #tpu.memory_space<vmem>>, %arg26: memref<32x128xf32, #tpu.memory_space<vmem>>) attributes {dimension_semantics = [], scalar_prefetch = 0 : i64, scratch_operands = 0 : i64, tpu.core_type = #tpu.core_type<tc>} {
    %c0 = arith.constant 0 : index
    %c0_0 = arith.constant 0 : index
    %0 = vector.load %arg4[%c0, %c0_0] : memref<1x128xf32, #tpu.memory_space<vmem>>, vector<1x128xf32>
    %c0_1 = arith.constant 0 : index
    %c0_2 = arith.constant 0 : index
    %1 = vector.load %arg5[%c0_1, %c0_2] : memref<1x128xf32, #tpu.memory_space<vmem>>, vector<1x128xf32>
    %c0_3 = arith.constant 0 : index
    %c0_4 = arith.constant 0 : index
    %2 = vector.load %arg6[%c0_3, %c0_4] : memref<1x128xf32, #tpu.memory_space<vmem>>, vector<1x128xf32>
    %3 = vector.shape_cast %0 : vector<1x128xf32> to vector<1x1x128xf32>
    %cst = arith.constant dense<0.000000e+00> : vector<1xf32>
    %4 = vector.multi_reduction <add>, %3, %cst [1, 2] : vector<1x1x128xf32> to vector<1xf32>
    %5 = vector.shape_cast %4 : vector<1xf32> to vector<1x1x1xf32>
    %6 = vector.extract %5[0, 0, 0] : f32 from vector<1x1x1xf32>
    %cst_5 = arith.constant 1.000000e+00 : f32
    %7 = arith.maximumf %6, %cst_5 : f32
    %cst_6 = arith.constant 1.000000e+00 : f32
    %8 = arith.divf %cst_6, %7 : f32
    %9 = vector.shape_cast %1 : vector<1x128xf32> to vector<1x1x128xf32>
    %cst_7 = arith.constant dense<0.000000e+00> : vector<1xf32>
    %10 = vector.multi_reduction <add>, %9, %cst_7 [1, 2] : vector<1x1x128xf32> to vector<1xf32>
    %11 = vector.shape_cast %10 : vector<1xf32> to vector<1x1x1xf32>
    %12 = vector.extract %11[0, 0, 0] : f32 from vector<1x1x1xf32>
    %cst_8 = arith.constant 1.000000e+00 : f32
    %13 = arith.maximumf %12, %cst_8 : f32
    %cst_9 = arith.constant 1.000000e+00 : f32
    %14 = arith.divf %cst_9, %13 : f32
    %15 = vector.shape_cast %2 : vector<1x128xf32> to vector<1x1x128xf32>
    %cst_10 = arith.constant dense<0.000000e+00> : vector<1xf32>
    %16 = vector.multi_reduction <add>, %15, %cst_10 [1, 2] : vector<1x1x128xf32> to vector<1xf32>
    %17 = vector.shape_cast %16 : vector<1xf32> to vector<1x1x1xf32>
    %18 = vector.extract %17[0, 0, 0] : f32 from vector<1x1x1xf32>
    %cst_11 = arith.constant 1.000000e+00 : f32
    %19 = arith.maximumf %18, %cst_11 : f32
    %cst_12 = arith.constant 1.000000e+00 : f32
    %20 = arith.divf %cst_12, %19 : f32
    %c0_13 = arith.constant 0 : index
    %c0_14 = arith.constant 0 : index
    %21 = vector.load %arg0[%c0_13, %c0_14] : memref<8x128xf32, #tpu.memory_space<vmem>>, vector<8x128xf32>
    %22 = arith.truncf %21 : vector<8x128xf32> to vector<8x128xbf16>
    %c0_15 = arith.constant 0 : index
    %c0_16 = arith.constant 0 : index
    %23 = vector.load %arg1[%c0_15, %c0_16] : memref<128x1024xbf16, #tpu.memory_space<vmem>>, vector<128x1024xbf16>
    %cst_17 = arith.constant dense<0.000000e+00> : vector<8x1024xf32>
    %24 = tpu.matmul %22, %23, %cst_17 {dimension_numbers = #tpu.dot_dimension_numbers<[1], [0], [0], [1], [0, 0, 1, 1], [], []>} : vector<8x128xbf16>, vector<128x1024xbf16>, vector<8x1024xf32> -> vector<8x1024xf32>
    %cst_18 = arith.constant 0.000000e+00 : f32
    %25 = vector.broadcast %cst_18 : f32 to vector<8x128xf32>
    %c0_19 = arith.constant 0 : index
    %c0_20 = arith.constant 0 : index
    %c0_21 = arith.constant 0 : index
    %26 = vector.load %arg7[%c0_19, %c0_20, %c0_21] : memref<8x8x8xf32, #tpu.memory_space<vmem>>, vector<1x8x8xf32>
    %27 = vector.shape_cast %26 : vector<1x8x8xf32> to vector<8x8xf32>
    %28 = vector.extract_strided_slice %24 {offsets = [0, 0], sizes = [8, 128], strides = [1, 1]} : vector<8x1024xf32> to vector<8x128xf32>
    %cst_22 = arith.constant dense<0.000000e+00> : vector<8x128xf32>
    %29 = tpu.matmul %27, %28, %cst_22 {dimension_numbers = #tpu.dot_dimension_numbers<[1], [0], [0], [1], [0, 0, 1, 1], [], []>} : vector<8x8xf32>, vector<8x128xf32>, vector<8x128xf32> -> vector<8x128xf32>
    %30 = arith.addf %25, %29 : vector<8x128xf32>
    %c1 = arith.constant 1 : index
    %c0_23 = arith.constant 0 : index
    %c0_24 = arith.constant 0 : index
    %31 = vector.load %arg7[%c1, %c0_23, %c0_24] : memref<8x8x8xf32, #tpu.memory_space<vmem>>, vector<1x8x8xf32>
    %32 = vector.shape_cast %31 : vector<1x8x8xf32> to vector<8x8xf32>
    %33 = vector.extract_strided_slice %24 {offsets = [0, 128], sizes = [8, 128], strides = [1, 1]} : vector<8x1024xf32> to vector<8x128xf32>
    %cst_25 = arith.constant dense<0.000000e+00> : vector<8x128xf32>
    %34 = tpu.matmul %32, %33, %cst_25 {dimension_numbers = #tpu.dot_dimension_numbers<[1], [0], [0], [1], [0, 0, 1, 1], [], []>} : vector<8x8xf32>, vector<8x128xf32>, vector<8x128xf32> -> vector<8x128xf32>
    %35 = arith.addf %30, %34 : vector<8x128xf32>
    %c2 = arith.constant 2 : index
    %c0_26 = arith.constant 0 : index
    %c0_27 = arith.constant 0 : index
    %36 = vector.load %arg7[%c2, %c0_26, %c0_27] : memref<8x8x8xf32, #tpu.memory_space<vmem>>, vector<1x8x8xf32>
    %37 = vector.shape_cast %36 : vector<1x8x8xf32> to vector<8x8xf32>
    %38 = vector.extract_strided_slice %24 {offsets = [0, 256], sizes = [8, 128], strides = [1, 1]} : vector<8x1024xf32> to vector<8x128xf32>
    %cst_28 = arith.constant dense<0.000000e+00> : vector<8x128xf32>
    %39 = tpu.matmul %37, %38, %cst_28 {dimension_numbers = #tpu.dot_dimension_numbers<[1], [0], [0], [1], [0, 0, 1, 1], [], []>} : vector<8x8xf32>, vector<8x128xf32>, vector<8x128xf32> -> vector<8x128xf32>
    %40 = arith.addf %35, %39 : vector<8x128xf32>
    %c3 = arith.constant 3 : index
    %c0_29 = arith.constant 0 : index
    %c0_30 = arith.constant 0 : index
    %41 = vector.load %arg7[%c3, %c0_29, %c0_30] : memref<8x8x8xf32, #tpu.memory_space<vmem>>, vector<1x8x8xf32>
    %42 = vector.shape_cast %41 : vector<1x8x8xf32> to vector<8x8xf32>
    %43 = vector.extract_strided_slice %24 {offsets = [0, 384], sizes = [8, 128], strides = [1, 1]} : vector<8x1024xf32> to vector<8x128xf32>
    %cst_31 = arith.constant dense<0.000000e+00> : vector<8x128xf32>
    %44 = tpu.matmul %42, %43, %cst_31 {dimension_numbers = #tpu.dot_dimension_numbers<[1], [0], [0], [1], [0, 0, 1, 1], [], []>} : vector<8x8xf32>, vector<8x128xf32>, vector<8x128xf32> -> vector<8x128xf32>
    %45 = arith.addf %40, %44 : vector<8x128xf32>
    %c4 = arith.constant 4 : index
    %c0_32 = arith.constant 0 : index
    %c0_33 = arith.constant 0 : index
    %46 = vector.load %arg7[%c4, %c0_32, %c0_33] : memref<8x8x8xf32, #tpu.memory_space<vmem>>, vector<1x8x8xf32>
    %47 = vector.shape_cast %46 : vector<1x8x8xf32> to vector<8x8xf32>
    %48 = vector.extract_strided_slice %24 {offsets = [0, 512], sizes = [8, 128], strides = [1, 1]} : vector<8x1024xf32> to vector<8x128xf32>
    %cst_34 = arith.constant dense<0.000000e+00> : vector<8x128xf32>
    %49 = tpu.matmul %47, %48, %cst_34 {dimension_numbers = #tpu.dot_dimension_numbers<[1], [0], [0], [1], [0, 0, 1, 1], [], []>} : vector<8x8xf32>, vector<8x128xf32>, vector<8x128xf32> -> vector<8x128xf32>
    %50 = arith.addf %45, %49 : vector<8x128xf32>
    %c5 = arith.constant 5 : index
    %c0_35 = arith.constant 0 : index
    %c0_36 = arith.constant 0 : index
    %51 = vector.load %arg7[%c5, %c0_35, %c0_36] : memref<8x8x8xf32, #tpu.memory_space<vmem>>, vector<1x8x8xf32>
    %52 = vector.shape_cast %51 : vector<1x8x8xf32> to vector<8x8xf32>
    %53 = vector.extract_strided_slice %24 {offsets = [0, 640], sizes = [8, 128], strides = [1, 1]} : vector<8x1024xf32> to vector<8x128xf32>
    %cst_37 = arith.constant dense<0.000000e+00> : vector<8x128xf32>
    %54 = tpu.matmul %52, %53, %cst_37 {dimension_numbers = #tpu.dot_dimension_numbers<[1], [0], [0], [1], [0, 0, 1, 1], [], []>} : vector<8x8xf32>, vector<8x128xf32>, vector<8x128xf32> -> vector<8x128xf32>
    %55 = arith.addf %50, %54 : vector<8x128xf32>
    %c6 = arith.constant 6 : index
    %c0_38 = arith.constant 0 : index
    %c0_39 = arith.constant 0 : index
    %56 = vector.load %arg7[%c6, %c0_38, %c0_39] : memref<8x8x8xf32, #tpu.memory_space<vmem>>, vector<1x8x8xf32>
    %57 = vector.shape_cast %56 : vector<1x8x8xf32> to vector<8x8xf32>
    %58 = vector.extract_strided_slice %24 {offsets = [0, 768], sizes = [8, 128], strides = [1, 1]} : vector<8x1024xf32> to vector<8x128xf32>
    %cst_40 = arith.constant dense<0.000000e+00> : vector<8x128xf32>
    %59 = tpu.matmul %57, %58, %cst_40 {dimension_numbers = #tpu.dot_dimension_numbers<[1], [0], [0], [1], [0, 0, 1, 1], [], []>} : vector<8x8xf32>, vector<8x128xf32>, vector<8x128xf32> -> vector<8x128xf32>
    %60 = arith.addf %55, %59 : vector<8x128xf32>
    %c7 = arith.constant 7 : index
    %c0_41 = arith.constant 0 : index
    %c0_42 = arith.constant 0 : index
    %61 = vector.load %arg7[%c7, %c0_41, %c0_42] : memref<8x8x8xf32, #tpu.memory_space<vmem>>, vector<1x8x8xf32>
    %62 = vector.shape_cast %61 : vector<1x8x8xf32> to vector<8x8xf32>
    %63 = vector.extract_strided_slice %24 {offsets = [0, 896], sizes = [8, 128], strides = [1, 1]} : vector<8x1024xf32> to vector<8x128xf32>
    %cst_43 = arith.constant dense<0.000000e+00> : vector<8x128xf32>
    %64 = tpu.matmul %62, %63, %cst_43 {dimension_numbers = #tpu.dot_dimension_numbers<[1], [0], [0], [1], [0, 0, 1, 1], [], []>} : vector<8x8xf32>, vector<8x128xf32>, vector<8x128xf32> -> vector<8x128xf32>
    %65 = arith.addf %60, %64 : vector<8x128xf32>
    %cst_44 = arith.constant 0.000000e+00 : f32
    %66 = vector.broadcast %cst_44 : f32 to vector<8x128xf32>
    %67 = arith.cmpf ogt, %65, %66 : vector<8x128xf32>
    %cst_45 = arith.constant 0.000000e+00 : f32
    %68 = vector.broadcast %cst_45 : f32 to vector<8x128xf32>
    %69 = arith.minimumf %65, %68 : vector<8x128xf32>
    %70 = math.exp %69 : vector<8x128xf32>
    %cst_46 = arith.constant 1.000000e+00 : f32
    %71 = vector.broadcast %cst_46 : f32 to vector<8x128xf32>
    %72 = arith.subf %70, %71 : vector<8x128xf32>
    %73 = arith.select %67, %65, %72 : vector<8x128xi1>, vector<8x128xf32>
    %74 = vector.broadcast %0 : vector<1x128xf32> to vector<8x128xf32>
    %75 = arith.mulf %73, %74 : vector<8x128xf32>
    %cst_47 = arith.constant dense<0.000000e+00> : vector<8xf32>
    %76 = vector.multi_reduction <add>, %75, %cst_47 [1] : vector<8x128xf32> to vector<8xf32>
    %77 = vector.shape_cast %76 : vector<8xf32> to vector<8x1xf32>
    %78 = vector.broadcast %8 : f32 to vector<8x1xf32>
    %79 = arith.mulf %77, %78 : vector<8x1xf32>
    %80 = vector.broadcast %79 : vector<8x1xf32> to vector<8x128xf32>
    %81 = arith.subf %73, %80 : vector<8x128xf32>
    %82 = arith.mulf %81, %81 : vector<8x128xf32>
    %83 = vector.broadcast %0 : vector<1x128xf32> to vector<8x128xf32>
    %84 = arith.mulf %82, %83 : vector<8x128xf32>
    %cst_48 = arith.constant dense<0.000000e+00> : vector<8xf32>
    %85 = vector.multi_reduction <add>, %84, %cst_48 [1] : vector<8x128xf32> to vector<8xf32>
    %86 = vector.shape_cast %85 : vector<8xf32> to vector<8x1xf32>
    %87 = vector.broadcast %8 : f32 to vector<8x1xf32>
    %88 = arith.mulf %86, %87 : vector<8x1xf32>
    %cst_49 = arith.constant 9.99999974E-6 : f32
    %89 = vector.broadcast %cst_49 : f32 to vector<8x1xf32>
    %90 = arith.addf %88, %89 : vector<8x1xf32>
    %91 = math.rsqrt %90 : vector<8x1xf32>
    %92 = vector.broadcast %91 : vector<8x1xf32> to vector<8x128xf32>
    %93 = arith.mulf %81, %92 : vector<8x128xf32>
    %94 = vector.broadcast %0 : vector<1x128xf32> to vector<8x128xf32>
    %95 = arith.mulf %93, %94 : vector<8x128xf32>
    %96 = arith.truncf %95 : vector<8x128xf32> to vector<8x128xbf16>
    %c0_50 = arith.constant 0 : index
    %c0_51 = arith.constant 0 : index
    %97 = vector.load %arg1[%c0_50, %c0_51] : memref<128x1024xbf16, #tpu.memory_space<vmem>>, vector<128x1024xbf16>
    %cst_52 = arith.constant dense<0.000000e+00> : vector<8x1024xf32>
    %98 = tpu.matmul %96, %97, %cst_52 {dimension_numbers = #tpu.dot_dimension_numbers<[1], [0], [0], [1], [0, 0, 1, 1], [], []>} : vector<8x128xbf16>, vector<128x1024xbf16>, vector<8x1024xf32> -> vector<8x1024xf32>
    %cst_53 = arith.constant 0.000000e+00 : f32
    %99 = vector.broadcast %cst_53 : f32 to vector<16x128xf32>
    %c0_54 = arith.constant 0 : index
    %c0_55 = arith.constant 0 : index
    %c0_56 = arith.constant 0 : index
    %100 = vector.load %arg8[%c0_54, %c0_55, %c0_56] : memref<8x16x8xf32, #tpu.memory_space<vmem>>, vector<1x16x8xf32>
    %101 = vector.shape_cast %100 : vector<1x16x8xf32> to vector<16x8xf32>
    %102 = vector.extract_strided_slice %98 {offsets = [0, 0], sizes = [8, 128], strides = [1, 1]} : vector<8x1024xf32> to vector<8x128xf32>
    %cst_57 = arith.constant dense<0.000000e+00> : vector<16x128xf32>
    %103 = tpu.matmul %101, %102, %cst_57 {dimension_numbers = #tpu.dot_dimension_numbers<[1], [0], [0], [1], [0, 0, 1, 1], [], []>} : vector<16x8xf32>, vector<8x128xf32>, vector<16x128xf32> -> vector<16x128xf32>
    %104 = arith.addf %99, %103 : vector<16x128xf32>
    %c1_58 = arith.constant 1 : index
    %c0_59 = arith.constant 0 : index
    %c0_60 = arith.constant 0 : index
    %105 = vector.load %arg8[%c1_58, %c0_59, %c0_60] : memref<8x16x8xf32, #tpu.memory_space<vmem>>, vector<1x16x8xf32>
    %106 = vector.shape_cast %105 : vector<1x16x8xf32> to vector<16x8xf32>
    %107 = vector.extract_strided_slice %98 {offsets = [0, 128], sizes = [8, 128], strides = [1, 1]} : vector<8x1024xf32> to vector<8x128xf32>
    %cst_61 = arith.constant dense<0.000000e+00> : vector<16x128xf32>
    %108 = tpu.matmul %106, %107, %cst_61 {dimension_numbers = #tpu.dot_dimension_numbers<[1], [0], [0], [1], [0, 0, 1, 1], [], []>} : vector<16x8xf32>, vector<8x128xf32>, vector<16x128xf32> -> vector<16x128xf32>
    %109 = arith.addf %104, %108 : vector<16x128xf32>
    %c2_62 = arith.constant 2 : index
    %c0_63 = arith.constant 0 : index
    %c0_64 = arith.constant 0 : index
    %110 = vector.load %arg8[%c2_62, %c0_63, %c0_64] : memref<8x16x8xf32, #tpu.memory_space<vmem>>, vector<1x16x8xf32>
    %111 = vector.shape_cast %110 : vector<1x16x8xf32> to vector<16x8xf32>
    %112 = vector.extract_strided_slice %98 {offsets = [0, 256], sizes = [8, 128], strides = [1, 1]} : vector<8x1024xf32> to vector<8x128xf32>
    %cst_65 = arith.constant dense<0.000000e+00> : vector<16x128xf32>
    %113 = tpu.matmul %111, %112, %cst_65 {dimension_numbers = #tpu.dot_dimension_numbers<[1], [0], [0], [1], [0, 0, 1, 1], [], []>} : vector<16x8xf32>, vector<8x128xf32>, vector<16x128xf32> -> vector<16x128xf32>
    %114 = arith.addf %109, %113 : vector<16x128xf32>
    %c3_66 = arith.constant 3 : index
    %c0_67 = arith.constant 0 : index
    %c0_68 = arith.constant 0 : index
    %115 = vector.load %arg8[%c3_66, %c0_67, %c0_68] : memref<8x16x8xf32, #tpu.memory_space<vmem>>, vector<1x16x8xf32>
    %116 = vector.shape_cast %115 : vector<1x16x8xf32> to vector<16x8xf32>
    %117 = vector.extract_strided_slice %98 {offsets = [0, 384], sizes = [8, 128], strides = [1, 1]} : vector<8x1024xf32> to vector<8x128xf32>
    %cst_69 = arith.constant dense<0.000000e+00> : vector<16x128xf32>
    %118 = tpu.matmul %116, %117, %cst_69 {dimension_numbers = #tpu.dot_dimension_numbers<[1], [0], [0], [1], [0, 0, 1, 1], [], []>} : vector<16x8xf32>, vector<8x128xf32>, vector<16x128xf32> -> vector<16x128xf32>
    %119 = arith.addf %114, %118 : vector<16x128xf32>
    %c4_70 = arith.constant 4 : index
    %c0_71 = arith.constant 0 : index
    %c0_72 = arith.constant 0 : index
    %120 = vector.load %arg8[%c4_70, %c0_71, %c0_72] : memref<8x16x8xf32, #tpu.memory_space<vmem>>, vector<1x16x8xf32>
    %121 = vector.shape_cast %120 : vector<1x16x8xf32> to vector<16x8xf32>
    %122 = vector.extract_strided_slice %98 {offsets = [0, 512], sizes = [8, 128], strides = [1, 1]} : vector<8x1024xf32> to vector<8x128xf32>
    %cst_73 = arith.constant dense<0.000000e+00> : vector<16x128xf32>
    %123 = tpu.matmul %121, %122, %cst_73 {dimension_numbers = #tpu.dot_dimension_numbers<[1], [0], [0], [1], [0, 0, 1, 1], [], []>} : vector<16x8xf32>, vector<8x128xf32>, vector<16x128xf32> -> vector<16x128xf32>
    %124 = arith.addf %119, %123 : vector<16x128xf32>
    %c5_74 = arith.constant 5 : index
    %c0_75 = arith.constant 0 : index
    %c0_76 = arith.constant 0 : index
    %125 = vector.load %arg8[%c5_74, %c0_75, %c0_76] : memref<8x16x8xf32, #tpu.memory_space<vmem>>, vector<1x16x8xf32>
    %126 = vector.shape_cast %125 : vector<1x16x8xf32> to vector<16x8xf32>
    %127 = vector.extract_strided_slice %98 {offsets = [0, 640], sizes = [8, 128], strides = [1, 1]} : vector<8x1024xf32> to vector<8x128xf32>
    %cst_77 = arith.constant dense<0.000000e+00> : vector<16x128xf32>
    %128 = tpu.matmul %126, %127, %cst_77 {dimension_numbers = #tpu.dot_dimension_numbers<[1], [0], [0], [1], [0, 0, 1, 1], [], []>} : vector<16x8xf32>, vector<8x128xf32>, vector<16x128xf32> -> vector<16x128xf32>
    %129 = arith.addf %124, %128 : vector<16x128xf32>
    %c6_78 = arith.constant 6 : index
    %c0_79 = arith.constant 0 : index
    %c0_80 = arith.constant 0 : index
    %130 = vector.load %arg8[%c6_78, %c0_79, %c0_80] : memref<8x16x8xf32, #tpu.memory_space<vmem>>, vector<1x16x8xf32>
    %131 = vector.shape_cast %130 : vector<1x16x8xf32> to vector<16x8xf32>
    %132 = vector.extract_strided_slice %98 {offsets = [0, 768], sizes = [8, 128], strides = [1, 1]} : vector<8x1024xf32> to vector<8x128xf32>
    %cst_81 = arith.constant dense<0.000000e+00> : vector<16x128xf32>
    %133 = tpu.matmul %131, %132, %cst_81 {dimension_numbers = #tpu.dot_dimension_numbers<[1], [0], [0], [1], [0, 0, 1, 1], [], []>} : vector<16x8xf32>, vector<8x128xf32>, vector<16x128xf32> -> vector<16x128xf32>
    %134 = arith.addf %129, %133 : vector<16x128xf32>
    %c7_82 = arith.constant 7 : index
    %c0_83 = arith.constant 0 : index
    %c0_84 = arith.constant 0 : index
    %135 = vector.load %arg8[%c7_82, %c0_83, %c0_84] : memref<8x16x8xf32, #tpu.memory_space<vmem>>, vector<1x16x8xf32>
    %136 = vector.shape_cast %135 : vector<1x16x8xf32> to vector<16x8xf32>
    %137 = vector.extract_strided_slice %98 {offsets = [0, 896], sizes = [8, 128], strides = [1, 1]} : vector<8x1024xf32> to vector<8x128xf32>
    %cst_85 = arith.constant dense<0.000000e+00> : vector<16x128xf32>
    %138 = tpu.matmul %136, %137, %cst_85 {dimension_numbers = #tpu.dot_dimension_numbers<[1], [0], [0], [1], [0, 0, 1, 1], [], []>} : vector<16x8xf32>, vector<8x128xf32>, vector<16x128xf32> -> vector<16x128xf32>
    %139 = arith.addf %134, %138 : vector<16x128xf32>
    %cst_86 = arith.constant 0.000000e+00 : f32
    %140 = vector.broadcast %cst_86 : f32 to vector<16x128xf32>
    %141 = arith.cmpf ogt, %139, %140 : vector<16x128xf32>
    %cst_87 = arith.constant 0.000000e+00 : f32
    %142 = vector.broadcast %cst_87 : f32 to vector<16x128xf32>
    %143 = arith.minimumf %139, %142 : vector<16x128xf32>
    %144 = math.exp %143 : vector<16x128xf32>
    %cst_88 = arith.constant 1.000000e+00 : f32
    %145 = vector.broadcast %cst_88 : f32 to vector<16x128xf32>
    %146 = arith.subf %144, %145 : vector<16x128xf32>
    %147 = arith.select %141, %139, %146 : vector<16x128xi1>, vector<16x128xf32>
    %148 = vector.broadcast %0 : vector<1x128xf32> to vector<16x128xf32>
    %149 = arith.mulf %147, %148 : vector<16x128xf32>
    %cst_89 = arith.constant dense<0.000000e+00> : vector<16xf32>
    %150 = vector.multi_reduction <add>, %149, %cst_89 [1] : vector<16x128xf32> to vector<16xf32>
    %151 = vector.shape_cast %150 : vector<16xf32> to vector<16x1xf32>
    %152 = vector.broadcast %8 : f32 to vector<16x1xf32>
    %153 = arith.mulf %151, %152 : vector<16x1xf32>
    %154 = vector.broadcast %153 : vector<16x1xf32> to vector<16x128xf32>
    %155 = arith.subf %147, %154 : vector<16x128xf32>
    %156 = arith.mulf %155, %155 : vector<16x128xf32>
    %157 = vector.broadcast %0 : vector<1x128xf32> to vector<16x128xf32>
    %158 = arith.mulf %156, %157 : vector<16x128xf32>
    %cst_90 = arith.constant dense<0.000000e+00> : vector<16xf32>
    %159 = vector.multi_reduction <add>, %158, %cst_90 [1] : vector<16x128xf32> to vector<16xf32>
    %160 = vector.shape_cast %159 : vector<16xf32> to vector<16x1xf32>
    %161 = vector.broadcast %8 : f32 to vector<16x1xf32>
    %162 = arith.mulf %160, %161 : vector<16x1xf32>
    %cst_91 = arith.constant 9.99999974E-6 : f32
    %163 = vector.broadcast %cst_91 : f32 to vector<16x1xf32>
    %164 = arith.addf %162, %163 : vector<16x1xf32>
    %165 = math.rsqrt %164 : vector<16x1xf32>
    %166 = vector.broadcast %165 : vector<16x1xf32> to vector<16x128xf32>
    %167 = arith.mulf %155, %166 : vector<16x128xf32>
    %168 = vector.broadcast %0 : vector<1x128xf32> to vector<16x128xf32>
    %169 = arith.mulf %167, %168 : vector<16x128xf32>
    %170 = arith.truncf %169 : vector<16x128xf32> to vector<16x128xbf16>
    %c0_92 = arith.constant 0 : index
    %c0_93 = arith.constant 0 : index
    %171 = vector.load %arg1[%c0_92, %c0_93] : memref<128x1024xbf16, #tpu.memory_space<vmem>>, vector<128x1024xbf16>
    %cst_94 = arith.constant dense<0.000000e+00> : vector<16x1024xf32>
    %172 = tpu.matmul %170, %171, %cst_94 {dimension_numbers = #tpu.dot_dimension_numbers<[1], [0], [0], [1], [0, 0, 1, 1], [], []>} : vector<16x128xbf16>, vector<128x1024xbf16>, vector<16x1024xf32> -> vector<16x1024xf32>
    %cst_95 = arith.constant 0.000000e+00 : f32
    %173 = vector.broadcast %cst_95 : f32 to vector<16x128xf32>
    %c0_96 = arith.constant 0 : index
    %c0_97 = arith.constant 0 : index
    %c0_98 = arith.constant 0 : index
    %174 = vector.load %arg9[%c0_96, %c0_97, %c0_98] : memref<8x16x16xf32, #tpu.memory_space<vmem>>, vector<1x16x16xf32>
    %175 = vector.shape_cast %174 : vector<1x16x16xf32> to vector<16x16xf32>
    %176 = vector.extract_strided_slice %172 {offsets = [0, 0], sizes = [16, 128], strides = [1, 1]} : vector<16x1024xf32> to vector<16x128xf32>
    %cst_99 = arith.constant dense<0.000000e+00> : vector<16x128xf32>
    %177 = tpu.matmul %175, %176, %cst_99 {dimension_numbers = #tpu.dot_dimension_numbers<[1], [0], [0], [1], [0, 0, 1, 1], [], []>} : vector<16x16xf32>, vector<16x128xf32>, vector<16x128xf32> -> vector<16x128xf32>
    %178 = arith.addf %173, %177 : vector<16x128xf32>
    %c1_100 = arith.constant 1 : index
    %c0_101 = arith.constant 0 : index
    %c0_102 = arith.constant 0 : index
    %179 = vector.load %arg9[%c1_100, %c0_101, %c0_102] : memref<8x16x16xf32, #tpu.memory_space<vmem>>, vector<1x16x16xf32>
    %180 = vector.shape_cast %179 : vector<1x16x16xf32> to vector<16x16xf32>
    %181 = vector.extract_strided_slice %172 {offsets = [0, 128], sizes = [16, 128], strides = [1, 1]} : vector<16x1024xf32> to vector<16x128xf32>
    %cst_103 = arith.constant dense<0.000000e+00> : vector<16x128xf32>
    %182 = tpu.matmul %180, %181, %cst_103 {dimension_numbers = #tpu.dot_dimension_numbers<[1], [0], [0], [1], [0, 0, 1, 1], [], []>} : vector<16x16xf32>, vector<16x128xf32>, vector<16x128xf32> -> vector<16x128xf32>
    %183 = arith.addf %178, %182 : vector<16x128xf32>
    %c2_104 = arith.constant 2 : index
    %c0_105 = arith.constant 0 : index
    %c0_106 = arith.constant 0 : index
    %184 = vector.load %arg9[%c2_104, %c0_105, %c0_106] : memref<8x16x16xf32, #tpu.memory_space<vmem>>, vector<1x16x16xf32>
    %185 = vector.shape_cast %184 : vector<1x16x16xf32> to vector<16x16xf32>
    %186 = vector.extract_strided_slice %172 {offsets = [0, 256], sizes = [16, 128], strides = [1, 1]} : vector<16x1024xf32> to vector<16x128xf32>
    %cst_107 = arith.constant dense<0.000000e+00> : vector<16x128xf32>
    %187 = tpu.matmul %185, %186, %cst_107 {dimension_numbers = #tpu.dot_dimension_numbers<[1], [0], [0], [1], [0, 0, 1, 1], [], []>} : vector<16x16xf32>, vector<16x128xf32>, vector<16x128xf32> -> vector<16x128xf32>
    %188 = arith.addf %183, %187 : vector<16x128xf32>
    %c3_108 = arith.constant 3 : index
    %c0_109 = arith.constant 0 : index
    %c0_110 = arith.constant 0 : index
    %189 = vector.load %arg9[%c3_108, %c0_109, %c0_110] : memref<8x16x16xf32, #tpu.memory_space<vmem>>, vector<1x16x16xf32>
    %190 = vector.shape_cast %189 : vector<1x16x16xf32> to vector<16x16xf32>
    %191 = vector.extract_strided_slice %172 {offsets = [0, 384], sizes = [16, 128], strides = [1, 1]} : vector<16x1024xf32> to vector<16x128xf32>
    %cst_111 = arith.constant dense<0.000000e+00> : vector<16x128xf32>
    %192 = tpu.matmul %190, %191, %cst_111 {dimension_numbers = #tpu.dot_dimension_numbers<[1], [0], [0], [1], [0, 0, 1, 1], [], []>} : vector<16x16xf32>, vector<16x128xf32>, vector<16x128xf32> -> vector<16x128xf32>
    %193 = arith.addf %188, %192 : vector<16x128xf32>
    %c4_112 = arith.constant 4 : index
    %c0_113 = arith.constant 0 : index
    %c0_114 = arith.constant 0 : index
    %194 = vector.load %arg9[%c4_112, %c0_113, %c0_114] : memref<8x16x16xf32, #tpu.memory_space<vmem>>, vector<1x16x16xf32>
    %195 = vector.shape_cast %194 : vector<1x16x16xf32> to vector<16x16xf32>
    %196 = vector.extract_strided_slice %172 {offsets = [0, 512], sizes = [16, 128], strides = [1, 1]} : vector<16x1024xf32> to vector<16x128xf32>
    %cst_115 = arith.constant dense<0.000000e+00> : vector<16x128xf32>
    %197 = tpu.matmul %195, %196, %cst_115 {dimension_numbers = #tpu.dot_dimension_numbers<[1], [0], [0], [1], [0, 0, 1, 1], [], []>} : vector<16x16xf32>, vector<16x128xf32>, vector<16x128xf32> -> vector<16x128xf32>
    %198 = arith.addf %193, %197 : vector<16x128xf32>
    %c5_116 = arith.constant 5 : index
    %c0_117 = arith.constant 0 : index
    %c0_118 = arith.constant 0 : index
    %199 = vector.load %arg9[%c5_116, %c0_117, %c0_118] : memref<8x16x16xf32, #tpu.memory_space<vmem>>, vector<1x16x16xf32>
    %200 = vector.shape_cast %199 : vector<1x16x16xf32> to vector<16x16xf32>
    %201 = vector.extract_strided_slice %172 {offsets = [0, 640], sizes = [16, 128], strides = [1, 1]} : vector<16x1024xf32> to vector<16x128xf32>
    %cst_119 = arith.constant dense<0.000000e+00> : vector<16x128xf32>
    %202 = tpu.matmul %200, %201, %cst_119 {dimension_numbers = #tpu.dot_dimension_numbers<[1], [0], [0], [1], [0, 0, 1, 1], [], []>} : vector<16x16xf32>, vector<16x128xf32>, vector<16x128xf32> -> vector<16x128xf32>
    %203 = arith.addf %198, %202 : vector<16x128xf32>
    %c6_120 = arith.constant 6 : index
    %c0_121 = arith.constant 0 : index
    %c0_122 = arith.constant 0 : index
    %204 = vector.load %arg9[%c6_120, %c0_121, %c0_122] : memref<8x16x16xf32, #tpu.memory_space<vmem>>, vector<1x16x16xf32>
    %205 = vector.shape_cast %204 : vector<1x16x16xf32> to vector<16x16xf32>
    %206 = vector.extract_strided_slice %172 {offsets = [0, 768], sizes = [16, 128], strides = [1, 1]} : vector<16x1024xf32> to vector<16x128xf32>
    %cst_123 = arith.constant dense<0.000000e+00> : vector<16x128xf32>
    %207 = tpu.matmul %205, %206, %cst_123 {dimension_numbers = #tpu.dot_dimension_numbers<[1], [0], [0], [1], [0, 0, 1, 1], [], []>} : vector<16x16xf32>, vector<16x128xf32>, vector<16x128xf32> -> vector<16x128xf32>
    %208 = arith.addf %203, %207 : vector<16x128xf32>
    %c7_124 = arith.constant 7 : index
    %c0_125 = arith.constant 0 : index
    %c0_126 = arith.constant 0 : index
    %209 = vector.load %arg9[%c7_124, %c0_125, %c0_126] : memref<8x16x16xf32, #tpu.memory_space<vmem>>, vector<1x16x16xf32>
    %210 = vector.shape_cast %209 : vector<1x16x16xf32> to vector<16x16xf32>
    %211 = vector.extract_strided_slice %172 {offsets = [0, 896], sizes = [16, 128], strides = [1, 1]} : vector<16x1024xf32> to vector<16x128xf32>
    %cst_127 = arith.constant dense<0.000000e+00> : vector<16x128xf32>
    %212 = tpu.matmul %210, %211, %cst_127 {dimension_numbers = #tpu.dot_dimension_numbers<[1], [0], [0], [1], [0, 0, 1, 1], [], []>} : vector<16x16xf32>, vector<16x128xf32>, vector<16x128xf32> -> vector<16x128xf32>
    %213 = arith.addf %208, %212 : vector<16x128xf32>
    %cst_128 = arith.constant 0.000000e+00 : f32
    %214 = vector.broadcast %cst_128 : f32 to vector<16x128xf32>
    %215 = arith.cmpf ogt, %213, %214 : vector<16x128xf32>
    %cst_129 = arith.constant 0.000000e+00 : f32
    %216 = vector.broadcast %cst_129 : f32 to vector<16x128xf32>
    %217 = arith.minimumf %213, %216 : vector<16x128xf32>
    %218 = math.exp %217 : vector<16x128xf32>
    %cst_130 = arith.constant 1.000000e+00 : f32
    %219 = vector.broadcast %cst_130 : f32 to vector<16x128xf32>
    %220 = arith.subf %218, %219 : vector<16x128xf32>
    %221 = arith.select %215, %213, %220 : vector<16x128xi1>, vector<16x128xf32>
    %222 = vector.broadcast %0 : vector<1x128xf32> to vector<16x128xf32>
    %223 = arith.mulf %221, %222 : vector<16x128xf32>
    %cst_131 = arith.constant dense<0.000000e+00> : vector<16xf32>
    %224 = vector.multi_reduction <add>, %223, %cst_131 [1] : vector<16x128xf32> to vector<16xf32>
    %225 = vector.shape_cast %224 : vector<16xf32> to vector<16x1xf32>
    %226 = vector.broadcast %8 : f32 to vector<16x1xf32>
    %227 = arith.mulf %225, %226 : vector<16x1xf32>
    %228 = vector.broadcast %227 : vector<16x1xf32> to vector<16x128xf32>
    %229 = arith.subf %221, %228 : vector<16x128xf32>
    %230 = arith.mulf %229, %229 : vector<16x128xf32>
    %231 = vector.broadcast %0 : vector<1x128xf32> to vector<16x128xf32>
    %232 = arith.mulf %230, %231 : vector<16x128xf32>
    %cst_132 = arith.constant dense<0.000000e+00> : vector<16xf32>
    %233 = vector.multi_reduction <add>, %232, %cst_132 [1] : vector<16x128xf32> to vector<16xf32>
    %234 = vector.shape_cast %233 : vector<16xf32> to vector<16x1xf32>
    %235 = vector.broadcast %8 : f32 to vector<16x1xf32>
    %236 = arith.mulf %234, %235 : vector<16x1xf32>
    %cst_133 = arith.constant 9.99999974E-6 : f32
    %237 = vector.broadcast %cst_133 : f32 to vector<16x1xf32>
    %238 = arith.addf %236, %237 : vector<16x1xf32>
    %239 = math.rsqrt %238 : vector<16x1xf32>
    %240 = vector.broadcast %239 : vector<16x1xf32> to vector<16x128xf32>
    %241 = arith.mulf %229, %240 : vector<16x128xf32>
    %242 = vector.broadcast %0 : vector<1x128xf32> to vector<16x128xf32>
    %243 = arith.mulf %241, %242 : vector<16x128xf32>
    %c0_134 = arith.constant 0 : index
    %c0_135 = arith.constant 0 : index
    %244 = vector.load %arg19[%c0_134, %c0_135] : memref<1x128xf32, #tpu.memory_space<vmem>>, vector<1x128xf32>
    %c0_136 = arith.constant 0 : index
    %c0_137 = arith.constant 0 : index
    %245 = vector.load %arg17[%c0_136, %c0_137] : memref<128x128xf32, #tpu.memory_space<vmem>>, vector<128x128xf32>
    %cst_138 = arith.constant dense<0.000000e+00> : vector<16x128xf32>
    %246 = tpu.matmul %243, %245, %cst_138 {dimension_numbers = #tpu.dot_dimension_numbers<[1], [0], [0], [1], [0, 0, 1, 1], [], []>} : vector<16x128xf32>, vector<128x128xf32>, vector<16x128xf32> -> vector<16x128xf32>
    %c0_139 = arith.constant 0 : index
    %c0_140 = arith.constant 0 : index
    %247 = vector.load %arg18[%c0_139, %c0_140] : memref<1x128xf32, #tpu.memory_space<vmem>>, vector<1x128xf32>
    %248 = vector.broadcast %247 : vector<1x128xf32> to vector<16x128xf32>
    %249 = arith.addf %246, %248 : vector<16x128xf32>
    %cst_141 = arith.constant 0.000000e+00 : f32
    %250 = vector.broadcast %cst_141 : f32 to vector<1x128xf32>
    %251 = arith.cmpf ogt, %244, %250 : vector<1x128xf32>
    %cst_142 = arith.constant 0.000000e+00 : f32
    %252 = vector.shape_cast %251 : vector<1x128xi1> to vector<1x128xi1>
    %253 = vector.broadcast %252 : vector<1x128xi1> to vector<16x128xi1>
    %254 = vector.broadcast %cst_142 : f32 to vector<16x128xf32>
    %255 = arith.select %253, %249, %254 : vector<16x128xi1>, vector<16x128xf32>
    %256 = arith.truncf %255 : vector<16x128xf32> to vector<16x128xbf16>
    %c0_143 = arith.constant 0 : index
    %c0_144 = arith.constant 0 : index
    %257 = vector.load %arg2[%c0_143, %c0_144] : memref<128x1024xbf16, #tpu.memory_space<vmem>>, vector<128x1024xbf16>
    %cst_145 = arith.constant dense<0.000000e+00> : vector<16x1024xf32>
    %258 = tpu.matmul %256, %257, %cst_145 {dimension_numbers = #tpu.dot_dimension_numbers<[1], [0], [0], [1], [0, 0, 1, 1], [], []>} : vector<16x128xbf16>, vector<128x1024xbf16>, vector<16x1024xf32> -> vector<16x1024xf32>
    %cst_146 = arith.constant 0.000000e+00 : f32
    %259 = vector.broadcast %cst_146 : f32 to vector<16x128xf32>
    %c0_147 = arith.constant 0 : index
    %c0_148 = arith.constant 0 : index
    %c0_149 = arith.constant 0 : index
    %260 = vector.load %arg10[%c0_147, %c0_148, %c0_149] : memref<8x16x16xf32, #tpu.memory_space<vmem>>, vector<1x16x16xf32>
    %261 = vector.shape_cast %260 : vector<1x16x16xf32> to vector<16x16xf32>
    %262 = vector.extract_strided_slice %258 {offsets = [0, 0], sizes = [16, 128], strides = [1, 1]} : vector<16x1024xf32> to vector<16x128xf32>
    %cst_150 = arith.constant dense<0.000000e+00> : vector<16x128xf32>
    %263 = tpu.matmul %261, %262, %cst_150 {dimension_numbers = #tpu.dot_dimension_numbers<[1], [0], [0], [1], [0, 0, 1, 1], [], []>} : vector<16x16xf32>, vector<16x128xf32>, vector<16x128xf32> -> vector<16x128xf32>
    %264 = arith.addf %259, %263 : vector<16x128xf32>
    %c1_151 = arith.constant 1 : index
    %c0_152 = arith.constant 0 : index
    %c0_153 = arith.constant 0 : index
    %265 = vector.load %arg10[%c1_151, %c0_152, %c0_153] : memref<8x16x16xf32, #tpu.memory_space<vmem>>, vector<1x16x16xf32>
    %266 = vector.shape_cast %265 : vector<1x16x16xf32> to vector<16x16xf32>
    %267 = vector.extract_strided_slice %258 {offsets = [0, 128], sizes = [16, 128], strides = [1, 1]} : vector<16x1024xf32> to vector<16x128xf32>
    %cst_154 = arith.constant dense<0.000000e+00> : vector<16x128xf32>
    %268 = tpu.matmul %266, %267, %cst_154 {dimension_numbers = #tpu.dot_dimension_numbers<[1], [0], [0], [1], [0, 0, 1, 1], [], []>} : vector<16x16xf32>, vector<16x128xf32>, vector<16x128xf32> -> vector<16x128xf32>
    %269 = arith.addf %264, %268 : vector<16x128xf32>
    %c2_155 = arith.constant 2 : index
    %c0_156 = arith.constant 0 : index
    %c0_157 = arith.constant 0 : index
    %270 = vector.load %arg10[%c2_155, %c0_156, %c0_157] : memref<8x16x16xf32, #tpu.memory_space<vmem>>, vector<1x16x16xf32>
    %271 = vector.shape_cast %270 : vector<1x16x16xf32> to vector<16x16xf32>
    %272 = vector.extract_strided_slice %258 {offsets = [0, 256], sizes = [16, 128], strides = [1, 1]} : vector<16x1024xf32> to vector<16x128xf32>
    %cst_158 = arith.constant dense<0.000000e+00> : vector<16x128xf32>
    %273 = tpu.matmul %271, %272, %cst_158 {dimension_numbers = #tpu.dot_dimension_numbers<[1], [0], [0], [1], [0, 0, 1, 1], [], []>} : vector<16x16xf32>, vector<16x128xf32>, vector<16x128xf32> -> vector<16x128xf32>
    %274 = arith.addf %269, %273 : vector<16x128xf32>
    %c3_159 = arith.constant 3 : index
    %c0_160 = arith.constant 0 : index
    %c0_161 = arith.constant 0 : index
    %275 = vector.load %arg10[%c3_159, %c0_160, %c0_161] : memref<8x16x16xf32, #tpu.memory_space<vmem>>, vector<1x16x16xf32>
    %276 = vector.shape_cast %275 : vector<1x16x16xf32> to vector<16x16xf32>
    %277 = vector.extract_strided_slice %258 {offsets = [0, 384], sizes = [16, 128], strides = [1, 1]} : vector<16x1024xf32> to vector<16x128xf32>
    %cst_162 = arith.constant dense<0.000000e+00> : vector<16x128xf32>
    %278 = tpu.matmul %276, %277, %cst_162 {dimension_numbers = #tpu.dot_dimension_numbers<[1], [0], [0], [1], [0, 0, 1, 1], [], []>} : vector<16x16xf32>, vector<16x128xf32>, vector<16x128xf32> -> vector<16x128xf32>
    %279 = arith.addf %274, %278 : vector<16x128xf32>
    %c4_163 = arith.constant 4 : index
    %c0_164 = arith.constant 0 : index
    %c0_165 = arith.constant 0 : index
    %280 = vector.load %arg10[%c4_163, %c0_164, %c0_165] : memref<8x16x16xf32, #tpu.memory_space<vmem>>, vector<1x16x16xf32>
    %281 = vector.shape_cast %280 : vector<1x16x16xf32> to vector<16x16xf32>
    %282 = vector.extract_strided_slice %258 {offsets = [0, 512], sizes = [16, 128], strides = [1, 1]} : vector<16x1024xf32> to vector<16x128xf32>
    %cst_166 = arith.constant dense<0.000000e+00> : vector<16x128xf32>
    %283 = tpu.matmul %281, %282, %cst_166 {dimension_numbers = #tpu.dot_dimension_numbers<[1], [0], [0], [1], [0, 0, 1, 1], [], []>} : vector<16x16xf32>, vector<16x128xf32>, vector<16x128xf32> -> vector<16x128xf32>
    %284 = arith.addf %279, %283 : vector<16x128xf32>
    %c5_167 = arith.constant 5 : index
    %c0_168 = arith.constant 0 : index
    %c0_169 = arith.constant 0 : index
    %285 = vector.load %arg10[%c5_167, %c0_168, %c0_169] : memref<8x16x16xf32, #tpu.memory_space<vmem>>, vector<1x16x16xf32>
    %286 = vector.shape_cast %285 : vector<1x16x16xf32> to vector<16x16xf32>
    %287 = vector.extract_strided_slice %258 {offsets = [0, 640], sizes = [16, 128], strides = [1, 1]} : vector<16x1024xf32> to vector<16x128xf32>
    %cst_170 = arith.constant dense<0.000000e+00> : vector<16x128xf32>
    %288 = tpu.matmul %286, %287, %cst_170 {dimension_numbers = #tpu.dot_dimension_numbers<[1], [0], [0], [1], [0, 0, 1, 1], [], []>} : vector<16x16xf32>, vector<16x128xf32>, vector<16x128xf32> -> vector<16x128xf32>
    %289 = arith.addf %284, %288 : vector<16x128xf32>
    %c6_171 = arith.constant 6 : index
    %c0_172 = arith.constant 0 : index
    %c0_173 = arith.constant 0 : index
    %290 = vector.load %arg10[%c6_171, %c0_172, %c0_173] : memref<8x16x16xf32, #tpu.memory_space<vmem>>, vector<1x16x16xf32>
    %291 = vector.shape_cast %290 : vector<1x16x16xf32> to vector<16x16xf32>
    %292 = vector.extract_strided_slice %258 {offsets = [0, 768], sizes = [16, 128], strides = [1, 1]} : vector<16x1024xf32> to vector<16x128xf32>
    %cst_174 = arith.constant dense<0.000000e+00> : vector<16x128xf32>
    %293 = tpu.matmul %291, %292, %cst_174 {dimension_numbers = #tpu.dot_dimension_numbers<[1], [0], [0], [1], [0, 0, 1, 1], [], []>} : vector<16x16xf32>, vector<16x128xf32>, vector<16x128xf32> -> vector<16x128xf32>
    %294 = arith.addf %289, %293 : vector<16x128xf32>
    %c7_175 = arith.constant 7 : index
    %c0_176 = arith.constant 0 : index
    %c0_177 = arith.constant 0 : index
    %295 = vector.load %arg10[%c7_175, %c0_176, %c0_177] : memref<8x16x16xf32, #tpu.memory_space<vmem>>, vector<1x16x16xf32>
    %296 = vector.shape_cast %295 : vector<1x16x16xf32> to vector<16x16xf32>
    %297 = vector.extract_strided_slice %258 {offsets = [0, 896], sizes = [16, 128], strides = [1, 1]} : vector<16x1024xf32> to vector<16x128xf32>
    %cst_178 = arith.constant dense<0.000000e+00> : vector<16x128xf32>
    %298 = tpu.matmul %296, %297, %cst_178 {dimension_numbers = #tpu.dot_dimension_numbers<[1], [0], [0], [1], [0, 0, 1, 1], [], []>} : vector<16x16xf32>, vector<16x128xf32>, vector<16x128xf32> -> vector<16x128xf32>
    %299 = arith.addf %294, %298 : vector<16x128xf32>
    %cst_179 = arith.constant 0.000000e+00 : f32
    %300 = vector.broadcast %cst_179 : f32 to vector<16x128xf32>
    %301 = arith.cmpf ogt, %299, %300 : vector<16x128xf32>
    %cst_180 = arith.constant 0.000000e+00 : f32
    %302 = vector.broadcast %cst_180 : f32 to vector<16x128xf32>
    %303 = arith.minimumf %299, %302 : vector<16x128xf32>
    %304 = math.exp %303 : vector<16x128xf32>
    %cst_181 = arith.constant 1.000000e+00 : f32
    %305 = vector.broadcast %cst_181 : f32 to vector<16x128xf32>
    %306 = arith.subf %304, %305 : vector<16x128xf32>
    %307 = arith.select %301, %299, %306 : vector<16x128xi1>, vector<16x128xf32>
    %308 = vector.broadcast %1 : vector<1x128xf32> to vector<16x128xf32>
    %309 = arith.mulf %307, %308 : vector<16x128xf32>
    %cst_182 = arith.constant dense<0.000000e+00> : vector<16xf32>
    %310 = vector.multi_reduction <add>, %309, %cst_182 [1] : vector<16x128xf32> to vector<16xf32>
    %311 = vector.shape_cast %310 : vector<16xf32> to vector<16x1xf32>
    %312 = vector.broadcast %14 : f32 to vector<16x1xf32>
    %313 = arith.mulf %311, %312 : vector<16x1xf32>
    %314 = vector.broadcast %313 : vector<16x1xf32> to vector<16x128xf32>
    %315 = arith.subf %307, %314 : vector<16x128xf32>
    %316 = arith.mulf %315, %315 : vector<16x128xf32>
    %317 = vector.broadcast %1 : vector<1x128xf32> to vector<16x128xf32>
    %318 = arith.mulf %316, %317 : vector<16x128xf32>
    %cst_183 = arith.constant dense<0.000000e+00> : vector<16xf32>
    %319 = vector.multi_reduction <add>, %318, %cst_183 [1] : vector<16x128xf32> to vector<16xf32>
    %320 = vector.shape_cast %319 : vector<16xf32> to vector<16x1xf32>
    %321 = vector.broadcast %14 : f32 to vector<16x1xf32>
    %322 = arith.mulf %320, %321 : vector<16x1xf32>
    %cst_184 = arith.constant 9.99999974E-6 : f32
    %323 = vector.broadcast %cst_184 : f32 to vector<16x1xf32>
    %324 = arith.addf %322, %323 : vector<16x1xf32>
    %325 = math.rsqrt %324 : vector<16x1xf32>
    %326 = vector.broadcast %325 : vector<16x1xf32> to vector<16x128xf32>
    %327 = arith.mulf %315, %326 : vector<16x128xf32>
    %328 = vector.broadcast %1 : vector<1x128xf32> to vector<16x128xf32>
    %329 = arith.mulf %327, %328 : vector<16x128xf32>
    %330 = arith.truncf %329 : vector<16x128xf32> to vector<16x128xbf16>
    %c0_185 = arith.constant 0 : index
    %c0_186 = arith.constant 0 : index
    %331 = vector.load %arg2[%c0_185, %c0_186] : memref<128x1024xbf16, #tpu.memory_space<vmem>>, vector<128x1024xbf16>
    %cst_187 = arith.constant dense<0.000000e+00> : vector<16x1024xf32>
    %332 = tpu.matmul %330, %331, %cst_187 {dimension_numbers = #tpu.dot_dimension_numbers<[1], [0], [0], [1], [0, 0, 1, 1], [], []>} : vector<16x128xbf16>, vector<128x1024xbf16>, vector<16x1024xf32> -> vector<16x1024xf32>
    %cst_188 = arith.constant 0.000000e+00 : f32
    %333 = vector.broadcast %cst_188 : f32 to vector<16x128xf32>
    %c0_189 = arith.constant 0 : index
    %c0_190 = arith.constant 0 : index
    %c0_191 = arith.constant 0 : index
    %334 = vector.load %arg11[%c0_189, %c0_190, %c0_191] : memref<8x16x16xf32, #tpu.memory_space<vmem>>, vector<1x16x16xf32>
    %335 = vector.shape_cast %334 : vector<1x16x16xf32> to vector<16x16xf32>
    %336 = vector.extract_strided_slice %332 {offsets = [0, 0], sizes = [16, 128], strides = [1, 1]} : vector<16x1024xf32> to vector<16x128xf32>
    %cst_192 = arith.constant dense<0.000000e+00> : vector<16x128xf32>
    %337 = tpu.matmul %335, %336, %cst_192 {dimension_numbers = #tpu.dot_dimension_numbers<[1], [0], [0], [1], [0, 0, 1, 1], [], []>} : vector<16x16xf32>, vector<16x128xf32>, vector<16x128xf32> -> vector<16x128xf32>
    %338 = arith.addf %333, %337 : vector<16x128xf32>
    %c1_193 = arith.constant 1 : index
    %c0_194 = arith.constant 0 : index
    %c0_195 = arith.constant 0 : index
    %339 = vector.load %arg11[%c1_193, %c0_194, %c0_195] : memref<8x16x16xf32, #tpu.memory_space<vmem>>, vector<1x16x16xf32>
    %340 = vector.shape_cast %339 : vector<1x16x16xf32> to vector<16x16xf32>
    %341 = vector.extract_strided_slice %332 {offsets = [0, 128], sizes = [16, 128], strides = [1, 1]} : vector<16x1024xf32> to vector<16x128xf32>
    %cst_196 = arith.constant dense<0.000000e+00> : vector<16x128xf32>
    %342 = tpu.matmul %340, %341, %cst_196 {dimension_numbers = #tpu.dot_dimension_numbers<[1], [0], [0], [1], [0, 0, 1, 1], [], []>} : vector<16x16xf32>, vector<16x128xf32>, vector<16x128xf32> -> vector<16x128xf32>
    %343 = arith.addf %338, %342 : vector<16x128xf32>
    %c2_197 = arith.constant 2 : index
    %c0_198 = arith.constant 0 : index
    %c0_199 = arith.constant 0 : index
    %344 = vector.load %arg11[%c2_197, %c0_198, %c0_199] : memref<8x16x16xf32, #tpu.memory_space<vmem>>, vector<1x16x16xf32>
    %345 = vector.shape_cast %344 : vector<1x16x16xf32> to vector<16x16xf32>
    %346 = vector.extract_strided_slice %332 {offsets = [0, 256], sizes = [16, 128], strides = [1, 1]} : vector<16x1024xf32> to vector<16x128xf32>
    %cst_200 = arith.constant dense<0.000000e+00> : vector<16x128xf32>
    %347 = tpu.matmul %345, %346, %cst_200 {dimension_numbers = #tpu.dot_dimension_numbers<[1], [0], [0], [1], [0, 0, 1, 1], [], []>} : vector<16x16xf32>, vector<16x128xf32>, vector<16x128xf32> -> vector<16x128xf32>
    %348 = arith.addf %343, %347 : vector<16x128xf32>
    %c3_201 = arith.constant 3 : index
    %c0_202 = arith.constant 0 : index
    %c0_203 = arith.constant 0 : index
    %349 = vector.load %arg11[%c3_201, %c0_202, %c0_203] : memref<8x16x16xf32, #tpu.memory_space<vmem>>, vector<1x16x16xf32>
    %350 = vector.shape_cast %349 : vector<1x16x16xf32> to vector<16x16xf32>
    %351 = vector.extract_strided_slice %332 {offsets = [0, 384], sizes = [16, 128], strides = [1, 1]} : vector<16x1024xf32> to vector<16x128xf32>
    %cst_204 = arith.constant dense<0.000000e+00> : vector<16x128xf32>
    %352 = tpu.matmul %350, %351, %cst_204 {dimension_numbers = #tpu.dot_dimension_numbers<[1], [0], [0], [1], [0, 0, 1, 1], [], []>} : vector<16x16xf32>, vector<16x128xf32>, vector<16x128xf32> -> vector<16x128xf32>
    %353 = arith.addf %348, %352 : vector<16x128xf32>
    %c4_205 = arith.constant 4 : index
    %c0_206 = arith.constant 0 : index
    %c0_207 = arith.constant 0 : index
    %354 = vector.load %arg11[%c4_205, %c0_206, %c0_207] : memref<8x16x16xf32, #tpu.memory_space<vmem>>, vector<1x16x16xf32>
    %355 = vector.shape_cast %354 : vector<1x16x16xf32> to vector<16x16xf32>
    %356 = vector.extract_strided_slice %332 {offsets = [0, 512], sizes = [16, 128], strides = [1, 1]} : vector<16x1024xf32> to vector<16x128xf32>
    %cst_208 = arith.constant dense<0.000000e+00> : vector<16x128xf32>
    %357 = tpu.matmul %355, %356, %cst_208 {dimension_numbers = #tpu.dot_dimension_numbers<[1], [0], [0], [1], [0, 0, 1, 1], [], []>} : vector<16x16xf32>, vector<16x128xf32>, vector<16x128xf32> -> vector<16x128xf32>
    %358 = arith.addf %353, %357 : vector<16x128xf32>
    %c5_209 = arith.constant 5 : index
    %c0_210 = arith.constant 0 : index
    %c0_211 = arith.constant 0 : index
    %359 = vector.load %arg11[%c5_209, %c0_210, %c0_211] : memref<8x16x16xf32, #tpu.memory_space<vmem>>, vector<1x16x16xf32>
    %360 = vector.shape_cast %359 : vector<1x16x16xf32> to vector<16x16xf32>
    %361 = vector.extract_strided_slice %332 {offsets = [0, 640], sizes = [16, 128], strides = [1, 1]} : vector<16x1024xf32> to vector<16x128xf32>
    %cst_212 = arith.constant dense<0.000000e+00> : vector<16x128xf32>
    %362 = tpu.matmul %360, %361, %cst_212 {dimension_numbers = #tpu.dot_dimension_numbers<[1], [0], [0], [1], [0, 0, 1, 1], [], []>} : vector<16x16xf32>, vector<16x128xf32>, vector<16x128xf32> -> vector<16x128xf32>
    %363 = arith.addf %358, %362 : vector<16x128xf32>
    %c6_213 = arith.constant 6 : index
    %c0_214 = arith.constant 0 : index
    %c0_215 = arith.constant 0 : index
    %364 = vector.load %arg11[%c6_213, %c0_214, %c0_215] : memref<8x16x16xf32, #tpu.memory_space<vmem>>, vector<1x16x16xf32>
    %365 = vector.shape_cast %364 : vector<1x16x16xf32> to vector<16x16xf32>
    %366 = vector.extract_strided_slice %332 {offsets = [0, 768], sizes = [16, 128], strides = [1, 1]} : vector<16x1024xf32> to vector<16x128xf32>
    %cst_216 = arith.constant dense<0.000000e+00> : vector<16x128xf32>
    %367 = tpu.matmul %365, %366, %cst_216 {dimension_numbers = #tpu.dot_dimension_numbers<[1], [0], [0], [1], [0, 0, 1, 1], [], []>} : vector<16x16xf32>, vector<16x128xf32>, vector<16x128xf32> -> vector<16x128xf32>
    %368 = arith.addf %363, %367 : vector<16x128xf32>
    %c7_217 = arith.constant 7 : index
    %c0_218 = arith.constant 0 : index
    %c0_219 = arith.constant 0 : index
    %369 = vector.load %arg11[%c7_217, %c0_218, %c0_219] : memref<8x16x16xf32, #tpu.memory_space<vmem>>, vector<1x16x16xf32>
    %370 = vector.shape_cast %369 : vector<1x16x16xf32> to vector<16x16xf32>
    %371 = vector.extract_strided_slice %332 {offsets = [0, 896], sizes = [16, 128], strides = [1, 1]} : vector<16x1024xf32> to vector<16x128xf32>
    %cst_220 = arith.constant dense<0.000000e+00> : vector<16x128xf32>
    %372 = tpu.matmul %370, %371, %cst_220 {dimension_numbers = #tpu.dot_dimension_numbers<[1], [0], [0], [1], [0, 0, 1, 1], [], []>} : vector<16x16xf32>, vector<16x128xf32>, vector<16x128xf32> -> vector<16x128xf32>
    %373 = arith.addf %368, %372 : vector<16x128xf32>
    %cst_221 = arith.constant 0.000000e+00 : f32
    %374 = vector.broadcast %cst_221 : f32 to vector<16x128xf32>
    %375 = arith.cmpf ogt, %373, %374 : vector<16x128xf32>
    %cst_222 = arith.constant 0.000000e+00 : f32
    %376 = vector.broadcast %cst_222 : f32 to vector<16x128xf32>
    %377 = arith.minimumf %373, %376 : vector<16x128xf32>
    %378 = math.exp %377 : vector<16x128xf32>
    %cst_223 = arith.constant 1.000000e+00 : f32
    %379 = vector.broadcast %cst_223 : f32 to vector<16x128xf32>
    %380 = arith.subf %378, %379 : vector<16x128xf32>
    %381 = arith.select %375, %373, %380 : vector<16x128xi1>, vector<16x128xf32>
    %382 = vector.broadcast %1 : vector<1x128xf32> to vector<16x128xf32>
    %383 = arith.mulf %381, %382 : vector<16x128xf32>
    %cst_224 = arith.constant dense<0.000000e+00> : vector<16xf32>
    %384 = vector.multi_reduction <add>, %383, %cst_224 [1] : vector<16x128xf32> to vector<16xf32>
    %385 = vector.shape_cast %384 : vector<16xf32> to vector<16x1xf32>
    %386 = vector.broadcast %14 : f32 to vector<16x1xf32>
    %387 = arith.mulf %385, %386 : vector<16x1xf32>
    %388 = vector.broadcast %387 : vector<16x1xf32> to vector<16x128xf32>
    %389 = arith.subf %381, %388 : vector<16x128xf32>
    %390 = arith.mulf %389, %389 : vector<16x128xf32>
    %391 = vector.broadcast %1 : vector<1x128xf32> to vector<16x128xf32>
    %392 = arith.mulf %390, %391 : vector<16x128xf32>
    %cst_225 = arith.constant dense<0.000000e+00> : vector<16xf32>
    %393 = vector.multi_reduction <add>, %392, %cst_225 [1] : vector<16x128xf32> to vector<16xf32>
    %394 = vector.shape_cast %393 : vector<16xf32> to vector<16x1xf32>
    %395 = vector.broadcast %14 : f32 to vector<16x1xf32>
    %396 = arith.mulf %394, %395 : vector<16x1xf32>
    %cst_226 = arith.constant 9.99999974E-6 : f32
    %397 = vector.broadcast %cst_226 : f32 to vector<16x1xf32>
    %398 = arith.addf %396, %397 : vector<16x1xf32>
    %399 = math.rsqrt %398 : vector<16x1xf32>
    %400 = vector.broadcast %399 : vector<16x1xf32> to vector<16x128xf32>
    %401 = arith.mulf %389, %400 : vector<16x128xf32>
    %402 = vector.broadcast %1 : vector<1x128xf32> to vector<16x128xf32>
    %403 = arith.mulf %401, %402 : vector<16x128xf32>
    %404 = arith.addf %403, %255 : vector<16x128xf32>
    %405 = arith.truncf %404 : vector<16x128xf32> to vector<16x128xbf16>
    %c0_227 = arith.constant 0 : index
    %c0_228 = arith.constant 0 : index
    %406 = vector.load %arg2[%c0_227, %c0_228] : memref<128x1024xbf16, #tpu.memory_space<vmem>>, vector<128x1024xbf16>
    %cst_229 = arith.constant dense<0.000000e+00> : vector<16x1024xf32>
    %407 = tpu.matmul %405, %406, %cst_229 {dimension_numbers = #tpu.dot_dimension_numbers<[1], [0], [0], [1], [0, 0, 1, 1], [], []>} : vector<16x128xbf16>, vector<128x1024xbf16>, vector<16x1024xf32> -> vector<16x1024xf32>
    %cst_230 = arith.constant 0.000000e+00 : f32
    %408 = vector.broadcast %cst_230 : f32 to vector<32x128xf32>
    %c0_231 = arith.constant 0 : index
    %c0_232 = arith.constant 0 : index
    %c0_233 = arith.constant 0 : index
    %409 = vector.load %arg12[%c0_231, %c0_232, %c0_233] : memref<8x32x16xf32, #tpu.memory_space<vmem>>, vector<1x32x16xf32>
    %410 = vector.shape_cast %409 : vector<1x32x16xf32> to vector<32x16xf32>
    %411 = vector.extract_strided_slice %407 {offsets = [0, 0], sizes = [16, 128], strides = [1, 1]} : vector<16x1024xf32> to vector<16x128xf32>
    %cst_234 = arith.constant dense<0.000000e+00> : vector<32x128xf32>
    %412 = tpu.matmul %410, %411, %cst_234 {dimension_numbers = #tpu.dot_dimension_numbers<[1], [0], [0], [1], [0, 0, 1, 1], [], []>} : vector<32x16xf32>, vector<16x128xf32>, vector<32x128xf32> -> vector<32x128xf32>
    %413 = arith.addf %408, %412 : vector<32x128xf32>
    %c1_235 = arith.constant 1 : index
    %c0_236 = arith.constant 0 : index
    %c0_237 = arith.constant 0 : index
    %414 = vector.load %arg12[%c1_235, %c0_236, %c0_237] : memref<8x32x16xf32, #tpu.memory_space<vmem>>, vector<1x32x16xf32>
    %415 = vector.shape_cast %414 : vector<1x32x16xf32> to vector<32x16xf32>
    %416 = vector.extract_strided_slice %407 {offsets = [0, 128], sizes = [16, 128], strides = [1, 1]} : vector<16x1024xf32> to vector<16x128xf32>
    %cst_238 = arith.constant dense<0.000000e+00> : vector<32x128xf32>
    %417 = tpu.matmul %415, %416, %cst_238 {dimension_numbers = #tpu.dot_dimension_numbers<[1], [0], [0], [1], [0, 0, 1, 1], [], []>} : vector<32x16xf32>, vector<16x128xf32>, vector<32x128xf32> -> vector<32x128xf32>
    %418 = arith.addf %413, %417 : vector<32x128xf32>
    %c2_239 = arith.constant 2 : index
    %c0_240 = arith.constant 0 : index
    %c0_241 = arith.constant 0 : index
    %419 = vector.load %arg12[%c2_239, %c0_240, %c0_241] : memref<8x32x16xf32, #tpu.memory_space<vmem>>, vector<1x32x16xf32>
    %420 = vector.shape_cast %419 : vector<1x32x16xf32> to vector<32x16xf32>
    %421 = vector.extract_strided_slice %407 {offsets = [0, 256], sizes = [16, 128], strides = [1, 1]} : vector<16x1024xf32> to vector<16x128xf32>
    %cst_242 = arith.constant dense<0.000000e+00> : vector<32x128xf32>
    %422 = tpu.matmul %420, %421, %cst_242 {dimension_numbers = #tpu.dot_dimension_numbers<[1], [0], [0], [1], [0, 0, 1, 1], [], []>} : vector<32x16xf32>, vector<16x128xf32>, vector<32x128xf32> -> vector<32x128xf32>
    %423 = arith.addf %418, %422 : vector<32x128xf32>
    %c3_243 = arith.constant 3 : index
    %c0_244 = arith.constant 0 : index
    %c0_245 = arith.constant 0 : index
    %424 = vector.load %arg12[%c3_243, %c0_244, %c0_245] : memref<8x32x16xf32, #tpu.memory_space<vmem>>, vector<1x32x16xf32>
    %425 = vector.shape_cast %424 : vector<1x32x16xf32> to vector<32x16xf32>
    %426 = vector.extract_strided_slice %407 {offsets = [0, 384], sizes = [16, 128], strides = [1, 1]} : vector<16x1024xf32> to vector<16x128xf32>
    %cst_246 = arith.constant dense<0.000000e+00> : vector<32x128xf32>
    %427 = tpu.matmul %425, %426, %cst_246 {dimension_numbers = #tpu.dot_dimension_numbers<[1], [0], [0], [1], [0, 0, 1, 1], [], []>} : vector<32x16xf32>, vector<16x128xf32>, vector<32x128xf32> -> vector<32x128xf32>
    %428 = arith.addf %423, %427 : vector<32x128xf32>
    %c4_247 = arith.constant 4 : index
    %c0_248 = arith.constant 0 : index
    %c0_249 = arith.constant 0 : index
    %429 = vector.load %arg12[%c4_247, %c0_248, %c0_249] : memref<8x32x16xf32, #tpu.memory_space<vmem>>, vector<1x32x16xf32>
    %430 = vector.shape_cast %429 : vector<1x32x16xf32> to vector<32x16xf32>
    %431 = vector.extract_strided_slice %407 {offsets = [0, 512], sizes = [16, 128], strides = [1, 1]} : vector<16x1024xf32> to vector<16x128xf32>
    %cst_250 = arith.constant dense<0.000000e+00> : vector<32x128xf32>
    %432 = tpu.matmul %430, %431, %cst_250 {dimension_numbers = #tpu.dot_dimension_numbers<[1], [0], [0], [1], [0, 0, 1, 1], [], []>} : vector<32x16xf32>, vector<16x128xf32>, vector<32x128xf32> -> vector<32x128xf32>
    %433 = arith.addf %428, %432 : vector<32x128xf32>
    %c5_251 = arith.constant 5 : index
    %c0_252 = arith.constant 0 : index
    %c0_253 = arith.constant 0 : index
    %434 = vector.load %arg12[%c5_251, %c0_252, %c0_253] : memref<8x32x16xf32, #tpu.memory_space<vmem>>, vector<1x32x16xf32>
    %435 = vector.shape_cast %434 : vector<1x32x16xf32> to vector<32x16xf32>
    %436 = vector.extract_strided_slice %407 {offsets = [0, 640], sizes = [16, 128], strides = [1, 1]} : vector<16x1024xf32> to vector<16x128xf32>
    %cst_254 = arith.constant dense<0.000000e+00> : vector<32x128xf32>
    %437 = tpu.matmul %435, %436, %cst_254 {dimension_numbers = #tpu.dot_dimension_numbers<[1], [0], [0], [1], [0, 0, 1, 1], [], []>} : vector<32x16xf32>, vector<16x128xf32>, vector<32x128xf32> -> vector<32x128xf32>
    %438 = arith.addf %433, %437 : vector<32x128xf32>
    %c6_255 = arith.constant 6 : index
    %c0_256 = arith.constant 0 : index
    %c0_257 = arith.constant 0 : index
    %439 = vector.load %arg12[%c6_255, %c0_256, %c0_257] : memref<8x32x16xf32, #tpu.memory_space<vmem>>, vector<1x32x16xf32>
    %440 = vector.shape_cast %439 : vector<1x32x16xf32> to vector<32x16xf32>
    %441 = vector.extract_strided_slice %407 {offsets = [0, 768], sizes = [16, 128], strides = [1, 1]} : vector<16x1024xf32> to vector<16x128xf32>
    %cst_258 = arith.constant dense<0.000000e+00> : vector<32x128xf32>
    %442 = tpu.matmul %440, %441, %cst_258 {dimension_numbers = #tpu.dot_dimension_numbers<[1], [0], [0], [1], [0, 0, 1, 1], [], []>} : vector<32x16xf32>, vector<16x128xf32>, vector<32x128xf32> -> vector<32x128xf32>
    %443 = arith.addf %438, %442 : vector<32x128xf32>
    %c7_259 = arith.constant 7 : index
    %c0_260 = arith.constant 0 : index
    %c0_261 = arith.constant 0 : index
    %444 = vector.load %arg12[%c7_259, %c0_260, %c0_261] : memref<8x32x16xf32, #tpu.memory_space<vmem>>, vector<1x32x16xf32>
    %445 = vector.shape_cast %444 : vector<1x32x16xf32> to vector<32x16xf32>
    %446 = vector.extract_strided_slice %407 {offsets = [0, 896], sizes = [16, 128], strides = [1, 1]} : vector<16x1024xf32> to vector<16x128xf32>
    %cst_262 = arith.constant dense<0.000000e+00> : vector<32x128xf32>
    %447 = tpu.matmul %445, %446, %cst_262 {dimension_numbers = #tpu.dot_dimension_numbers<[1], [0], [0], [1], [0, 0, 1, 1], [], []>} : vector<32x16xf32>, vector<16x128xf32>, vector<32x128xf32> -> vector<32x128xf32>
    %448 = arith.addf %443, %447 : vector<32x128xf32>
    %cst_263 = arith.constant 0.000000e+00 : f32
    %449 = vector.broadcast %cst_263 : f32 to vector<32x128xf32>
    %450 = arith.cmpf ogt, %448, %449 : vector<32x128xf32>
    %cst_264 = arith.constant 0.000000e+00 : f32
    %451 = vector.broadcast %cst_264 : f32 to vector<32x128xf32>
    %452 = arith.minimumf %448, %451 : vector<32x128xf32>
    %453 = math.exp %452 : vector<32x128xf32>
    %cst_265 = arith.constant 1.000000e+00 : f32
    %454 = vector.broadcast %cst_265 : f32 to vector<32x128xf32>
    %455 = arith.subf %453, %454 : vector<32x128xf32>
    %456 = arith.select %450, %448, %455 : vector<32x128xi1>, vector<32x128xf32>
    %457 = vector.broadcast %1 : vector<1x128xf32> to vector<32x128xf32>
    %458 = arith.mulf %456, %457 : vector<32x128xf32>
    %cst_266 = arith.constant dense<0.000000e+00> : vector<32xf32>
    %459 = vector.multi_reduction <add>, %458, %cst_266 [1] : vector<32x128xf32> to vector<32xf32>
    %460 = vector.shape_cast %459 : vector<32xf32> to vector<32x1xf32>
    %461 = vector.broadcast %14 : f32 to vector<32x1xf32>
    %462 = arith.mulf %460, %461 : vector<32x1xf32>
    %463 = vector.broadcast %462 : vector<32x1xf32> to vector<32x128xf32>
    %464 = arith.subf %456, %463 : vector<32x128xf32>
    %465 = arith.mulf %464, %464 : vector<32x128xf32>
    %466 = vector.broadcast %1 : vector<1x128xf32> to vector<32x128xf32>
    %467 = arith.mulf %465, %466 : vector<32x128xf32>
    %cst_267 = arith.constant dense<0.000000e+00> : vector<32xf32>
    %468 = vector.multi_reduction <add>, %467, %cst_267 [1] : vector<32x128xf32> to vector<32xf32>
    %469 = vector.shape_cast %468 : vector<32xf32> to vector<32x1xf32>
    %470 = vector.broadcast %14 : f32 to vector<32x1xf32>
    %471 = arith.mulf %469, %470 : vector<32x1xf32>
    %cst_268 = arith.constant 9.99999974E-6 : f32
    %472 = vector.broadcast %cst_268 : f32 to vector<32x1xf32>
    %473 = arith.addf %471, %472 : vector<32x1xf32>
    %474 = math.rsqrt %473 : vector<32x1xf32>
    %475 = vector.broadcast %474 : vector<32x1xf32> to vector<32x128xf32>
    %476 = arith.mulf %464, %475 : vector<32x128xf32>
    %477 = vector.broadcast %1 : vector<1x128xf32> to vector<32x128xf32>
    %478 = arith.mulf %476, %477 : vector<32x128xf32>
    %c0_269 = arith.constant 0 : index
    %c0_270 = arith.constant 0 : index
    %479 = vector.load %arg22[%c0_269, %c0_270] : memref<1x128xf32, #tpu.memory_space<vmem>>, vector<1x128xf32>
    %c0_271 = arith.constant 0 : index
    %c0_272 = arith.constant 0 : index
    %480 = vector.load %arg20[%c0_271, %c0_272] : memref<128x128xf32, #tpu.memory_space<vmem>>, vector<128x128xf32>
    %cst_273 = arith.constant dense<0.000000e+00> : vector<32x128xf32>
    %481 = tpu.matmul %478, %480, %cst_273 {dimension_numbers = #tpu.dot_dimension_numbers<[1], [0], [0], [1], [0, 0, 1, 1], [], []>} : vector<32x128xf32>, vector<128x128xf32>, vector<32x128xf32> -> vector<32x128xf32>
    %c0_274 = arith.constant 0 : index
    %c0_275 = arith.constant 0 : index
    %482 = vector.load %arg21[%c0_274, %c0_275] : memref<1x128xf32, #tpu.memory_space<vmem>>, vector<1x128xf32>
    %483 = vector.broadcast %482 : vector<1x128xf32> to vector<32x128xf32>
    %484 = arith.addf %481, %483 : vector<32x128xf32>
    %cst_276 = arith.constant 0.000000e+00 : f32
    %485 = vector.broadcast %cst_276 : f32 to vector<1x128xf32>
    %486 = arith.cmpf ogt, %479, %485 : vector<1x128xf32>
    %cst_277 = arith.constant 0.000000e+00 : f32
    %487 = vector.shape_cast %486 : vector<1x128xi1> to vector<1x128xi1>
    %488 = vector.broadcast %487 : vector<1x128xi1> to vector<32x128xi1>
    %489 = vector.broadcast %cst_277 : f32 to vector<32x128xf32>
    %490 = arith.select %488, %484, %489 : vector<32x128xi1>, vector<32x128xf32>
    %491 = arith.truncf %490 : vector<32x128xf32> to vector<32x128xbf16>
    %c0_278 = arith.constant 0 : index
    %c0_279 = arith.constant 0 : index
    %492 = vector.load %arg3[%c0_278, %c0_279] : memref<128x1024xbf16, #tpu.memory_space<vmem>>, vector<128x1024xbf16>
    %cst_280 = arith.constant dense<0.000000e+00> : vector<32x1024xf32>
    %493 = tpu.matmul %491, %492, %cst_280 {dimension_numbers = #tpu.dot_dimension_numbers<[1], [0], [0], [1], [0, 0, 1, 1], [], []>} : vector<32x128xbf16>, vector<128x1024xbf16>, vector<32x1024xf32> -> vector<32x1024xf32>
    %cst_281 = arith.constant 0.000000e+00 : f32
    %494 = vector.broadcast %cst_281 : f32 to vector<32x128xf32>
    %c0_282 = arith.constant 0 : index
    %c0_283 = arith.constant 0 : index
    %c0_284 = arith.constant 0 : index
    %495 = vector.load %arg13[%c0_282, %c0_283, %c0_284] : memref<8x32x32xf32, #tpu.memory_space<vmem>>, vector<1x32x32xf32>
    %496 = vector.shape_cast %495 : vector<1x32x32xf32> to vector<32x32xf32>
    %497 = vector.extract_strided_slice %493 {offsets = [0, 0], sizes = [32, 128], strides = [1, 1]} : vector<32x1024xf32> to vector<32x128xf32>
    %cst_285 = arith.constant dense<0.000000e+00> : vector<32x128xf32>
    %498 = tpu.matmul %496, %497, %cst_285 {dimension_numbers = #tpu.dot_dimension_numbers<[1], [0], [0], [1], [0, 0, 1, 1], [], []>} : vector<32x32xf32>, vector<32x128xf32>, vector<32x128xf32> -> vector<32x128xf32>
    %499 = arith.addf %494, %498 : vector<32x128xf32>
    %c1_286 = arith.constant 1 : index
    %c0_287 = arith.constant 0 : index
    %c0_288 = arith.constant 0 : index
    %500 = vector.load %arg13[%c1_286, %c0_287, %c0_288] : memref<8x32x32xf32, #tpu.memory_space<vmem>>, vector<1x32x32xf32>
    %501 = vector.shape_cast %500 : vector<1x32x32xf32> to vector<32x32xf32>
    %502 = vector.extract_strided_slice %493 {offsets = [0, 128], sizes = [32, 128], strides = [1, 1]} : vector<32x1024xf32> to vector<32x128xf32>
    %cst_289 = arith.constant dense<0.000000e+00> : vector<32x128xf32>
    %503 = tpu.matmul %501, %502, %cst_289 {dimension_numbers = #tpu.dot_dimension_numbers<[1], [0], [0], [1], [0, 0, 1, 1], [], []>} : vector<32x32xf32>, vector<32x128xf32>, vector<32x128xf32> -> vector<32x128xf32>
    %504 = arith.addf %499, %503 : vector<32x128xf32>
    %c2_290 = arith.constant 2 : index
    %c0_291 = arith.constant 0 : index
    %c0_292 = arith.constant 0 : index
    %505 = vector.load %arg13[%c2_290, %c0_291, %c0_292] : memref<8x32x32xf32, #tpu.memory_space<vmem>>, vector<1x32x32xf32>
    %506 = vector.shape_cast %505 : vector<1x32x32xf32> to vector<32x32xf32>
    %507 = vector.extract_strided_slice %493 {offsets = [0, 256], sizes = [32, 128], strides = [1, 1]} : vector<32x1024xf32> to vector<32x128xf32>
    %cst_293 = arith.constant dense<0.000000e+00> : vector<32x128xf32>
    %508 = tpu.matmul %506, %507, %cst_293 {dimension_numbers = #tpu.dot_dimension_numbers<[1], [0], [0], [1], [0, 0, 1, 1], [], []>} : vector<32x32xf32>, vector<32x128xf32>, vector<32x128xf32> -> vector<32x128xf32>
    %509 = arith.addf %504, %508 : vector<32x128xf32>
    %c3_294 = arith.constant 3 : index
    %c0_295 = arith.constant 0 : index
    %c0_296 = arith.constant 0 : index
    %510 = vector.load %arg13[%c3_294, %c0_295, %c0_296] : memref<8x32x32xf32, #tpu.memory_space<vmem>>, vector<1x32x32xf32>
    %511 = vector.shape_cast %510 : vector<1x32x32xf32> to vector<32x32xf32>
    %512 = vector.extract_strided_slice %493 {offsets = [0, 384], sizes = [32, 128], strides = [1, 1]} : vector<32x1024xf32> to vector<32x128xf32>
    %cst_297 = arith.constant dense<0.000000e+00> : vector<32x128xf32>
    %513 = tpu.matmul %511, %512, %cst_297 {dimension_numbers = #tpu.dot_dimension_numbers<[1], [0], [0], [1], [0, 0, 1, 1], [], []>} : vector<32x32xf32>, vector<32x128xf32>, vector<32x128xf32> -> vector<32x128xf32>
    %514 = arith.addf %509, %513 : vector<32x128xf32>
    %c4_298 = arith.constant 4 : index
    %c0_299 = arith.constant 0 : index
    %c0_300 = arith.constant 0 : index
    %515 = vector.load %arg13[%c4_298, %c0_299, %c0_300] : memref<8x32x32xf32, #tpu.memory_space<vmem>>, vector<1x32x32xf32>
    %516 = vector.shape_cast %515 : vector<1x32x32xf32> to vector<32x32xf32>
    %517 = vector.extract_strided_slice %493 {offsets = [0, 512], sizes = [32, 128], strides = [1, 1]} : vector<32x1024xf32> to vector<32x128xf32>
    %cst_301 = arith.constant dense<0.000000e+00> : vector<32x128xf32>
    %518 = tpu.matmul %516, %517, %cst_301 {dimension_numbers = #tpu.dot_dimension_numbers<[1], [0], [0], [1], [0, 0, 1, 1], [], []>} : vector<32x32xf32>, vector<32x128xf32>, vector<32x128xf32> -> vector<32x128xf32>
    %519 = arith.addf %514, %518 : vector<32x128xf32>
    %c5_302 = arith.constant 5 : index
    %c0_303 = arith.constant 0 : index
    %c0_304 = arith.constant 0 : index
    %520 = vector.load %arg13[%c5_302, %c0_303, %c0_304] : memref<8x32x32xf32, #tpu.memory_space<vmem>>, vector<1x32x32xf32>
    %521 = vector.shape_cast %520 : vector<1x32x32xf32> to vector<32x32xf32>
    %522 = vector.extract_strided_slice %493 {offsets = [0, 640], sizes = [32, 128], strides = [1, 1]} : vector<32x1024xf32> to vector<32x128xf32>
    %cst_305 = arith.constant dense<0.000000e+00> : vector<32x128xf32>
    %523 = tpu.matmul %521, %522, %cst_305 {dimension_numbers = #tpu.dot_dimension_numbers<[1], [0], [0], [1], [0, 0, 1, 1], [], []>} : vector<32x32xf32>, vector<32x128xf32>, vector<32x128xf32> -> vector<32x128xf32>
    %524 = arith.addf %519, %523 : vector<32x128xf32>
    %c6_306 = arith.constant 6 : index
    %c0_307 = arith.constant 0 : index
    %c0_308 = arith.constant 0 : index
    %525 = vector.load %arg13[%c6_306, %c0_307, %c0_308] : memref<8x32x32xf32, #tpu.memory_space<vmem>>, vector<1x32x32xf32>
    %526 = vector.shape_cast %525 : vector<1x32x32xf32> to vector<32x32xf32>
    %527 = vector.extract_strided_slice %493 {offsets = [0, 768], sizes = [32, 128], strides = [1, 1]} : vector<32x1024xf32> to vector<32x128xf32>
    %cst_309 = arith.constant dense<0.000000e+00> : vector<32x128xf32>
    %528 = tpu.matmul %526, %527, %cst_309 {dimension_numbers = #tpu.dot_dimension_numbers<[1], [0], [0], [1], [0, 0, 1, 1], [], []>} : vector<32x32xf32>, vector<32x128xf32>, vector<32x128xf32> -> vector<32x128xf32>
    %529 = arith.addf %524, %528 : vector<32x128xf32>
    %c7_310 = arith.constant 7 : index
    %c0_311 = arith.constant 0 : index
    %c0_312 = arith.constant 0 : index
    %530 = vector.load %arg13[%c7_310, %c0_311, %c0_312] : memref<8x32x32xf32, #tpu.memory_space<vmem>>, vector<1x32x32xf32>
    %531 = vector.shape_cast %530 : vector<1x32x32xf32> to vector<32x32xf32>
    %532 = vector.extract_strided_slice %493 {offsets = [0, 896], sizes = [32, 128], strides = [1, 1]} : vector<32x1024xf32> to vector<32x128xf32>
    %cst_313 = arith.constant dense<0.000000e+00> : vector<32x128xf32>
    %533 = tpu.matmul %531, %532, %cst_313 {dimension_numbers = #tpu.dot_dimension_numbers<[1], [0], [0], [1], [0, 0, 1, 1], [], []>} : vector<32x32xf32>, vector<32x128xf32>, vector<32x128xf32> -> vector<32x128xf32>
    %534 = arith.addf %529, %533 : vector<32x128xf32>
    %cst_314 = arith.constant 0.000000e+00 : f32
    %535 = vector.broadcast %cst_314 : f32 to vector<32x128xf32>
    %536 = arith.cmpf ogt, %534, %535 : vector<32x128xf32>
    %cst_315 = arith.constant 0.000000e+00 : f32
    %537 = vector.broadcast %cst_315 : f32 to vector<32x128xf32>
    %538 = arith.minimumf %534, %537 : vector<32x128xf32>
    %539 = math.exp %538 : vector<32x128xf32>
    %cst_316 = arith.constant 1.000000e+00 : f32
    %540 = vector.broadcast %cst_316 : f32 to vector<32x128xf32>
    %541 = arith.subf %539, %540 : vector<32x128xf32>
    %542 = arith.select %536, %534, %541 : vector<32x128xi1>, vector<32x128xf32>
    %543 = vector.broadcast %2 : vector<1x128xf32> to vector<32x128xf32>
    %544 = arith.mulf %542, %543 : vector<32x128xf32>
    %cst_317 = arith.constant dense<0.000000e+00> : vector<32xf32>
    %545 = vector.multi_reduction <add>, %544, %cst_317 [1] : vector<32x128xf32> to vector<32xf32>
    %546 = vector.shape_cast %545 : vector<32xf32> to vector<32x1xf32>
    %547 = vector.broadcast %20 : f32 to vector<32x1xf32>
    %548 = arith.mulf %546, %547 : vector<32x1xf32>
    %549 = vector.broadcast %548 : vector<32x1xf32> to vector<32x128xf32>
    %550 = arith.subf %542, %549 : vector<32x128xf32>
    %551 = arith.mulf %550, %550 : vector<32x128xf32>
    %552 = vector.broadcast %2 : vector<1x128xf32> to vector<32x128xf32>
    %553 = arith.mulf %551, %552 : vector<32x128xf32>
    %cst_318 = arith.constant dense<0.000000e+00> : vector<32xf32>
    %554 = vector.multi_reduction <add>, %553, %cst_318 [1] : vector<32x128xf32> to vector<32xf32>
    %555 = vector.shape_cast %554 : vector<32xf32> to vector<32x1xf32>
    %556 = vector.broadcast %20 : f32 to vector<32x1xf32>
    %557 = arith.mulf %555, %556 : vector<32x1xf32>
    %cst_319 = arith.constant 9.99999974E-6 : f32
    %558 = vector.broadcast %cst_319 : f32 to vector<32x1xf32>
    %559 = arith.addf %557, %558 : vector<32x1xf32>
    %560 = math.rsqrt %559 : vector<32x1xf32>
    %561 = vector.broadcast %560 : vector<32x1xf32> to vector<32x128xf32>
    %562 = arith.mulf %550, %561 : vector<32x128xf32>
    %563 = vector.broadcast %2 : vector<1x128xf32> to vector<32x128xf32>
    %564 = arith.mulf %562, %563 : vector<32x128xf32>
    %565 = arith.truncf %564 : vector<32x128xf32> to vector<32x128xbf16>
    %c0_320 = arith.constant 0 : index
    %c0_321 = arith.constant 0 : index
    %566 = vector.load %arg3[%c0_320, %c0_321] : memref<128x1024xbf16, #tpu.memory_space<vmem>>, vector<128x1024xbf16>
    %cst_322 = arith.constant dense<0.000000e+00> : vector<32x1024xf32>
    %567 = tpu.matmul %565, %566, %cst_322 {dimension_numbers = #tpu.dot_dimension_numbers<[1], [0], [0], [1], [0, 0, 1, 1], [], []>} : vector<32x128xbf16>, vector<128x1024xbf16>, vector<32x1024xf32> -> vector<32x1024xf32>
    %cst_323 = arith.constant 0.000000e+00 : f32
    %568 = vector.broadcast %cst_323 : f32 to vector<32x128xf32>
    %c0_324 = arith.constant 0 : index
    %c0_325 = arith.constant 0 : index
    %c0_326 = arith.constant 0 : index
    %569 = vector.load %arg14[%c0_324, %c0_325, %c0_326] : memref<8x32x32xf32, #tpu.memory_space<vmem>>, vector<1x32x32xf32>
    %570 = vector.shape_cast %569 : vector<1x32x32xf32> to vector<32x32xf32>
    %571 = vector.extract_strided_slice %567 {offsets = [0, 0], sizes = [32, 128], strides = [1, 1]} : vector<32x1024xf32> to vector<32x128xf32>
    %cst_327 = arith.constant dense<0.000000e+00> : vector<32x128xf32>
    %572 = tpu.matmul %570, %571, %cst_327 {dimension_numbers = #tpu.dot_dimension_numbers<[1], [0], [0], [1], [0, 0, 1, 1], [], []>} : vector<32x32xf32>, vector<32x128xf32>, vector<32x128xf32> -> vector<32x128xf32>
    %573 = arith.addf %568, %572 : vector<32x128xf32>
    %c1_328 = arith.constant 1 : index
    %c0_329 = arith.constant 0 : index
    %c0_330 = arith.constant 0 : index
    %574 = vector.load %arg14[%c1_328, %c0_329, %c0_330] : memref<8x32x32xf32, #tpu.memory_space<vmem>>, vector<1x32x32xf32>
    %575 = vector.shape_cast %574 : vector<1x32x32xf32> to vector<32x32xf32>
    %576 = vector.extract_strided_slice %567 {offsets = [0, 128], sizes = [32, 128], strides = [1, 1]} : vector<32x1024xf32> to vector<32x128xf32>
    %cst_331 = arith.constant dense<0.000000e+00> : vector<32x128xf32>
    %577 = tpu.matmul %575, %576, %cst_331 {dimension_numbers = #tpu.dot_dimension_numbers<[1], [0], [0], [1], [0, 0, 1, 1], [], []>} : vector<32x32xf32>, vector<32x128xf32>, vector<32x128xf32> -> vector<32x128xf32>
    %578 = arith.addf %573, %577 : vector<32x128xf32>
    %c2_332 = arith.constant 2 : index
    %c0_333 = arith.constant 0 : index
    %c0_334 = arith.constant 0 : index
    %579 = vector.load %arg14[%c2_332, %c0_333, %c0_334] : memref<8x32x32xf32, #tpu.memory_space<vmem>>, vector<1x32x32xf32>
    %580 = vector.shape_cast %579 : vector<1x32x32xf32> to vector<32x32xf32>
    %581 = vector.extract_strided_slice %567 {offsets = [0, 256], sizes = [32, 128], strides = [1, 1]} : vector<32x1024xf32> to vector<32x128xf32>
    %cst_335 = arith.constant dense<0.000000e+00> : vector<32x128xf32>
    %582 = tpu.matmul %580, %581, %cst_335 {dimension_numbers = #tpu.dot_dimension_numbers<[1], [0], [0], [1], [0, 0, 1, 1], [], []>} : vector<32x32xf32>, vector<32x128xf32>, vector<32x128xf32> -> vector<32x128xf32>
    %583 = arith.addf %578, %582 : vector<32x128xf32>
    %c3_336 = arith.constant 3 : index
    %c0_337 = arith.constant 0 : index
    %c0_338 = arith.constant 0 : index
    %584 = vector.load %arg14[%c3_336, %c0_337, %c0_338] : memref<8x32x32xf32, #tpu.memory_space<vmem>>, vector<1x32x32xf32>
    %585 = vector.shape_cast %584 : vector<1x32x32xf32> to vector<32x32xf32>
    %586 = vector.extract_strided_slice %567 {offsets = [0, 384], sizes = [32, 128], strides = [1, 1]} : vector<32x1024xf32> to vector<32x128xf32>
    %cst_339 = arith.constant dense<0.000000e+00> : vector<32x128xf32>
    %587 = tpu.matmul %585, %586, %cst_339 {dimension_numbers = #tpu.dot_dimension_numbers<[1], [0], [0], [1], [0, 0, 1, 1], [], []>} : vector<32x32xf32>, vector<32x128xf32>, vector<32x128xf32> -> vector<32x128xf32>
    %588 = arith.addf %583, %587 : vector<32x128xf32>
    %c4_340 = arith.constant 4 : index
    %c0_341 = arith.constant 0 : index
    %c0_342 = arith.constant 0 : index
    %589 = vector.load %arg14[%c4_340, %c0_341, %c0_342] : memref<8x32x32xf32, #tpu.memory_space<vmem>>, vector<1x32x32xf32>
    %590 = vector.shape_cast %589 : vector<1x32x32xf32> to vector<32x32xf32>
    %591 = vector.extract_strided_slice %567 {offsets = [0, 512], sizes = [32, 128], strides = [1, 1]} : vector<32x1024xf32> to vector<32x128xf32>
    %cst_343 = arith.constant dense<0.000000e+00> : vector<32x128xf32>
    %592 = tpu.matmul %590, %591, %cst_343 {dimension_numbers = #tpu.dot_dimension_numbers<[1], [0], [0], [1], [0, 0, 1, 1], [], []>} : vector<32x32xf32>, vector<32x128xf32>, vector<32x128xf32> -> vector<32x128xf32>
    %593 = arith.addf %588, %592 : vector<32x128xf32>
    %c5_344 = arith.constant 5 : index
    %c0_345 = arith.constant 0 : index
    %c0_346 = arith.constant 0 : index
    %594 = vector.load %arg14[%c5_344, %c0_345, %c0_346] : memref<8x32x32xf32, #tpu.memory_space<vmem>>, vector<1x32x32xf32>
    %595 = vector.shape_cast %594 : vector<1x32x32xf32> to vector<32x32xf32>
    %596 = vector.extract_strided_slice %567 {offsets = [0, 640], sizes = [32, 128], strides = [1, 1]} : vector<32x1024xf32> to vector<32x128xf32>
    %cst_347 = arith.constant dense<0.000000e+00> : vector<32x128xf32>
    %597 = tpu.matmul %595, %596, %cst_347 {dimension_numbers = #tpu.dot_dimension_numbers<[1], [0], [0], [1], [0, 0, 1, 1], [], []>} : vector<32x32xf32>, vector<32x128xf32>, vector<32x128xf32> -> vector<32x128xf32>
    %598 = arith.addf %593, %597 : vector<32x128xf32>
    %c6_348 = arith.constant 6 : index
    %c0_349 = arith.constant 0 : index
    %c0_350 = arith.constant 0 : index
    %599 = vector.load %arg14[%c6_348, %c0_349, %c0_350] : memref<8x32x32xf32, #tpu.memory_space<vmem>>, vector<1x32x32xf32>
    %600 = vector.shape_cast %599 : vector<1x32x32xf32> to vector<32x32xf32>
    %601 = vector.extract_strided_slice %567 {offsets = [0, 768], sizes = [32, 128], strides = [1, 1]} : vector<32x1024xf32> to vector<32x128xf32>
    %cst_351 = arith.constant dense<0.000000e+00> : vector<32x128xf32>
    %602 = tpu.matmul %600, %601, %cst_351 {dimension_numbers = #tpu.dot_dimension_numbers<[1], [0], [0], [1], [0, 0, 1, 1], [], []>} : vector<32x32xf32>, vector<32x128xf32>, vector<32x128xf32> -> vector<32x128xf32>
    %603 = arith.addf %598, %602 : vector<32x128xf32>
    %c7_352 = arith.constant 7 : index
    %c0_353 = arith.constant 0 : index
    %c0_354 = arith.constant 0 : index
    %604 = vector.load %arg14[%c7_352, %c0_353, %c0_354] : memref<8x32x32xf32, #tpu.memory_space<vmem>>, vector<1x32x32xf32>
    %605 = vector.shape_cast %604 : vector<1x32x32xf32> to vector<32x32xf32>
    %606 = vector.extract_strided_slice %567 {offsets = [0, 896], sizes = [32, 128], strides = [1, 1]} : vector<32x1024xf32> to vector<32x128xf32>
    %cst_355 = arith.constant dense<0.000000e+00> : vector<32x128xf32>
    %607 = tpu.matmul %605, %606, %cst_355 {dimension_numbers = #tpu.dot_dimension_numbers<[1], [0], [0], [1], [0, 0, 1, 1], [], []>} : vector<32x32xf32>, vector<32x128xf32>, vector<32x128xf32> -> vector<32x128xf32>
    %608 = arith.addf %603, %607 : vector<32x128xf32>
    %cst_356 = arith.constant 0.000000e+00 : f32
    %609 = vector.broadcast %cst_356 : f32 to vector<32x128xf32>
    %610 = arith.cmpf ogt, %608, %609 : vector<32x128xf32>
    %cst_357 = arith.constant 0.000000e+00 : f32
    %611 = vector.broadcast %cst_357 : f32 to vector<32x128xf32>
    %612 = arith.minimumf %608, %611 : vector<32x128xf32>
    %613 = math.exp %612 : vector<32x128xf32>
    %cst_358 = arith.constant 1.000000e+00 : f32
    %614 = vector.broadcast %cst_358 : f32 to vector<32x128xf32>
    %615 = arith.subf %613, %614 : vector<32x128xf32>
    %616 = arith.select %610, %608, %615 : vector<32x128xi1>, vector<32x128xf32>
    %617 = vector.broadcast %2 : vector<1x128xf32> to vector<32x128xf32>
    %618 = arith.mulf %616, %617 : vector<32x128xf32>
    %cst_359 = arith.constant dense<0.000000e+00> : vector<32xf32>
    %619 = vector.multi_reduction <add>, %618, %cst_359 [1] : vector<32x128xf32> to vector<32xf32>
    %620 = vector.shape_cast %619 : vector<32xf32> to vector<32x1xf32>
    %621 = vector.broadcast %20 : f32 to vector<32x1xf32>
    %622 = arith.mulf %620, %621 : vector<32x1xf32>
    %623 = vector.broadcast %622 : vector<32x1xf32> to vector<32x128xf32>
    %624 = arith.subf %616, %623 : vector<32x128xf32>
    %625 = arith.mulf %624, %624 : vector<32x128xf32>
    %626 = vector.broadcast %2 : vector<1x128xf32> to vector<32x128xf32>
    %627 = arith.mulf %625, %626 : vector<32x128xf32>
    %cst_360 = arith.constant dense<0.000000e+00> : vector<32xf32>
    %628 = vector.multi_reduction <add>, %627, %cst_360 [1] : vector<32x128xf32> to vector<32xf32>
    %629 = vector.shape_cast %628 : vector<32xf32> to vector<32x1xf32>
    %630 = vector.broadcast %20 : f32 to vector<32x1xf32>
    %631 = arith.mulf %629, %630 : vector<32x1xf32>
    %cst_361 = arith.constant 9.99999974E-6 : f32
    %632 = vector.broadcast %cst_361 : f32 to vector<32x1xf32>
    %633 = arith.addf %631, %632 : vector<32x1xf32>
    %634 = math.rsqrt %633 : vector<32x1xf32>
    %635 = vector.broadcast %634 : vector<32x1xf32> to vector<32x128xf32>
    %636 = arith.mulf %624, %635 : vector<32x128xf32>
    %637 = vector.broadcast %2 : vector<1x128xf32> to vector<32x128xf32>
    %638 = arith.mulf %636, %637 : vector<32x128xf32>
    %639 = arith.addf %638, %490 : vector<32x128xf32>
    %640 = arith.truncf %639 : vector<32x128xf32> to vector<32x128xbf16>
    %c0_362 = arith.constant 0 : index
    %c0_363 = arith.constant 0 : index
    %641 = vector.load %arg3[%c0_362, %c0_363] : memref<128x1024xbf16, #tpu.memory_space<vmem>>, vector<128x1024xbf16>
    %cst_364 = arith.constant dense<0.000000e+00> : vector<32x1024xf32>
    %642 = tpu.matmul %640, %641, %cst_364 {dimension_numbers = #tpu.dot_dimension_numbers<[1], [0], [0], [1], [0, 0, 1, 1], [], []>} : vector<32x128xbf16>, vector<128x1024xbf16>, vector<32x1024xf32> -> vector<32x1024xf32>
    %cst_365 = arith.constant 0.000000e+00 : f32
    %643 = vector.broadcast %cst_365 : f32 to vector<32x128xf32>
    %c0_366 = arith.constant 0 : index
    %c0_367 = arith.constant 0 : index
    %c0_368 = arith.constant 0 : index
    %644 = vector.load %arg15[%c0_366, %c0_367, %c0_368] : memref<8x32x32xf32, #tpu.memory_space<vmem>>, vector<1x32x32xf32>
    %645 = vector.shape_cast %644 : vector<1x32x32xf32> to vector<32x32xf32>
    %646 = vector.extract_strided_slice %642 {offsets = [0, 0], sizes = [32, 128], strides = [1, 1]} : vector<32x1024xf32> to vector<32x128xf32>
    %cst_369 = arith.constant dense<0.000000e+00> : vector<32x128xf32>
    %647 = tpu.matmul %645, %646, %cst_369 {dimension_numbers = #tpu.dot_dimension_numbers<[1], [0], [0], [1], [0, 0, 1, 1], [], []>} : vector<32x32xf32>, vector<32x128xf32>, vector<32x128xf32> -> vector<32x128xf32>
    %648 = arith.addf %643, %647 : vector<32x128xf32>
    %c1_370 = arith.constant 1 : index
    %c0_371 = arith.constant 0 : index
    %c0_372 = arith.constant 0 : index
    %649 = vector.load %arg15[%c1_370, %c0_371, %c0_372] : memref<8x32x32xf32, #tpu.memory_space<vmem>>, vector<1x32x32xf32>
    %650 = vector.shape_cast %649 : vector<1x32x32xf32> to vector<32x32xf32>
    %651 = vector.extract_strided_slice %642 {offsets = [0, 128], sizes = [32, 128], strides = [1, 1]} : vector<32x1024xf32> to vector<32x128xf32>
    %cst_373 = arith.constant dense<0.000000e+00> : vector<32x128xf32>
    %652 = tpu.matmul %650, %651, %cst_373 {dimension_numbers = #tpu.dot_dimension_numbers<[1], [0], [0], [1], [0, 0, 1, 1], [], []>} : vector<32x32xf32>, vector<32x128xf32>, vector<32x128xf32> -> vector<32x128xf32>
    %653 = arith.addf %648, %652 : vector<32x128xf32>
    %c2_374 = arith.constant 2 : index
    %c0_375 = arith.constant 0 : index
    %c0_376 = arith.constant 0 : index
    %654 = vector.load %arg15[%c2_374, %c0_375, %c0_376] : memref<8x32x32xf32, #tpu.memory_space<vmem>>, vector<1x32x32xf32>
    %655 = vector.shape_cast %654 : vector<1x32x32xf32> to vector<32x32xf32>
    %656 = vector.extract_strided_slice %642 {offsets = [0, 256], sizes = [32, 128], strides = [1, 1]} : vector<32x1024xf32> to vector<32x128xf32>
    %cst_377 = arith.constant dense<0.000000e+00> : vector<32x128xf32>
    %657 = tpu.matmul %655, %656, %cst_377 {dimension_numbers = #tpu.dot_dimension_numbers<[1], [0], [0], [1], [0, 0, 1, 1], [], []>} : vector<32x32xf32>, vector<32x128xf32>, vector<32x128xf32> -> vector<32x128xf32>
    %658 = arith.addf %653, %657 : vector<32x128xf32>
    %c3_378 = arith.constant 3 : index
    %c0_379 = arith.constant 0 : index
    %c0_380 = arith.constant 0 : index
    %659 = vector.load %arg15[%c3_378, %c0_379, %c0_380] : memref<8x32x32xf32, #tpu.memory_space<vmem>>, vector<1x32x32xf32>
    %660 = vector.shape_cast %659 : vector<1x32x32xf32> to vector<32x32xf32>
    %661 = vector.extract_strided_slice %642 {offsets = [0, 384], sizes = [32, 128], strides = [1, 1]} : vector<32x1024xf32> to vector<32x128xf32>
    %cst_381 = arith.constant dense<0.000000e+00> : vector<32x128xf32>
    %662 = tpu.matmul %660, %661, %cst_381 {dimension_numbers = #tpu.dot_dimension_numbers<[1], [0], [0], [1], [0, 0, 1, 1], [], []>} : vector<32x32xf32>, vector<32x128xf32>, vector<32x128xf32> -> vector<32x128xf32>
    %663 = arith.addf %658, %662 : vector<32x128xf32>
    %c4_382 = arith.constant 4 : index
    %c0_383 = arith.constant 0 : index
    %c0_384 = arith.constant 0 : index
    %664 = vector.load %arg15[%c4_382, %c0_383, %c0_384] : memref<8x32x32xf32, #tpu.memory_space<vmem>>, vector<1x32x32xf32>
    %665 = vector.shape_cast %664 : vector<1x32x32xf32> to vector<32x32xf32>
    %666 = vector.extract_strided_slice %642 {offsets = [0, 512], sizes = [32, 128], strides = [1, 1]} : vector<32x1024xf32> to vector<32x128xf32>
    %cst_385 = arith.constant dense<0.000000e+00> : vector<32x128xf32>
    %667 = tpu.matmul %665, %666, %cst_385 {dimension_numbers = #tpu.dot_dimension_numbers<[1], [0], [0], [1], [0, 0, 1, 1], [], []>} : vector<32x32xf32>, vector<32x128xf32>, vector<32x128xf32> -> vector<32x128xf32>
    %668 = arith.addf %663, %667 : vector<32x128xf32>
    %c5_386 = arith.constant 5 : index
    %c0_387 = arith.constant 0 : index
    %c0_388 = arith.constant 0 : index
    %669 = vector.load %arg15[%c5_386, %c0_387, %c0_388] : memref<8x32x32xf32, #tpu.memory_space<vmem>>, vector<1x32x32xf32>
    %670 = vector.shape_cast %669 : vector<1x32x32xf32> to vector<32x32xf32>
    %671 = vector.extract_strided_slice %642 {offsets = [0, 640], sizes = [32, 128], strides = [1, 1]} : vector<32x1024xf32> to vector<32x128xf32>
    %cst_389 = arith.constant dense<0.000000e+00> : vector<32x128xf32>
    %672 = tpu.matmul %670, %671, %cst_389 {dimension_numbers = #tpu.dot_dimension_numbers<[1], [0], [0], [1], [0, 0, 1, 1], [], []>} : vector<32x32xf32>, vector<32x128xf32>, vector<32x128xf32> -> vector<32x128xf32>
    %673 = arith.addf %668, %672 : vector<32x128xf32>
    %c6_390 = arith.constant 6 : index
    %c0_391 = arith.constant 0 : index
    %c0_392 = arith.constant 0 : index
    %674 = vector.load %arg15[%c6_390, %c0_391, %c0_392] : memref<8x32x32xf32, #tpu.memory_space<vmem>>, vector<1x32x32xf32>
    %675 = vector.shape_cast %674 : vector<1x32x32xf32> to vector<32x32xf32>
    %676 = vector.extract_strided_slice %642 {offsets = [0, 768], sizes = [32, 128], strides = [1, 1]} : vector<32x1024xf32> to vector<32x128xf32>
    %cst_393 = arith.constant dense<0.000000e+00> : vector<32x128xf32>
    %677 = tpu.matmul %675, %676, %cst_393 {dimension_numbers = #tpu.dot_dimension_numbers<[1], [0], [0], [1], [0, 0, 1, 1], [], []>} : vector<32x32xf32>, vector<32x128xf32>, vector<32x128xf32> -> vector<32x128xf32>
    %678 = arith.addf %673, %677 : vector<32x128xf32>
    %c7_394 = arith.constant 7 : index
    %c0_395 = arith.constant 0 : index
    %c0_396 = arith.constant 0 : index
    %679 = vector.load %arg15[%c7_394, %c0_395, %c0_396] : memref<8x32x32xf32, #tpu.memory_space<vmem>>, vector<1x32x32xf32>
    %680 = vector.shape_cast %679 : vector<1x32x32xf32> to vector<32x32xf32>
    %681 = vector.extract_strided_slice %642 {offsets = [0, 896], sizes = [32, 128], strides = [1, 1]} : vector<32x1024xf32> to vector<32x128xf32>
    %cst_397 = arith.constant dense<0.000000e+00> : vector<32x128xf32>
    %682 = tpu.matmul %680, %681, %cst_397 {dimension_numbers = #tpu.dot_dimension_numbers<[1], [0], [0], [1], [0, 0, 1, 1], [], []>} : vector<32x32xf32>, vector<32x128xf32>, vector<32x128xf32> -> vector<32x128xf32>
    %683 = arith.addf %678, %682 : vector<32x128xf32>
    %cst_398 = arith.constant 0.000000e+00 : f32
    %684 = vector.broadcast %cst_398 : f32 to vector<32x128xf32>
    %685 = arith.cmpf ogt, %683, %684 : vector<32x128xf32>
    %cst_399 = arith.constant 0.000000e+00 : f32
    %686 = vector.broadcast %cst_399 : f32 to vector<32x128xf32>
    %687 = arith.minimumf %683, %686 : vector<32x128xf32>
    %688 = math.exp %687 : vector<32x128xf32>
    %cst_400 = arith.constant 1.000000e+00 : f32
    %689 = vector.broadcast %cst_400 : f32 to vector<32x128xf32>
    %690 = arith.subf %688, %689 : vector<32x128xf32>
    %691 = arith.select %685, %683, %690 : vector<32x128xi1>, vector<32x128xf32>
    %692 = vector.broadcast %2 : vector<1x128xf32> to vector<32x128xf32>
    %693 = arith.mulf %691, %692 : vector<32x128xf32>
    %cst_401 = arith.constant dense<0.000000e+00> : vector<32xf32>
    %694 = vector.multi_reduction <add>, %693, %cst_401 [1] : vector<32x128xf32> to vector<32xf32>
    %695 = vector.shape_cast %694 : vector<32xf32> to vector<32x1xf32>
    %696 = vector.broadcast %20 : f32 to vector<32x1xf32>
    %697 = arith.mulf %695, %696 : vector<32x1xf32>
    %698 = vector.broadcast %697 : vector<32x1xf32> to vector<32x128xf32>
    %699 = arith.subf %691, %698 : vector<32x128xf32>
    %700 = arith.mulf %699, %699 : vector<32x128xf32>
    %701 = vector.broadcast %2 : vector<1x128xf32> to vector<32x128xf32>
    %702 = arith.mulf %700, %701 : vector<32x128xf32>
    %cst_402 = arith.constant dense<0.000000e+00> : vector<32xf32>
    %703 = vector.multi_reduction <add>, %702, %cst_402 [1] : vector<32x128xf32> to vector<32xf32>
    %704 = vector.shape_cast %703 : vector<32xf32> to vector<32x1xf32>
    %705 = vector.broadcast %20 : f32 to vector<32x1xf32>
    %706 = arith.mulf %704, %705 : vector<32x1xf32>
    %cst_403 = arith.constant 9.99999974E-6 : f32
    %707 = vector.broadcast %cst_403 : f32 to vector<32x1xf32>
    %708 = arith.addf %706, %707 : vector<32x1xf32>
    %709 = math.rsqrt %708 : vector<32x1xf32>
    %710 = vector.broadcast %709 : vector<32x1xf32> to vector<32x128xf32>
    %711 = arith.mulf %699, %710 : vector<32x128xf32>
    %712 = vector.broadcast %2 : vector<1x128xf32> to vector<32x128xf32>
    %713 = arith.mulf %711, %712 : vector<32x128xf32>
    %714 = arith.truncf %713 : vector<32x128xf32> to vector<32x128xbf16>
    %c0_404 = arith.constant 0 : index
    %c0_405 = arith.constant 0 : index
    %715 = vector.load %arg3[%c0_404, %c0_405] : memref<128x1024xbf16, #tpu.memory_space<vmem>>, vector<128x1024xbf16>
    %cst_406 = arith.constant dense<0.000000e+00> : vector<32x1024xf32>
    %716 = tpu.matmul %714, %715, %cst_406 {dimension_numbers = #tpu.dot_dimension_numbers<[1], [0], [0], [1], [0, 0, 1, 1], [], []>} : vector<32x128xbf16>, vector<128x1024xbf16>, vector<32x1024xf32> -> vector<32x1024xf32>
    %cst_407 = arith.constant 0.000000e+00 : f32
    %717 = vector.broadcast %cst_407 : f32 to vector<32x128xf32>
    %c0_408 = arith.constant 0 : index
    %c0_409 = arith.constant 0 : index
    %c0_410 = arith.constant 0 : index
    %718 = vector.load %arg16[%c0_408, %c0_409, %c0_410] : memref<8x32x32xf32, #tpu.memory_space<vmem>>, vector<1x32x32xf32>
    %719 = vector.shape_cast %718 : vector<1x32x32xf32> to vector<32x32xf32>
    %720 = vector.extract_strided_slice %716 {offsets = [0, 0], sizes = [32, 128], strides = [1, 1]} : vector<32x1024xf32> to vector<32x128xf32>
    %cst_411 = arith.constant dense<0.000000e+00> : vector<32x128xf32>
    %721 = tpu.matmul %719, %720, %cst_411 {dimension_numbers = #tpu.dot_dimension_numbers<[1], [0], [0], [1], [0, 0, 1, 1], [], []>} : vector<32x32xf32>, vector<32x128xf32>, vector<32x128xf32> -> vector<32x128xf32>
    %722 = arith.addf %717, %721 : vector<32x128xf32>
    %c1_412 = arith.constant 1 : index
    %c0_413 = arith.constant 0 : index
    %c0_414 = arith.constant 0 : index
    %723 = vector.load %arg16[%c1_412, %c0_413, %c0_414] : memref<8x32x32xf32, #tpu.memory_space<vmem>>, vector<1x32x32xf32>
    %724 = vector.shape_cast %723 : vector<1x32x32xf32> to vector<32x32xf32>
    %725 = vector.extract_strided_slice %716 {offsets = [0, 128], sizes = [32, 128], strides = [1, 1]} : vector<32x1024xf32> to vector<32x128xf32>
    %cst_415 = arith.constant dense<0.000000e+00> : vector<32x128xf32>
    %726 = tpu.matmul %724, %725, %cst_415 {dimension_numbers = #tpu.dot_dimension_numbers<[1], [0], [0], [1], [0, 0, 1, 1], [], []>} : vector<32x32xf32>, vector<32x128xf32>, vector<32x128xf32> -> vector<32x128xf32>
    %727 = arith.addf %722, %726 : vector<32x128xf32>
    %c2_416 = arith.constant 2 : index
    %c0_417 = arith.constant 0 : index
    %c0_418 = arith.constant 0 : index
    %728 = vector.load %arg16[%c2_416, %c0_417, %c0_418] : memref<8x32x32xf32, #tpu.memory_space<vmem>>, vector<1x32x32xf32>
    %729 = vector.shape_cast %728 : vector<1x32x32xf32> to vector<32x32xf32>
    %730 = vector.extract_strided_slice %716 {offsets = [0, 256], sizes = [32, 128], strides = [1, 1]} : vector<32x1024xf32> to vector<32x128xf32>
    %cst_419 = arith.constant dense<0.000000e+00> : vector<32x128xf32>
    %731 = tpu.matmul %729, %730, %cst_419 {dimension_numbers = #tpu.dot_dimension_numbers<[1], [0], [0], [1], [0, 0, 1, 1], [], []>} : vector<32x32xf32>, vector<32x128xf32>, vector<32x128xf32> -> vector<32x128xf32>
    %732 = arith.addf %727, %731 : vector<32x128xf32>
    %c3_420 = arith.constant 3 : index
    %c0_421 = arith.constant 0 : index
    %c0_422 = arith.constant 0 : index
    %733 = vector.load %arg16[%c3_420, %c0_421, %c0_422] : memref<8x32x32xf32, #tpu.memory_space<vmem>>, vector<1x32x32xf32>
    %734 = vector.shape_cast %733 : vector<1x32x32xf32> to vector<32x32xf32>
    %735 = vector.extract_strided_slice %716 {offsets = [0, 384], sizes = [32, 128], strides = [1, 1]} : vector<32x1024xf32> to vector<32x128xf32>
    %cst_423 = arith.constant dense<0.000000e+00> : vector<32x128xf32>
    %736 = tpu.matmul %734, %735, %cst_423 {dimension_numbers = #tpu.dot_dimension_numbers<[1], [0], [0], [1], [0, 0, 1, 1], [], []>} : vector<32x32xf32>, vector<32x128xf32>, vector<32x128xf32> -> vector<32x128xf32>
    %737 = arith.addf %732, %736 : vector<32x128xf32>
    %c4_424 = arith.constant 4 : index
    %c0_425 = arith.constant 0 : index
    %c0_426 = arith.constant 0 : index
    %738 = vector.load %arg16[%c4_424, %c0_425, %c0_426] : memref<8x32x32xf32, #tpu.memory_space<vmem>>, vector<1x32x32xf32>
    %739 = vector.shape_cast %738 : vector<1x32x32xf32> to vector<32x32xf32>
    %740 = vector.extract_strided_slice %716 {offsets = [0, 512], sizes = [32, 128], strides = [1, 1]} : vector<32x1024xf32> to vector<32x128xf32>
    %cst_427 = arith.constant dense<0.000000e+00> : vector<32x128xf32>
    %741 = tpu.matmul %739, %740, %cst_427 {dimension_numbers = #tpu.dot_dimension_numbers<[1], [0], [0], [1], [0, 0, 1, 1], [], []>} : vector<32x32xf32>, vector<32x128xf32>, vector<32x128xf32> -> vector<32x128xf32>
    %742 = arith.addf %737, %741 : vector<32x128xf32>
    %c5_428 = arith.constant 5 : index
    %c0_429 = arith.constant 0 : index
    %c0_430 = arith.constant 0 : index
    %743 = vector.load %arg16[%c5_428, %c0_429, %c0_430] : memref<8x32x32xf32, #tpu.memory_space<vmem>>, vector<1x32x32xf32>
    %744 = vector.shape_cast %743 : vector<1x32x32xf32> to vector<32x32xf32>
    %745 = vector.extract_strided_slice %716 {offsets = [0, 640], sizes = [32, 128], strides = [1, 1]} : vector<32x1024xf32> to vector<32x128xf32>
    %cst_431 = arith.constant dense<0.000000e+00> : vector<32x128xf32>
    %746 = tpu.matmul %744, %745, %cst_431 {dimension_numbers = #tpu.dot_dimension_numbers<[1], [0], [0], [1], [0, 0, 1, 1], [], []>} : vector<32x32xf32>, vector<32x128xf32>, vector<32x128xf32> -> vector<32x128xf32>
    %747 = arith.addf %742, %746 : vector<32x128xf32>
    %c6_432 = arith.constant 6 : index
    %c0_433 = arith.constant 0 : index
    %c0_434 = arith.constant 0 : index
    %748 = vector.load %arg16[%c6_432, %c0_433, %c0_434] : memref<8x32x32xf32, #tpu.memory_space<vmem>>, vector<1x32x32xf32>
    %749 = vector.shape_cast %748 : vector<1x32x32xf32> to vector<32x32xf32>
    %750 = vector.extract_strided_slice %716 {offsets = [0, 768], sizes = [32, 128], strides = [1, 1]} : vector<32x1024xf32> to vector<32x128xf32>
    %cst_435 = arith.constant dense<0.000000e+00> : vector<32x128xf32>
    %751 = tpu.matmul %749, %750, %cst_435 {dimension_numbers = #tpu.dot_dimension_numbers<[1], [0], [0], [1], [0, 0, 1, 1], [], []>} : vector<32x32xf32>, vector<32x128xf32>, vector<32x128xf32> -> vector<32x128xf32>
    %752 = arith.addf %747, %751 : vector<32x128xf32>
    %c7_436 = arith.constant 7 : index
    %c0_437 = arith.constant 0 : index
    %c0_438 = arith.constant 0 : index
    %753 = vector.load %arg16[%c7_436, %c0_437, %c0_438] : memref<8x32x32xf32, #tpu.memory_space<vmem>>, vector<1x32x32xf32>
    %754 = vector.shape_cast %753 : vector<1x32x32xf32> to vector<32x32xf32>
    %755 = vector.extract_strided_slice %716 {offsets = [0, 896], sizes = [32, 128], strides = [1, 1]} : vector<32x1024xf32> to vector<32x128xf32>
    %cst_439 = arith.constant dense<0.000000e+00> : vector<32x128xf32>
    %756 = tpu.matmul %754, %755, %cst_439 {dimension_numbers = #tpu.dot_dimension_numbers<[1], [0], [0], [1], [0, 0, 1, 1], [], []>} : vector<32x32xf32>, vector<32x128xf32>, vector<32x128xf32> -> vector<32x128xf32>
    %757 = arith.addf %752, %756 : vector<32x128xf32>
    %cst_440 = arith.constant 0.000000e+00 : f32
    %758 = vector.broadcast %cst_440 : f32 to vector<32x128xf32>
    %759 = arith.cmpf ogt, %757, %758 : vector<32x128xf32>
    %cst_441 = arith.constant 0.000000e+00 : f32
    %760 = vector.broadcast %cst_441 : f32 to vector<32x128xf32>
    %761 = arith.minimumf %757, %760 : vector<32x128xf32>
    %762 = math.exp %761 : vector<32x128xf32>
    %cst_442 = arith.constant 1.000000e+00 : f32
    %763 = vector.broadcast %cst_442 : f32 to vector<32x128xf32>
    %764 = arith.subf %762, %763 : vector<32x128xf32>
    %765 = arith.select %759, %757, %764 : vector<32x128xi1>, vector<32x128xf32>
    %766 = vector.broadcast %2 : vector<1x128xf32> to vector<32x128xf32>
    %767 = arith.mulf %765, %766 : vector<32x128xf32>
    %cst_443 = arith.constant dense<0.000000e+00> : vector<32xf32>
    %768 = vector.multi_reduction <add>, %767, %cst_443 [1] : vector<32x128xf32> to vector<32xf32>
    %769 = vector.shape_cast %768 : vector<32xf32> to vector<32x1xf32>
    %770 = vector.broadcast %20 : f32 to vector<32x1xf32>
    %771 = arith.mulf %769, %770 : vector<32x1xf32>
    %772 = vector.broadcast %771 : vector<32x1xf32> to vector<32x128xf32>
    %773 = arith.subf %765, %772 : vector<32x128xf32>
    %774 = arith.mulf %773, %773 : vector<32x128xf32>
    %775 = vector.broadcast %2 : vector<1x128xf32> to vector<32x128xf32>
    %776 = arith.mulf %774, %775 : vector<32x128xf32>
    %cst_444 = arith.constant dense<0.000000e+00> : vector<32xf32>
    %777 = vector.multi_reduction <add>, %776, %cst_444 [1] : vector<32x128xf32> to vector<32xf32>
    %778 = vector.shape_cast %777 : vector<32xf32> to vector<32x1xf32>
    %779 = vector.broadcast %20 : f32 to vector<32x1xf32>
    %780 = arith.mulf %778, %779 : vector<32x1xf32>
    %cst_445 = arith.constant 9.99999974E-6 : f32
    %781 = vector.broadcast %cst_445 : f32 to vector<32x1xf32>
    %782 = arith.addf %780, %781 : vector<32x1xf32>
    %783 = math.rsqrt %782 : vector<32x1xf32>
    %784 = vector.broadcast %783 : vector<32x1xf32> to vector<32x128xf32>
    %785 = arith.mulf %773, %784 : vector<32x128xf32>
    %786 = vector.broadcast %2 : vector<1x128xf32> to vector<32x128xf32>
    %787 = arith.mulf %785, %786 : vector<32x128xf32>
    %788 = arith.addf %787, %490 : vector<32x128xf32>
    %c0_446 = arith.constant 0 : index
    %c0_447 = arith.constant 0 : index
    %789 = vector.load %arg25[%c0_446, %c0_447] : memref<1x128xf32, #tpu.memory_space<vmem>>, vector<1x128xf32>
    %c0_448 = arith.constant 0 : index
    %c0_449 = arith.constant 0 : index
    %790 = vector.load %arg23[%c0_448, %c0_449] : memref<128x768xf32, #tpu.memory_space<vmem>>, vector<128x768xf32>
    %cst_450 = arith.constant dense<0.000000e+00> : vector<32x768xf32>
    %791 = tpu.matmul %788, %790, %cst_450 {dimension_numbers = #tpu.dot_dimension_numbers<[1], [0], [0], [1], [0, 0, 1, 1], [], []>} : vector<32x128xf32>, vector<128x768xf32>, vector<32x768xf32> -> vector<32x768xf32>
    %c0_451 = arith.constant 0 : index
    %c0_452 = arith.constant 0 : index
    %792 = vector.load %arg24[%c0_451, %c0_452] : memref<1x768xf32, #tpu.memory_space<vmem>>, vector<1x768xf32>
    %793 = vector.broadcast %792 : vector<1x768xf32> to vector<32x768xf32>
    %794 = arith.addf %791, %793 : vector<32x768xf32>
    %795 = vector.extract_strided_slice %794 {offsets = [0, 0], sizes = [32, 128], strides = [1, 1]} : vector<32x768xf32> to vector<32x128xf32>
    %796 = vector.extract_strided_slice %794 {offsets = [0, 128], sizes = [32, 128], strides = [1, 1]} : vector<32x768xf32> to vector<32x128xf32>
    %797 = arith.maximumf %795, %796 : vector<32x128xf32>
    %798 = vector.extract_strided_slice %794 {offsets = [0, 256], sizes = [32, 128], strides = [1, 1]} : vector<32x768xf32> to vector<32x128xf32>
    %799 = arith.maximumf %797, %798 : vector<32x128xf32>
    %800 = vector.extract_strided_slice %794 {offsets = [0, 384], sizes = [32, 128], strides = [1, 1]} : vector<32x768xf32> to vector<32x128xf32>
    %801 = arith.maximumf %799, %800 : vector<32x128xf32>
    %802 = vector.extract_strided_slice %794 {offsets = [0, 512], sizes = [32, 128], strides = [1, 1]} : vector<32x768xf32> to vector<32x128xf32>
    %803 = arith.maximumf %801, %802 : vector<32x128xf32>
    %804 = vector.extract_strided_slice %794 {offsets = [0, 640], sizes = [32, 128], strides = [1, 1]} : vector<32x768xf32> to vector<32x128xf32>
    %805 = arith.maximumf %803, %804 : vector<32x128xf32>
    %cst_453 = arith.constant 0.000000e+00 : f32
    %806 = vector.broadcast %cst_453 : f32 to vector<1x128xf32>
    %807 = arith.cmpf ogt, %789, %806 : vector<1x128xf32>
    %cst_454 = arith.constant 0.000000e+00 : f32
    %808 = vector.shape_cast %807 : vector<1x128xi1> to vector<1x128xi1>
    %809 = vector.broadcast %808 : vector<1x128xi1> to vector<32x128xi1>
    %810 = vector.broadcast %cst_454 : f32 to vector<32x128xf32>
    %811 = arith.select %809, %805, %810 : vector<32x128xi1>, vector<32x128xf32>
    %c0_455 = arith.constant 0 : index
    %c0_456 = arith.constant 0 : index
    %812 = vector.load %arg26[%c0_455, %c0_456] : memref<32x128xf32, #tpu.memory_space<vmem>>, vector<32x128xf32>
    tpu.vector_store %arg26[%c0_455, %c0_456], %811 {strides = array<i32>} : memref<32x128xf32, #tpu.memory_space<vmem>>, vector<32x128xf32>,
    return
  }
}

</mosaic_0001>

<llo_original>
// kernel: tpu_custom_call.1
$region0: #{tpu_custom_call.1}
  #allocation0 [shape = 'u32[]', space=smem, size = 0x4, offset = 0x4, fixed_abs, tag = 'smem constant byte address 0x4 - core index']
  #allocation1 [shape = 'u32[72,128]{1,0:T(1,128)}', space=vmem, size = 0x9000, scoped, tag = 'internal scratch']
  %s0 = inlined_call_operand.vmem [shape: f32[8,128], index: 0, kind: input, shape index: {}]
  %s1 = inlined_call_operand.hbm [shape: bf16[128,1024], index: 1, kind: input, shape index: {}]
  %s2 = inlined_call_operand.hbm [shape: bf16[128,1024], index: 2, kind: input, shape index: {}]
  %s3 = inlined_call_operand.hbm [shape: bf16[128,1024], index: 3, kind: input, shape index: {}]
  %s4 = inlined_call_operand.vmem [shape: f32[1,128], index: 4, kind: input, shape index: {}]
  %s5 = inlined_call_operand.vmem [shape: f32[1,128], index: 5, kind: input, shape index: {}]
  %s6 = inlined_call_operand.vmem [shape: f32[1,128], index: 6, kind: input, shape index: {}]
  %s7 = inlined_call_operand.vmem [shape: f32[8,8,8], index: 7, kind: input, shape index: {}]
  %s8 = inlined_call_operand.vmem [shape: f32[8,16,8], index: 8, kind: input, shape index: {}]
  %s9 = inlined_call_operand.vmem [shape: f32[8,16,16], index: 9, kind: input, shape index: {}]
  %s10 = inlined_call_operand.hbm [shape: f32[8,16,16], index: 10, kind: input, shape index: {}]
  %s11 = inlined_call_operand.hbm [shape: f32[8,16,16], index: 11, kind: input, shape index: {}]
  %s12 = inlined_call_operand.vmem [shape: f32[8,32,16], index: 12, kind: input, shape index: {}]
  %s13 = inlined_call_operand.vmem [shape: f32[8,32,32], index: 13, kind: input, shape index: {}]
  %s14 = inlined_call_operand.hbm [shape: f32[8,32,32], index: 14, kind: input, shape index: {}]
  %s15 = inlined_call_operand.hbm [shape: f32[8,32,32], index: 15, kind: input, shape index: {}]
  %s16 = inlined_call_operand.hbm [shape: f32[8,32,32], index: 16, kind: input, shape index: {}]
  %s17 = inlined_call_operand.hbm [shape: f32[128,128], index: 17, kind: input, shape index: {}]
  %s18 = inlined_call_operand.vmem [shape: f32[1,128], index: 18, kind: input, shape index: {}]
  %s19 = inlined_call_operand.vmem [shape: f32[1,128], index: 19, kind: input, shape index: {}]
  %s20 = inlined_call_operand.hbm [shape: f32[128,128], index: 20, kind: input, shape index: {}]
  %s21 = inlined_call_operand.vmem [shape: f32[1,128], index: 21, kind: input, shape index: {}]
  %s22 = inlined_call_operand.hbm [shape: f32[1,128], index: 22, kind: input, shape index: {}]
  %s23 = inlined_call_operand.hbm [shape: f32[128,768], index: 23, kind: input, shape index: {}]
  %s24 = inlined_call_operand.vmem [shape: f32[1,768], index: 24, kind: input, shape index: {}]
  %s25 = inlined_call_operand.hbm [shape: f32[1,128], index: 25, kind: input, shape index: {}]
  %s26 = inlined_call_operand.hbm [shape: f32[32,128], index: 26, kind: output, shape index: {}]
  %s27 = sld [smem:[#allocation0]]
  $region166: #{tpu_custom_call.1} parent=0
    _
  %s29 = ssub.s32 1, %s27
  %s30 = scalar_select 0, %s29, %s27
  $region1: #{tpu_custom_call.1} parent=0
    #allocation2 [shape = 'u8[262144]{0}', space=vmem, size = 0x40000, scoped, tag = 'input window, operand 1, single buffered']
    #allocation3 [shape = 's32[1]{0}', space=sflag, size = 0x4, scoped, tag = 'scoped memory for tpu_custom_call.1']
    #allocation4 [shape = 's32[1]{0}', space=sflag, size = 0x4, scoped, tag = 'scoped memory for tpu_custom_call.1']
    #allocation5 [shape = 'u8[262144]{0}', space=vmem, size = 0x40000, scoped, tag = 'input window, operand 2, single buffered']
    #allocation6 [shape = 's32[1]{0}', space=sflag, size = 0x4, scoped, tag = 'scoped memory for tpu_custom_call.1']
    #allocation7 [shape = 'u8[262144]{0}', space=vmem, size = 0x40000, scoped, tag = 'input window, operand 3, single buffered']
    #allocation8 [shape = 'u8[65536]{0}', space=vmem, size = 0x10000, scoped, tag = 'input window, operand 10, single buffered']
    #allocation9 [shape = 's32[1]{0}', space=sflag, size = 0x4, scoped, tag = 'scoped memory for tpu_custom_call.1']
    #allocation10 [shape = 'u8[65536]{0}', space=vmem, size = 0x10000, scoped, tag = 'input window, operand 11, single buffered']
    #allocation11 [shape = 'u8[131072]{0}', space=vmem, size = 0x20000, scoped, tag = 'input window, operand 14, single buffered']
    #allocation12 [shape = 's32[1]{0}', space=sflag, size = 0x4, scoped, tag = 'scoped memory for tpu_custom_call.1']
    #allocation13 [shape = 'u8[131072]{0}', space=vmem, size = 0x20000, scoped, tag = 'input window, operand 15, single buffered']
    #allocation14 [shape = 'u8[131072]{0}', space=vmem, size = 0x20000, scoped, tag = 'input window, operand 16, single buffered']
    #allocation15 [shape = 's32[1]{0}', space=sflag, size = 0x4, scoped, tag = 'scoped memory for tpu_custom_call.1']
    #allocation16 [shape = 'u8[65536]{0}', space=vmem, size = 0x10000, scoped, tag = 'input window, operand 17, single buffered']
    #allocation17 [shape = 'u8[65536]{0}', space=vmem, size = 0x10000, scoped, tag = 'input window, operand 20, single buffered']
    #allocation18 [shape = 's32[1]{0}', space=sflag, size = 0x4, scoped, tag = 'scoped memory for tpu_custom_call.1']
    #allocation19 [shape = 'u8[512]{0}', space=vmem, size = 0x400, scoped, tag = 'input window, operand 22, single buffered']
    #allocation20 [shape = 'u8[393216]{0}', space=vmem, size = 0x60000, scoped, tag = 'input window, operand 23, single buffered']
    #allocation21 [shape = 's32[1]{0}', space=sflag, size = 0x4, scoped, tag = 'scoped memory for tpu_custom_call.1']
    #allocation22 [shape = 'u8[512]{0}', space=vmem, size = 0x400, scoped, tag = 'input window, operand 25, single buffered']
    #allocation23 [shape = 'u8[16384]{0}', space=vmem, size = 0x4000, scoped, tag = 'output window, operand 0, single buffered']
    %31 = vsyncpa [#allocation3], 0
    %32 = vsyncpa [#allocation6], 0
    %33 = vsyncpa [#allocation9], 0
    %34 = vsyncpa [#allocation12], 0
    %35 = vsyncpa [#allocation15], 0
    %36 = vsyncpa [#allocation18], 0
    %37 = vsyncpa [#allocation21], 0
    %38 = vsyncpa [#allocation4], 0
    // Predicated region
    $region2: #{tpu_custom_call.1} parent=1 // pred_check
      _
    $region3: #{tpu_custom_call.1} parent=1 // pred_check_branch
      %40 = sbr.rel (0) target = $region5
    $region4: #{tpu_custom_call.1} parent=1 // pred_region
      _
    $region5: #{tpu_custom_call.1} parent=1 // pred_fallthru
      _
    // Predicated region
    $region6: #{tpu_custom_call.1} parent=1 // pred_check
      _
    $region7: #{tpu_custom_call.1} parent=1 // pred_check_branch
      %42 = sbr.rel (0) target = $region9
    $region8: #{tpu_custom_call.1} parent=1 // pred_region
      %44 = vsyncadd [#allocation3], 0
      %s45 = sshll.u32 %s1, 4
      %s46 = int_to_ptr.hbm [resolvable:$true] %s45
      %s47 = sshll.u32 [#allocation2], 4
      %s48 = int_to_ptr.vmem [resolvable:$true] %s47
      %53 = dma.hbm_to_vmem [thread:$0]  %s46, 8192, %s48, [#allocation3], 512, 512, 32
    $region9: #{tpu_custom_call.1} parent=1 // pred_fallthru
      _
    // Predicated region
    $region10: #{tpu_custom_call.1} parent=1 // pred_check
      _
    $region11: #{tpu_custom_call.1} parent=1 // pred_check_branch
      %55 = sbr.rel (0) target = $region13
    $region12: #{tpu_custom_call.1} parent=1 // pred_region
      %57 = vsyncadd [#allocation6], 0
      %s58 = sshll.u32 %s2, 4
      %s59 = int_to_ptr.hbm [resolvable:$true] %s58
      %s60 = sshll.u32 [#allocation5], 4
      %s61 = int_to_ptr.vmem [resolvable:$true] %s60
      %66 = dma.hbm_to_vmem [thread:$0]  %s59, 8192, %s61, [#allocation6], 512, 512, 32
    $region13: #{tpu_custom_call.1} parent=1 // pred_fallthru
      _
    // Predicated region
    $region14: #{tpu_custom_call.1} parent=1 // pred_check
      _
    $region15: #{tpu_custom_call.1} parent=1 // pred_check_branch
      %68 = sbr.rel (0) target = $region17
    $region16: #{tpu_custom_call.1} parent=1 // pred_region
      %70 = vsyncadd [#allocation6], 0
      %s71 = sshll.u32 %s3, 4
      %s72 = int_to_ptr.hbm [resolvable:$true] %s71
      %s73 = sshll.u32 [#allocation7], 4
      %s74 = int_to_ptr.vmem [resolvable:$true] %s73
      %79 = dma.hbm_to_vmem [thread:$0]  %s72, 8192, %s74, [#allocation6], 512, 512, 32
    $region17: #{tpu_custom_call.1} parent=1 // pred_fallthru
      _
    // Predicated region
    $region18: #{tpu_custom_call.1} parent=1 // pred_check
      _
    $region19: #{tpu_custom_call.1} parent=1 // pred_check_branch
      %81 = sbr.rel (0) target = $region21
    $region20: #{tpu_custom_call.1} parent=1 // pred_region
      _
    $region21: #{tpu_custom_call.1} parent=1 // pred_fallthru
      _
    // Predicated region
    $region22: #{tpu_custom_call.1} parent=1 // pred_check
      _
    $region23: #{tpu_custom_call.1} parent=1 // pred_check_branch
      %83 = sbr.rel (0) target = $region25
    $region24: #{tpu_custom_call.1} parent=1 // pred_region
      _
    $region25: #{tpu_custom_call.1} parent=1 // pred_fallthru
      _
    // Predicated region
    $region26: #{tpu_custom_call.1} parent=1 // pred_check
      _
    $region27: #{tpu_custom_call.1} parent=1 // pred_check_branch
      %85 = sbr.rel (0) target = $region29
    $region28: #{tpu_custom_call.1} parent=1 // pred_region
      _
    $region29: #{tpu_custom_call.1} parent=1 // pred_fallthru
      _
    // Predicated region
    $region30: #{tpu_custom_call.1} parent=1 // pred_check
      _
    $region31: #{tpu_custom_call.1} parent=1 // pred_check_branch
      %87 = sbr.rel (0) target = $region33
    $region32: #{tpu_custom_call.1} parent=1 // pred_region
      _
    $region33: #{tpu_custom_call.1} parent=1 // pred_fallthru
      _
    // Predicated region
    $region34: #{tpu_custom_call.1} parent=1 // pred_check
      _
    $region35: #{tpu_custom_call.1} parent=1 // pred_check_branch
      %89 = sbr.rel (0) target = $region37
    $region36: #{tpu_custom_call.1} parent=1 // pred_region
      _
    $region37: #{tpu_custom_call.1} parent=1 // pred_fallthru
      _
    // Predicated region
    $region38: #{tpu_custom_call.1} parent=1 // pred_check
      _
    $region39: #{tpu_custom_call.1} parent=1 // pred_check_branch
      %91 = sbr.rel (0) target = $region41
    $region40: #{tpu_custom_call.1} parent=1 // pred_region
      _
    $region41: #{tpu_custom_call.1} parent=1 // pred_fallthru
      _
    // Predicated region
    $region42: #{tpu_custom_call.1} parent=1 // pred_check
      _
    $region43: #{tpu_custom_call.1} parent=1 // pred_check_branch
      %93 = sbr.rel (0) target = $region45
    $region44: #{tpu_custom_call.1} parent=1 // pred_region
      %95 = vsyncadd [#allocation9], 0
      %s96 = sshll.u32 %s10, 4
      %s97 = int_to_ptr.hbm [resolvable:$true] %s96
      %s98 = sshll.u32 [#allocation8], 4
      %s99 = int_to_ptr.vmem [resolvable:$true] %s98
      %104 = dma.hbm_to_vmem [thread:$0]  %s97, 2048, %s99, [#allocation9], 128, 128, 8
    $region45: #{tpu_custom_call.1} parent=1 // pred_fallthru
      _
    // Predicated region
    $region46: #{tpu_custom_call.1} parent=1 // pred_check
      _
    $region47: #{tpu_custom_call.1} parent=1 // pred_check_branch
      %106 = sbr.rel (0) target = $region49
    $region48: #{tpu_custom_call.1} parent=1 // pred_region
      %108 = vsyncadd [#allocation9], 0
      %s109 = sshll.u32 %s11, 4
      %s110 = int_to_ptr.hbm [resolvable:$true] %s109
      %s111 = sshll.u32 [#allocation10], 4
      %s112 = int_to_ptr.vmem [resolvable:$true] %s111
      %117 = dma.hbm_to_vmem [thread:$0]  %s110, 2048, %s112, [#allocation9], 128, 128, 8
    $region49: #{tpu_custom_call.1} parent=1 // pred_fallthru
      _
    // Predicated region
    $region50: #{tpu_custom_call.1} parent=1 // pred_check
      _
    $region51: #{tpu_custom_call.1} parent=1 // pred_check_branch
      %119 = sbr.rel (0) target = $region53
    $region52: #{tpu_custom_call.1} parent=1 // pred_region
      _
    $region53: #{tpu_custom_call.1} parent=1 // pred_fallthru
      _
    // Predicated region
    $region54: #{tpu_custom_call.1} parent=1 // pred_check
      _
    $region55: #{tpu_custom_call.1} parent=1 // pred_check_branch
      %121 = sbr.rel (0) target = $region57
    $region56: #{tpu_custom_call.1} parent=1 // pred_region
      _
    $region57: #{tpu_custom_call.1} parent=1 // pred_fallthru
      _
    // Predicated region
    $region58: #{tpu_custom_call.1} parent=1 // pred_check
      _
    $region59: #{tpu_custom_call.1} parent=1 // pred_check_branch
      %123 = sbr.rel (0) target = $region61
    $region60: #{tpu_custom_call.1} parent=1 // pred_region
      %125 = vsyncadd [#allocation12], 0
      %s126 = sshll.u32 %s14, 4
      %s127 = int_to_ptr.hbm [resolvable:$true] %s126
      %s128 = sshll.u32 [#allocation11], 4
      %s129 = int_to_ptr.vmem [resolvable:$true] %s128
      %134 = dma.hbm_to_vmem [thread:$0]  %s127, 4096, %s129, [#allocation12], 128, 128, 8
    $region61: #{tpu_custom_call.1} parent=1 // pred_fallthru
      _
    // Predicated region
    $region62: #{tpu_custom_call.1} parent=1 // pred_check
      _
    $region63: #{tpu_custom_call.1} parent=1 // pred_check_branch
      %136 = sbr.rel (0) target = $region65
    $region64: #{tpu_custom_call.1} parent=1 // pred_region
      %138 = vsyncadd [#allocation12], 0
      %s139 = sshll.u32 %s15, 4
      %s140 = int_to_ptr.hbm [resolvable:$true] %s139
      %s141 = sshll.u32 [#allocation13], 4
      %s142 = int_to_ptr.vmem [resolvable:$true] %s141
      %147 = dma.hbm_to_vmem [thread:$0]  %s140, 4096, %s142, [#allocation12], 128, 128, 8
    $region65: #{tpu_custom_call.1} parent=1 // pred_fallthru
      _
    // Predicated region
    $region66: #{tpu_custom_call.1} parent=1 // pred_check
      _
    $region67: #{tpu_custom_call.1} parent=1 // pred_check_branch
      %149 = sbr.rel (0) target = $region69
    $region68: #{tpu_custom_call.1} parent=1 // pred_region
      %151 = vsyncadd [#allocation15], 0
      %s152 = sshll.u32 %s16, 4
      %s153 = int_to_ptr.hbm [resolvable:$true] %s152
      %s154 = sshll.u32 [#allocation14], 4
      %s155 = int_to_ptr.vmem [resolvable:$true] %s154
      %160 = dma.hbm_to_vmem [thread:$0]  %s153, 4096, %s155, [#allocation15], 128, 128, 8
    $region69: #{tpu_custom_call.1} parent=1 // pred_fallthru
      _
    // Predicated region
    $region70: #{tpu_custom_call.1} parent=1 // pred_check
      _
    $region71: #{tpu_custom_call.1} parent=1 // pred_check_branch
      %162 = sbr.rel (0) target = $region73
    $region72: #{tpu_custom_call.1} parent=1 // pred_region
      %164 = vsyncadd [#allocation15], 0
      %s165 = sshll.u32 %s17, 4
      %s166 = int_to_ptr.hbm [resolvable:$true] %s165
      %s167 = sshll.u32 [#allocation16], 4
      %s168 = int_to_ptr.vmem [resolvable:$true] %s167
      %173 = dma.hbm_to_vmem [thread:$0]  %s166, 2048, %s168, [#allocation15], 128, 128, 8
    $region73: #{tpu_custom_call.1} parent=1 // pred_fallthru
      _
    // Predicated region
    $region74: #{tpu_custom_call.1} parent=1 // pred_check
      _
    $region75: #{tpu_custom_call.1} parent=1 // pred_check_branch
      %175 = sbr.rel (0) target = $region77
    $region76: #{tpu_custom_call.1} parent=1 // pred_region
      _
    $region77: #{tpu_custom_call.1} parent=1 // pred_fallthru
      _
    // Predicated region
    $region78: #{tpu_custom_call.1} parent=1 // pred_check
      _
    $region79: #{tpu_custom_call.1} parent=1 // pred_check_branch
      %177 = sbr.rel (0) target = $region81
    $region80: #{tpu_custom_call.1} parent=1 // pred_region
      _
    $region81: #{tpu_custom_call.1} parent=1 // pred_fallthru
      _
    // Predicated region
    $region82: #{tpu_custom_call.1} parent=1 // pred_check
      _
    $region83: #{tpu_custom_call.1} parent=1 // pred_check_branch
      %179 = sbr.rel (0) target = $region85
    $region84: #{tpu_custom_call.1} parent=1 // pred_region
      %181 = vsyncadd [#allocation18], 0
      %s182 = sshll.u32 %s20, 4
      %s183 = int_to_ptr.hbm [resolvable:$true] %s182
      %s184 = sshll.u32 [#allocation17], 4
      %s185 = int_to_ptr.vmem [resolvable:$true] %s184
      %190 = dma.hbm_to_vmem [thread:$0]  %s183, 2048, %s185, [#allocation18], 128, 128, 8
    $region85: #{tpu_custom_call.1} parent=1 // pred_fallthru
      _
    // Predicated region
    $region86: #{tpu_custom_call.1} parent=1 // pred_check
      _
    $region87: #{tpu_custom_call.1} parent=1 // pred_check_branch
      %192 = sbr.rel (0) target = $region89
    $region88: #{tpu_custom_call.1} parent=1 // pred_region
      _
    $region89: #{tpu_custom_call.1} parent=1 // pred_fallthru
      _
    // Predicated region
    $region90: #{tpu_custom_call.1} parent=1 // pred_check
      _
    $region91: #{tpu_custom_call.1} parent=1 // pred_check_branch
      %194 = sbr.rel (0) target = $region93
    $region92: #{tpu_custom_call.1} parent=1 // pred_region
      %196 = vsyncadd [#allocation18], 0
      %s198 = sshll.u32 %s22, 4
      %s199 = int_to_ptr.hbm [resolvable:$true] %s198
      %s200 = sshll.u32 [#allocation19], 4
      %s201 = int_to_ptr.vmem [resolvable:$true] %s200
      %203 = dma.hbm_to_vmem [thread:$0]  %s199, 16, %s201, [#allocation18]
    $region93: #{tpu_custom_call.1} parent=1 // pred_fallthru
      _
    // Predicated region
    $region94: #{tpu_custom_call.1} parent=1 // pred_check
      _
    $region95: #{tpu_custom_call.1} parent=1 // pred_check_branch
      %205 = sbr.rel (0) target = $region97
    $region96: #{tpu_custom_call.1} parent=1 // pred_region
      %207 = vsyncadd [#allocation21], 0
      %s208 = sshll.u32 %s23, 4
      %s209 = int_to_ptr.hbm [resolvable:$true] %s208
      %s210 = sshll.u32 [#allocation20], 4
      %s211 = int_to_ptr.vmem [resolvable:$true] %s210
      %216 = dma.hbm_to_vmem [thread:$0]  %s209, 12288, %s211, [#allocation21], 768, 768, 48
    $region97: #{tpu_custom_call.1} parent=1 // pred_fallthru
      _
    // Predicated region
    $region98: #{tpu_custom_call.1} parent=1 // pred_check
      _
    $region99: #{tpu_custom_call.1} parent=1 // pred_check_branch
      %218 = sbr.rel (0) target = $region101
    $region100: #{tpu_custom_call.1} parent=1 // pred_region
      _
    $region101: #{tpu_custom_call.1} parent=1 // pred_fallthru
      _
    // Predicated region
    $region102: #{tpu_custom_call.1} parent=1 // pred_check
      _
    $region103: #{tpu_custom_call.1} parent=1 // pred_check_branch
      %220 = sbr.rel (0) target = $region105
    $region104: #{tpu_custom_call.1} parent=1 // pred_region
      %222 = vsyncadd [#allocation21], 0
      %s224 = sshll.u32 %s25, 4
      %s225 = int_to_ptr.hbm [resolvable:$true] %s224
      %s226 = sshll.u32 [#allocation22], 4
      %s227 = int_to_ptr.vmem [resolvable:$true] %s226
      %229 = dma.hbm_to_vmem [thread:$0]  %s225, 16, %s227, [#allocation21]
    $region105: #{tpu_custom_call.1} parent=1 // pred_fallthru
      _
    // Predicated region
    $region106: #{tpu_custom_call.1} parent=1 // pred_check
      _
    $region107: #{tpu_custom_call.1} parent=1 // pred_check_branch
      %231 = sbr.rel (0) target = $region109
    $region108: #{tpu_custom_call.1} parent=1 // pred_region
      %233 = dma.done [#allocation3], 8192
    $region109: #{tpu_custom_call.1} parent=1 // pred_fallthru
      _
    // Predicated region
    $region110: #{tpu_custom_call.1} parent=1 // pred_check
      _
    $region111: #{tpu_custom_call.1} parent=1 // pred_check_branch
      %235 = sbr.rel (0) target = $region113
    $region112: #{tpu_custom_call.1} parent=1 // pred_region
      %237 = dma.done [#allocation6], 8192
    $region113: #{tpu_custom_call.1} parent=1 // pred_fallthru
      _
    // Predicated region
    $region114: #{tpu_custom_call.1} parent=1 // pred_check
      _
    $region115: #{tpu_custom_call.1} parent=1 // pred_check_branch
      %239 = sbr.rel (0) target = $region117
    $region116: #{tpu_custom_call.1} parent=1 // pred_region
      %241 = dma.done [#allocation6], 8192
    $region117: #{tpu_custom_call.1} parent=1 // pred_fallthru
      _
    // Predicated region
    $region118: #{tpu_custom_call.1} parent=1 // pred_check
      _
    $region119: #{tpu_custom_call.1} parent=1 // pred_check_branch
      %243 = sbr.rel (0) target = $region121
    $region120: #{tpu_custom_call.1} parent=1 // pred_region
      %245 = dma.done [#allocation9], 2048
    $region121: #{tpu_custom_call.1} parent=1 // pred_fallthru
      _
    // Predicated region
    $region122: #{tpu_custom_call.1} parent=1 // pred_check
      _
    $region123: #{tpu_custom_call.1} parent=1 // pred_check_branch
      %247 = sbr.rel (0) target = $region125
    $region124: #{tpu_custom_call.1} parent=1 // pred_region
      %249 = dma.done [#allocation9], 2048
    $region125: #{tpu_custom_call.1} parent=1 // pred_fallthru
      _
    // Predicated region
    $region126: #{tpu_custom_call.1} parent=1 // pred_check
      _
    $region127: #{tpu_custom_call.1} parent=1 // pred_check_branch
      %251 = sbr.rel (0) target = $region129
    $region128: #{tpu_custom_call.1} parent=1 // pred_region
      %253 = dma.done [#allocation12], 4096
    $region129: #{tpu_custom_call.1} parent=1 // pred_fallthru
      _
    // Predicated region
    $region130: #{tpu_custom_call.1} parent=1 // pred_check
      _
    $region131: #{tpu_custom_call.1} parent=1 // pred_check_branch
      %255 = sbr.rel (0) target = $region133
    $region132: #{tpu_custom_call.1} parent=1 // pred_region
      %257 = dma.done [#allocation12], 4096
    $region133: #{tpu_custom_call.1} parent=1 // pred_fallthru
      _
    // Predicated region
    $region134: #{tpu_custom_call.1} parent=1 // pred_check
      _
    $region135: #{tpu_custom_call.1} parent=1 // pred_check_branch
      %259 = sbr.rel (0) target = $region137
    $region136: #{tpu_custom_call.1} parent=1 // pred_region
      %261 = dma.done [#allocation15], 4096
    $region137: #{tpu_custom_call.1} parent=1 // pred_fallthru
      _
    // Predicated region
    $region138: #{tpu_custom_call.1} parent=1 // pred_check
      _
    $region139: #{tpu_custom_call.1} parent=1 // pred_check_branch
      %263 = sbr.rel (0) target = $region141
    $region140: #{tpu_custom_call.1} parent=1 // pred_region
      %265 = dma.done [#allocation15], 2048
    $region141: #{tpu_custom_call.1} parent=1 // pred_fallthru
      _
    // Predicated region
    $region142: #{tpu_custom_call.1} parent=1 // pred_check
      _
    $region143: #{tpu_custom_call.1} parent=1 // pred_check_branch
      %267 = sbr.rel (0) target = $region145
    $region144: #{tpu_custom_call.1} parent=1 // pred_region
      %269 = dma.done [#allocation18], 2048
    $region145: #{tpu_custom_call.1} parent=1 // pred_fallthru
      _
    // Predicated region
    $region146: #{tpu_custom_call.1} parent=1 // pred_check
      _
    $region147: #{tpu_custom_call.1} parent=1 // pred_check_branch
      %271 = sbr.rel (0) target = $region149
    $region148: #{tpu_custom_call.1} parent=1 // pred_region
      %273 = dma.done [#allocation18], 16
    $region149: #{tpu_custom_call.1} parent=1 // pred_fallthru
      _
    // Predicated region
    $region150: #{tpu_custom_call.1} parent=1 // pred_check
      _
    $region151: #{tpu_custom_call.1} parent=1 // pred_check_branch
      %275 = sbr.rel (0) target = $region153
    $region152: #{tpu_custom_call.1} parent=1 // pred_region
      %277 = dma.done [#allocation21], 12288
    $region153: #{tpu_custom_call.1} parent=1 // pred_fallthru
      _
    // Predicated region
    $region154: #{tpu_custom_call.1} parent=1 // pred_check
      _
    $region155: #{tpu_custom_call.1} parent=1 // pred_check_branch
      %279 = sbr.rel (0) target = $region157
    $region156: #{tpu_custom_call.1} parent=1 // pred_region
      %281 = dma.done [#allocation21], 16
    $region157: #{tpu_custom_call.1} parent=1 // pred_fallthru
      _
    %v282 = vld [vmem:[%s4] sm:$0x1]
    %v283 = vld [vmem:[%s5] sm:$0x1]
    %v284 = vld [vmem:[%s6] sm:$0x1]
    %vm285 = vcmask 1040384
    %v286 = vsel %vm285, %v282, 0.0
    %287 = vadd.xlane.f32.xlu0 %v286
    %v288 = vpop.xlane.xlu0 %287
    %v289 = vrot.slane %v288, 4
    %v290 = vadd.f32 %v288, %v289
    %v291 = vrot.slane %v290, 2
    %v292 = vadd.f32 %v290, %v291
    %v293 = vrot.slane %v292, 1
    %v294 = vadd.f32 %v292, %v293
    %s295 = vtos %v294
    %s296 = smax.f32 %s295, 1.0
    %v297 = vstv %s296
    %v298 = vrcp.pop %v297
    %v299 = vmul.f32 %v297, %v298
    %v300 = vsub.f32 1.0, %v299
    %v301 = vmul.f32 %v298, %v300
    %v302 = vadd.f32 %v298, %v301
    %vm303 = vweird.f32 %v297
    %vm304 = vweird.f32 %v298
    %vm305 = vmor %vm303, %vm304
    %v306 = vsel %vm305, %v298, %v302
    %v307 = vand.u32 2147483647, %v297
    %vm308 = vcmp.eq.f32.partialorder %v307, 8.507059e+37
    %v309 = vand.u32 %v297, 2147483648
    %v310 = vor.u32 1.1754944e-38, %v309
    %v311 = vsel %vm308, %v310, %v306
    %s312 = vtos %v311
    %v313 = vsel %vm285, %v283, 0.0
    %314 = vadd.xlane.f32.xlu0 %v313
    %v315 = vpop.xlane.xlu0 %314
    %v316 = vrot.slane %v315, 4
    %v317 = vadd.f32 %v315, %v316
    %v318 = vrot.slane %v317, 2
    %v319 = vadd.f32 %v317, %v318
    %v320 = vrot.slane %v319, 1
    %v321 = vadd.f32 %v319, %v320
    %s322 = vtos %v321
    %s323 = smax.f32 %s322, 1.0
    %v324 = vstv %s323
    %v325 = vrcp.pop %v324
    %v326 = vmul.f32 %v324, %v325
    %v327 = vsub.f32 1.0, %v326
    %v328 = vmul.f32 %v325, %v327
    %v329 = vadd.f32 %v325, %v328
    %vm330 = vweird.f32 %v324
    %vm331 = vweird.f32 %v325
    %vm332 = vmor %vm330, %vm331
    %v333 = vsel %vm332, %v325, %v329
    %v334 = vand.u32 2147483647, %v324
    %vm335 = vcmp.eq.f32.partialorder %v334, 8.507059e+37
    %v336 = vand.u32 %v324, 2147483648
    %v337 = vor.u32 1.1754944e-38, %v336
    %v338 = vsel %vm335, %v337, %v333
    %s339 = vtos %v338
    %v340 = vsel %vm285, %v284, 0.0
    %341 = vadd.xlane.f32.xlu0 %v340
    %v342 = vpop.xlane.xlu0 %341
    %v343 = vrot.slane %v342, 4
    %v344 = vadd.f32 %v342, %v343
    %v345 = vrot.slane %v344, 2
    %v346 = vadd.f32 %v344, %v345
    %v347 = vrot.slane %v346, 1
    %v348 = vadd.f32 %v346, %v347
    %s349 = vtos %v348
    %s350 = smax.f32 %s349, 1.0
    %v351 = vstv %s350
    %v352 = vrcp.pop %v351
    %v353 = vmul.f32 %v351, %v352
    %v354 = vsub.f32 1.0, %v353
    %v355 = vmul.f32 %v352, %v354
    %v356 = vadd.f32 %v352, %v355
    %vm357 = vweird.f32 %v351
    %vm358 = vweird.f32 %v352
    %vm359 = vmor %vm357, %vm358
    %v360 = vsel %vm359, %v352, %v356
    %v361 = vand.u32 2147483647, %v351
    %vm362 = vcmp.eq.f32.partialorder %v361, 8.507059e+37
    %v363 = vand.u32 %v351, 2147483648
    %v364 = vor.u32 1.1754944e-38, %v363
    %v365 = vsel %vm362, %v364, %v360
    %s366 = vtos %v365
    %v367 = vld [vmem:[%s0] sm:$0xff]
    %v368 = vpack.c.bf16 %v367, %v367
    %v369 = vld [vmem:[#allocation2] sm:$0xff]
    %v370 = vld [vmem:[#allocation2 + $0x8] sm:$0xff]
    %v371 = vld [vmem:[#allocation2 + $0x10] sm:$0xff]
    %v372 = vld [vmem:[#allocation2 + $0x18] sm:$0xff]
    %v373 = vld [vmem:[#allocation2 + $0x20] sm:$0xff]
    %v374 = vld [vmem:[#allocation2 + $0x28] sm:$0xff]
    %v375 = vld [vmem:[#allocation2 + $0x30] sm:$0xff]
    %v376 = vld [vmem:[#allocation2 + $0x38] sm:$0xff]
    %v377 = vld [vmem:[#allocation2 + $0x40] sm:$0xff]
    %v378 = vld [vmem:[#allocation2 + $0x48] sm:$0xff]
    %v379 = vld [vmem:[#allocation2 + $0x50] sm:$0xff]
    %v380 = vld [vmem:[#allocation2 + $0x58] sm:$0xff]
    %v381 = vld [vmem:[#allocation2 + $0x60] sm:$0xff]
    %v382 = vld [vmem:[#allocation2 + $0x68] sm:$0xff]
    %v383 = vld [vmem:[#allocation2 + $0x70] sm:$0xff]
    %v384 = vld [vmem:[#allocation2 + $0x78] sm:$0xff]
    %v385 = vld [vmem:[#allocation2 + $0x80] sm:$0xff]
    %v386 = vld [vmem:[#allocation2 + $0x88] sm:$0xff]
    %v387 = vld [vmem:[#allocation2 + $0x90] sm:$0xff]
    %v388 = vld [vmem:[#allocation2 + $0x98] sm:$0xff]
    %v389 = vld [vmem:[#allocation2 + $0xa0] sm:$0xff]
    %v390 = vld [vmem:[#allocation2 + $0xa8] sm:$0xff]
    %v391 = vld [vmem:[#allocation2 + $0xb0] sm:$0xff]
    %v392 = vld [vmem:[#allocation2 + $0xb8] sm:$0xff]
    %v393 = vld [vmem:[#allocation2 + $0xc0] sm:$0xff]
    %v394 = vld [vmem:[#allocation2 + $0xc8] sm:$0xff]
    %v395 = vld [vmem:[#allocation2 + $0xd0] sm:$0xff]
    %v396 = vld [vmem:[#allocation2 + $0xd8] sm:$0xff]
    %v397 = vld [vmem:[#allocation2 + $0xe0] sm:$0xff]
    %v398 = vld [vmem:[#allocation2 + $0xe8] sm:$0xff]
    %v399 = vld [vmem:[#allocation2 + $0xf0] sm:$0xff]
    %v400 = vld [vmem:[#allocation2 + $0xf8] sm:$0xff]
    %v401 = vld [vmem:[#allocation2 + $0x100] sm:$0xff]
    %v402 = vld [vmem:[#allocation2 + $0x108] sm:$0xff]
    %v403 = vld [vmem:[#allocation2 + $0x110] sm:$0xff]
    %v404 = vld [vmem:[#allocation2 + $0x118] sm:$0xff]
    %v405 = vld [vmem:[#allocation2 + $0x120] sm:$0xff]
    %v406 = vld [vmem:[#allocation2 + $0x128] sm:$0xff]
    %v407 = vld [vmem:[#allocation2 + $0x130] sm:$0xff]
    %v408 = vld [vmem:[#allocation2 + $0x138] sm:$0xff]
    %v409 = vld [vmem:[#allocation2 + $0x140] sm:$0xff]
    %v410 = vld [vmem:[#allocation2 + $0x148] sm:$0xff]
    %v411 = vld [vmem:[#allocation2 + $0x150] sm:$0xff]
    %v412 = vld [vmem:[#allocation2 + $0x158] sm:$0xff]
    %v413 = vld [vmem:[#allocation2 + $0x160] sm:$0xff]
    %v414 = vld [vmem:[#allocation2 + $0x168] sm:$0xff]
    %v415 = vld [vmem:[#allocation2 + $0x170] sm:$0xff]
    %v416 = vld [vmem:[#allocation2 + $0x178] sm:$0xff]
    %v417 = vld [vmem:[#allocation2 + $0x180] sm:$0xff]
    %v418 = vld [vmem:[#allocation2 + $0x188] sm:$0xff]
    %v419 = vld [vmem:[#allocation2 + $0x190] sm:$0xff]
    %v420 = vld [vmem:[#allocation2 + $0x198] sm:$0xff]
    %v421 = vld [vmem:[#allocation2 + $0x1a0] sm:$0xff]
    %v422 = vld [vmem:[#allocation2 + $0x1a8] sm:$0xff]
    %v423 = vld [vmem:[#allocation2 + $0x1b0] sm:$0xff]
    %v424 = vld [vmem:[#allocation2 + $0x1b8] sm:$0xff]
    %v425 = vld [vmem:[#allocation2 + $0x1c0] sm:$0xff]
    %v426 = vld [vmem:[#allocation2 + $0x1c8] sm:$0xff]
    %v427 = vld [vmem:[#allocation2 + $0x1d0] sm:$0xff]
    %v428 = vld [vmem:[#allocation2 + $0x1d8] sm:$0xff]
    %v429 = vld [vmem:[#allocation2 + $0x1e0] sm:$0xff]
    %v430 = vld [vmem:[#allocation2 + $0x1e8] sm:$0xff]
    %v431 = vld [vmem:[#allocation2 + $0x1f0] sm:$0xff]
    %v432 = vld [vmem:[#allocation2 + $0x1f8] sm:$0xff]
    %v497 = vunpack.c.l.b16 %v369
    %v498 = vunpack.c.h.b16 %v369
    %v499 = vunpack.c.l.b16 %v370
    %v500 = vunpack.c.h.b16 %v370
    %v501 = vunpack.c.l.b16 %v371
    %v502 = vunpack.c.h.b16 %v371
    %v503 = vunpack.c.l.b16 %v372
    %v504 = vunpack.c.h.b16 %v372
    %v505 = vunpack.c.l.b16 %v373
    %v506 = vunpack.c.h.b16 %v373
    %v507 = vunpack.c.l.b16 %v374
    %v508 = vunpack.c.h.b16 %v374
    %v509 = vunpack.c.l.b16 %v375
    %v510 = vunpack.c.h.b16 %v375
    %v511 = vunpack.c.l.b16 %v376
    %v512 = vunpack.c.h.b16 %v376
    %v513 = vunpack.c.l.b16 %v377
    %v514 = vunpack.c.h.b16 %v377
    %v515 = vunpack.c.l.b16 %v378
    %v516 = vunpack.c.h.b16 %v378
    %v517 = vunpack.c.l.b16 %v379
    %v518 = vunpack.c.h.b16 %v379
    %v519 = vunpack.c.l.b16 %v380
    %v520 = vunpack.c.h.b16 %v380
    %v521 = vunpack.c.l.b16 %v381
    %v522 = vunpack.c.h.b16 %v381
    %v523 = vunpack.c.l.b16 %v382
    %v524 = vunpack.c.h.b16 %v382
    %v525 = vunpack.c.l.b16 %v383
    %v526 = vunpack.c.h.b16 %v383
    %v527 = vunpack.c.l.b16 %v384
    %v528 = vunpack.c.h.b16 %v384
    %v529 = vunpack.c.l.b16 %v385
    %v530 = vunpack.c.h.b16 %v385
    %v531 = vunpack.c.l.b16 %v386
    %v532 = vunpack.c.h.b16 %v386
    %v533 = vunpack.c.l.b16 %v387
    %v534 = vunpack.c.h.b16 %v387
    %v535 = vunpack.c.l.b16 %v388
    %v536 = vunpack.c.h.b16 %v388
    %v537 = vunpack.c.l.b16 %v389
    %v538 = vunpack.c.h.b16 %v389
    %v539 = vunpack.c.l.b16 %v390
    %v540 = vunpack.c.h.b16 %v390
    %v541 = vunpack.c.l.b16 %v391
    %v542 = vunpack.c.h.b16 %v391
    %v543 = vunpack.c.l.b16 %v392
    %v544 = vunpack.c.h.b16 %v392
    %v545 = vunpack.c.l.b16 %v393
    %v546 = vunpack.c.h.b16 %v393
    %v547 = vunpack.c.l.b16 %v394
    %v548 = vunpack.c.h.b16 %v394
    %v549 = vunpack.c.l.b16 %v395
    %v550 = vunpack.c.h.b16 %v395
    %v551 = vunpack.c.l.b16 %v396
    %v552 = vunpack.c.h.b16 %v396
    %v553 = vunpack.c.l.b16 %v397
    %v554 = vunpack.c.h.b16 %v397
    %v555 = vunpack.c.l.b16 %v398
    %v556 = vunpack.c.h.b16 %v398
    %v557 = vunpack.c.l.b16 %v399
    %v558 = vunpack.c.h.b16 %v399
    %v559 = vunpack.c.l.b16 %v400
    %v560 = vunpack.c.h.b16 %v400
    %v561 = vunpack.c.l.b16 %v401
    %v562 = vunpack.c.h.b16 %v401
    %v563 = vunpack.c.l.b16 %v402
    %v564 = vunpack.c.h.b16 %v402
    %v565 = vunpack.c.l.b16 %v403
    %v566 = vunpack.c.h.b16 %v403
    %v567 = vunpack.c.l.b16 %v404
    %v568 = vunpack.c.h.b16 %v404
    %v569 = vunpack.c.l.b16 %v405
    %v570 = vunpack.c.h.b16 %v405
    %v571 = vunpack.c.l.b16 %v406
    %v572 = vunpack.c.h.b16 %v406
    %v573 = vunpack.c.l.b16 %v407
    %v574 = vunpack.c.h.b16 %v407
    %v575 = vunpack.c.l.b16 %v408
    %v576 = vunpack.c.h.b16 %v408
    %v577 = vunpack.c.l.b16 %v409
    %v578 = vunpack.c.h.b16 %v409
    %v579 = vunpack.c.l.b16 %v410
    %v580 = vunpack.c.h.b16 %v410
    %v581 = vunpack.c.l.b16 %v411
    %v582 = vunpack.c.h.b16 %v411
    %v583 = vunpack.c.l.b16 %v412
    %v584 = vunpack.c.h.b16 %v412
    %v585 = vunpack.c.l.b16 %v413
    %v586 = vunpack.c.h.b16 %v413
    %v587 = vunpack.c.l.b16 %v414
    %v588 = vunpack.c.h.b16 %v414
    %v589 = vunpack.c.l.b16 %v415
    %v590 = vunpack.c.h.b16 %v415
    %v591 = vunpack.c.l.b16 %v416
    %v592 = vunpack.c.h.b16 %v416
    %v593 = vunpack.c.l.b16 %v417
    %v594 = vunpack.c.h.b16 %v417
    %v595 = vunpack.c.l.b16 %v418
    %v596 = vunpack.c.h.b16 %v418
    %v597 = vunpack.c.l.b16 %v419
    %v598 = vunpack.c.h.b16 %v419
    %v599 = vunpack.c.l.b16 %v420
    %v600 = vunpack.c.h.b16 %v420
    %v601 = vunpack.c.l.b16 %v421
    %v602 = vunpack.c.h.b16 %v421
    %v603 = vunpack.c.l.b16 %v422
    %v604 = vunpack.c.h.b16 %v422
    %v605 = vunpack.c.l.b16 %v423
    %v606 = vunpack.c.h.b16 %v423
    %v607 = vunpack.c.l.b16 %v424
    %v608 = vunpack.c.h.b16 %v424
    %v609 = vunpack.c.l.b16 %v425
    %v610 = vunpack.c.h.b16 %v425
    %v611 = vunpack.c.l.b16 %v426
    %v612 = vunpack.c.h.b16 %v426
    %v613 = vunpack.c.l.b16 %v427
    %v614 = vunpack.c.h.b16 %v427
    %v615 = vunpack.c.l.b16 %v428
    %v616 = vunpack.c.h.b16 %v428
    %v617 = vunpack.c.l.b16 %v429
    %v618 = vunpack.c.h.b16 %v429
    %v619 = vunpack.c.l.b16 %v430
    %v620 = vunpack.c.h.b16 %v430
    %v621 = vunpack.c.l.b16 %v431
    %v622 = vunpack.c.h.b16 %v431
    %v623 = vunpack.c.l.b16 %v432
    %v624 = vunpack.c.h.b16 %v432
    %v625 = vpack.c.b16 %v505, %v497
    %v626 = vpack.c.b16 %v506, %v498
    %v627 = vpack.c.b16 %v507, %v499
    %v628 = vpack.c.b16 %v508, %v500
    %v629 = vpack.c.b16 %v509, %v501
    %v630 = vpack.c.b16 %v510, %v502
    %v631 = vpack.c.b16 %v511, %v503
    %v632 = vpack.c.b16 %v512, %v504
    %v633 = vpack.c.b16 %v521, %v513
    %v634 = vpack.c.b16 %v522, %v514
    %v635 = vpack.c.b16 %v523, %v515
    %v636 = vpack.c.b16 %v524, %v516
    %v637 = vpack.c.b16 %v525, %v517
    %v638 = vpack.c.b16 %v526, %v518
    %v639 = vpack.c.b16 %v527, %v519
    %v640 = vpack.c.b16 %v528, %v520
    %v641 = vpack.c.b16 %v537, %v529
    %v642 = vpack.c.b16 %v538, %v530
    %v643 = vpack.c.b16 %v539, %v531
    %v644 = vpack.c.b16 %v540, %v532
    %v645 = vpack.c.b16 %v541, %v533
    %v646 = vpack.c.b16 %v542, %v534
    %v647 = vpack.c.b16 %v543, %v535
    %v648 = vpack.c.b16 %v544, %v536
    %v649 = vpack.c.b16 %v553, %v545
    %v650 = vpack.c.b16 %v554, %v546
    %v651 = vpack.c.b16 %v555, %v547
    %v652 = vpack.c.b16 %v556, %v548
    %v653 = vpack.c.b16 %v557, %v549
    %v654 = vpack.c.b16 %v558, %v550
    %v655 = vpack.c.b16 %v559, %v551
    %v656 = vpack.c.b16 %v560, %v552
    %v657 = vpack.c.b16 %v569, %v561
    %v658 = vpack.c.b16 %v570, %v562
    %v659 = vpack.c.b16 %v571, %v563
    %v660 = vpack.c.b16 %v572, %v564
    %v661 = vpack.c.b16 %v573, %v565
    %v662 = vpack.c.b16 %v574, %v566
    %v663 = vpack.c.b16 %v575, %v567
    %v664 = vpack.c.b16 %v576, %v568
    %v665 = vpack.c.b16 %v585, %v577
    %v666 = vpack.c.b16 %v586, %v578
    %v667 = vpack.c.b16 %v587, %v579
    %v668 = vpack.c.b16 %v588, %v580
    %v669 = vpack.c.b16 %v589, %v581
    %v670 = vpack.c.b16 %v590, %v582
    %v671 = vpack.c.b16 %v591, %v583
    %v672 = vpack.c.b16 %v592, %v584
    %v673 = vpack.c.b16 %v601, %v593
    %v674 = vpack.c.b16 %v602, %v594
    %v675 = vpack.c.b16 %v603, %v595
    %v676 = vpack.c.b16 %v604, %v596
    %v677 = vpack.c.b16 %v605, %v597
    %v678 = vpack.c.b16 %v606, %v598
    %v679 = vpack.c.b16 %v607, %v599
    %v680 = vpack.c.b16 %v608, %v600
    %v681 = vpack.c.b16 %v617, %v609
    %v682 = vpack.c.b16 %v618, %v610
    %v683 = vpack.c.b16 %v619, %v611
    %v684 = vpack.c.b16 %v620, %v612
    %v685 = vpack.c.b16 %v621, %v613
    %v686 = vpack.c.b16 %v622, %v614
    %v687 = vpack.c.b16 %v623, %v615
    %v688 = vpack.c.b16 %v624, %v616
    %753 = vmatpush.bf16.msra.mxu0 %v681
    %754 = vmatpush.bf16.msra.mxu0 %v673
    %755 = vmatpush.bf16.msra.mxu0 %v665
    %756 = vmatpush.bf16.msra.mxu0 %v657
    %757 = vmatpush.bf16.msra.mxu0 %v649
    %758 = vmatpush.bf16.msra.mxu0 %v641
    %759 = vmatpush.bf16.msra.mxu0 %v633
    %760 = vmatpush.bf16.msra.mxu0 %v625
    %761 = vmatmul.bf16.gmra.mxu0 %v368
    %v762 = vpop.f32.mrf.mxu0
    %v763 = vadd.f32 0.0, %v762
    %v764 = vpop.f32.mrf.mxu0
    %765 = vdwg.mxu0
    %766 = vmatpush.bf16.msra.mxu0 %v682
    %767 = vmatpush.bf16.msra.mxu0 %v674
    %768 = vmatpush.bf16.msra.mxu0 %v666
    %769 = vmatpush.bf16.msra.mxu0 %v658
    %770 = vmatpush.bf16.msra.mxu0 %v650
    %771 = vmatpush.bf16.msra.mxu0 %v642
    %772 = vmatpush.bf16.msra.mxu0 %v634
    %773 = vmatpush.bf16.msra.mxu0 %v626
    %774 = vmatmul.bf16.gmra.mxu0 %v368
    %v775 = vpop.f32.mrf.mxu0
    %v776 = vadd.f32 0.0, %v775
    %v777 = vpop.f32.mrf.mxu0
    %778 = vdwg.mxu0
    %779 = vmatpush.bf16.msra.mxu0 %v683
    %780 = vmatpush.bf16.msra.mxu0 %v675
    %781 = vmatpush.bf16.msra.mxu0 %v667
    %782 = vmatpush.bf16.msra.mxu0 %v659
    %783 = vmatpush.bf16.msra.mxu0 %v651
    %784 = vmatpush.bf16.msra.mxu0 %v643
    %785 = vmatpush.bf16.msra.mxu0 %v635
    %786 = vmatpush.bf16.msra.mxu0 %v627
    %787 = vmatmul.bf16.gmra.mxu0 %v368
    %v788 = vpop.f32.mrf.mxu0
    %v789 = vadd.f32 0.0, %v788
    %v790 = vpop.f32.mrf.mxu0
    %791 = vdwg.mxu0
    %792 = vmatpush.bf16.msra.mxu0 %v684
    %793 = vmatpush.bf16.msra.mxu0 %v676
    %794 = vmatpush.bf16.msra.mxu0 %v668
    %795 = vmatpush.bf16.msra.mxu0 %v660
    %796 = vmatpush.bf16.msra.mxu0 %v652
    %797 = vmatpush.bf16.msra.mxu0 %v644
    %798 = vmatpush.bf16.msra.mxu0 %v636
    %799 = vmatpush.bf16.msra.mxu0 %v628
    %800 = vmatmul.bf16.gmra.mxu0 %v368
    %v801 = vpop.f32.mrf.mxu0
    %v802 = vadd.f32 0.0, %v801
    %v803 = vpop.f32.mrf.mxu0
    %804 = vdwg.mxu0
    %805 = vmatpush.bf16.msra.mxu0 %v685
    %806 = vmatpush.bf16.msra.mxu0 %v677
    %807 = vmatpush.bf16.msra.mxu0 %v669
    %808 = vmatpush.bf16.msra.mxu0 %v661
    %809 = vmatpush.bf16.msra.mxu0 %v653
    %810 = vmatpush.bf16.msra.mxu0 %v645
    %811 = vmatpush.bf16.msra.mxu0 %v637
    %812 = vmatpush.bf16.msra.mxu0 %v629
    %813 = vmatmul.bf16.gmra.mxu0 %v368
    %v814 = vpop.f32.mrf.mxu0
    %v815 = vadd.f32 0.0, %v814
    %v816 = vpop.f32.mrf.mxu0
    %817 = vdwg.mxu0
    %818 = vmatpush.bf16.msra.mxu0 %v686
    %819 = vmatpush.bf16.msra.mxu0 %v678
    %820 = vmatpush.bf16.msra.mxu0 %v670
    %821 = vmatpush.bf16.msra.mxu0 %v662
    %822 = vmatpush.bf16.msra.mxu0 %v654
    %823 = vmatpush.bf16.msra.mxu0 %v646
    %824 = vmatpush.bf16.msra.mxu0 %v638
    %825 = vmatpush.bf16.msra.mxu0 %v630
    %826 = vmatmul.bf16.gmra.mxu0 %v368
    %v827 = vpop.f32.mrf.mxu0
    %v828 = vadd.f32 0.0, %v827
    %v829 = vpop.f32.mrf.mxu0
    %830 = vdwg.mxu0
    %831 = vmatpush.bf16.msra.mxu0 %v687
    %832 = vmatpush.bf16.msra.mxu0 %v679
    %833 = vmatpush.bf16.msra.mxu0 %v671
    %834 = vmatpush.bf16.msra.mxu0 %v663
    %835 = vmatpush.bf16.msra.mxu0 %v655
    %836 = vmatpush.bf16.msra.mxu0 %v647
    %837 = vmatpush.bf16.msra.mxu0 %v639
    %838 = vmatpush.bf16.msra.mxu0 %v631
    %839 = vmatmul.bf16.gmra.mxu0 %v368
    %v840 = vpop.f32.mrf.mxu0
    %v841 = vadd.f32 0.0, %v840
    %v842 = vpop.f32.mrf.mxu0
    %843 = vdwg.mxu0
    %844 = vmatpush.bf16.msra.mxu0 %v688
    %845 = vmatpush.bf16.msra.mxu0 %v680
    %846 = vmatpush.bf16.msra.mxu0 %v672
    %847 = vmatpush.bf16.msra.mxu0 %v664
    %848 = vmatpush.bf16.msra.mxu0 %v656
    %849 = vmatpush.bf16.msra.mxu0 %v648
    %850 = vmatpush.bf16.msra.mxu0 %v640
    %851 = vmatpush.bf16.msra.mxu0 %v632
    %852 = vmatmul.bf16.gmra.mxu0 %v368
    %v853 = vpop.f32.mrf.mxu0
    %v854 = vadd.f32 0.0, %v853
    %v855 = vpop.f32.mrf.mxu0
    %856 = vdwg.mxu0
    %v857 = vld [vmem:[%s7] sm:$0xff]
    %s858 = scalar_lea.vmem %s7, 8
    %v859 = vld [vmem:[%s858] sm:$0xff]
    %vm860 = vcmask 64512
    %v862 = vsel %vm860, %v859, 0
    %864 = vmatpush.msra.mxu0 0.0
    %865 = vmatpush.msra.mxu0 0.0
    %866 = vmatpush.msra.mxu0 0.0
    %867 = vmatpush.msra.mxu0 0.0
    %868 = vmatpush.msra.mxu0 0.0
    %869 = vmatpush.msra.mxu0 0.0
    %870 = vmatpush.msra.mxu0 0.0
    %871 = vmatpush.msra.mxu0 0.0
    %872 = vmatpush.msra.mxu0 0.0
    %873 = vmatpush.msra.mxu0 0.0
    %874 = vmatpush.msra.mxu0 0.0
    %875 = vmatpush.msra.mxu0 0.0
    %876 = vmatpush.msra.mxu0 0.0
    %877 = vmatpush.msra.mxu0 0.0
    %878 = vmatpush.msra.mxu0 0.0
    %879 = vmatpush.msra.mxu0 %v776
    %880 = vmatmul.f32.gmra.mxu0 %v862
    %v881 = vpop.f32.mrf.mxu0
    %v882 = vadd.f32 0.0, %v881
    %883 = vdwg.mxu0
    %v885 = vsel %vm860, %v857, 0
    %887 = vmatpush.msra.mxu0 0.0
    %888 = vmatpush.msra.mxu0 0.0
    %889 = vmatpush.msra.mxu0 0.0
    %890 = vmatpush.msra.mxu0 0.0
    %891 = vmatpush.msra.mxu0 0.0
    %892 = vmatpush.msra.mxu0 0.0
    %893 = vmatpush.msra.mxu0 0.0
    %894 = vmatpush.msra.mxu0 0.0
    %895 = vmatpush.msra.mxu0 0.0
    %896 = vmatpush.msra.mxu0 0.0
    %897 = vmatpush.msra.mxu0 0.0
    %898 = vmatpush.msra.mxu0 0.0
    %899 = vmatpush.msra.mxu0 0.0
    %900 = vmatpush.msra.mxu0 0.0
    %901 = vmatpush.msra.mxu0 0.0
    %902 = vmatpush.msra.mxu0 %v763
    %903 = vmatmul.f32.gmra.mxu0 %v885
    %v904 = vpop.f32.mrf.mxu0
    %v905 = vadd.f32 %v882, %v904
    %906 = vdwg.mxu0
    %s907 = scalar_lea.vmem %s7, 16
    %v908 = vld [vmem:[%s907] sm:$0xff]
    %v910 = vsel %vm860, %v908, 0
    %912 = vmatpush.msra.mxu0 0.0
    %913 = vmatpush.msra.mxu0 0.0
    %914 = vmatpush.msra.mxu0 0.0
    %915 = vmatpush.msra.mxu0 0.0
    %916 = vmatpush.msra.mxu0 0.0
    %917 = vmatpush.msra.mxu0 0.0
    %918 = vmatpush.msra.mxu0 0.0
    %919 = vmatpush.msra.mxu0 0.0
    %920 = vmatpush.msra.mxu0 0.0
    %921 = vmatpush.msra.mxu0 0.0
    %922 = vmatpush.msra.mxu0 0.0
    %923 = vmatpush.msra.mxu0 0.0
    %924 = vmatpush.msra.mxu0 0.0
    %925 = vmatpush.msra.mxu0 0.0
    %926 = vmatpush.msra.mxu0 0.0
    %927 = vmatpush.msra.mxu0 %v789
    %928 = vmatmul.f32.gmra.mxu0 %v910
    %v929 = vpop.f32.mrf.mxu0
    %v930 = vadd.f32 0.0, %v929
    %931 = vdwg.mxu0
    %v932 = vadd.f32 %v905, %v930
    %s933 = scalar_lea.vmem %s7, 24
    %v934 = vld [vmem:[%s933] sm:$0xff]
    %v936 = vsel %vm860, %v934, 0
    %938 = vmatpush.msra.mxu0 0.0
    %939 = vmatpush.msra.mxu0 0.0
    %940 = vmatpush.msra.mxu0 0.0
    %941 = vmatpush.msra.mxu0 0.0
    %942 = vmatpush.msra.mxu0 0.0
    %943 = vmatpush.msra.mxu0 0.0
    %944 = vmatpush.msra.mxu0 0.0
    %945 = vmatpush.msra.mxu0 0.0
    %946 = vmatpush.msra.mxu0 0.0
    %947 = vmatpush.msra.mxu0 0.0
    %948 = vmatpush.msra.mxu0 0.0
    %949 = vmatpush.msra.mxu0 0.0
    %950 = vmatpush.msra.mxu0 0.0
    %951 = vmatpush.msra.mxu0 0.0
    %952 = vmatpush.msra.mxu0 0.0
    %953 = vmatpush.msra.mxu0 %v802
    %954 = vmatmul.f32.gmra.mxu0 %v936
    %v955 = vpop.f32.mrf.mxu0
    %v956 = vadd.f32 0.0, %v955
    %957 = vdwg.mxu0
    %v958 = vadd.f32 %v932, %v956
    %s959 = scalar_lea.vmem %s7, 32
    %v960 = vld [vmem:[%s959] sm:$0xff]
    %v962 = vsel %vm860, %v960, 0
    %964 = vmatpush.msra.mxu0 0.0
    %965 = vmatpush.msra.mxu0 0.0
    %966 = vmatpush.msra.mxu0 0.0
    %967 = vmatpush.msra.mxu0 0.0
    %968 = vmatpush.msra.mxu0 0.0
    %969 = vmatpush.msra.mxu0 0.0
    %970 = vmatpush.msra.mxu0 0.0
    %971 = vmatpush.msra.mxu0 0.0
    %972 = vmatpush.msra.mxu0 0.0
    %973 = vmatpush.msra.mxu0 0.0
    %974 = vmatpush.msra.mxu0 0.0
    %975 = vmatpush.msra.mxu0 0.0
    %976 = vmatpush.msra.mxu0 0.0
    %977 = vmatpush.msra.mxu0 0.0
    %978 = vmatpush.msra.mxu0 0.0
    %979 = vmatpush.msra.mxu0 %v815
    %980 = vmatmul.f32.gmra.mxu0 %v962
    %v981 = vpop.f32.mrf.mxu0
    %v982 = vadd.f32 0.0, %v981
    %983 = vdwg.mxu0
    %v984 = vadd.f32 %v958, %v982
    %s985 = scalar_lea.vmem %s7, 40
    %v986 = vld [vmem:[%s985] sm:$0xff]
    %v988 = vsel %vm860, %v986, 0
    %990 = vmatpush.msra.mxu0 0.0
    %991 = vmatpush.msra.mxu0 0.0
    %992 = vmatpush.msra.mxu0 0.0
    %993 = vmatpush.msra.mxu0 0.0
    %994 = vmatpush.msra.mxu0 0.0
    %995 = vmatpush.msra.mxu0 0.0
    %996 = vmatpush.msra.mxu0 0.0
    %997 = vmatpush.msra.mxu0 0.0
    %998 = vmatpush.msra.mxu0 0.0
    %999 = vmatpush.msra.mxu0 0.0
    %1000 = vmatpush.msra.mxu0 0.0
    %1001 = vmatpush.msra.mxu0 0.0
    %1002 = vmatpush.msra.mxu0 0.0
    %1003 = vmatpush.msra.mxu0 0.0
    %1004 = vmatpush.msra.mxu0 0.0
    %1005 = vmatpush.msra.mxu0 %v828
    %1006 = vmatmul.f32.gmra.mxu0 %v988
    %v1007 = vpop.f32.mrf.mxu0
    %v1008 = vadd.f32 0.0, %v1007
    %1009 = vdwg.mxu0
    %v1010 = vadd.f32 %v984, %v1008
    %s1011 = scalar_lea.vmem %s7, 48
    %v1012 = vld [vmem:[%s1011] sm:$0xff]
    %v1014 = vsel %vm860, %v1012, 0
    %1016 = vmatpush.msra.mxu0 0.0
    %1017 = vmatpush.msra.mxu0 0.0
    %1018 = vmatpush.msra.mxu0 0.0
    %1019 = vmatpush.msra.mxu0 0.0
    %1020 = vmatpush.msra.mxu0 0.0
    %1021 = vmatpush.msra.mxu0 0.0
    %1022 = vmatpush.msra.mxu0 0.0
    %1023 = vmatpush.msra.mxu0 0.0
    %1024 = vmatpush.msra.mxu0 0.0
    %1025 = vmatpush.msra.mxu0 0.0
    %1026 = vmatpush.msra.mxu0 0.0
    %1027 = vmatpush.msra.mxu0 0.0
    %1028 = vmatpush.msra.mxu0 0.0
    %1029 = vmatpush.msra.mxu0 0.0
    %1030 = vmatpush.msra.mxu0 0.0
    %1031 = vmatpush.msra.mxu0 %v841
    %1032 = vmatmul.f32.gmra.mxu0 %v1014
    %v1033 = vpop.f32.mrf.mxu0
    %v1034 = vadd.f32 0.0, %v1033
    %1035 = vdwg.mxu0
    %v1036 = vadd.f32 %v1010, %v1034
    %s1037 = scalar_lea.vmem %s7, 56
    %v1038 = vld [vmem:[%s1037] sm:$0xff]
    %v1040 = vsel %vm860, %v1038, 0
    %1042 = vmatpush.msra.mxu0 0.0
    %1043 = vmatpush.msra.mxu0 0.0
    %1044 = vmatpush.msra.mxu0 0.0
    %1045 = vmatpush.msra.mxu0 0.0
    %1046 = vmatpush.msra.mxu0 0.0
    %1047 = vmatpush.msra.mxu0 0.0
    %1048 = vmatpush.msra.mxu0 0.0
    %1049 = vmatpush.msra.mxu0 0.0
    %1050 = vmatpush.msra.mxu0 0.0
    %1051 = vmatpush.msra.mxu0 0.0
    %1052 = vmatpush.msra.mxu0 0.0
    %1053 = vmatpush.msra.mxu0 0.0
    %1054 = vmatpush.msra.mxu0 0.0
    %1055 = vmatpush.msra.mxu0 0.0
    %1056 = vmatpush.msra.mxu0 0.0
    %1057 = vmatpush.msra.mxu0 %v854
    %1058 = vmatmul.f32.gmra.mxu0 %v1040
    %v1059 = vpop.f32.mrf.mxu0
    %v1060 = vadd.f32 0.0, %v1059
    %1061 = vdwg.mxu0
    %v1062 = vadd.f32 %v1036, %v1060
    %vm1063 = vcmp.gt.f32.partialorder %v1062, 0.0
    %v1064 = vmin.f32 %v1062, 0.0
    %v1065 = vmul.f32 %v1064, 1.442695
    %v1066 = vpow.pop %v1065
    %v1067 = vsub.f32 %v1066, 1.0
    %v1068 = vsel %vm1063, %v1062, %v1067
    %v1070 = vperm.slane %v282, 0
    %v1072 = vmul.f32 %v1068, %v1070
    %1073 = vadd.xlane.f32.xlu0 %v1072
    %v1074 = vpop.xlane.xlu0 %1073
    %v1075 = vstv %s312
    %v1076 = vmul.f32 %v1074, %v1075
    %v1077 = vsub.f32 %v1068, %v1076
    %v1078 = vmul.f32 %v1077, %v1077
    %v1079 = vmul.f32 %v1078, %v1070
    %1080 = vadd.xlane.f32.xlu0 %v1079
    %v1081 = vpop.xlane.xlu0 %1080
    %v1082 = vmul.f32 %v1081, %v1075
    %v1083 = vadd.f32 %v1082, 1e-05
    %v1084 = vrsqrt.pop %v1083
    %v1085 = vmul.f32 %v1084, %v1083
    %v1086 = vmul.f32 %v1085, %v1084
    %v1087 = vmul.f32 0.5, %v1086
    %v1088 = vsub.f32 1.5, %v1087
    %v1089 = vmul.f32 %v1084, %v1088
    %vm1090 = vweird.f32 %v1083
    %vm1091 = vweird.f32 %v1084
    %vm1092 = vmor %vm1090, %vm1091
    %v1093 = vsel %vm1092, %v1084, %v1089
    %v1094 = vmul.f32 %v1077, %v1093
    %v1095 = vmul.f32 %v1094, %v1070
    %v1096 = vpack.c.bf16 %v1095, %v1095
    %1097 = vmatpush.bf16.msra.mxu0 %v681
    %1098 = vmatpush.bf16.msra.mxu0 %v673
    %1099 = vmatpush.bf16.msra.mxu0 %v665
    %1100 = vmatpush.bf16.msra.mxu0 %v657
    %1101 = vmatpush.bf16.msra.mxu0 %v649
    %1102 = vmatpush.bf16.msra.mxu0 %v641
    %1103 = vmatpush.bf16.msra.mxu0 %v633
    %1104 = vmatpush.bf16.msra.mxu0 %v625
    %1105 = vmatmul.bf16.gmra.mxu0 %v1096
    %v1106 = vpop.f32.mrf.mxu0
    %v1107 = vadd.f32 0.0, %v1106
    %v1108 = vpop.f32.mrf.mxu0
    %1109 = vdwg.mxu0
    %1110 = vmatpush.bf16.msra.mxu0 %v682
    %1111 = vmatpush.bf16.msra.mxu0 %v674
    %1112 = vmatpush.bf16.msra.mxu0 %v666
    %1113 = vmatpush.bf16.msra.mxu0 %v658
    %1114 = vmatpush.bf16.msra.mxu0 %v650
    %1115 = vmatpush.bf16.msra.mxu0 %v642
    %1116 = vmatpush.bf16.msra.mxu0 %v634
    %1117 = vmatpush.bf16.msra.mxu0 %v626
    %1118 = vmatmul.bf16.gmra.mxu0 %v1096
    %v1119 = vpop.f32.mrf.mxu0
    %v1120 = vadd.f32 0.0, %v1119
    %v1121 = vpop.f32.mrf.mxu0
    %1122 = vdwg.mxu0
    %1123 = vmatpush.bf16.msra.mxu0 %v683
    %1124 = vmatpush.bf16.msra.mxu0 %v675
    %1125 = vmatpush.bf16.msra.mxu0 %v667
    %1126 = vmatpush.bf16.msra.mxu0 %v659
    %1127 = vmatpush.bf16.msra.mxu0 %v651
    %1128 = vmatpush.bf16.msra.mxu0 %v643
    %1129 = vmatpush.bf16.msra.mxu0 %v635
    %1130 = vmatpush.bf16.msra.mxu0 %v627
    %1131 = vmatmul.bf16.gmra.mxu0 %v1096
    %v1132 = vpop.f32.mrf.mxu0
    %v1133 = vadd.f32 0.0, %v1132
    %v1134 = vpop.f32.mrf.mxu0
    %1135 = vdwg.mxu0
    %1136 = vmatpush.bf16.msra.mxu0 %v684
    %1137 = vmatpush.bf16.msra.mxu0 %v676
    %1138 = vmatpush.bf16.msra.mxu0 %v668
    %1139 = vmatpush.bf16.msra.mxu0 %v660
    %1140 = vmatpush.bf16.msra.mxu0 %v652
    %1141 = vmatpush.bf16.msra.mxu0 %v644
    %1142 = vmatpush.bf16.msra.mxu0 %v636
    %1143 = vmatpush.bf16.msra.mxu0 %v628
    %1144 = vmatmul.bf16.gmra.mxu0 %v1096
    %v1145 = vpop.f32.mrf.mxu0
    %v1146 = vadd.f32 0.0, %v1145
    %v1147 = vpop.f32.mrf.mxu0
    %1148 = vdwg.mxu0
    %1149 = vmatpush.bf16.msra.mxu0 %v685
    %1150 = vmatpush.bf16.msra.mxu0 %v677
    %1151 = vmatpush.bf16.msra.mxu0 %v669
    %1152 = vmatpush.bf16.msra.mxu0 %v661
    %1153 = vmatpush.bf16.msra.mxu0 %v653
    %1154 = vmatpush.bf16.msra.mxu0 %v645
    %1155 = vmatpush.bf16.msra.mxu0 %v637
    %1156 = vmatpush.bf16.msra.mxu0 %v629
    %1157 = vmatmul.bf16.gmra.mxu0 %v1096
    %v1158 = vpop.f32.mrf.mxu0
    %v1159 = vadd.f32 0.0, %v1158
    %v1160 = vpop.f32.mrf.mxu0
    %1161 = vdwg.mxu0
    %1162 = vmatpush.bf16.msra.mxu0 %v686
    %1163 = vmatpush.bf16.msra.mxu0 %v678
    %1164 = vmatpush.bf16.msra.mxu0 %v670
    %1165 = vmatpush.bf16.msra.mxu0 %v662
    %1166 = vmatpush.bf16.msra.mxu0 %v654
    %1167 = vmatpush.bf16.msra.mxu0 %v646
    %1168 = vmatpush.bf16.msra.mxu0 %v638
    %1169 = vmatpush.bf16.msra.mxu0 %v630
    %1170 = vmatmul.bf16.gmra.mxu0 %v1096
    %v1171 = vpop.f32.mrf.mxu0
    %v1172 = vadd.f32 0.0, %v1171
    %v1173 = vpop.f32.mrf.mxu0
    %1174 = vdwg.mxu0
    %1175 = vmatpush.bf16.msra.mxu0 %v687
    %1176 = vmatpush.bf16.msra.mxu0 %v679
    %1177 = vmatpush.bf16.msra.mxu0 %v671
    %1178 = vmatpush.bf16.msra.mxu0 %v663
    %1179 = vmatpush.bf16.msra.mxu0 %v655
    %1180 = vmatpush.bf16.msra.mxu0 %v647
    %1181 = vmatpush.bf16.msra.mxu0 %v639
    %1182 = vmatpush.bf16.msra.mxu0 %v631
    %1183 = vmatmul.bf16.gmra.mxu0 %v1096
    %v1184 = vpop.f32.mrf.mxu0
    %v1185 = vadd.f32 0.0, %v1184
    %v1186 = vpop.f32.mrf.mxu0
    %1187 = vdwg.mxu0
    %1188 = vmatpush.bf16.msra.mxu0 %v688
    %1189 = vmatpush.bf16.msra.mxu0 %v680
    %1190 = vmatpush.bf16.msra.mxu0 %v672
    %1191 = vmatpush.bf16.msra.mxu0 %v664
    %1192 = vmatpush.bf16.msra.mxu0 %v656
    %1193 = vmatpush.bf16.msra.mxu0 %v648
    %1194 = vmatpush.bf16.msra.mxu0 %v640
    %1195 = vmatpush.bf16.msra.mxu0 %v632
    %1196 = vmatmul.bf16.gmra.mxu0 %v1096
    %v1197 = vpop.f32.mrf.mxu0
    %v1198 = vadd.f32 0.0, %v1197
    %v1199 = vpop.f32.mrf.mxu0
    %1200 = vdwg.mxu0
    %v1201 = vld [vmem:[%s8] sm:$0xff]
    %v1202 = vld [vmem:[%s8 + $0x8] sm:$0xff]
    %s1203 = scalar_lea.vmem %s8, 16
    %v1204 = vld [vmem:[%s1203] sm:$0xff]
    %v1205 = vld [vmem:[%s1203 + $0x8] sm:$0xff]
    %v1207 = vsel %vm860, %v1204, 0
    %v1210 = vsel %vm860, %v1205, 0
    %1212 = vmatpush.msra.mxu0 0.0
    %1213 = vmatpush.msra.mxu0 0.0
    %1214 = vmatpush.msra.mxu0 0.0
    %1215 = vmatpush.msra.mxu0 0.0
    %1216 = vmatpush.msra.mxu0 0.0
    %1217 = vmatpush.msra.mxu0 0.0
    %1218 = vmatpush.msra.mxu0 0.0
    %1219 = vmatpush.msra.mxu0 0.0
    %1220 = vmatpush.msra.mxu0 0.0
    %1221 = vmatpush.msra.mxu0 0.0
    %1222 = vmatpush.msra.mxu0 0.0
    %1223 = vmatpush.msra.mxu0 0.0
    %1224 = vmatpush.msra.mxu0 0.0
    %1225 = vmatpush.msra.mxu0 0.0
    %1226 = vmatpush.msra.mxu0 0.0
    %1227 = vmatpush.msra.mxu0 %v1120
    %1228 = vmatmul.f32.gmra.mxu0 %v1207
    %v1229 = vpop.f32.mrf.mxu0
    %v1230 = vadd.f32 0.0, %v1229
    %1231 = vmatmul.f32.gmra.mxu0 %v1210
    %v1232 = vpop.f32.mrf.mxu0
    %v1233 = vadd.f32 0.0, %v1232
    %1234 = vdwg.mxu0
    %v1236 = vsel %vm860, %v1201, 0
    %v1239 = vsel %vm860, %v1202, 0
    %1241 = vmatpush.msra.mxu0 0.0
    %1242 = vmatpush.msra.mxu0 0.0
    %1243 = vmatpush.msra.mxu0 0.0
    %1244 = vmatpush.msra.mxu0 0.0
    %1245 = vmatpush.msra.mxu0 0.0
    %1246 = vmatpush.msra.mxu0 0.0
    %1247 = vmatpush.msra.mxu0 0.0
    %1248 = vmatpush.msra.mxu0 0.0
    %1249 = vmatpush.msra.mxu0 0.0
    %1250 = vmatpush.msra.mxu0 0.0
    %1251 = vmatpush.msra.mxu0 0.0
    %1252 = vmatpush.msra.mxu0 0.0
    %1253 = vmatpush.msra.mxu0 0.0
    %1254 = vmatpush.msra.mxu0 0.0
    %1255 = vmatpush.msra.mxu0 0.0
    %1256 = vmatpush.msra.mxu0 %v1107
    %1257 = vmatmul.f32.gmra.mxu0 %v1236
    %v1258 = vpop.f32.mrf.mxu0
    %v1259 = vadd.f32 %v1230, %v1258
    %1260 = vmatmul.f32.gmra.mxu0 %v1239
    %v1261 = vpop.f32.mrf.mxu0
    %v1262 = vadd.f32 %v1233, %v1261
    %1263 = vdwg.mxu0
    %s1264 = scalar_lea.vmem %s8, 32
    %v1265 = vld [vmem:[%s1264] sm:$0xff]
    %v1266 = vld [vmem:[%s1264 + $0x8] sm:$0xff]
    %v1268 = vsel %vm860, %v1265, 0
    %v1271 = vsel %vm860, %v1266, 0
    %1273 = vmatpush.msra.mxu0 0.0
    %1274 = vmatpush.msra.mxu0 0.0
    %1275 = vmatpush.msra.mxu0 0.0
    %1276 = vmatpush.msra.mxu0 0.0
    %1277 = vmatpush.msra.mxu0 0.0
    %1278 = vmatpush.msra.mxu0 0.0
    %1279 = vmatpush.msra.mxu0 0.0
    %1280 = vmatpush.msra.mxu0 0.0
    %1281 = vmatpush.msra.mxu0 0.0
    %1282 = vmatpush.msra.mxu0 0.0
    %1283 = vmatpush.msra.mxu0 0.0
    %1284 = vmatpush.msra.mxu0 0.0
    %1285 = vmatpush.msra.mxu0 0.0
    %1286 = vmatpush.msra.mxu0 0.0
    %1287 = vmatpush.msra.mxu0 0.0
    %1288 = vmatpush.msra.mxu0 %v1133
    %1289 = vmatmul.f32.gmra.mxu0 %v1268
    %v1290 = vpop.f32.mrf.mxu0
    %v1291 = vadd.f32 0.0, %v1290
    %1292 = vmatmul.f32.gmra.mxu0 %v1271
    %v1293 = vpop.f32.mrf.mxu0
    %v1294 = vadd.f32 0.0, %v1293
    %1295 = vdwg.mxu0
    %v1296 = vadd.f32 %v1259, %v1291
    %v1297 = vadd.f32 %v1262, %v1294
    %s1298 = scalar_lea.vmem %s8, 48
    %v1299 = vld [vmem:[%s1298] sm:$0xff]
    %v1300 = vld [vmem:[%s1298 + $0x8] sm:$0xff]
    %v1302 = vsel %vm860, %v1299, 0
    %v1305 = vsel %vm860, %v1300, 0
    %1307 = vmatpush.msra.mxu0 0.0
    %1308 = vmatpush.msra.mxu0 0.0
    %1309 = vmatpush.msra.mxu0 0.0
    %1310 = vmatpush.msra.mxu0 0.0
    %1311 = vmatpush.msra.mxu0 0.0
    %1312 = vmatpush.msra.mxu0 0.0
    %1313 = vmatpush.msra.mxu0 0.0
    %1314 = vmatpush.msra.mxu0 0.0
    %1315 = vmatpush.msra.mxu0 0.0
    %1316 = vmatpush.msra.mxu0 0.0
    %1317 = vmatpush.msra.mxu0 0.0
    %1318 = vmatpush.msra.mxu0 0.0
    %1319 = vmatpush.msra.mxu0 0.0
    %1320 = vmatpush.msra.mxu0 0.0
    %1321 = vmatpush.msra.mxu0 0.0
    %1322 = vmatpush.msra.mxu0 %v1146
    %1323 = vmatmul.f32.gmra.mxu0 %v1302
    %v1324 = vpop.f32.mrf.mxu0
    %v1325 = vadd.f32 0.0, %v1324
    %1326 = vmatmul.f32.gmra.mxu0 %v1305
    %v1327 = vpop.f32.mrf.mxu0
    %v1328 = vadd.f32 0.0, %v1327
    %1329 = vdwg.mxu0
    %v1330 = vadd.f32 %v1296, %v1325
    %v1331 = vadd.f32 %v1297, %v1328
    %s1332 = scalar_lea.vmem %s8, 64
    %v1333 = vld [vmem:[%s1332] sm:$0xff]
    %v1334 = vld [vmem:[%s1332 + $0x8] sm:$0xff]
    %v1336 = vsel %vm860, %v1333, 0
    %v1339 = vsel %vm860, %v1334, 0
    %1341 = vmatpush.msra.mxu0 0.0
    %1342 = vmatpush.msra.mxu0 0.0
    %1343 = vmatpush.msra.mxu0 0.0
    %1344 = vmatpush.msra.mxu0 0.0
    %1345 = vmatpush.msra.mxu0 0.0
    %1346 = vmatpush.msra.mxu0 0.0
    %1347 = vmatpush.msra.mxu0 0.0
    %1348 = vmatpush.msra.mxu0 0.0
    %1349 = vmatpush.msra.mxu0 0.0
    %1350 = vmatpush.msra.mxu0 0.0
    %1351 = vmatpush.msra.mxu0 0.0
    %1352 = vmatpush.msra.mxu0 0.0
    %1353 = vmatpush.msra.mxu0 0.0
    %1354 = vmatpush.msra.mxu0 0.0
    %1355 = vmatpush.msra.mxu0 0.0
    %1356 = vmatpush.msra.mxu0 %v1159
    %1357 = vmatmul.f32.gmra.mxu0 %v1336
    %v1358 = vpop.f32.mrf.mxu0
    %v1359 = vadd.f32 0.0, %v1358
    %1360 = vmatmul.f32.gmra.mxu0 %v1339
    %v1361 = vpop.f32.mrf.mxu0
    %v1362 = vadd.f32 0.0, %v1361
    %1363 = vdwg.mxu0
    %v1364 = vadd.f32 %v1330, %v1359
    %v1365 = vadd.f32 %v1331, %v1362
    %s1366 = scalar_lea.vmem %s8, 80
    %v1367 = vld [vmem:[%s1366] sm:$0xff]
    %v1368 = vld [vmem:[%s1366 + $0x8] sm:$0xff]
    %v1370 = vsel %vm860, %v1367, 0
    %v1373 = vsel %vm860, %v1368, 0
    %1375 = vmatpush.msra.mxu0 0.0
    %1376 = vmatpush.msra.mxu0 0.0
    %1377 = vmatpush.msra.mxu0 0.0
    %1378 = vmatpush.msra.mxu0 0.0
    %1379 = vmatpush.msra.mxu0 0.0
    %1380 = vmatpush.msra.mxu0 0.0
    %1381 = vmatpush.msra.mxu0 0.0
    %1382 = vmatpush.msra.mxu0 0.0
    %1383 = vmatpush.msra.mxu0 0.0
    %1384 = vmatpush.msra.mxu0 0.0
    %1385 = vmatpush.msra.mxu0 0.0
    %1386 = vmatpush.msra.mxu0 0.0
    %1387 = vmatpush.msra.mxu0 0.0
    %1388 = vmatpush.msra.mxu0 0.0
    %1389 = vmatpush.msra.mxu0 0.0
    %1390 = vmatpush.msra.mxu0 %v1172
    %1391 = vmatmul.f32.gmra.mxu0 %v1370
    %v1392 = vpop.f32.mrf.mxu0
    %v1393 = vadd.f32 0.0, %v1392
    %1394 = vmatmul.f32.gmra.mxu0 %v1373
    %v1395 = vpop.f32.mrf.mxu0
    %v1396 = vadd.f32 0.0, %v1395
    %1397 = vdwg.mxu0
    %v1398 = vadd.f32 %v1364, %v1393
    %v1399 = vadd.f32 %v1365, %v1396
    %s1400 = scalar_lea.vmem %s8, 96
    %v1401 = vld [vmem:[%s1400] sm:$0xff]
    %v1402 = vld [vmem:[%s1400 + $0x8] sm:$0xff]
    %v1404 = vsel %vm860, %v1401, 0
    %v1407 = vsel %vm860, %v1402, 0
    %1409 = vmatpush.msra.mxu0 0.0
    %1410 = vmatpush.msra.mxu0 0.0
    %1411 = vmatpush.msra.mxu0 0.0
    %1412 = vmatpush.msra.mxu0 0.0
    %1413 = vmatpush.msra.mxu0 0.0
    %1414 = vmatpush.msra.mxu0 0.0
    %1415 = vmatpush.msra.mxu0 0.0
    %1416 = vmatpush.msra.mxu0 0.0
    %1417 = vmatpush.msra.mxu0 0.0
    %1418 = vmatpush.msra.mxu0 0.0
    %1419 = vmatpush.msra.mxu0 0.0
    %1420 = vmatpush.msra.mxu0 0.0
    %1421 = vmatpush.msra.mxu0 0.0
    %1422 = vmatpush.msra.mxu0 0.0
    %1423 = vmatpush.msra.mxu0 0.0
    %1424 = vmatpush.msra.mxu0 %v1185
    %1425 = vmatmul.f32.gmra.mxu0 %v1404
    %v1426 = vpop.f32.mrf.mxu0
    %v1427 = vadd.f32 0.0, %v1426
    %1428 = vmatmul.f32.gmra.mxu0 %v1407
    %v1429 = vpop.f32.mrf.mxu0
    %v1430 = vadd.f32 0.0, %v1429
    %1431 = vdwg.mxu0
    %v1432 = vadd.f32 %v1398, %v1427
    %v1433 = vadd.f32 %v1399, %v1430
    %s1434 = scalar_lea.vmem %s8, 112
    %v1435 = vld [vmem:[%s1434] sm:$0xff]
    %v1436 = vld [vmem:[%s1434 + $0x8] sm:$0xff]
    %v1438 = vsel %vm860, %v1435, 0
    %v1441 = vsel %vm860, %v1436, 0
    %1443 = vmatpush.msra.mxu0 0.0
    %1444 = vmatpush.msra.mxu0 0.0
    %1445 = vmatpush.msra.mxu0 0.0
    %1446 = vmatpush.msra.mxu0 0.0
    %1447 = vmatpush.msra.mxu0 0.0
    %1448 = vmatpush.msra.mxu0 0.0
    %1449 = vmatpush.msra.mxu0 0.0
    %1450 = vmatpush.msra.mxu0 0.0
    %1451 = vmatpush.msra.mxu0 0.0
    %1452 = vmatpush.msra.mxu0 0.0
    %1453 = vmatpush.msra.mxu0 0.0
    %1454 = vmatpush.msra.mxu0 0.0
    %1455 = vmatpush.msra.mxu0 0.0
    %1456 = vmatpush.msra.mxu0 0.0
    %1457 = vmatpush.msra.mxu0 0.0
    %1458 = vmatpush.msra.mxu0 %v1198
    %1459 = vmatmul.f32.gmra.mxu0 %v1438
    %v1460 = vpop.f32.mrf.mxu0
    %v1461 = vadd.f32 0.0, %v1460
    %1462 = vmatmul.f32.gmra.mxu0 %v1441
    %v1463 = vpop.f32.mrf.mxu0
    %v1464 = vadd.f32 0.0, %v1463
    %1465 = vdwg.mxu0
    %v1466 = vadd.f32 %v1432, %v1461
    %v1467 = vadd.f32 %v1433, %v1464
    %vm1468 = vcmp.gt.f32.partialorder %v1466, 0.0
    %vm1469 = vcmp.gt.f32.partialorder %v1467, 0.0
    %v1470 = vmin.f32 %v1466, 0.0
    %v1471 = vmin.f32 %v1467, 0.0
    %v1472 = vmul.f32 %v1470, 1.442695
    %v1473 = vpow.pop %v1472
    %v1474 = vmul.f32 %v1471, 1.442695
    %v1475 = vpow.pop %v1474
    %v1476 = vsub.f32 %v1473, 1.0
    %v1477 = vsub.f32 %v1475, 1.0
    %v1478 = vsel %vm1468, %v1466, %v1476
    %v1479 = vsel %vm1469, %v1467, %v1477
    %v1480 = vmul.f32 %v1478, %v1070
    %v1481 = vmul.f32 %v1479, %v1070
    %1482 = vadd.xlane.f32.xlu0 %v1480
    %v1483 = vpop.xlane.xlu0 %1482
    %1484 = vadd.xlane.f32.xlu0 %v1481
    %v1485 = vpop.xlane.xlu0 %1484
    %v1486 = vmul.f32 %v1483, %v1075
    %v1487 = vmul.f32 %v1485, %v1075
    %v1488 = vsub.f32 %v1478, %v1486
    %v1489 = vsub.f32 %v1479, %v1487
    %v1490 = vmul.f32 %v1488, %v1488
    %v1491 = vmul.f32 %v1489, %v1489
    %v1492 = vmul.f32 %v1490, %v1070
    %v1493 = vmul.f32 %v1491, %v1070
    %1494 = vadd.xlane.f32.xlu0 %v1492
    %v1495 = vpop.xlane.xlu0 %1494
    %1496 = vadd.xlane.f32.xlu0 %v1493
    %v1497 = vpop.xlane.xlu0 %1496
    %v1498 = vmul.f32 %v1495, %v1075
    %v1499 = vmul.f32 %v1497, %v1075
    %v1500 = vadd.f32 %v1498, 1e-05
    %v1501 = vadd.f32 %v1499, 1e-05
    %v1502 = vrsqrt.pop %v1500
    %v1503 = vmul.f32 %v1502, %v1500
    %v1504 = vmul.f32 %v1503, %v1502
    %v1505 = vmul.f32 0.5, %v1504
    %v1506 = vsub.f32 1.5, %v1505
    %v1507 = vmul.f32 %v1502, %v1506
    %vm1508 = vweird.f32 %v1500
    %vm1509 = vweird.f32 %v1502
    %vm1510 = vmor %vm1508, %vm1509
    %v1511 = vsel %vm1510, %v1502, %v1507
    %v1512 = vrsqrt.pop %v1501
    %v1513 = vmul.f32 %v1512, %v1501
    %v1514 = vmul.f32 %v1513, %v1512
    %v1515 = vmul.f32 0.5, %v1514
    %v1516 = vsub.f32 1.5, %v1515
    %v1517 = vmul.f32 %v1512, %v1516
    %vm1518 = vweird.f32 %v1501
    %vm1519 = vweird.f32 %v1512
    %vm1520 = vmor %vm1518, %vm1519
    %v1521 = vsel %vm1520, %v1512, %v1517
    %v1522 = vmul.f32 %v1488, %v1511
    %v1523 = vmul.f32 %v1489, %v1521
    %v1524 = vmul.f32 %v1522, %v1070
    %v1525 = vmul.f32 %v1523, %v1070
    %v1526 = vpack.c.bf16 %v1525, %v1524
    %1527 = vmatpush.bf16.msra.mxu0 %v681
    %1528 = vmatpush.bf16.msra.mxu0 %v673
    %1529 = vmatpush.bf16.msra.mxu0 %v665
    %1530 = vmatpush.bf16.msra.mxu0 %v657
    %1531 = vmatpush.bf16.msra.mxu0 %v649
    %1532 = vmatpush.bf16.msra.mxu0 %v641
    %1533 = vmatpush.bf16.msra.mxu0 %v633
    %1534 = vmatpush.bf16.msra.mxu0 %v625
    %1535 = vmatmul.bf16.gmra.mxu0 %v1526
    %v1536 = vpop.f32.mrf.mxu0
    %v1537 = vadd.f32 0.0, %v1536
    %v1538 = vpop.f32.mrf.mxu0
    %v1539 = vadd.f32 0.0, %v1538
    %1540 = vdwg.mxu0
    %1541 = vmatpush.bf16.msra.mxu0 %v682
    %1542 = vmatpush.bf16.msra.mxu0 %v674
    %1543 = vmatpush.bf16.msra.mxu0 %v666
    %1544 = vmatpush.bf16.msra.mxu0 %v658
    %1545 = vmatpush.bf16.msra.mxu0 %v650
    %1546 = vmatpush.bf16.msra.mxu0 %v642
    %1547 = vmatpush.bf16.msra.mxu0 %v634
    %1548 = vmatpush.bf16.msra.mxu0 %v626
    %1549 = vmatmul.bf16.gmra.mxu0 %v1526
    %v1550 = vpop.f32.mrf.mxu0
    %v1551 = vadd.f32 0.0, %v1550
    %v1552 = vpop.f32.mrf.mxu0
    %v1553 = vadd.f32 0.0, %v1552
    %1554 = vdwg.mxu0
    %1555 = vmatpush.bf16.msra.mxu0 %v683
    %1556 = vmatpush.bf16.msra.mxu0 %v675
    %1557 = vmatpush.bf16.msra.mxu0 %v667
    %1558 = vmatpush.bf16.msra.mxu0 %v659
    %1559 = vmatpush.bf16.msra.mxu0 %v651
    %1560 = vmatpush.bf16.msra.mxu0 %v643
    %1561 = vmatpush.bf16.msra.mxu0 %v635
    %1562 = vmatpush.bf16.msra.mxu0 %v627
    %1563 = vmatmul.bf16.gmra.mxu0 %v1526
    %v1564 = vpop.f32.mrf.mxu0
    %v1565 = vadd.f32 0.0, %v1564
    %v1566 = vpop.f32.mrf.mxu0
    %v1567 = vadd.f32 0.0, %v1566
    %1568 = vdwg.mxu0
    %1569 = vmatpush.bf16.msra.mxu0 %v684
    %1570 = vmatpush.bf16.msra.mxu0 %v676
    %1571 = vmatpush.bf16.msra.mxu0 %v668
    %1572 = vmatpush.bf16.msra.mxu0 %v660
    %1573 = vmatpush.bf16.msra.mxu0 %v652
    %1574 = vmatpush.bf16.msra.mxu0 %v644
    %1575 = vmatpush.bf16.msra.mxu0 %v636
    %1576 = vmatpush.bf16.msra.mxu0 %v628
    %1577 = vmatmul.bf16.gmra.mxu0 %v1526
    %v1578 = vpop.f32.mrf.mxu0
    %v1579 = vadd.f32 0.0, %v1578
    %v1580 = vpop.f32.mrf.mxu0
    %v1581 = vadd.f32 0.0, %v1580
    %1582 = vdwg.mxu0
    %1583 = vmatpush.bf16.msra.mxu0 %v685
    %1584 = vmatpush.bf16.msra.mxu0 %v677
    %1585 = vmatpush.bf16.msra.mxu0 %v669
    %1586 = vmatpush.bf16.msra.mxu0 %v661
    %1587 = vmatpush.bf16.msra.mxu0 %v653
    %1588 = vmatpush.bf16.msra.mxu0 %v645
    %1589 = vmatpush.bf16.msra.mxu0 %v637
    %1590 = vmatpush.bf16.msra.mxu0 %v629
    %1591 = vmatmul.bf16.gmra.mxu0 %v1526
    %v1592 = vpop.f32.mrf.mxu0
    %v1593 = vadd.f32 0.0, %v1592
    %v1594 = vpop.f32.mrf.mxu0
    %v1595 = vadd.f32 0.0, %v1594
    %1596 = vdwg.mxu0
    %1597 = vmatpush.bf16.msra.mxu0 %v686
    %1598 = vmatpush.bf16.msra.mxu0 %v678
    %1599 = vmatpush.bf16.msra.mxu0 %v670
    %1600 = vmatpush.bf16.msra.mxu0 %v662
    %1601 = vmatpush.bf16.msra.mxu0 %v654
    %1602 = vmatpush.bf16.msra.mxu0 %v646
    %1603 = vmatpush.bf16.msra.mxu0 %v638
    %1604 = vmatpush.bf16.msra.mxu0 %v630
    %1605 = vmatmul.bf16.gmra.mxu0 %v1526
    %v1606 = vpop.f32.mrf.mxu0
    %v1607 = vadd.f32 0.0, %v1606
    %v1608 = vpop.f32.mrf.mxu0
    %v1609 = vadd.f32 0.0, %v1608
    %1610 = vdwg.mxu0
    %1611 = vmatpush.bf16.msra.mxu0 %v687
    %1612 = vmatpush.bf16.msra.mxu0 %v679
    %1613 = vmatpush.bf16.msra.mxu0 %v671
    %1614 = vmatpush.bf16.msra.mxu0 %v663
    %1615 = vmatpush.bf16.msra.mxu0 %v655
    %1616 = vmatpush.bf16.msra.mxu0 %v647
    %1617 = vmatpush.bf16.msra.mxu0 %v639
    %1618 = vmatpush.bf16.msra.mxu0 %v631
    %1619 = vmatmul.bf16.gmra.mxu0 %v1526
    %v1620 = vpop.f32.mrf.mxu0
    %v1621 = vadd.f32 0.0, %v1620
    %v1622 = vpop.f32.mrf.mxu0
    %v1623 = vadd.f32 0.0, %v1622
    %1624 = vdwg.mxu0
    %1625 = vmatpush.bf16.msra.mxu0 %v688
    %1626 = vmatpush.bf16.msra.mxu0 %v680
    %1627 = vmatpush.bf16.msra.mxu0 %v672
    %1628 = vmatpush.bf16.msra.mxu0 %v664
    %1629 = vmatpush.bf16.msra.mxu0 %v656
    %1630 = vmatpush.bf16.msra.mxu0 %v648
    %1631 = vmatpush.bf16.msra.mxu0 %v640
    %1632 = vmatpush.bf16.msra.mxu0 %v632
    %1633 = vmatmul.bf16.gmra.mxu0 %v1526
    %v1634 = vpop.f32.mrf.mxu0
    %v1635 = vadd.f32 0.0, %v1634
    %v1636 = vpop.f32.mrf.mxu0
    %v1637 = vadd.f32 0.0, %v1636
    %1638 = vdwg.mxu0
    %v1639 = vld [vmem:[%s9] sm:$0xff]
    %v1640 = vld [vmem:[%s9 + $0x8] sm:$0xff]
    %s1641 = scalar_lea.vmem %s9, 16
    %v1642 = vld [vmem:[%s1641] sm:$0xff]
    %v1643 = vld [vmem:[%s1641 + $0x8] sm:$0xff]
    %vm1644 = vcmask 130048
    %v1646 = vsel %vm1644, %v1642, 0
    %v1649 = vsel %vm1644, %v1643, 0
    %1651 = vmatpush.msra.mxu0 0.0
    %1652 = vmatpush.msra.mxu0 0.0
    %1653 = vmatpush.msra.mxu0 0.0
    %1654 = vmatpush.msra.mxu0 0.0
    %1655 = vmatpush.msra.mxu0 0.0
    %1656 = vmatpush.msra.mxu0 0.0
    %1657 = vmatpush.msra.mxu0 0.0
    %1658 = vmatpush.msra.mxu0 0.0
    %1659 = vmatpush.msra.mxu0 0.0
    %1660 = vmatpush.msra.mxu0 0.0
    %1661 = vmatpush.msra.mxu0 0.0
    %1662 = vmatpush.msra.mxu0 0.0
    %1663 = vmatpush.msra.mxu0 0.0
    %1664 = vmatpush.msra.mxu0 0.0
    %1665 = vmatpush.msra.mxu0 %v1553
    %1666 = vmatpush.msra.mxu0 %v1551
    %1667 = vmatmul.f32.gmra.mxu0 %v1646
    %v1668 = vpop.f32.mrf.mxu0
    %v1669 = vadd.f32 0.0, %v1668
    %1670 = vmatmul.f32.gmra.mxu0 %v1649
    %v1671 = vpop.f32.mrf.mxu0
    %v1672 = vadd.f32 0.0, %v1671
    %1673 = vdwg.mxu0
    %v1675 = vsel %vm1644, %v1639, 0
    %v1678 = vsel %vm1644, %v1640, 0
    %1680 = vmatpush.msra.mxu0 0.0
    %1681 = vmatpush.msra.mxu0 0.0
    %1682 = vmatpush.msra.mxu0 0.0
    %1683 = vmatpush.msra.mxu0 0.0
    %1684 = vmatpush.msra.mxu0 0.0
    %1685 = vmatpush.msra.mxu0 0.0
    %1686 = vmatpush.msra.mxu0 0.0
    %1687 = vmatpush.msra.mxu0 0.0
    %1688 = vmatpush.msra.mxu0 0.0
    %1689 = vmatpush.msra.mxu0 0.0
    %1690 = vmatpush.msra.mxu0 0.0
    %1691 = vmatpush.msra.mxu0 0.0
    %1692 = vmatpush.msra.mxu0 0.0
    %1693 = vmatpush.msra.mxu0 0.0
    %1694 = vmatpush.msra.mxu0 %v1539
    %1695 = vmatpush.msra.mxu0 %v1537
    %1696 = vmatmul.f32.gmra.mxu0 %v1675
    %v1697 = vpop.f32.mrf.mxu0
    %v1698 = vadd.f32 %v1669, %v1697
    %1699 = vmatmul.f32.gmra.mxu0 %v1678
    %v1700 = vpop.f32.mrf.mxu0
    %v1701 = vadd.f32 %v1672, %v1700
    %1702 = vdwg.mxu0
    %s1703 = scalar_lea.vmem %s9, 32
    %v1704 = vld [vmem:[%s1703] sm:$0xff]
    %v1705 = vld [vmem:[%s1703 + $0x8] sm:$0xff]
    %v1707 = vsel %vm1644, %v1704, 0
    %v1710 = vsel %vm1644, %v1705, 0
    %1712 = vmatpush.msra.mxu0 0.0
    %1713 = vmatpush.msra.mxu0 0.0
    %1714 = vmatpush.msra.mxu0 0.0
    %1715 = vmatpush.msra.mxu0 0.0
    %1716 = vmatpush.msra.mxu0 0.0
    %1717 = vmatpush.msra.mxu0 0.0
    %1718 = vmatpush.msra.mxu0 0.0
    %1719 = vmatpush.msra.mxu0 0.0
    %1720 = vmatpush.msra.mxu0 0.0
    %1721 = vmatpush.msra.mxu0 0.0
    %1722 = vmatpush.msra.mxu0 0.0
    %1723 = vmatpush.msra.mxu0 0.0
    %1724 = vmatpush.msra.mxu0 0.0
    %1725 = vmatpush.msra.mxu0 0.0
    %1726 = vmatpush.msra.mxu0 %v1567
    %1727 = vmatpush.msra.mxu0 %v1565
    %1728 = vmatmul.f32.gmra.mxu0 %v1707
    %v1729 = vpop.f32.mrf.mxu0
    %v1730 = vadd.f32 0.0, %v1729
    %1731 = vmatmul.f32.gmra.mxu0 %v1710
    %v1732 = vpop.f32.mrf.mxu0
    %v1733 = vadd.f32 0.0, %v1732
    %1734 = vdwg.mxu0
    %v1735 = vadd.f32 %v1698, %v1730
    %v1736 = vadd.f32 %v1701, %v1733
    %s1737 = scalar_lea.vmem %s9, 48
    %v1738 = vld [vmem:[%s1737] sm:$0xff]
    %v1739 = vld [vmem:[%s1737 + $0x8] sm:$0xff]
    %v1741 = vsel %vm1644, %v1738, 0
    %v1744 = vsel %vm1644, %v1739, 0
    %1746 = vmatpush.msra.mxu0 0.0
    %1747 = vmatpush.msra.mxu0 0.0
    %1748 = vmatpush.msra.mxu0 0.0
    %1749 = vmatpush.msra.mxu0 0.0
    %1750 = vmatpush.msra.mxu0 0.0
    %1751 = vmatpush.msra.mxu0 0.0
    %1752 = vmatpush.msra.mxu0 0.0
    %1753 = vmatpush.msra.mxu0 0.0
    %1754 = vmatpush.msra.mxu0 0.0
    %1755 = vmatpush.msra.mxu0 0.0
    %1756 = vmatpush.msra.mxu0 0.0
    %1757 = vmatpush.msra.mxu0 0.0
    %1758 = vmatpush.msra.mxu0 0.0
    %1759 = vmatpush.msra.mxu0 0.0
    %1760 = vmatpush.msra.mxu0 %v1581
    %1761 = vmatpush.msra.mxu0 %v1579
    %1762 = vmatmul.f32.gmra.mxu0 %v1741
    %v1763 = vpop.f32.mrf.mxu0
    %v1764 = vadd.f32 0.0, %v1763
    %1765 = vmatmul.f32.gmra.mxu0 %v1744
    %v1766 = vpop.f32.mrf.mxu0
    %v1767 = vadd.f32 0.0, %v1766
    %1768 = vdwg.mxu0
    %v1769 = vadd.f32 %v1735, %v1764
    %v1770 = vadd.f32 %v1736, %v1767
    %s1771 = scalar_lea.vmem %s9, 64
    %v1772 = vld [vmem:[%s1771] sm:$0xff]
    %v1773 = vld [vmem:[%s1771 + $0x8] sm:$0xff]
    %v1775 = vsel %vm1644, %v1772, 0
    %v1778 = vsel %vm1644, %v1773, 0
    %1780 = vmatpush.msra.mxu0 0.0
    %1781 = vmatpush.msra.mxu0 0.0
    %1782 = vmatpush.msra.mxu0 0.0
    %1783 = vmatpush.msra.mxu0 0.0
    %1784 = vmatpush.msra.mxu0 0.0
    %1785 = vmatpush.msra.mxu0 0.0
    %1786 = vmatpush.msra.mxu0 0.0
    %1787 = vmatpush.msra.mxu0 0.0
    %1788 = vmatpush.msra.mxu0 0.0
    %1789 = vmatpush.msra.mxu0 0.0
    %1790 = vmatpush.msra.mxu0 0.0
    %1791 = vmatpush.msra.mxu0 0.0
    %1792 = vmatpush.msra.mxu0 0.0
    %1793 = vmatpush.msra.mxu0 0.0
    %1794 = vmatpush.msra.mxu0 %v1595
    %1795 = vmatpush.msra.mxu0 %v1593
    %1796 = vmatmul.f32.gmra.mxu0 %v1775
    %v1797 = vpop.f32.mrf.mxu0
    %v1798 = vadd.f32 0.0, %v1797
    %1799 = vmatmul.f32.gmra.mxu0 %v1778
    %v1800 = vpop.f32.mrf.mxu0
    %v1801 = vadd.f32 0.0, %v1800
    %1802 = vdwg.mxu0
    %v1803 = vadd.f32 %v1769, %v1798
    %v1804 = vadd.f32 %v1770, %v1801
    %s1805 = scalar_lea.vmem %s9, 80
    %v1806 = vld [vmem:[%s1805] sm:$0xff]
    %v1807 = vld [vmem:[%s1805 + $0x8] sm:$0xff]
    %v1809 = vsel %vm1644, %v1806, 0
    %v1812 = vsel %vm1644, %v1807, 0
    %1814 = vmatpush.msra.mxu0 0.0
    %1815 = vmatpush.msra.mxu0 0.0
    %1816 = vmatpush.msra.mxu0 0.0
    %1817 = vmatpush.msra.mxu0 0.0
    %1818 = vmatpush.msra.mxu0 0.0
    %1819 = vmatpush.msra.mxu0 0.0
    %1820 = vmatpush.msra.mxu0 0.0
    %1821 = vmatpush.msra.mxu0 0.0
    %1822 = vmatpush.msra.mxu0 0.0
    %1823 = vmatpush.msra.mxu0 0.0
    %1824 = vmatpush.msra.mxu0 0.0
    %1825 = vmatpush.msra.mxu0 0.0
    %1826 = vmatpush.msra.mxu0 0.0
    %1827 = vmatpush.msra.mxu0 0.0
    %1828 = vmatpush.msra.mxu0 %v1609
    %1829 = vmatpush.msra.mxu0 %v1607
    %1830 = vmatmul.f32.gmra.mxu0 %v1809
    %v1831 = vpop.f32.mrf.mxu0
    %v1832 = vadd.f32 0.0, %v1831
    %1833 = vmatmul.f32.gmra.mxu0 %v1812
    %v1834 = vpop.f32.mrf.mxu0
    %v1835 = vadd.f32 0.0, %v1834
    %1836 = vdwg.mxu0
    %v1837 = vadd.f32 %v1803, %v1832
    %v1838 = vadd.f32 %v1804, %v1835
    %s1839 = scalar_lea.vmem %s9, 96
    %v1840 = vld [vmem:[%s1839] sm:$0xff]
    %v1841 = vld [vmem:[%s1839 + $0x8] sm:$0xff]
    %v1843 = vsel %vm1644, %v1840, 0
    %v1846 = vsel %vm1644, %v1841, 0
    %1848 = vmatpush.msra.mxu0 0.0
    %1849 = vmatpush.msra.mxu0 0.0
    %1850 = vmatpush.msra.mxu0 0.0
    %1851 = vmatpush.msra.mxu0 0.0
    %1852 = vmatpush.msra.mxu0 0.0
    %1853 = vmatpush.msra.mxu0 0.0
    %1854 = vmatpush.msra.mxu0 0.0
    %1855 = vmatpush.msra.mxu0 0.0
    %1856 = vmatpush.msra.mxu0 0.0
    %1857 = vmatpush.msra.mxu0 0.0
    %1858 = vmatpush.msra.mxu0 0.0
    %1859 = vmatpush.msra.mxu0 0.0
    %1860 = vmatpush.msra.mxu0 0.0
    %1861 = vmatpush.msra.mxu0 0.0
    %1862 = vmatpush.msra.mxu0 %v1623
    %1863 = vmatpush.msra.mxu0 %v1621
    %1864 = vmatmul.f32.gmra.mxu0 %v1843
    %v1865 = vpop.f32.mrf.mxu0
    %v1866 = vadd.f32 0.0, %v1865
    %1867 = vmatmul.f32.gmra.mxu0 %v1846
    %v1868 = vpop.f32.mrf.mxu0
    %v1869 = vadd.f32 0.0, %v1868
    %1870 = vdwg.mxu0
    %v1871 = vadd.f32 %v1837, %v1866
    %v1872 = vadd.f32 %v1838, %v1869
    %s1873 = scalar_lea.vmem %s9, 112
    %v1874 = vld [vmem:[%s1873] sm:$0xff]
    %v1875 = vld [vmem:[%s1873 + $0x8] sm:$0xff]
    %v1877 = vsel %vm1644, %v1874, 0
    %v1880 = vsel %vm1644, %v1875, 0
    %1882 = vmatpush.msra.mxu0 0.0
    %1883 = vmatpush.msra.mxu0 0.0
    %1884 = vmatpush.msra.mxu0 0.0
    %1885 = vmatpush.msra.mxu0 0.0
    %1886 = vmatpush.msra.mxu0 0.0
    %1887 = vmatpush.msra.mxu0 0.0
    %1888 = vmatpush.msra.mxu0 0.0
    %1889 = vmatpush.msra.mxu0 0.0
    %1890 = vmatpush.msra.mxu0 0.0
    %1891 = vmatpush.msra.mxu0 0.0
    %1892 = vmatpush.msra.mxu0 0.0
    %1893 = vmatpush.msra.mxu0 0.0
    %1894 = vmatpush.msra.mxu0 0.0
    %1895 = vmatpush.msra.mxu0 0.0
    %1896 = vmatpush.msra.mxu0 %v1637
    %1897 = vmatpush.msra.mxu0 %v1635
    %1898 = vmatmul.f32.gmra.mxu0 %v1877
    %v1899 = vpop.f32.mrf.mxu0
    %v1900 = vadd.f32 0.0, %v1899
    %1901 = vmatmul.f32.gmra.mxu0 %v1880
    %v1902 = vpop.f32.mrf.mxu0
    %v1903 = vadd.f32 0.0, %v1902
    %1904 = vdwg.mxu0
    %v1905 = vadd.f32 %v1871, %v1900
    %v1906 = vadd.f32 %v1872, %v1903
    %vm1907 = vcmp.gt.f32.partialorder %v1905, 0.0
    %vm1908 = vcmp.gt.f32.partialorder %v1906, 0.0
    %v1909 = vmin.f32 %v1905, 0.0
    %v1910 = vmin.f32 %v1906, 0.0
    %v1911 = vmul.f32 %v1909, 1.442695
    %v1912 = vpow.pop %v1911
    %v1913 = vmul.f32 %v1910, 1.442695
    %v1914 = vpow.pop %v1913
    %v1915 = vsub.f32 %v1912, 1.0
    %v1916 = vsub.f32 %v1914, 1.0
    %v1917 = vsel %vm1907, %v1905, %v1915
    %v1918 = vsel %vm1908, %v1906, %v1916
    %v1919 = vmul.f32 %v1917, %v1070
    %v1920 = vmul.f32 %v1918, %v1070
    %1921 = vadd.xlane.f32.xlu0 %v1919
    %v1922 = vpop.xlane.xlu0 %1921
    %1923 = vadd.xlane.f32.xlu0 %v1920
    %v1924 = vpop.xlane.xlu0 %1923
    %v1925 = vmul.f32 %v1922, %v1075
    %v1926 = vmul.f32 %v1924, %v1075
    %v1927 = vsub.f32 %v1917, %v1925
    %v1928 = vsub.f32 %v1918, %v1926
    %v1929 = vmul.f32 %v1927, %v1927
    %v1930 = vmul.f32 %v1928, %v1928
    %v1931 = vmul.f32 %v1929, %v1070
    %v1932 = vmul.f32 %v1930, %v1070
    %1933 = vadd.xlane.f32.xlu0 %v1931
    %v1934 = vpop.xlane.xlu0 %1933
    %1935 = vadd.xlane.f32.xlu0 %v1932
    %v1936 = vpop.xlane.xlu0 %1935
    %v1937 = vmul.f32 %v1934, %v1075
    %v1938 = vmul.f32 %v1936, %v1075
    %v1939 = vadd.f32 %v1937, 1e-05
    %v1940 = vadd.f32 %v1938, 1e-05
    %v1941 = vrsqrt.pop %v1939
    %v1942 = vmul.f32 %v1941, %v1939
    %v1943 = vmul.f32 %v1942, %v1941
    %v1944 = vmul.f32 0.5, %v1943
    %v1945 = vsub.f32 1.5, %v1944
    %v1946 = vmul.f32 %v1941, %v1945
    %vm1947 = vweird.f32 %v1939
    %vm1948 = vweird.f32 %v1941
    %vm1949 = vmor %vm1947, %vm1948
    %v1950 = vsel %vm1949, %v1941, %v1946
    %v1951 = vrsqrt.pop %v1940
    %v1952 = vmul.f32 %v1951, %v1940
    %v1953 = vmul.f32 %v1952, %v1951
    %v1954 = vmul.f32 0.5, %v1953
    %v1955 = vsub.f32 1.5, %v1954
    %v1956 = vmul.f32 %v1951, %v1955
    %vm1957 = vweird.f32 %v1940
    %vm1958 = vweird.f32 %v1951
    %vm1959 = vmor %vm1957, %vm1958
    %v1960 = vsel %vm1959, %v1951, %v1956
    %v1961 = vmul.f32 %v1927, %v1950
    %v1962 = vmul.f32 %v1928, %v1960
    %v1963 = vmul.f32 %v1961, %v1070
    %v1964 = vmul.f32 %v1962, %v1070
    %v1965 = vld [vmem:[%s19] sm:$0x1]
    %v1966 = vld [vmem:[#allocation16] sm:$0xff]
    %v1967 = vld [vmem:[#allocation16 + $0x8] sm:$0xff]
    %v1968 = vld [vmem:[#allocation16 + $0x10] sm:$0xff]
    %v1969 = vld [vmem:[#allocation16 + $0x18] sm:$0xff]
    %v1970 = vld [vmem:[#allocation16 + $0x20] sm:$0xff]
    %v1971 = vld [vmem:[#allocation16 + $0x28] sm:$0xff]
    %v1972 = vld [vmem:[#allocation16 + $0x30] sm:$0xff]
    %v1973 = vld [vmem:[#allocation16 + $0x38] sm:$0xff]
    %v1974 = vld [vmem:[#allocation16 + $0x40] sm:$0xff]
    %v1975 = vld [vmem:[#allocation16 + $0x48] sm:$0xff]
    %v1976 = vld [vmem:[#allocation16 + $0x50] sm:$0xff]
    %v1977 = vld [vmem:[#allocation16 + $0x58] sm:$0xff]
    %v1978 = vld [vmem:[#allocation16 + $0x60] sm:$0xff]
    %v1979 = vld [vmem:[#allocation16 + $0x68] sm:$0xff]
    %v1980 = vld [vmem:[#allocation16 + $0x70] sm:$0xff]
    %v1981 = vld [vmem:[#allocation16 + $0x78] sm:$0xff]
    %v1982 = vld [vmem:[%s18] sm:$0x1]
    %v1984 = vperm.slane %v1982, 0
    %1986 = vmatpush.msra.mxu0 %v1981
    %1987 = vmatpush.msra.mxu0 %v1980
    %1988 = vmatpush.msra.mxu0 %v1979
    %1989 = vmatpush.msra.mxu0 %v1978
    %1990 = vmatpush.msra.mxu0 %v1977
    %1991 = vmatpush.msra.mxu0 %v1976
    %1992 = vmatpush.msra.mxu0 %v1975
    %1993 = vmatpush.msra.mxu0 %v1974
    %1994 = vmatpush.msra.mxu0 %v1973
    %1995 = vmatpush.msra.mxu0 %v1972
    %1996 = vmatpush.msra.mxu0 %v1971
    %1997 = vmatpush.msra.mxu0 %v1970
    %1998 = vmatpush.msra.mxu0 %v1969
    %1999 = vmatpush.msra.mxu0 %v1968
    %2000 = vmatpush.msra.mxu0 %v1967
    %2001 = vmatpush.msra.mxu0 %v1966
    %2002 = vmatmul.f32.gmra.mxu0 %v1963
    %v2003 = vpop.f32.mrf.mxu0
    %v2004 = vadd.f32 %v1984, %v2003
    %2005 = vmatmul.f32.gmra.mxu0 %v1964
    %v2006 = vpop.f32.mrf.mxu0
    %v2007 = vadd.f32 %v1984, %v2006
    %2008 = vdwg.mxu0
    %vm2009 = vcmp.gt.f32.partialorder %v1965, 0.0
    %v2010 = vsel %vm2009, 1, 0
    %v2011 = vperm.slane %v2010, 0
    %vm2012 = vcmp.eq.s32.totalorder %v2011, 1
    %v2013 = vsel %vm2012, %v2004, 0.0
    %v2014 = vsel %vm2012, %v2007, 0.0
    %v2015 = vpack.c.bf16 %v2014, %v2013
    %v2016 = vld [vmem:[#allocation5] sm:$0xff]
    %v2017 = vld [vmem:[#allocation5 + $0x8] sm:$0xff]
    %v2018 = vld [vmem:[#allocation5 + $0x10] sm:$0xff]
    %v2019 = vld [vmem:[#allocation5 + $0x18] sm:$0xff]
    %v2020 = vld [vmem:[#allocation5 + $0x20] sm:$0xff]
    %v2021 = vld [vmem:[#allocation5 + $0x28] sm:$0xff]
    %v2022 = vld [vmem:[#allocation5 + $0x30] sm:$0xff]
    %v2023 = vld [vmem:[#allocation5 + $0x38] sm:$0xff]
    %v2024 = vld [vmem:[#allocation5 + $0x40] sm:$0xff]
    %v2025 = vld [vmem:[#allocation5 + $0x48] sm:$0xff]
    %v2026 = vld [vmem:[#allocation5 + $0x50] sm:$0xff]
    %v2027 = vld [vmem:[#allocation5 + $0x58] sm:$0xff]
    %v2028 = vld [vmem:[#allocation5 + $0x60] sm:$0xff]
    %v2029 = vld [vmem:[#allocation5 + $0x68] sm:$0xff]
    %v2030 = vld [vmem:[#allocation5 + $0x70] sm:$0xff]
    %v2031 = vld [vmem:[#allocation5 + $0x78] sm:$0xff]
    %v2032 = vld [vmem:[#allocation5 + $0x80] sm:$0xff]
    %v2033 = vld [vmem:[#allocation5 + $0x88] sm:$0xff]
    %v2034 = vld [vmem:[#allocation5 + $0x90] sm:$0xff]
    %v2035 = vld [vmem:[#allocation5 + $0x98] sm:$0xff]
    %v2036 = vld [vmem:[#allocation5 + $0xa0] sm:$0xff]
    %v2037 = vld [vmem:[#allocation5 + $0xa8] sm:$0xff]
    %v2038 = vld [vmem:[#allocation5 + $0xb0] sm:$0xff]
    %v2039 = vld [vmem:[#allocation5 + $0xb8] sm:$0xff]
    %v2040 = vld [vmem:[#allocation5 + $0xc0] sm:$0xff]
    %v2041 = vld [vmem:[#allocation5 + $0xc8] sm:$0xff]
    %v2042 = vld [vmem:[#allocation5 + $0xd0] sm:$0xff]
    %v2043 = vld [vmem:[#allocation5 + $0xd8] sm:$0xff]
    %v2044 = vld [vmem:[#allocation5 + $0xe0] sm:$0xff]
    %v2045 = vld [vmem:[#allocation5 + $0xe8] sm:$0xff]
    %v2046 = vld [vmem:[#allocation5 + $0xf0] sm:$0xff]
    %v2047 = vld [vmem:[#allocation5 + $0xf8] sm:$0xff]
    %v2048 = vld [vmem:[#allocation5 + $0x100] sm:$0xff]
    %v2049 = vld [vmem:[#allocation5 + $0x108] sm:$0xff]
    %v2050 = vld [vmem:[#allocation5 + $0x110] sm:$0xff]
    %v2051 = vld [vmem:[#allocation5 + $0x118] sm:$0xff]
    %v2052 = vld [vmem:[#allocation5 + $0x120] sm:$0xff]
    %v2053 = vld [vmem:[#allocation5 + $0x128] sm:$0xff]
    %v2054 = vld [vmem:[#allocation5 + $0x130] sm:$0xff]
    %v2055 = vld [vmem:[#allocation5 + $0x138] sm:$0xff]
    %v2056 = vld [vmem:[#allocation5 + $0x140] sm:$0xff]
    %v2057 = vld [vmem:[#allocation5 + $0x148] sm:$0xff]
    %v2058 = vld [vmem:[#allocation5 + $0x150] sm:$0xff]
    %v2059 = vld [vmem:[#allocation5 + $0x158] sm:$0xff]
    %v2060 = vld [vmem:[#allocation5 + $0x160] sm:$0xff]
    %v2061 = vld [vmem:[#allocation5 + $0x168] sm:$0xff]
    %v2062 = vld [vmem:[#allocation5 + $0x170] sm:$0xff]
    %v2063 = vld [vmem:[#allocation5 + $0x178] sm:$0xff]
    %v2064 = vld [vmem:[#allocation5 + $0x180] sm:$0xff]
    %v2065 = vld [vmem:[#allocation5 + $0x188] sm:$0xff]
    %v2066 = vld [vmem:[#allocation5 + $0x190] sm:$0xff]
    %v2067 = vld [vmem:[#allocation5 + $0x198] sm:$0xff]
    %v2068 = vld [vmem:[#allocation5 + $0x1a0] sm:$0xff]
    %v2069 = vld [vmem:[#allocation5 + $0x1a8] sm:$0xff]
    %v2070 = vld [vmem:[#allocation5 + $0x1b0] sm:$0xff]
    %v2071 = vld [vmem:[#allocation5 + $0x1b8] sm:$0xff]
    %v2072 = vld [vmem:[#allocation5 + $0x1c0] sm:$0xff]
    %v2073 = vld [vmem:[#allocation5 + $0x1c8] sm:$0xff]
    %v2074 = vld [vmem:[#allocation5 + $0x1d0] sm:$0xff]
    %v2075 = vld [vmem:[#allocation5 + $0x1d8] sm:$0xff]
    %v2076 = vld [vmem:[#allocation5 + $0x1e0] sm:$0xff]
    %v2077 = vld [vmem:[#allocation5 + $0x1e8] sm:$0xff]
    %v2078 = vld [vmem:[#allocation5 + $0x1f0] sm:$0xff]
    %v2079 = vld [vmem:[#allocation5 + $0x1f8] sm:$0xff]
    %v2144 = vunpack.c.l.b16 %v2016
    %v2145 = vunpack.c.h.b16 %v2016
    %v2146 = vunpack.c.l.b16 %v2017
    %v2147 = vunpack.c.h.b16 %v2017
    %v2148 = vunpack.c.l.b16 %v2018
    %v2149 = vunpack.c.h.b16 %v2018
    %v2150 = vunpack.c.l.b16 %v2019
    %v2151 = vunpack.c.h.b16 %v2019
    %v2152 = vunpack.c.l.b16 %v2020
    %v2153 = vunpack.c.h.b16 %v2020
    %v2154 = vunpack.c.l.b16 %v2021
    %v2155 = vunpack.c.h.b16 %v2021
    %v2156 = vunpack.c.l.b16 %v2022
    %v2157 = vunpack.c.h.b16 %v2022
    %v2158 = vunpack.c.l.b16 %v2023
    %v2159 = vunpack.c.h.b16 %v2023
    %v2160 = vunpack.c.l.b16 %v2024
    %v2161 = vunpack.c.h.b16 %v2024
    %v2162 = vunpack.c.l.b16 %v2025
    %v2163 = vunpack.c.h.b16 %v2025
    %v2164 = vunpack.c.l.b16 %v2026
    %v2165 = vunpack.c.h.b16 %v2026
    %v2166 = vunpack.c.l.b16 %v2027
    %v2167 = vunpack.c.h.b16 %v2027
    %v2168 = vunpack.c.l.b16 %v2028
    %v2169 = vunpack.c.h.b16 %v2028
    %v2170 = vunpack.c.l.b16 %v2029
    %v2171 = vunpack.c.h.b16 %v2029
    %v2172 = vunpack.c.l.b16 %v2030
    %v2173 = vunpack.c.h.b16 %v2030
    %v2174 = vunpack.c.l.b16 %v2031
    %v2175 = vunpack.c.h.b16 %v2031
    %v2176 = vunpack.c.l.b16 %v2032
    %v2177 = vunpack.c.h.b16 %v2032
    %v2178 = vunpack.c.l.b16 %v2033
    %v2179 = vunpack.c.h.b16 %v2033
    %v2180 = vunpack.c.l.b16 %v2034
    %v2181 = vunpack.c.h.b16 %v2034
    %v2182 = vunpack.c.l.b16 %v2035
    %v2183 = vunpack.c.h.b16 %v2035
    %v2184 = vunpack.c.l.b16 %v2036
    %v2185 = vunpack.c.h.b16 %v2036
    %v2186 = vunpack.c.l.b16 %v2037
    %v2187 = vunpack.c.h.b16 %v2037
    %v2188 = vunpack.c.l.b16 %v2038
    %v2189 = vunpack.c.h.b16 %v2038
    %v2190 = vunpack.c.l.b16 %v2039
    %v2191 = vunpack.c.h.b16 %v2039
    %v2192 = vunpack.c.l.b16 %v2040
    %v2193 = vunpack.c.h.b16 %v2040
    %v2194 = vunpack.c.l.b16 %v2041
    %v2195 = vunpack.c.h.b16 %v2041
    %v2196 = vunpack.c.l.b16 %v2042
    %v2197 = vunpack.c.h.b16 %v2042
    %v2198 = vunpack.c.l.b16 %v2043
    %v2199 = vunpack.c.h.b16 %v2043
    %v2200 = vunpack.c.l.b16 %v2044
    %v2201 = vunpack.c.h.b16 %v2044
    %v2202 = vunpack.c.l.b16 %v2045
    %v2203 = vunpack.c.h.b16 %v2045
    %v2204 = vunpack.c.l.b16 %v2046
    %v2205 = vunpack.c.h.b16 %v2046
    %v2206 = vunpack.c.l.b16 %v2047
    %v2207 = vunpack.c.h.b16 %v2047
    %v2208 = vunpack.c.l.b16 %v2048
    %v2209 = vunpack.c.h.b16 %v2048
    %v2210 = vunpack.c.l.b16 %v2049
    %v2211 = vunpack.c.h.b16 %v2049
    %v2212 = vunpack.c.l.b16 %v2050
    %v2213 = vunpack.c.h.b16 %v2050
    %v2214 = vunpack.c.l.b16 %v2051
    %v2215 = vunpack.c.h.b16 %v2051
    %v2216 = vunpack.c.l.b16 %v2052
    %v2217 = vunpack.c.h.b16 %v2052
    %v2218 = vunpack.c.l.b16 %v2053
    %v2219 = vunpack.c.h.b16 %v2053
    %v2220 = vunpack.c.l.b16 %v2054
    %v2221 = vunpack.c.h.b16 %v2054
    %v2222 = vunpack.c.l.b16 %v2055
    %v2223 = vunpack.c.h.b16 %v2055
    %v2224 = vunpack.c.l.b16 %v2056
    %v2225 = vunpack.c.h.b16 %v2056
    %v2226 = vunpack.c.l.b16 %v2057
    %v2227 = vunpack.c.h.b16 %v2057
    %v2228 = vunpack.c.l.b16 %v2058
    %v2229 = vunpack.c.h.b16 %v2058
    %v2230 = vunpack.c.l.b16 %v2059
    %v2231 = vunpack.c.h.b16 %v2059
    %v2232 = vunpack.c.l.b16 %v2060
    %v2233 = vunpack.c.h.b16 %v2060
    %v2234 = vunpack.c.l.b16 %v2061
    %v2235 = vunpack.c.h.b16 %v2061
    %v2236 = vunpack.c.l.b16 %v2062
    %v2237 = vunpack.c.h.b16 %v2062
    %v2238 = vunpack.c.l.b16 %v2063
    %v2239 = vunpack.c.h.b16 %v2063
    %v2240 = vunpack.c.l.b16 %v2064
    %v2241 = vunpack.c.h.b16 %v2064
    %v2242 = vunpack.c.l.b16 %v2065
    %v2243 = vunpack.c.h.b16 %v2065
    %v2244 = vunpack.c.l.b16 %v2066
    %v2245 = vunpack.c.h.b16 %v2066
    %v2246 = vunpack.c.l.b16 %v2067
    %v2247 = vunpack.c.h.b16 %v2067
    %v2248 = vunpack.c.l.b16 %v2068
    %v2249 = vunpack.c.h.b16 %v2068
    %v2250 = vunpack.c.l.b16 %v2069
    %v2251 = vunpack.c.h.b16 %v2069
    %v2252 = vunpack.c.l.b16 %v2070
    %v2253 = vunpack.c.h.b16 %v2070
    %v2254 = vunpack.c.l.b16 %v2071
    %v2255 = vunpack.c.h.b16 %v2071
    %v2256 = vunpack.c.l.b16 %v2072
    %v2257 = vunpack.c.h.b16 %v2072
    %v2258 = vunpack.c.l.b16 %v2073
    %v2259 = vunpack.c.h.b16 %v2073
    %v2260 = vunpack.c.l.b16 %v2074
    %v2261 = vunpack.c.h.b16 %v2074
    %v2262 = vunpack.c.l.b16 %v2075
    %v2263 = vunpack.c.h.b16 %v2075
    %v2264 = vunpack.c.l.b16 %v2076
    %v2265 = vunpack.c.h.b16 %v2076
    %v2266 = vunpack.c.l.b16 %v2077
    %v2267 = vunpack.c.h.b16 %v2077
    %v2268 = vunpack.c.l.b16 %v2078
    %v2269 = vunpack.c.h.b16 %v2078
    %v2270 = vunpack.c.l.b16 %v2079
    %v2271 = vunpack.c.h.b16 %v2079
    %v2272 = vpack.c.b16 %v2152, %v2144
    %v2273 = vpack.c.b16 %v2153, %v2145
    %v2274 = vpack.c.b16 %v2154, %v2146
    %v2275 = vpack.c.b16 %v2155, %v2147
    %v2276 = vpack.c.b16 %v2156, %v2148
    %v2277 = vpack.c.b16 %v2157, %v2149
    %v2278 = vpack.c.b16 %v2158, %v2150
    %v2279 = vpack.c.b16 %v2159, %v2151
    %v2280 = vpack.c.b16 %v2168, %v2160
    %v2281 = vpack.c.b16 %v2169, %v2161
    %v2282 = vpack.c.b16 %v2170, %v2162
    %v2283 = vpack.c.b16 %v2171, %v2163
    %v2284 = vpack.c.b16 %v2172, %v2164
    %v2285 = vpack.c.b16 %v2173, %v2165
    %v2286 = vpack.c.b16 %v2174, %v2166
    %v2287 = vpack.c.b16 %v2175, %v2167
    %v2288 = vpack.c.b16 %v2184, %v2176
    %v2289 = vpack.c.b16 %v2185, %v2177
    %v2290 = vpack.c.b16 %v2186, %v2178
    %v2291 = vpack.c.b16 %v2187, %v2179
    %v2292 = vpack.c.b16 %v2188, %v2180
    %v2293 = vpack.c.b16 %v2189, %v2181
    %v2294 = vpack.c.b16 %v2190, %v2182
    %v2295 = vpack.c.b16 %v2191, %v2183
    %v2296 = vpack.c.b16 %v2200, %v2192
    %v2297 = vpack.c.b16 %v2201, %v2193
    %v2298 = vpack.c.b16 %v2202, %v2194
    %v2299 = vpack.c.b16 %v2203, %v2195
    %v2300 = vpack.c.b16 %v2204, %v2196
    %v2301 = vpack.c.b16 %v2205, %v2197
    %v2302 = vpack.c.b16 %v2206, %v2198
    %v2303 = vpack.c.b16 %v2207, %v2199
    %v2304 = vpack.c.b16 %v2216, %v2208
    %v2305 = vpack.c.b16 %v2217, %v2209
    %v2306 = vpack.c.b16 %v2218, %v2210
    %v2307 = vpack.c.b16 %v2219, %v2211
    %v2308 = vpack.c.b16 %v2220, %v2212
    %v2309 = vpack.c.b16 %v2221, %v2213
    %v2310 = vpack.c.b16 %v2222, %v2214
    %v2311 = vpack.c.b16 %v2223, %v2215
    %v2312 = vpack.c.b16 %v2232, %v2224
    %v2313 = vpack.c.b16 %v2233, %v2225
    %v2314 = vpack.c.b16 %v2234, %v2226
    %v2315 = vpack.c.b16 %v2235, %v2227
    %v2316 = vpack.c.b16 %v2236, %v2228
    %v2317 = vpack.c.b16 %v2237, %v2229
    %v2318 = vpack.c.b16 %v2238, %v2230
    %v2319 = vpack.c.b16 %v2239, %v2231
    %v2320 = vpack.c.b16 %v2248, %v2240
    %v2321 = vpack.c.b16 %v2249, %v2241
    %v2322 = vpack.c.b16 %v2250, %v2242
    %v2323 = vpack.c.b16 %v2251, %v2243
    %v2324 = vpack.c.b16 %v2252, %v2244
    %v2325 = vpack.c.b16 %v2253, %v2245
    %v2326 = vpack.c.b16 %v2254, %v2246
    %v2327 = vpack.c.b16 %v2255, %v2247
    %v2328 = vpack.c.b16 %v2264, %v2256
    %v2329 = vpack.c.b16 %v2265, %v2257
    %v2330 = vpack.c.b16 %v2266, %v2258
    %v2331 = vpack.c.b16 %v2267, %v2259
    %v2332 = vpack.c.b16 %v2268, %v2260
    %v2333 = vpack.c.b16 %v2269, %v2261
    %v2334 = vpack.c.b16 %v2270, %v2262
    %v2335 = vpack.c.b16 %v2271, %v2263
    %2400 = vmatpush.bf16.msra.mxu0 %v2328
    %2401 = vmatpush.bf16.msra.mxu0 %v2320
    %2402 = vmatpush.bf16.msra.mxu0 %v2312
    %2403 = vmatpush.bf16.msra.mxu0 %v2304
    %2404 = vmatpush.bf16.msra.mxu0 %v2296
    %2405 = vmatpush.bf16.msra.mxu0 %v2288
    %2406 = vmatpush.bf16.msra.mxu0 %v2280
    %2407 = vmatpush.bf16.msra.mxu0 %v2272
    %2408 = vmatmul.bf16.gmra.mxu0 %v2015
    %v2409 = vpop.f32.mrf.mxu0
    %v2410 = vadd.f32 0.0, %v2409
    %v2411 = vpop.f32.mrf.mxu0
    %v2412 = vadd.f32 0.0, %v2411
    %2413 = vdwg.mxu0
    %2414 = vmatpush.bf16.msra.mxu0 %v2329
    %2415 = vmatpush.bf16.msra.mxu0 %v2321
    %2416 = vmatpush.bf16.msra.mxu0 %v2313
    %2417 = vmatpush.bf16.msra.mxu0 %v2305
    %2418 = vmatpush.bf16.msra.mxu0 %v2297
    %2419 = vmatpush.bf16.msra.mxu0 %v2289
    %2420 = vmatpush.bf16.msra.mxu0 %v2281
    %2421 = vmatpush.bf16.msra.mxu0 %v2273
    %2422 = vmatmul.bf16.gmra.mxu0 %v2015
    %v2423 = vpop.f32.mrf.mxu0
    %v2424 = vadd.f32 0.0, %v2423
    %v2425 = vpop.f32.mrf.mxu0
    %v2426 = vadd.f32 0.0, %v2425
    %2427 = vdwg.mxu0
    %2428 = vmatpush.bf16.msra.mxu0 %v2330
    %2429 = vmatpush.bf16.msra.mxu0 %v2322
    %2430 = vmatpush.bf16.msra.mxu0 %v2314
    %2431 = vmatpush.bf16.msra.mxu0 %v2306
    %2432 = vmatpush.bf16.msra.mxu0 %v2298
    %2433 = vmatpush.bf16.msra.mxu0 %v2290
    %2434 = vmatpush.bf16.msra.mxu0 %v2282
    %2435 = vmatpush.bf16.msra.mxu0 %v2274
    %2436 = vmatmul.bf16.gmra.mxu0 %v2015
    %v2437 = vpop.f32.mrf.mxu0
    %v2438 = vadd.f32 0.0, %v2437
    %v2439 = vpop.f32.mrf.mxu0
    %v2440 = vadd.f32 0.0, %v2439
    %2441 = vdwg.mxu0
    %2442 = vmatpush.bf16.msra.mxu0 %v2331
    %2443 = vmatpush.bf16.msra.mxu0 %v2323
    %2444 = vmatpush.bf16.msra.mxu0 %v2315
    %2445 = vmatpush.bf16.msra.mxu0 %v2307
    %2446 = vmatpush.bf16.msra.mxu0 %v2299
    %2447 = vmatpush.bf16.msra.mxu0 %v2291
    %2448 = vmatpush.bf16.msra.mxu0 %v2283
    %2449 = vmatpush.bf16.msra.mxu0 %v2275
    %2450 = vmatmul.bf16.gmra.mxu0 %v2015
    %v2451 = vpop.f32.mrf.mxu0
    %v2452 = vadd.f32 0.0, %v2451
    %v2453 = vpop.f32.mrf.mxu0
    %v2454 = vadd.f32 0.0, %v2453
    %2455 = vdwg.mxu0
    %2456 = vmatpush.bf16.msra.mxu0 %v2332
    %2457 = vmatpush.bf16.msra.mxu0 %v2324
    %2458 = vmatpush.bf16.msra.mxu0 %v2316
    %2459 = vmatpush.bf16.msra.mxu0 %v2308
    %2460 = vmatpush.bf16.msra.mxu0 %v2300
    %2461 = vmatpush.bf16.msra.mxu0 %v2292
    %2462 = vmatpush.bf16.msra.mxu0 %v2284
    %2463 = vmatpush.bf16.msra.mxu0 %v2276
    %2464 = vmatmul.bf16.gmra.mxu0 %v2015
    %v2465 = vpop.f32.mrf.mxu0
    %v2466 = vadd.f32 0.0, %v2465
    %v2467 = vpop.f32.mrf.mxu0
    %v2468 = vadd.f32 0.0, %v2467
    %2469 = vdwg.mxu0
    %2470 = vmatpush.bf16.msra.mxu0 %v2333
    %2471 = vmatpush.bf16.msra.mxu0 %v2325
    %2472 = vmatpush.bf16.msra.mxu0 %v2317
    %2473 = vmatpush.bf16.msra.mxu0 %v2309
    %2474 = vmatpush.bf16.msra.mxu0 %v2301
    %2475 = vmatpush.bf16.msra.mxu0 %v2293
    %2476 = vmatpush.bf16.msra.mxu0 %v2285
    %2477 = vmatpush.bf16.msra.mxu0 %v2277
    %2478 = vmatmul.bf16.gmra.mxu0 %v2015
    %v2479 = vpop.f32.mrf.mxu0
    %v2480 = vadd.f32 0.0, %v2479
    %v2481 = vpop.f32.mrf.mxu0
    %v2482 = vadd.f32 0.0, %v2481
    %2483 = vdwg.mxu0
    %2484 = vmatpush.bf16.msra.mxu0 %v2334
    %2485 = vmatpush.bf16.msra.mxu0 %v2326
    %2486 = vmatpush.bf16.msra.mxu0 %v2318
    %2487 = vmatpush.bf16.msra.mxu0 %v2310
    %2488 = vmatpush.bf16.msra.mxu0 %v2302
    %2489 = vmatpush.bf16.msra.mxu0 %v2294
    %2490 = vmatpush.bf16.msra.mxu0 %v2286
    %2491 = vmatpush.bf16.msra.mxu0 %v2278
    %2492 = vmatmul.bf16.gmra.mxu0 %v2015
    %v2493 = vpop.f32.mrf.mxu0
    %v2494 = vadd.f32 0.0, %v2493
    %v2495 = vpop.f32.mrf.mxu0
    %v2496 = vadd.f32 0.0, %v2495
    %2497 = vdwg.mxu0
    %2498 = vmatpush.bf16.msra.mxu0 %v2335
    %2499 = vmatpush.bf16.msra.mxu0 %v2327
    %2500 = vmatpush.bf16.msra.mxu0 %v2319
    %2501 = vmatpush.bf16.msra.mxu0 %v2311
    %2502 = vmatpush.bf16.msra.mxu0 %v2303
    %2503 = vmatpush.bf16.msra.mxu0 %v2295
    %2504 = vmatpush.bf16.msra.mxu0 %v2287
    %2505 = vmatpush.bf16.msra.mxu0 %v2279
    %2506 = vmatmul.bf16.gmra.mxu0 %v2015
    %v2507 = vpop.f32.mrf.mxu0
    %v2508 = vadd.f32 0.0, %v2507
    %v2509 = vpop.f32.mrf.mxu0
    %v2510 = vadd.f32 0.0, %v2509
    %2511 = vdwg.mxu0
    %v2512 = vld [vmem:[#allocation8] sm:$0xff]
    %v2513 = vld [vmem:[#allocation8 + $0x8] sm:$0xff]
    %s2514 = scalar_lea.vmem [#allocation8], 16
    %v2515 = vld [vmem:[%s2514] sm:$0xff]
    %v2516 = vld [vmem:[%s2514 + $0x8] sm:$0xff]
    %v2518 = vsel %vm1644, %v2515, 0
    %v2521 = vsel %vm1644, %v2516, 0
    %2523 = vmatpush.msra.mxu0 0.0
    %2524 = vmatpush.msra.mxu0 0.0
    %2525 = vmatpush.msra.mxu0 0.0
    %2526 = vmatpush.msra.mxu0 0.0
    %2527 = vmatpush.msra.mxu0 0.0
    %2528 = vmatpush.msra.mxu0 0.0
    %2529 = vmatpush.msra.mxu0 0.0
    %2530 = vmatpush.msra.mxu0 0.0
    %2531 = vmatpush.msra.mxu0 0.0
    %2532 = vmatpush.msra.mxu0 0.0
    %2533 = vmatpush.msra.mxu0 0.0
    %2534 = vmatpush.msra.mxu0 0.0
    %2535 = vmatpush.msra.mxu0 0.0
    %2536 = vmatpush.msra.mxu0 0.0
    %2537 = vmatpush.msra.mxu0 %v2426
    %2538 = vmatpush.msra.mxu0 %v2424
    %2539 = vmatmul.f32.gmra.mxu0 %v2518
    %v2540 = vpop.f32.mrf.mxu0
    %v2541 = vadd.f32 0.0, %v2540
    %2542 = vmatmul.f32.gmra.mxu0 %v2521
    %v2543 = vpop.f32.mrf.mxu0
    %v2544 = vadd.f32 0.0, %v2543
    %2545 = vdwg.mxu0
    %v2547 = vsel %vm1644, %v2512, 0
    %v2550 = vsel %vm1644, %v2513, 0
    %2552 = vmatpush.msra.mxu0 0.0
    %2553 = vmatpush.msra.mxu0 0.0
    %2554 = vmatpush.msra.mxu0 0.0
    %2555 = vmatpush.msra.mxu0 0.0
    %2556 = vmatpush.msra.mxu0 0.0
    %2557 = vmatpush.msra.mxu0 0.0
    %2558 = vmatpush.msra.mxu0 0.0
    %2559 = vmatpush.msra.mxu0 0.0
    %2560 = vmatpush.msra.mxu0 0.0
    %2561 = vmatpush.msra.mxu0 0.0
    %2562 = vmatpush.msra.mxu0 0.0
    %2563 = vmatpush.msra.mxu0 0.0
    %2564 = vmatpush.msra.mxu0 0.0
    %2565 = vmatpush.msra.mxu0 0.0
    %2566 = vmatpush.msra.mxu0 %v2412
    %2567 = vmatpush.msra.mxu0 %v2410
    %2568 = vmatmul.f32.gmra.mxu0 %v2547
    %v2569 = vpop.f32.mrf.mxu0
    %v2570 = vadd.f32 %v2541, %v2569
    %2571 = vmatmul.f32.gmra.mxu0 %v2550
    %v2572 = vpop.f32.mrf.mxu0
    %v2573 = vadd.f32 %v2544, %v2572
    %2574 = vdwg.mxu0
    %s2575 = scalar_lea.vmem [#allocation8], 32
    %v2576 = vld [vmem:[%s2575] sm:$0xff]
    %v2577 = vld [vmem:[%s2575 + $0x8] sm:$0xff]
    %v2579 = vsel %vm1644, %v2576, 0
    %v2582 = vsel %vm1644, %v2577, 0
    %2584 = vmatpush.msra.mxu0 0.0
    %2585 = vmatpush.msra.mxu0 0.0
    %2586 = vmatpush.msra.mxu0 0.0
    %2587 = vmatpush.msra.mxu0 0.0
    %2588 = vmatpush.msra.mxu0 0.0
    %2589 = vmatpush.msra.mxu0 0.0
    %2590 = vmatpush.msra.mxu0 0.0
    %2591 = vmatpush.msra.mxu0 0.0
    %2592 = vmatpush.msra.mxu0 0.0
    %2593 = vmatpush.msra.mxu0 0.0
    %2594 = vmatpush.msra.mxu0 0.0
    %2595 = vmatpush.msra.mxu0 0.0
    %2596 = vmatpush.msra.mxu0 0.0
    %2597 = vmatpush.msra.mxu0 0.0
    %2598 = vmatpush.msra.mxu0 %v2440
    %2599 = vmatpush.msra.mxu0 %v2438
    %2600 = vmatmul.f32.gmra.mxu0 %v2579
    %v2601 = vpop.f32.mrf.mxu0
    %v2602 = vadd.f32 0.0, %v2601
    %2603 = vmatmul.f32.gmra.mxu0 %v2582
    %v2604 = vpop.f32.mrf.mxu0
    %v2605 = vadd.f32 0.0, %v2604
    %2606 = vdwg.mxu0
    %v2607 = vadd.f32 %v2570, %v2602
    %v2608 = vadd.f32 %v2573, %v2605
    %s2609 = scalar_lea.vmem [#allocation8], 48
    %v2610 = vld [vmem:[%s2609] sm:$0xff]
    %v2611 = vld [vmem:[%s2609 + $0x8] sm:$0xff]
    %v2613 = vsel %vm1644, %v2610, 0
    %v2616 = vsel %vm1644, %v2611, 0
    %2618 = vmatpush.msra.mxu0 0.0
    %2619 = vmatpush.msra.mxu0 0.0
    %2620 = vmatpush.msra.mxu0 0.0
    %2621 = vmatpush.msra.mxu0 0.0
    %2622 = vmatpush.msra.mxu0 0.0
    %2623 = vmatpush.msra.mxu0 0.0
    %2624 = vmatpush.msra.mxu0 0.0
    %2625 = vmatpush.msra.mxu0 0.0
    %2626 = vmatpush.msra.mxu0 0.0
    %2627 = vmatpush.msra.mxu0 0.0
    %2628 = vmatpush.msra.mxu0 0.0
    %2629 = vmatpush.msra.mxu0 0.0
    %2630 = vmatpush.msra.mxu0 0.0
    %2631 = vmatpush.msra.mxu0 0.0
    %2632 = vmatpush.msra.mxu0 %v2454
    %2633 = vmatpush.msra.mxu0 %v2452
    %2634 = vmatmul.f32.gmra.mxu0 %v2613
    %v2635 = vpop.f32.mrf.mxu0
    %v2636 = vadd.f32 0.0, %v2635
    %2637 = vmatmul.f32.gmra.mxu0 %v2616
    %v2638 = vpop.f32.mrf.mxu0
    %v2639 = vadd.f32 0.0, %v2638
    %2640 = vdwg.mxu0
    %v2641 = vadd.f32 %v2607, %v2636
    %v2642 = vadd.f32 %v2608, %v2639
    %s2643 = scalar_lea.vmem [#allocation8], 64
    %v2644 = vld [vmem:[%s2643] sm:$0xff]
    %v2645 = vld [vmem:[%s2643 + $0x8] sm:$0xff]
    %v2647 = vsel %vm1644, %v2644, 0
    %v2650 = vsel %vm1644, %v2645, 0
    %2652 = vmatpush.msra.mxu0 0.0
    %2653 = vmatpush.msra.mxu0 0.0
    %2654 = vmatpush.msra.mxu0 0.0
    %2655 = vmatpush.msra.mxu0 0.0
    %2656 = vmatpush.msra.mxu0 0.0
    %2657 = vmatpush.msra.mxu0 0.0
    %2658 = vmatpush.msra.mxu0 0.0
    %2659 = vmatpush.msra.mxu0 0.0
    %2660 = vmatpush.msra.mxu0 0.0
    %2661 = vmatpush.msra.mxu0 0.0
    %2662 = vmatpush.msra.mxu0 0.0
    %2663 = vmatpush.msra.mxu0 0.0
    %2664 = vmatpush.msra.mxu0 0.0
    %2665 = vmatpush.msra.mxu0 0.0
    %2666 = vmatpush.msra.mxu0 %v2468
    %2667 = vmatpush.msra.mxu0 %v2466
    %2668 = vmatmul.f32.gmra.mxu0 %v2647
    %v2669 = vpop.f32.mrf.mxu0
    %v2670 = vadd.f32 0.0, %v2669
    %2671 = vmatmul.f32.gmra.mxu0 %v2650
    %v2672 = vpop.f32.mrf.mxu0
    %v2673 = vadd.f32 0.0, %v2672
    %2674 = vdwg.mxu0
    %v2675 = vadd.f32 %v2641, %v2670
    %v2676 = vadd.f32 %v2642, %v2673
    %s2677 = scalar_lea.vmem [#allocation8], 80
    %v2678 = vld [vmem:[%s2677] sm:$0xff]
    %v2679 = vld [vmem:[%s2677 + $0x8] sm:$0xff]
    %v2681 = vsel %vm1644, %v2678, 0
    %v2684 = vsel %vm1644, %v2679, 0
    %2686 = vmatpush.msra.mxu0 0.0
    %2687 = vmatpush.msra.mxu0 0.0
    %2688 = vmatpush.msra.mxu0 0.0
    %2689 = vmatpush.msra.mxu0 0.0
    %2690 = vmatpush.msra.mxu0 0.0
    %2691 = vmatpush.msra.mxu0 0.0
    %2692 = vmatpush.msra.mxu0 0.0
    %2693 = vmatpush.msra.mxu0 0.0
    %2694 = vmatpush.msra.mxu0 0.0
    %2695 = vmatpush.msra.mxu0 0.0
    %2696 = vmatpush.msra.mxu0 0.0
    %2697 = vmatpush.msra.mxu0 0.0
    %2698 = vmatpush.msra.mxu0 0.0
    %2699 = vmatpush.msra.mxu0 0.0
    %2700 = vmatpush.msra.mxu0 %v2482
    %2701 = vmatpush.msra.mxu0 %v2480
    %2702 = vmatmul.f32.gmra.mxu0 %v2681
    %v2703 = vpop.f32.mrf.mxu0
    %v2704 = vadd.f32 0.0, %v2703
    %2705 = vmatmul.f32.gmra.mxu0 %v2684
    %v2706 = vpop.f32.mrf.mxu0
    %v2707 = vadd.f32 0.0, %v2706
    %2708 = vdwg.mxu0
    %v2709 = vadd.f32 %v2675, %v2704
    %v2710 = vadd.f32 %v2676, %v2707
    %s2711 = scalar_lea.vmem [#allocation8], 96
    %v2712 = vld [vmem:[%s2711] sm:$0xff]
    %v2713 = vld [vmem:[%s2711 + $0x8] sm:$0xff]
    %v2715 = vsel %vm1644, %v2712, 0
    %v2718 = vsel %vm1644, %v2713, 0
    %2720 = vmatpush.msra.mxu0 0.0
    %2721 = vmatpush.msra.mxu0 0.0
    %2722 = vmatpush.msra.mxu0 0.0
    %2723 = vmatpush.msra.mxu0 0.0
    %2724 = vmatpush.msra.mxu0 0.0
    %2725 = vmatpush.msra.mxu0 0.0
    %2726 = vmatpush.msra.mxu0 0.0
    %2727 = vmatpush.msra.mxu0 0.0
    %2728 = vmatpush.msra.mxu0 0.0
    %2729 = vmatpush.msra.mxu0 0.0
    %2730 = vmatpush.msra.mxu0 0.0
    %2731 = vmatpush.msra.mxu0 0.0
    %2732 = vmatpush.msra.mxu0 0.0
    %2733 = vmatpush.msra.mxu0 0.0
    %2734 = vmatpush.msra.mxu0 %v2496
    %2735 = vmatpush.msra.mxu0 %v2494
    %2736 = vmatmul.f32.gmra.mxu0 %v2715
    %v2737 = vpop.f32.mrf.mxu0
    %v2738 = vadd.f32 0.0, %v2737
    %2739 = vmatmul.f32.gmra.mxu0 %v2718
    %v2740 = vpop.f32.mrf.mxu0
    %v2741 = vadd.f32 0.0, %v2740
    %2742 = vdwg.mxu0
    %v2743 = vadd.f32 %v2709, %v2738
    %v2744 = vadd.f32 %v2710, %v2741
    %s2745 = scalar_lea.vmem [#allocation8], 112
    %v2746 = vld [vmem:[%s2745] sm:$0xff]
    %v2747 = vld [vmem:[%s2745 + $0x8] sm:$0xff]
    %v2749 = vsel %vm1644, %v2746, 0
    %v2752 = vsel %vm1644, %v2747, 0
    %2754 = vmatpush.msra.mxu0 0.0
    %2755 = vmatpush.msra.mxu0 0.0
    %2756 = vmatpush.msra.mxu0 0.0
    %2757 = vmatpush.msra.mxu0 0.0
    %2758 = vmatpush.msra.mxu0 0.0
    %2759 = vmatpush.msra.mxu0 0.0
    %2760 = vmatpush.msra.mxu0 0.0
    %2761 = vmatpush.msra.mxu0 0.0
    %2762 = vmatpush.msra.mxu0 0.0
    %2763 = vmatpush.msra.mxu0 0.0
    %2764 = vmatpush.msra.mxu0 0.0
    %2765 = vmatpush.msra.mxu0 0.0
    %2766 = vmatpush.msra.mxu0 0.0
    %2767 = vmatpush.msra.mxu0 0.0
    %2768 = vmatpush.msra.mxu0 %v2510
    %2769 = vmatpush.msra.mxu0 %v2508
    %2770 = vmatmul.f32.gmra.mxu0 %v2749
    %v2771 = vpop.f32.mrf.mxu0
    %v2772 = vadd.f32 0.0, %v2771
    %2773 = vmatmul.f32.gmra.mxu0 %v2752
    %v2774 = vpop.f32.mrf.mxu0
    %v2775 = vadd.f32 0.0, %v2774
    %2776 = vdwg.mxu0
    %v2777 = vadd.f32 %v2743, %v2772
    %v2778 = vadd.f32 %v2744, %v2775
    %vm2779 = vcmp.gt.f32.partialorder %v2777, 0.0
    %vm2780 = vcmp.gt.f32.partialorder %v2778, 0.0
    %v2781 = vmin.f32 %v2777, 0.0
    %v2782 = vmin.f32 %v2778, 0.0
    %v2783 = vmul.f32 %v2781, 1.442695
    %v2784 = vpow.pop %v2783
    %v2785 = vmul.f32 %v2782, 1.442695
    %v2786 = vpow.pop %v2785
    %v2787 = vsub.f32 %v2784, 1.0
    %v2788 = vsub.f32 %v2786, 1.0
    %v2789 = vsel %vm2779, %v2777, %v2787
    %v2790 = vsel %vm2780, %v2778, %v2788
    %v2792 = vperm.slane %v283, 0
    %v2794 = vmul.f32 %v2789, %v2792
    %v2795 = vmul.f32 %v2790, %v2792
    %2796 = vadd.xlane.f32.xlu0 %v2794
    %v2797 = vpop.xlane.xlu0 %2796
    %2798 = vadd.xlane.f32.xlu0 %v2795
    %v2799 = vpop.xlane.xlu0 %2798
    %v2800 = vstv %s339
    %v2801 = vmul.f32 %v2797, %v2800
    %v2802 = vmul.f32 %v2799, %v2800
    %v2803 = vsub.f32 %v2789, %v2801
    %v2804 = vsub.f32 %v2790, %v2802
    %v2805 = vmul.f32 %v2803, %v2803
    %v2806 = vmul.f32 %v2804, %v2804
    %v2807 = vmul.f32 %v2805, %v2792
    %v2808 = vmul.f32 %v2806, %v2792
    %2809 = vadd.xlane.f32.xlu0 %v2807
    %v2810 = vpop.xlane.xlu0 %2809
    %2811 = vadd.xlane.f32.xlu0 %v2808
    %v2812 = vpop.xlane.xlu0 %2811
    %v2813 = vmul.f32 %v2810, %v2800
    %v2814 = vmul.f32 %v2812, %v2800
    %v2815 = vadd.f32 %v2813, 1e-05
    %v2816 = vadd.f32 %v2814, 1e-05
    %v2817 = vrsqrt.pop %v2815
    %v2818 = vmul.f32 %v2817, %v2815
    %v2819 = vmul.f32 %v2818, %v2817
    %v2820 = vmul.f32 0.5, %v2819
    %v2821 = vsub.f32 1.5, %v2820
    %v2822 = vmul.f32 %v2817, %v2821
    %vm2823 = vweird.f32 %v2815
    %vm2824 = vweird.f32 %v2817
    %vm2825 = vmor %vm2823, %vm2824
    %v2826 = vsel %vm2825, %v2817, %v2822
    %v2827 = vrsqrt.pop %v2816
    %v2828 = vmul.f32 %v2827, %v2816
    %v2829 = vmul.f32 %v2828, %v2827
    %v2830 = vmul.f32 0.5, %v2829
    %v2831 = vsub.f32 1.5, %v2830
    %v2832 = vmul.f32 %v2827, %v2831
    %vm2833 = vweird.f32 %v2816
    %vm2834 = vweird.f32 %v2827
    %vm2835 = vmor %vm2833, %vm2834
    %v2836 = vsel %vm2835, %v2827, %v2832
    %v2837 = vmul.f32 %v2803, %v2826
    %v2838 = vmul.f32 %v2804, %v2836
    %v2839 = vmul.f32 %v2837, %v2792
    %v2840 = vmul.f32 %v2838, %v2792
    %v2841 = vpack.c.bf16 %v2840, %v2839
    %2842 = vmatpush.bf16.msra.mxu0 %v2328
    %2843 = vmatpush.bf16.msra.mxu0 %v2320
    %2844 = vmatpush.bf16.msra.mxu0 %v2312
    %2845 = vmatpush.bf16.msra.mxu0 %v2304
    %2846 = vmatpush.bf16.msra.mxu0 %v2296
    %2847 = vmatpush.bf16.msra.mxu0 %v2288
    %2848 = vmatpush.bf16.msra.mxu0 %v2280
    %2849 = vmatpush.bf16.msra.mxu0 %v2272
    %2850 = vmatmul.bf16.gmra.mxu0 %v2841
    %v2851 = vpop.f32.mrf.mxu0
    %v2852 = vadd.f32 0.0, %v2851
    %v2853 = vpop.f32.mrf.mxu0
    %v2854 = vadd.f32 0.0, %v2853
    %2855 = vdwg.mxu0
    %2856 = vmatpush.bf16.msra.mxu0 %v2329
    %2857 = vmatpush.bf16.msra.mxu0 %v2321
    %2858 = vmatpush.bf16.msra.mxu0 %v2313
    %2859 = vmatpush.bf16.msra.mxu0 %v2305
    %2860 = vmatpush.bf16.msra.mxu0 %v2297
    %2861 = vmatpush.bf16.msra.mxu0 %v2289
    %2862 = vmatpush.bf16.msra.mxu0 %v2281
    %2863 = vmatpush.bf16.msra.mxu0 %v2273
    %2864 = vmatmul.bf16.gmra.mxu0 %v2841
    %v2865 = vpop.f32.mrf.mxu0
    %v2866 = vadd.f32 0.0, %v2865
    %v2867 = vpop.f32.mrf.mxu0
    %v2868 = vadd.f32 0.0, %v2867
    %2869 = vdwg.mxu0
    %2870 = vmatpush.bf16.msra.mxu0 %v2330
    %2871 = vmatpush.bf16.msra.mxu0 %v2322
    %2872 = vmatpush.bf16.msra.mxu0 %v2314
    %2873 = vmatpush.bf16.msra.mxu0 %v2306
    %2874 = vmatpush.bf16.msra.mxu0 %v2298
    %2875 = vmatpush.bf16.msra.mxu0 %v2290
    %2876 = vmatpush.bf16.msra.mxu0 %v2282
    %2877 = vmatpush.bf16.msra.mxu0 %v2274
    %2878 = vmatmul.bf16.gmra.mxu0 %v2841
    %v2879 = vpop.f32.mrf.mxu0
    %v2880 = vadd.f32 0.0, %v2879
    %v2881 = vpop.f32.mrf.mxu0
    %v2882 = vadd.f32 0.0, %v2881
    %2883 = vdwg.mxu0
    %2884 = vmatpush.bf16.msra.mxu0 %v2331
    %2885 = vmatpush.bf16.msra.mxu0 %v2323
    %2886 = vmatpush.bf16.msra.mxu0 %v2315
    %2887 = vmatpush.bf16.msra.mxu0 %v2307
    %2888 = vmatpush.bf16.msra.mxu0 %v2299
    %2889 = vmatpush.bf16.msra.mxu0 %v2291
    %2890 = vmatpush.bf16.msra.mxu0 %v2283
    %2891 = vmatpush.bf16.msra.mxu0 %v2275
    %2892 = vmatmul.bf16.gmra.mxu0 %v2841
    %v2893 = vpop.f32.mrf.mxu0
    %v2894 = vadd.f32 0.0, %v2893
    %v2895 = vpop.f32.mrf.mxu0
    %v2896 = vadd.f32 0.0, %v2895
    %2897 = vdwg.mxu0
    %2898 = vmatpush.bf16.msra.mxu0 %v2332
    %2899 = vmatpush.bf16.msra.mxu0 %v2324
    %2900 = vmatpush.bf16.msra.mxu0 %v2316
    %2901 = vmatpush.bf16.msra.mxu0 %v2308
    %2902 = vmatpush.bf16.msra.mxu0 %v2300
    %2903 = vmatpush.bf16.msra.mxu0 %v2292
    %2904 = vmatpush.bf16.msra.mxu0 %v2284
    %2905 = vmatpush.bf16.msra.mxu0 %v2276
    %2906 = vmatmul.bf16.gmra.mxu0 %v2841
    %v2907 = vpop.f32.mrf.mxu0
    %v2908 = vadd.f32 0.0, %v2907
    %v2909 = vpop.f32.mrf.mxu0
    %v2910 = vadd.f32 0.0, %v2909
    %2911 = vdwg.mxu0
    %2912 = vmatpush.bf16.msra.mxu0 %v2333
    %2913 = vmatpush.bf16.msra.mxu0 %v2325
    %2914 = vmatpush.bf16.msra.mxu0 %v2317
    %2915 = vmatpush.bf16.msra.mxu0 %v2309
    %2916 = vmatpush.bf16.msra.mxu0 %v2301
    %2917 = vmatpush.bf16.msra.mxu0 %v2293
    %2918 = vmatpush.bf16.msra.mxu0 %v2285
    %2919 = vmatpush.bf16.msra.mxu0 %v2277
    %2920 = vmatmul.bf16.gmra.mxu0 %v2841
    %v2921 = vpop.f32.mrf.mxu0
    %v2922 = vadd.f32 0.0, %v2921
    %v2923 = vpop.f32.mrf.mxu0
    %v2924 = vadd.f32 0.0, %v2923
    %2925 = vdwg.mxu0
    %2926 = vmatpush.bf16.msra.mxu0 %v2334
    %2927 = vmatpush.bf16.msra.mxu0 %v2326
    %2928 = vmatpush.bf16.msra.mxu0 %v2318
    %2929 = vmatpush.bf16.msra.mxu0 %v2310
    %2930 = vmatpush.bf16.msra.mxu0 %v2302
    %2931 = vmatpush.bf16.msra.mxu0 %v2294
    %2932 = vmatpush.bf16.msra.mxu0 %v2286
    %2933 = vmatpush.bf16.msra.mxu0 %v2278
    %2934 = vmatmul.bf16.gmra.mxu0 %v2841
    %v2935 = vpop.f32.mrf.mxu0
    %v2936 = vadd.f32 0.0, %v2935
    %v2937 = vpop.f32.mrf.mxu0
    %v2938 = vadd.f32 0.0, %v2937
    %2939 = vdwg.mxu0
    %2940 = vmatpush.bf16.msra.mxu0 %v2335
    %2941 = vmatpush.bf16.msra.mxu0 %v2327
    %2942 = vmatpush.bf16.msra.mxu0 %v2319
    %2943 = vmatpush.bf16.msra.mxu0 %v2311
    %2944 = vmatpush.bf16.msra.mxu0 %v2303
    %2945 = vmatpush.bf16.msra.mxu0 %v2295
    %2946 = vmatpush.bf16.msra.mxu0 %v2287
    %2947 = vmatpush.bf16.msra.mxu0 %v2279
    %2948 = vmatmul.bf16.gmra.mxu0 %v2841
    %v2949 = vpop.f32.mrf.mxu0
    %v2950 = vadd.f32 0.0, %v2949
    %v2951 = vpop.f32.mrf.mxu0
    %v2952 = vadd.f32 0.0, %v2951
    %2953 = vdwg.mxu0
    %v2954 = vld [vmem:[#allocation10] sm:$0xff]
    %v2955 = vld [vmem:[#allocation10 + $0x8] sm:$0xff]
    %s2956 = scalar_lea.vmem [#allocation10], 16
    %v2957 = vld [vmem:[%s2956] sm:$0xff]
    %v2958 = vld [vmem:[%s2956 + $0x8] sm:$0xff]
    %v2960 = vsel %vm1644, %v2957, 0
    %v2963 = vsel %vm1644, %v2958, 0
    %2965 = vmatpush.msra.mxu0 0.0
    %2966 = vmatpush.msra.mxu0 0.0
    %2967 = vmatpush.msra.mxu0 0.0
    %2968 = vmatpush.msra.mxu0 0.0
    %2969 = vmatpush.msra.mxu0 0.0
    %2970 = vmatpush.msra.mxu0 0.0
    %2971 = vmatpush.msra.mxu0 0.0
    %2972 = vmatpush.msra.mxu0 0.0
    %2973 = vmatpush.msra.mxu0 0.0
    %2974 = vmatpush.msra.mxu0 0.0
    %2975 = vmatpush.msra.mxu0 0.0
    %2976 = vmatpush.msra.mxu0 0.0
    %2977 = vmatpush.msra.mxu0 0.0
    %2978 = vmatpush.msra.mxu0 0.0
    %2979 = vmatpush.msra.mxu0 %v2868
    %2980 = vmatpush.msra.mxu0 %v2866
    %2981 = vmatmul.f32.gmra.mxu0 %v2960
    %v2982 = vpop.f32.mrf.mxu0
    %v2983 = vadd.f32 0.0, %v2982
    %2984 = vmatmul.f32.gmra.mxu0 %v2963
    %v2985 = vpop.f32.mrf.mxu0
    %v2986 = vadd.f32 0.0, %v2985
    %2987 = vdwg.mxu0
    %v2989 = vsel %vm1644, %v2954, 0
    %v2992 = vsel %vm1644, %v2955, 0
    %2994 = vmatpush.msra.mxu0 0.0
    %2995 = vmatpush.msra.mxu0 0.0
    %2996 = vmatpush.msra.mxu0 0.0
    %2997 = vmatpush.msra.mxu0 0.0
    %2998 = vmatpush.msra.mxu0 0.0
    %2999 = vmatpush.msra.mxu0 0.0
    %3000 = vmatpush.msra.mxu0 0.0
    %3001 = vmatpush.msra.mxu0 0.0
    %3002 = vmatpush.msra.mxu0 0.0
    %3003 = vmatpush.msra.mxu0 0.0
    %3004 = vmatpush.msra.mxu0 0.0
    %3005 = vmatpush.msra.mxu0 0.0
    %3006 = vmatpush.msra.mxu0 0.0
    %3007 = vmatpush.msra.mxu0 0.0
    %3008 = vmatpush.msra.mxu0 %v2854
    %3009 = vmatpush.msra.mxu0 %v2852
    %3010 = vmatmul.f32.gmra.mxu0 %v2989
    %v3011 = vpop.f32.mrf.mxu0
    %v3012 = vadd.f32 %v2983, %v3011
    %3013 = vmatmul.f32.gmra.mxu0 %v2992
    %v3014 = vpop.f32.mrf.mxu0
    %v3015 = vadd.f32 %v2986, %v3014
    %3016 = vdwg.mxu0
    %s3017 = scalar_lea.vmem [#allocation10], 32
    %v3018 = vld [vmem:[%s3017] sm:$0xff]
    %v3019 = vld [vmem:[%s3017 + $0x8] sm:$0xff]
    %v3021 = vsel %vm1644, %v3018, 0
    %v3024 = vsel %vm1644, %v3019, 0
    %3026 = vmatpush.msra.mxu0 0.0
    %3027 = vmatpush.msra.mxu0 0.0
    %3028 = vmatpush.msra.mxu0 0.0
    %3029 = vmatpush.msra.mxu0 0.0
    %3030 = vmatpush.msra.mxu0 0.0
    %3031 = vmatpush.msra.mxu0 0.0
    %3032 = vmatpush.msra.mxu0 0.0
    %3033 = vmatpush.msra.mxu0 0.0
    %3034 = vmatpush.msra.mxu0 0.0
    %3035 = vmatpush.msra.mxu0 0.0
    %3036 = vmatpush.msra.mxu0 0.0
    %3037 = vmatpush.msra.mxu0 0.0
    %3038 = vmatpush.msra.mxu0 0.0
    %3039 = vmatpush.msra.mxu0 0.0
    %3040 = vmatpush.msra.mxu0 %v2882
    %3041 = vmatpush.msra.mxu0 %v2880
    %3042 = vmatmul.f32.gmra.mxu0 %v3021
    %v3043 = vpop.f32.mrf.mxu0
    %v3044 = vadd.f32 0.0, %v3043
    %3045 = vmatmul.f32.gmra.mxu0 %v3024
    %v3046 = vpop.f32.mrf.mxu0
    %v3047 = vadd.f32 0.0, %v3046
    %3048 = vdwg.mxu0
    %v3049 = vadd.f32 %v3012, %v3044
    %v3050 = vadd.f32 %v3015, %v3047
    %s3051 = scalar_lea.vmem [#allocation10], 48
    %v3052 = vld [vmem:[%s3051] sm:$0xff]
    %v3053 = vld [vmem:[%s3051 + $0x8] sm:$0xff]
    %v3055 = vsel %vm1644, %v3052, 0
    %v3058 = vsel %vm1644, %v3053, 0
    %3060 = vmatpush.msra.mxu0 0.0
    %3061 = vmatpush.msra.mxu0 0.0
    %3062 = vmatpush.msra.mxu0 0.0
    %3063 = vmatpush.msra.mxu0 0.0
    %3064 = vmatpush.msra.mxu0 0.0
    %3065 = vmatpush.msra.mxu0 0.0
    %3066 = vmatpush.msra.mxu0 0.0
    %3067 = vmatpush.msra.mxu0 0.0
    %3068 = vmatpush.msra.mxu0 0.0
    %3069 = vmatpush.msra.mxu0 0.0
    %3070 = vmatpush.msra.mxu0 0.0
    %3071 = vmatpush.msra.mxu0 0.0
    %3072 = vmatpush.msra.mxu0 0.0
    %3073 = vmatpush.msra.mxu0 0.0
    %3074 = vmatpush.msra.mxu0 %v2896
    %3075 = vmatpush.msra.mxu0 %v2894
    %3076 = vmatmul.f32.gmra.mxu0 %v3055
    %v3077 = vpop.f32.mrf.mxu0
    %v3078 = vadd.f32 0.0, %v3077
    %3079 = vmatmul.f32.gmra.mxu0 %v3058
    %v3080 = vpop.f32.mrf.mxu0
    %v3081 = vadd.f32 0.0, %v3080
    %3082 = vdwg.mxu0
    %v3083 = vadd.f32 %v3049, %v3078
    %v3084 = vadd.f32 %v3050, %v3081
    %s3085 = scalar_lea.vmem [#allocation10], 64
    %v3086 = vld [vmem:[%s3085] sm:$0xff]
    %v3087 = vld [vmem:[%s3085 + $0x8] sm:$0xff]
    %v3089 = vsel %vm1644, %v3086, 0
    %v3092 = vsel %vm1644, %v3087, 0
    %3094 = vmatpush.msra.mxu0 0.0
    %3095 = vmatpush.msra.mxu0 0.0
    %3096 = vmatpush.msra.mxu0 0.0
    %3097 = vmatpush.msra.mxu0 0.0
    %3098 = vmatpush.msra.mxu0 0.0
    %3099 = vmatpush.msra.mxu0 0.0
    %3100 = vmatpush.msra.mxu0 0.0
    %3101 = vmatpush.msra.mxu0 0.0
    %3102 = vmatpush.msra.mxu0 0.0
    %3103 = vmatpush.msra.mxu0 0.0
    %3104 = vmatpush.msra.mxu0 0.0
    %3105 = vmatpush.msra.mxu0 0.0
    %3106 = vmatpush.msra.mxu0 0.0
    %3107 = vmatpush.msra.mxu0 0.0
    %3108 = vmatpush.msra.mxu0 %v2910
    %3109 = vmatpush.msra.mxu0 %v2908
    %3110 = vmatmul.f32.gmra.mxu0 %v3089
    %v3111 = vpop.f32.mrf.mxu0
    %v3112 = vadd.f32 0.0, %v3111
    %3113 = vmatmul.f32.gmra.mxu0 %v3092
    %v3114 = vpop.f32.mrf.mxu0
    %v3115 = vadd.f32 0.0, %v3114
    %3116 = vdwg.mxu0
    %v3117 = vadd.f32 %v3083, %v3112
    %v3118 = vadd.f32 %v3084, %v3115
    %s3119 = scalar_lea.vmem [#allocation10], 80
    %v3120 = vld [vmem:[%s3119] sm:$0xff]
    %v3121 = vld [vmem:[%s3119 + $0x8] sm:$0xff]
    %v3123 = vsel %vm1644, %v3120, 0
    %v3126 = vsel %vm1644, %v3121, 0
    %3128 = vmatpush.msra.mxu0 0.0
    %3129 = vmatpush.msra.mxu0 0.0
    %3130 = vmatpush.msra.mxu0 0.0
    %3131 = vmatpush.msra.mxu0 0.0
    %3132 = vmatpush.msra.mxu0 0.0
    %3133 = vmatpush.msra.mxu0 0.0
    %3134 = vmatpush.msra.mxu0 0.0
    %3135 = vmatpush.msra.mxu0 0.0
    %3136 = vmatpush.msra.mxu0 0.0
    %3137 = vmatpush.msra.mxu0 0.0
    %3138 = vmatpush.msra.mxu0 0.0
    %3139 = vmatpush.msra.mxu0 0.0
    %3140 = vmatpush.msra.mxu0 0.0
    %3141 = vmatpush.msra.mxu0 0.0
    %3142 = vmatpush.msra.mxu0 %v2924
    %3143 = vmatpush.msra.mxu0 %v2922
    %3144 = vmatmul.f32.gmra.mxu0 %v3123
    %v3145 = vpop.f32.mrf.mxu0
    %v3146 = vadd.f32 0.0, %v3145
    %3147 = vmatmul.f32.gmra.mxu0 %v3126
    %v3148 = vpop.f32.mrf.mxu0
    %v3149 = vadd.f32 0.0, %v3148
    %3150 = vdwg.mxu0
    %v3151 = vadd.f32 %v3117, %v3146
    %v3152 = vadd.f32 %v3118, %v3149
    %s3153 = scalar_lea.vmem [#allocation10], 96
    %v3154 = vld [vmem:[%s3153] sm:$0xff]
    %v3155 = vld [vmem:[%s3153 + $0x8] sm:$0xff]
    %v3157 = vsel %vm1644, %v3154, 0
    %v3160 = vsel %vm1644, %v3155, 0
    %3162 = vmatpush.msra.mxu0 0.0
    %3163 = vmatpush.msra.mxu0 0.0
    %3164 = vmatpush.msra.mxu0 0.0
    %3165 = vmatpush.msra.mxu0 0.0
    %3166 = vmatpush.msra.mxu0 0.0
    %3167 = vmatpush.msra.mxu0 0.0
    %3168 = vmatpush.msra.mxu0 0.0
    %3169 = vmatpush.msra.mxu0 0.0
    %3170 = vmatpush.msra.mxu0 0.0
    %3171 = vmatpush.msra.mxu0 0.0
    %3172 = vmatpush.msra.mxu0 0.0
    %3173 = vmatpush.msra.mxu0 0.0
    %3174 = vmatpush.msra.mxu0 0.0
    %3175 = vmatpush.msra.mxu0 0.0
    %3176 = vmatpush.msra.mxu0 %v2938
    %3177 = vmatpush.msra.mxu0 %v2936
    %3178 = vmatmul.f32.gmra.mxu0 %v3157
    %v3179 = vpop.f32.mrf.mxu0
    %v3180 = vadd.f32 0.0, %v3179
    %3181 = vmatmul.f32.gmra.mxu0 %v3160
    %v3182 = vpop.f32.mrf.mxu0
    %v3183 = vadd.f32 0.0, %v3182
    %3184 = vdwg.mxu0
    %v3185 = vadd.f32 %v3151, %v3180
    %v3186 = vadd.f32 %v3152, %v3183
    %s3187 = scalar_lea.vmem [#allocation10], 112
    %v3188 = vld [vmem:[%s3187] sm:$0xff]
    %v3189 = vld [vmem:[%s3187 + $0x8] sm:$0xff]
    %v3191 = vsel %vm1644, %v3188, 0
    %v3194 = vsel %vm1644, %v3189, 0
    %3196 = vmatpush.msra.mxu0 0.0
    %3197 = vmatpush.msra.mxu0 0.0
    %3198 = vmatpush.msra.mxu0 0.0
    %3199 = vmatpush.msra.mxu0 0.0
    %3200 = vmatpush.msra.mxu0 0.0
    %3201 = vmatpush.msra.mxu0 0.0
    %3202 = vmatpush.msra.mxu0 0.0
    %3203 = vmatpush.msra.mxu0 0.0
    %3204 = vmatpush.msra.mxu0 0.0
    %3205 = vmatpush.msra.mxu0 0.0
    %3206 = vmatpush.msra.mxu0 0.0
    %3207 = vmatpush.msra.mxu0 0.0
    %3208 = vmatpush.msra.mxu0 0.0
    %3209 = vmatpush.msra.mxu0 0.0
    %3210 = vmatpush.msra.mxu0 %v2952
    %3211 = vmatpush.msra.mxu0 %v2950
    %3212 = vmatmul.f32.gmra.mxu0 %v3191
    %v3213 = vpop.f32.mrf.mxu0
    %v3214 = vadd.f32 0.0, %v3213
    %3215 = vmatmul.f32.gmra.mxu0 %v3194
    %v3216 = vpop.f32.mrf.mxu0
    %v3217 = vadd.f32 0.0, %v3216
    %3218 = vdwg.mxu0
    %v3219 = vadd.f32 %v3185, %v3214
    %v3220 = vadd.f32 %v3186, %v3217
    %vm3221 = vcmp.gt.f32.partialorder %v3219, 0.0
    %vm3222 = vcmp.gt.f32.partialorder %v3220, 0.0
    %v3223 = vmin.f32 %v3219, 0.0
    %v3224 = vmin.f32 %v3220, 0.0
    %v3225 = vmul.f32 %v3223, 1.442695
    %v3226 = vpow.pop %v3225
    %v3227 = vmul.f32 %v3224, 1.442695
    %v3228 = vpow.pop %v3227
    %v3229 = vsub.f32 %v3226, 1.0
    %v3230 = vsub.f32 %v3228, 1.0
    %v3231 = vsel %vm3221, %v3219, %v3229
    %v3232 = vsel %vm3222, %v3220, %v3230
    %v3233 = vmul.f32 %v3231, %v2792
    %v3234 = vmul.f32 %v3232, %v2792
    %3235 = vadd.xlane.f32.xlu0 %v3233
    %v3236 = vpop.xlane.xlu0 %3235
    %3237 = vadd.xlane.f32.xlu0 %v3234
    %v3238 = vpop.xlane.xlu0 %3237
    %v3239 = vmul.f32 %v3236, %v2800
    %v3240 = vmul.f32 %v3238, %v2800
    %v3241 = vsub.f32 %v3231, %v3239
    %v3242 = vsub.f32 %v3232, %v3240
    %v3243 = vmul.f32 %v3241, %v3241
    %v3244 = vmul.f32 %v3242, %v3242
    %v3245 = vmul.f32 %v3243, %v2792
    %v3246 = vmul.f32 %v3244, %v2792
    %3247 = vadd.xlane.f32.xlu0 %v3245
    %v3248 = vpop.xlane.xlu0 %3247
    %3249 = vadd.xlane.f32.xlu0 %v3246
    %v3250 = vpop.xlane.xlu0 %3249
    %v3251 = vmul.f32 %v3248, %v2800
    %v3252 = vmul.f32 %v3250, %v2800
    %v3253 = vadd.f32 %v3251, 1e-05
    %v3254 = vadd.f32 %v3252, 1e-05
    %v3255 = vrsqrt.pop %v3253
    %v3256 = vmul.f32 %v3255, %v3253
    %v3257 = vmul.f32 %v3256, %v3255
    %v3258 = vmul.f32 0.5, %v3257
    %v3259 = vsub.f32 1.5, %v3258
    %v3260 = vmul.f32 %v3255, %v3259
    %vm3261 = vweird.f32 %v3253
    %vm3262 = vweird.f32 %v3255
    %vm3263 = vmor %vm3261, %vm3262
    %v3264 = vsel %vm3263, %v3255, %v3260
    %v3265 = vrsqrt.pop %v3254
    %v3266 = vmul.f32 %v3265, %v3254
    %v3267 = vmul.f32 %v3266, %v3265
    %v3268 = vmul.f32 0.5, %v3267
    %v3269 = vsub.f32 1.5, %v3268
    %v3270 = vmul.f32 %v3265, %v3269
    %vm3271 = vweird.f32 %v3254
    %vm3272 = vweird.f32 %v3265
    %vm3273 = vmor %vm3271, %vm3272
    %v3274 = vsel %vm3273, %v3265, %v3270
    %v3275 = vmul.f32 %v3241, %v3264
    %v3276 = vmul.f32 %v3242, %v3274
    %v3277 = vmul.f32 %v3275, %v2792
    %v3278 = vmul.f32 %v3276, %v2792
    %v3279 = vadd.f32 %v3277, %v2013
    %v3280 = vadd.f32 %v3278, %v2014
    %v3281 = vpack.c.bf16 %v3280, %v3279
    %3282 = vmatpush.bf16.msra.mxu0 %v2328
    %3283 = vmatpush.bf16.msra.mxu0 %v2320
    %3284 = vmatpush.bf16.msra.mxu0 %v2312
    %3285 = vmatpush.bf16.msra.mxu0 %v2304
    %3286 = vmatpush.bf16.msra.mxu0 %v2296
    %3287 = vmatpush.bf16.msra.mxu0 %v2288
    %3288 = vmatpush.bf16.msra.mxu0 %v2280
    %3289 = vmatpush.bf16.msra.mxu0 %v2272
    %3290 = vmatmul.bf16.gmra.mxu0 %v3281
    %v3291 = vpop.f32.mrf.mxu0
    %v3292 = vadd.f32 0.0, %v3291
    %v3293 = vpop.f32.mrf.mxu0
    %v3294 = vadd.f32 0.0, %v3293
    %3295 = vdwg.mxu0
    %3296 = vmatpush.bf16.msra.mxu0 %v2329
    %3297 = vmatpush.bf16.msra.mxu0 %v2321
    %3298 = vmatpush.bf16.msra.mxu0 %v2313
    %3299 = vmatpush.bf16.msra.mxu0 %v2305
    %3300 = vmatpush.bf16.msra.mxu0 %v2297
    %3301 = vmatpush.bf16.msra.mxu0 %v2289
    %3302 = vmatpush.bf16.msra.mxu0 %v2281
    %3303 = vmatpush.bf16.msra.mxu0 %v2273
    %3304 = vmatmul.bf16.gmra.mxu0 %v3281
    %v3305 = vpop.f32.mrf.mxu0
    %v3306 = vadd.f32 0.0, %v3305
    %v3307 = vpop.f32.mrf.mxu0
    %v3308 = vadd.f32 0.0, %v3307
    %3309 = vdwg.mxu0
    %3310 = vmatpush.bf16.msra.mxu0 %v2330
    %3311 = vmatpush.bf16.msra.mxu0 %v2322
    %3312 = vmatpush.bf16.msra.mxu0 %v2314
    %3313 = vmatpush.bf16.msra.mxu0 %v2306
    %3314 = vmatpush.bf16.msra.mxu0 %v2298
    %3315 = vmatpush.bf16.msra.mxu0 %v2290
    %3316 = vmatpush.bf16.msra.mxu0 %v2282
    %3317 = vmatpush.bf16.msra.mxu0 %v2274
    %3318 = vmatmul.bf16.gmra.mxu0 %v3281
    %v3319 = vpop.f32.mrf.mxu0
    %v3320 = vadd.f32 0.0, %v3319
    %v3321 = vpop.f32.mrf.mxu0
    %v3322 = vadd.f32 0.0, %v3321
    %3323 = vdwg.mxu0
    %3324 = vmatpush.bf16.msra.mxu0 %v2331
    %3325 = vmatpush.bf16.msra.mxu0 %v2323
    %3326 = vmatpush.bf16.msra.mxu0 %v2315
    %3327 = vmatpush.bf16.msra.mxu0 %v2307
    %3328 = vmatpush.bf16.msra.mxu0 %v2299
    %3329 = vmatpush.bf16.msra.mxu0 %v2291
    %3330 = vmatpush.bf16.msra.mxu0 %v2283
    %3331 = vmatpush.bf16.msra.mxu0 %v2275
    %3332 = vmatmul.bf16.gmra.mxu0 %v3281
    %v3333 = vpop.f32.mrf.mxu0
    %v3334 = vadd.f32 0.0, %v3333
    %v3335 = vpop.f32.mrf.mxu0
    %v3336 = vadd.f32 0.0, %v3335
    %3337 = vdwg.mxu0
    %3338 = vmatpush.bf16.msra.mxu0 %v2332
    %3339 = vmatpush.bf16.msra.mxu0 %v2324
    %3340 = vmatpush.bf16.msra.mxu0 %v2316
    %3341 = vmatpush.bf16.msra.mxu0 %v2308
    %3342 = vmatpush.bf16.msra.mxu0 %v2300
    %3343 = vmatpush.bf16.msra.mxu0 %v2292
    %3344 = vmatpush.bf16.msra.mxu0 %v2284
    %3345 = vmatpush.bf16.msra.mxu0 %v2276
    %3346 = vmatmul.bf16.gmra.mxu0 %v3281
    %v3347 = vpop.f32.mrf.mxu0
    %v3348 = vadd.f32 0.0, %v3347
    %v3349 = vpop.f32.mrf.mxu0
    %v3350 = vadd.f32 0.0, %v3349
    %3351 = vdwg.mxu0
    %3352 = vmatpush.bf16.msra.mxu0 %v2333
    %3353 = vmatpush.bf16.msra.mxu0 %v2325
    %3354 = vmatpush.bf16.msra.mxu0 %v2317
    %3355 = vmatpush.bf16.msra.mxu0 %v2309
    %3356 = vmatpush.bf16.msra.mxu0 %v2301
    %3357 = vmatpush.bf16.msra.mxu0 %v2293
    %3358 = vmatpush.bf16.msra.mxu0 %v2285
    %3359 = vmatpush.bf16.msra.mxu0 %v2277
    %3360 = vmatmul.bf16.gmra.mxu0 %v3281
    %v3361 = vpop.f32.mrf.mxu0
    %v3362 = vadd.f32 0.0, %v3361
    %v3363 = vpop.f32.mrf.mxu0
    %v3364 = vadd.f32 0.0, %v3363
    %3365 = vdwg.mxu0
    %3366 = vmatpush.bf16.msra.mxu0 %v2334
    %3367 = vmatpush.bf16.msra.mxu0 %v2326
    %3368 = vmatpush.bf16.msra.mxu0 %v2318
    %3369 = vmatpush.bf16.msra.mxu0 %v2310
    %3370 = vmatpush.bf16.msra.mxu0 %v2302
    %3371 = vmatpush.bf16.msra.mxu0 %v2294
    %3372 = vmatpush.bf16.msra.mxu0 %v2286
    %3373 = vmatpush.bf16.msra.mxu0 %v2278
    %3374 = vmatmul.bf16.gmra.mxu0 %v3281
    %v3375 = vpop.f32.mrf.mxu0
    %v3376 = vadd.f32 0.0, %v3375
    %v3377 = vpop.f32.mrf.mxu0
    %v3378 = vadd.f32 0.0, %v3377
    %3379 = vdwg.mxu0
    %3380 = vmatpush.bf16.msra.mxu0 %v2335
    %3381 = vmatpush.bf16.msra.mxu0 %v2327
    %3382 = vmatpush.bf16.msra.mxu0 %v2319
    %3383 = vmatpush.bf16.msra.mxu0 %v2311
    %3384 = vmatpush.bf16.msra.mxu0 %v2303
    %3385 = vmatpush.bf16.msra.mxu0 %v2295
    %3386 = vmatpush.bf16.msra.mxu0 %v2287
    %3387 = vmatpush.bf16.msra.mxu0 %v2279
    %3388 = vmatmul.bf16.gmra.mxu0 %v3281
    %v3389 = vpop.f32.mrf.mxu0
    %v3390 = vadd.f32 0.0, %v3389
    %v3391 = vpop.f32.mrf.mxu0
    %v3392 = vadd.f32 0.0, %v3391
    %3393 = vdwg.mxu0
    %v3394 = vld [vmem:[%s12] sm:$0xff]
    %v3395 = vld [vmem:[%s12 + $0x8] sm:$0xff]
    %v3396 = vld [vmem:[%s12 + $0x10] sm:$0xff]
    %v3397 = vld [vmem:[%s12 + $0x18] sm:$0xff]
    %s3398 = scalar_lea.vmem %s12, 32
    %v3399 = vld [vmem:[%s3398] sm:$0xff]
    %v3400 = vld [vmem:[%s3398 + $0x8] sm:$0xff]
    %v3401 = vld [vmem:[%s3398 + $0x10] sm:$0xff]
    %v3402 = vld [vmem:[%s3398 + $0x18] sm:$0xff]
    %v3404 = vsel %vm1644, %v3399, 0
    %v3407 = vsel %vm1644, %v3400, 0
    %v3410 = vsel %vm1644, %v3401, 0
    %v3413 = vsel %vm1644, %v3402, 0
    %3415 = vmatpush.msra.mxu0 0.0
    %3416 = vmatpush.msra.mxu0 0.0
    %3417 = vmatpush.msra.mxu0 0.0
    %3418 = vmatpush.msra.mxu0 0.0
    %3419 = vmatpush.msra.mxu0 0.0
    %3420 = vmatpush.msra.mxu0 0.0
    %3421 = vmatpush.msra.mxu0 0.0
    %3422 = vmatpush.msra.mxu0 0.0
    %3423 = vmatpush.msra.mxu0 0.0
    %3424 = vmatpush.msra.mxu0 0.0
    %3425 = vmatpush.msra.mxu0 0.0
    %3426 = vmatpush.msra.mxu0 0.0
    %3427 = vmatpush.msra.mxu0 0.0
    %3428 = vmatpush.msra.mxu0 0.0
    %3429 = vmatpush.msra.mxu0 %v3308
    %3430 = vmatpush.msra.mxu0 %v3306
    %3431 = vmatmul.f32.gmra.mxu0 %v3404
    %v3432 = vpop.f32.mrf.mxu0
    %v3433 = vadd.f32 0.0, %v3432
    %3434 = vmatmul.f32.gmra.mxu0 %v3407
    %v3435 = vpop.f32.mrf.mxu0
    %v3436 = vadd.f32 0.0, %v3435
    %3437 = vmatmul.f32.gmra.mxu0 %v3410
    %v3438 = vpop.f32.mrf.mxu0
    %v3439 = vadd.f32 0.0, %v3438
    %3440 = vmatmul.f32.gmra.mxu0 %v3413
    %v3441 = vpop.f32.mrf.mxu0
    %v3442 = vadd.f32 0.0, %v3441
    %3443 = vdwg.mxu0
    %v3445 = vsel %vm1644, %v3394, 0
    %v3448 = vsel %vm1644, %v3395, 0
    %v3451 = vsel %vm1644, %v3396, 0
    %v3454 = vsel %vm1644, %v3397, 0
    %3456 = vmatpush.msra.mxu0 0.0
    %3457 = vmatpush.msra.mxu0 0.0
    %3458 = vmatpush.msra.mxu0 0.0
    %3459 = vmatpush.msra.mxu0 0.0
    %3460 = vmatpush.msra.mxu0 0.0
    %3461 = vmatpush.msra.mxu0 0.0
    %3462 = vmatpush.msra.mxu0 0.0
    %3463 = vmatpush.msra.mxu0 0.0
    %3464 = vmatpush.msra.mxu0 0.0
    %3465 = vmatpush.msra.mxu0 0.0
    %3466 = vmatpush.msra.mxu0 0.0
    %3467 = vmatpush.msra.mxu0 0.0
    %3468 = vmatpush.msra.mxu0 0.0
    %3469 = vmatpush.msra.mxu0 0.0
    %3470 = vmatpush.msra.mxu0 %v3294
    %3471 = vmatpush.msra.mxu0 %v3292
    %3472 = vmatmul.f32.gmra.mxu0 %v3445
    %v3473 = vpop.f32.mrf.mxu0
    %v3474 = vadd.f32 %v3433, %v3473
    %3475 = vmatmul.f32.gmra.mxu0 %v3448
    %v3476 = vpop.f32.mrf.mxu0
    %v3477 = vadd.f32 %v3436, %v3476
    %3478 = vmatmul.f32.gmra.mxu0 %v3451
    %v3479 = vpop.f32.mrf.mxu0
    %v3480 = vadd.f32 %v3439, %v3479
    %3481 = vmatmul.f32.gmra.mxu0 %v3454
    %v3482 = vpop.f32.mrf.mxu0
    %v3483 = vadd.f32 %v3442, %v3482
    %3484 = vdwg.mxu0
    %s3485 = scalar_lea.vmem %s12, 64
    %v3486 = vld [vmem:[%s3485] sm:$0xff]
    %v3487 = vld [vmem:[%s3485 + $0x8] sm:$0xff]
    %v3488 = vld [vmem:[%s3485 + $0x10] sm:$0xff]
    %v3489 = vld [vmem:[%s3485 + $0x18] sm:$0xff]
    %v3491 = vsel %vm1644, %v3486, 0
    %v3494 = vsel %vm1644, %v3487, 0
    %v3497 = vsel %vm1644, %v3488, 0
    %v3500 = vsel %vm1644, %v3489, 0
    %3502 = vmatpush.msra.mxu0 0.0
    %3503 = vmatpush.msra.mxu0 0.0
    %3504 = vmatpush.msra.mxu0 0.0
    %3505 = vmatpush.msra.mxu0 0.0
    %3506 = vmatpush.msra.mxu0 0.0
    %3507 = vmatpush.msra.mxu0 0.0
    %3508 = vmatpush.msra.mxu0 0.0
    %3509 = vmatpush.msra.mxu0 0.0
    %3510 = vmatpush.msra.mxu0 0.0
    %3511 = vmatpush.msra.mxu0 0.0
    %3512 = vmatpush.msra.mxu0 0.0
    %3513 = vmatpush.msra.mxu0 0.0
    %3514 = vmatpush.msra.mxu0 0.0
    %3515 = vmatpush.msra.mxu0 0.0
    %3516 = vmatpush.msra.mxu0 %v3322
    %3517 = vmatpush.msra.mxu0 %v3320
    %3518 = vmatmul.f32.gmra.mxu0 %v3491
    %v3519 = vpop.f32.mrf.mxu0
    %v3520 = vadd.f32 0.0, %v3519
    %3521 = vmatmul.f32.gmra.mxu0 %v3494
    %v3522 = vpop.f32.mrf.mxu0
    %v3523 = vadd.f32 0.0, %v3522
    %3524 = vmatmul.f32.gmra.mxu0 %v3497
    %v3525 = vpop.f32.mrf.mxu0
    %v3526 = vadd.f32 0.0, %v3525
    %3527 = vmatmul.f32.gmra.mxu0 %v3500
    %v3528 = vpop.f32.mrf.mxu0
    %v3529 = vadd.f32 0.0, %v3528
    %3530 = vdwg.mxu0
    %v3531 = vadd.f32 %v3474, %v3520
    %v3532 = vadd.f32 %v3477, %v3523
    %v3533 = vadd.f32 %v3480, %v3526
    %v3534 = vadd.f32 %v3483, %v3529
    %s3535 = scalar_lea.vmem %s12, 96
    %v3536 = vld [vmem:[%s3535] sm:$0xff]
    %v3537 = vld [vmem:[%s3535 + $0x8] sm:$0xff]
    %v3538 = vld [vmem:[%s3535 + $0x10] sm:$0xff]
    %v3539 = vld [vmem:[%s3535 + $0x18] sm:$0xff]
    %v3541 = vsel %vm1644, %v3536, 0
    %v3544 = vsel %vm1644, %v3537, 0
    %v3547 = vsel %vm1644, %v3538, 0
    %v3550 = vsel %vm1644, %v3539, 0
    %3552 = vmatpush.msra.mxu0 0.0
    %3553 = vmatpush.msra.mxu0 0.0
    %3554 = vmatpush.msra.mxu0 0.0
    %3555 = vmatpush.msra.mxu0 0.0
    %3556 = vmatpush.msra.mxu0 0.0
    %3557 = vmatpush.msra.mxu0 0.0
    %3558 = vmatpush.msra.mxu0 0.0
    %3559 = vmatpush.msra.mxu0 0.0
    %3560 = vmatpush.msra.mxu0 0.0
    %3561 = vmatpush.msra.mxu0 0.0
    %3562 = vmatpush.msra.mxu0 0.0
    %3563 = vmatpush.msra.mxu0 0.0
    %3564 = vmatpush.msra.mxu0 0.0
    %3565 = vmatpush.msra.mxu0 0.0
    %3566 = vmatpush.msra.mxu0 %v3336
    %3567 = vmatpush.msra.mxu0 %v3334
    %3568 = vmatmul.f32.gmra.mxu0 %v3541
    %v3569 = vpop.f32.mrf.mxu0
    %v3570 = vadd.f32 0.0, %v3569
    %3571 = vmatmul.f32.gmra.mxu0 %v3544
    %v3572 = vpop.f32.mrf.mxu0
    %v3573 = vadd.f32 0.0, %v3572
    %3574 = vmatmul.f32.gmra.mxu0 %v3547
    %v3575 = vpop.f32.mrf.mxu0
    %v3576 = vadd.f32 0.0, %v3575
    %3577 = vmatmul.f32.gmra.mxu0 %v3550
    %v3578 = vpop.f32.mrf.mxu0
    %v3579 = vadd.f32 0.0, %v3578
    %3580 = vdwg.mxu0
    %v3581 = vadd.f32 %v3531, %v3570
    %v3582 = vadd.f32 %v3532, %v3573
    %v3583 = vadd.f32 %v3533, %v3576
    %v3584 = vadd.f32 %v3534, %v3579
    %s3585 = scalar_lea.vmem %s12, 128
    %v3586 = vld [vmem:[%s3585] sm:$0xff]
    %v3587 = vld [vmem:[%s3585 + $0x8] sm:$0xff]
    %v3588 = vld [vmem:[%s3585 + $0x10] sm:$0xff]
    %v3589 = vld [vmem:[%s3585 + $0x18] sm:$0xff]
    %v3591 = vsel %vm1644, %v3586, 0
    %v3594 = vsel %vm1644, %v3587, 0
    %v3597 = vsel %vm1644, %v3588, 0
    %v3600 = vsel %vm1644, %v3589, 0
    %3602 = vmatpush.msra.mxu0 0.0
    %3603 = vmatpush.msra.mxu0 0.0
    %3604 = vmatpush.msra.mxu0 0.0
    %3605 = vmatpush.msra.mxu0 0.0
    %3606 = vmatpush.msra.mxu0 0.0
    %3607 = vmatpush.msra.mxu0 0.0
    %3608 = vmatpush.msra.mxu0 0.0
    %3609 = vmatpush.msra.mxu0 0.0
    %3610 = vmatpush.msra.mxu0 0.0
    %3611 = vmatpush.msra.mxu0 0.0
    %3612 = vmatpush.msra.mxu0 0.0
    %3613 = vmatpush.msra.mxu0 0.0
    %3614 = vmatpush.msra.mxu0 0.0
    %3615 = vmatpush.msra.mxu0 0.0
    %3616 = vmatpush.msra.mxu0 %v3350
    %3617 = vmatpush.msra.mxu0 %v3348
    %3618 = vmatmul.f32.gmra.mxu0 %v3591
    %v3619 = vpop.f32.mrf.mxu0
    %v3620 = vadd.f32 0.0, %v3619
    %3621 = vmatmul.f32.gmra.mxu0 %v3594
    %v3622 = vpop.f32.mrf.mxu0
    %v3623 = vadd.f32 0.0, %v3622
    %3624 = vmatmul.f32.gmra.mxu0 %v3597
    %v3625 = vpop.f32.mrf.mxu0
    %v3626 = vadd.f32 0.0, %v3625
    %3627 = vmatmul.f32.gmra.mxu0 %v3600
    %v3628 = vpop.f32.mrf.mxu0
    %v3629 = vadd.f32 0.0, %v3628
    %3630 = vdwg.mxu0
    %v3631 = vadd.f32 %v3581, %v3620
    %v3632 = vadd.f32 %v3582, %v3623
    %v3633 = vadd.f32 %v3583, %v3626
    %v3634 = vadd.f32 %v3584, %v3629
    %s3635 = scalar_lea.vmem %s12, 160
    %v3636 = vld [vmem:[%s3635] sm:$0xff]
    %v3637 = vld [vmem:[%s3635 + $0x8] sm:$0xff]
    %v3638 = vld [vmem:[%s3635 + $0x10] sm:$0xff]
    %v3639 = vld [vmem:[%s3635 + $0x18] sm:$0xff]
    %v3641 = vsel %vm1644, %v3636, 0
    %v3644 = vsel %vm1644, %v3637, 0
    %v3647 = vsel %vm1644, %v3638, 0
    %v3650 = vsel %vm1644, %v3639, 0
    %3652 = vmatpush.msra.mxu0 0.0
    %3653 = vmatpush.msra.mxu0 0.0
    %3654 = vmatpush.msra.mxu0 0.0
    %3655 = vmatpush.msra.mxu0 0.0
    %3656 = vmatpush.msra.mxu0 0.0
    %3657 = vmatpush.msra.mxu0 0.0
    %3658 = vmatpush.msra.mxu0 0.0
    %3659 = vmatpush.msra.mxu0 0.0
    %3660 = vmatpush.msra.mxu0 0.0
    %3661 = vmatpush.msra.mxu0 0.0
    %3662 = vmatpush.msra.mxu0 0.0
    %3663 = vmatpush.msra.mxu0 0.0
    %3664 = vmatpush.msra.mxu0 0.0
    %3665 = vmatpush.msra.mxu0 0.0
    %3666 = vmatpush.msra.mxu0 %v3364
    %3667 = vmatpush.msra.mxu0 %v3362
    %3668 = vmatmul.f32.gmra.mxu0 %v3641
    %v3669 = vpop.f32.mrf.mxu0
    %v3670 = vadd.f32 0.0, %v3669
    %3671 = vmatmul.f32.gmra.mxu0 %v3644
    %v3672 = vpop.f32.mrf.mxu0
    %v3673 = vadd.f32 0.0, %v3672
    %3674 = vmatmul.f32.gmra.mxu0 %v3647
    %v3675 = vpop.f32.mrf.mxu0
    %v3676 = vadd.f32 0.0, %v3675
    %3677 = vmatmul.f32.gmra.mxu0 %v3650
    %v3678 = vpop.f32.mrf.mxu0
    %v3679 = vadd.f32 0.0, %v3678
    %3680 = vdwg.mxu0
    %v3681 = vadd.f32 %v3631, %v3670
    %v3682 = vadd.f32 %v3632, %v3673
    %v3683 = vadd.f32 %v3633, %v3676
    %v3684 = vadd.f32 %v3634, %v3679
    %s3685 = scalar_lea.vmem %s12, 192
    %v3686 = vld [vmem:[%s3685] sm:$0xff]
    %v3687 = vld [vmem:[%s3685 + $0x8] sm:$0xff]
    %v3688 = vld [vmem:[%s3685 + $0x10] sm:$0xff]
    %v3689 = vld [vmem:[%s3685 + $0x18] sm:$0xff]
    %v3691 = vsel %vm1644, %v3686, 0
    %v3694 = vsel %vm1644, %v3687, 0
    %v3697 = vsel %vm1644, %v3688, 0
    %v3700 = vsel %vm1644, %v3689, 0
    %3702 = vmatpush.msra.mxu0 0.0
    %3703 = vmatpush.msra.mxu0 0.0
    %3704 = vmatpush.msra.mxu0 0.0
    %3705 = vmatpush.msra.mxu0 0.0
    %3706 = vmatpush.msra.mxu0 0.0
    %3707 = vmatpush.msra.mxu0 0.0
    %3708 = vmatpush.msra.mxu0 0.0
    %3709 = vmatpush.msra.mxu0 0.0
    %3710 = vmatpush.msra.mxu0 0.0
    %3711 = vmatpush.msra.mxu0 0.0
    %3712 = vmatpush.msra.mxu0 0.0
    %3713 = vmatpush.msra.mxu0 0.0
    %3714 = vmatpush.msra.mxu0 0.0
    %3715 = vmatpush.msra.mxu0 0.0
    %3716 = vmatpush.msra.mxu0 %v3378
    %3717 = vmatpush.msra.mxu0 %v3376
    %3718 = vmatmul.f32.gmra.mxu0 %v3691
    %v3719 = vpop.f32.mrf.mxu0
    %v3720 = vadd.f32 0.0, %v3719
    %3721 = vmatmul.f32.gmra.mxu0 %v3694
    %v3722 = vpop.f32.mrf.mxu0
    %v3723 = vadd.f32 0.0, %v3722
    %3724 = vmatmul.f32.gmra.mxu0 %v3697
    %v3725 = vpop.f32.mrf.mxu0
    %v3726 = vadd.f32 0.0, %v3725
    %3727 = vmatmul.f32.gmra.mxu0 %v3700
    %v3728 = vpop.f32.mrf.mxu0
    %v3729 = vadd.f32 0.0, %v3728
    %3730 = vdwg.mxu0
    %v3731 = vadd.f32 %v3681, %v3720
    %v3732 = vadd.f32 %v3682, %v3723
    %v3733 = vadd.f32 %v3683, %v3726
    %v3734 = vadd.f32 %v3684, %v3729
    %s3735 = scalar_lea.vmem %s12, 224
    %v3736 = vld [vmem:[%s3735] sm:$0xff]
    %v3737 = vld [vmem:[%s3735 + $0x8] sm:$0xff]
    %v3738 = vld [vmem:[%s3735 + $0x10] sm:$0xff]
    %v3739 = vld [vmem:[%s3735 + $0x18] sm:$0xff]
    %v3741 = vsel %vm1644, %v3736, 0
    %v3744 = vsel %vm1644, %v3737, 0
    %v3747 = vsel %vm1644, %v3738, 0
    %v3750 = vsel %vm1644, %v3739, 0
    %3752 = vmatpush.msra.mxu0 0.0
    %3753 = vmatpush.msra.mxu0 0.0
    %3754 = vmatpush.msra.mxu0 0.0
    %3755 = vmatpush.msra.mxu0 0.0
    %3756 = vmatpush.msra.mxu0 0.0
    %3757 = vmatpush.msra.mxu0 0.0
    %3758 = vmatpush.msra.mxu0 0.0
    %3759 = vmatpush.msra.mxu0 0.0
    %3760 = vmatpush.msra.mxu0 0.0
    %3761 = vmatpush.msra.mxu0 0.0
    %3762 = vmatpush.msra.mxu0 0.0
    %3763 = vmatpush.msra.mxu0 0.0
    %3764 = vmatpush.msra.mxu0 0.0
    %3765 = vmatpush.msra.mxu0 0.0
    %3766 = vmatpush.msra.mxu0 %v3392
    %3767 = vmatpush.msra.mxu0 %v3390
    %3768 = vmatmul.f32.gmra.mxu0 %v3741
    %v3769 = vpop.f32.mrf.mxu0
    %v3770 = vadd.f32 0.0, %v3769
    %3771 = vmatmul.f32.gmra.mxu0 %v3744
    %v3772 = vpop.f32.mrf.mxu0
    %v3773 = vadd.f32 0.0, %v3772
    %3774 = vmatmul.f32.gmra.mxu0 %v3747
    %v3775 = vpop.f32.mrf.mxu0
    %v3776 = vadd.f32 0.0, %v3775
    %3777 = vmatmul.f32.gmra.mxu0 %v3750
    %v3778 = vpop.f32.mrf.mxu0
    %v3779 = vadd.f32 0.0, %v3778
    %3780 = vdwg.mxu0
    %v3781 = vadd.f32 %v3731, %v3770
    %v3782 = vadd.f32 %v3732, %v3773
    %v3783 = vadd.f32 %v3733, %v3776
    %v3784 = vadd.f32 %v3734, %v3779
    %vm3785 = vcmp.gt.f32.partialorder %v3781, 0.0
    %vm3786 = vcmp.gt.f32.partialorder %v3782, 0.0
    %vm3787 = vcmp.gt.f32.partialorder %v3783, 0.0
    %vm3788 = vcmp.gt.f32.partialorder %v3784, 0.0
    %v3789 = vmin.f32 %v3781, 0.0
    %v3790 = vmin.f32 %v3782, 0.0
    %v3791 = vmin.f32 %v3783, 0.0
    %v3792 = vmin.f32 %v3784, 0.0
    %v3793 = vmul.f32 %v3789, 1.442695
    %v3794 = vpow.pop %v3793
    %v3795 = vmul.f32 %v3790, 1.442695
    %v3796 = vpow.pop %v3795
    %v3797 = vmul.f32 %v3791, 1.442695
    %v3798 = vpow.pop %v3797
    %v3799 = vmul.f32 %v3792, 1.442695
    %v3800 = vpow.pop %v3799
    %v3801 = vsub.f32 %v3794, 1.0
    %v3802 = vsub.f32 %v3796, 1.0
    %v3803 = vsub.f32 %v3798, 1.0
    %v3804 = vsub.f32 %v3800, 1.0
    %v3805 = vsel %vm3785, %v3781, %v3801
    %v3806 = vsel %vm3786, %v3782, %v3802
    %v3807 = vsel %vm3787, %v3783, %v3803
    %v3808 = vsel %vm3788, %v3784, %v3804
    %v3809 = vmul.f32 %v3805, %v2792
    %v3810 = vmul.f32 %v3806, %v2792
    %v3811 = vmul.f32 %v3807, %v2792
    %v3812 = vmul.f32 %v3808, %v2792
    %3813 = vadd.xlane.f32.xlu0 %v3809
    %v3814 = vpop.xlane.xlu0 %3813
    %3815 = vadd.xlane.f32.xlu0 %v3810
    %v3816 = vpop.xlane.xlu0 %3815
    %3817 = vadd.xlane.f32.xlu0 %v3811
    %v3818 = vpop.xlane.xlu0 %3817
    %3819 = vadd.xlane.f32.xlu0 %v3812
    %v3820 = vpop.xlane.xlu0 %3819
    %v3821 = vmul.f32 %v3814, %v2800
    %v3822 = vmul.f32 %v3816, %v2800
    %v3823 = vmul.f32 %v3818, %v2800
    %v3824 = vmul.f32 %v3820, %v2800
    %v3825 = vsub.f32 %v3805, %v3821
    %v3826 = vsub.f32 %v3806, %v3822
    %v3827 = vsub.f32 %v3807, %v3823
    %v3828 = vsub.f32 %v3808, %v3824
    %v3829 = vmul.f32 %v3825, %v3825
    %v3830 = vmul.f32 %v3826, %v3826
    %v3831 = vmul.f32 %v3827, %v3827
    %v3832 = vmul.f32 %v3828, %v3828
    %v3833 = vmul.f32 %v3829, %v2792
    %v3834 = vmul.f32 %v3830, %v2792
    %v3835 = vmul.f32 %v3831, %v2792
    %v3836 = vmul.f32 %v3832, %v2792
    %3837 = vadd.xlane.f32.xlu0 %v3833
    %v3838 = vpop.xlane.xlu0 %3837
    %3839 = vadd.xlane.f32.xlu0 %v3834
    %v3840 = vpop.xlane.xlu0 %3839
    %3841 = vadd.xlane.f32.xlu0 %v3835
    %v3842 = vpop.xlane.xlu0 %3841
    %3843 = vadd.xlane.f32.xlu0 %v3836
    %v3844 = vpop.xlane.xlu0 %3843
    %v3845 = vmul.f32 %v3838, %v2800
    %v3846 = vmul.f32 %v3840, %v2800
    %v3847 = vmul.f32 %v3842, %v2800
    %v3848 = vmul.f32 %v3844, %v2800
    %v3849 = vadd.f32 %v3845, 1e-05
    %v3850 = vadd.f32 %v3846, 1e-05
    %v3851 = vadd.f32 %v3847, 1e-05
    %v3852 = vadd.f32 %v3848, 1e-05
    %v3853 = vrsqrt.pop %v3849
    %v3854 = vmul.f32 %v3853, %v3849
    %v3855 = vmul.f32 %v3854, %v3853
    %v3856 = vmul.f32 0.5, %v3855
    %v3857 = vsub.f32 1.5, %v3856
    %v3858 = vmul.f32 %v3853, %v3857
    %vm3859 = vweird.f32 %v3849
    %vm3860 = vweird.f32 %v3853
    %vm3861 = vmor %vm3859, %vm3860
    %v3862 = vsel %vm3861, %v3853, %v3858
    %v3863 = vrsqrt.pop %v3850
    %v3864 = vmul.f32 %v3863, %v3850
    %v3865 = vmul.f32 %v3864, %v3863
    %v3866 = vmul.f32 0.5, %v3865
    %v3867 = vsub.f32 1.5, %v3866
    %v3868 = vmul.f32 %v3863, %v3867
    %vm3869 = vweird.f32 %v3850
    %vm3870 = vweird.f32 %v3863
    %vm3871 = vmor %vm3869, %vm3870
    %v3872 = vsel %vm3871, %v3863, %v3868
    %v3873 = vrsqrt.pop %v3851
    %v3874 = vmul.f32 %v3873, %v3851
    %v3875 = vmul.f32 %v3874, %v3873
    %v3876 = vmul.f32 0.5, %v3875
    %v3877 = vsub.f32 1.5, %v3876
    %v3878 = vmul.f32 %v3873, %v3877
    %vm3879 = vweird.f32 %v3851
    %vm3880 = vweird.f32 %v3873
    %vm3881 = vmor %vm3879, %vm3880
    %v3882 = vsel %vm3881, %v3873, %v3878
    %v3883 = vrsqrt.pop %v3852
    %v3884 = vmul.f32 %v3883, %v3852
    %v3885 = vmul.f32 %v3884, %v3883
    %v3886 = vmul.f32 0.5, %v3885
    %v3887 = vsub.f32 1.5, %v3886
    %v3888 = vmul.f32 %v3883, %v3887
    %vm3889 = vweird.f32 %v3852
    %vm3890 = vweird.f32 %v3883
    %vm3891 = vmor %vm3889, %vm3890
    %v3892 = vsel %vm3891, %v3883, %v3888
    %v3893 = vmul.f32 %v3825, %v3862
    %v3894 = vmul.f32 %v3826, %v3872
    %v3895 = vmul.f32 %v3827, %v3882
    %v3896 = vmul.f32 %v3828, %v3892
    %v3897 = vmul.f32 %v3893, %v2792
    %v3898 = vmul.f32 %v3894, %v2792
    %v3899 = vmul.f32 %v3895, %v2792
    %v3900 = vmul.f32 %v3896, %v2792
    %v3901 = vld [vmem:[#allocation19] sm:$0x1]
    %v3902 = vld [vmem:[#allocation17] sm:$0xff]
    %v3903 = vld [vmem:[#allocation17 + $0x8] sm:$0xff]
    %v3904 = vld [vmem:[#allocation17 + $0x10] sm:$0xff]
    %v3905 = vld [vmem:[#allocation17 + $0x18] sm:$0xff]
    %v3906 = vld [vmem:[#allocation17 + $0x20] sm:$0xff]
    %v3907 = vld [vmem:[#allocation17 + $0x28] sm:$0xff]
    %v3908 = vld [vmem:[#allocation17 + $0x30] sm:$0xff]
    %v3909 = vld [vmem:[#allocation17 + $0x38] sm:$0xff]
    %v3910 = vld [vmem:[#allocation17 + $0x40] sm:$0xff]
    %v3911 = vld [vmem:[#allocation17 + $0x48] sm:$0xff]
    %v3912 = vld [vmem:[#allocation17 + $0x50] sm:$0xff]
    %v3913 = vld [vmem:[#allocation17 + $0x58] sm:$0xff]
    %v3914 = vld [vmem:[#allocation17 + $0x60] sm:$0xff]
    %v3915 = vld [vmem:[#allocation17 + $0x68] sm:$0xff]
    %v3916 = vld [vmem:[#allocation17 + $0x70] sm:$0xff]
    %v3917 = vld [vmem:[#allocation17 + $0x78] sm:$0xff]
    %v3918 = vld [vmem:[%s21] sm:$0x1]
    %v3920 = vperm.slane %v3918, 0
    %3922 = vmatpush.msra.mxu0 %v3917
    %3923 = vmatpush.msra.mxu0 %v3916
    %3924 = vmatpush.msra.mxu0 %v3915
    %3925 = vmatpush.msra.mxu0 %v3914
    %3926 = vmatpush.msra.mxu0 %v3913
    %3927 = vmatpush.msra.mxu0 %v3912
    %3928 = vmatpush.msra.mxu0 %v3911
    %3929 = vmatpush.msra.mxu0 %v3910
    %3930 = vmatpush.msra.mxu0 %v3909
    %3931 = vmatpush.msra.mxu0 %v3908
    %3932 = vmatpush.msra.mxu0 %v3907
    %3933 = vmatpush.msra.mxu0 %v3906
    %3934 = vmatpush.msra.mxu0 %v3905
    %3935 = vmatpush.msra.mxu0 %v3904
    %3936 = vmatpush.msra.mxu0 %v3903
    %3937 = vmatpush.msra.mxu0 %v3902
    %3938 = vmatmul.f32.gmra.mxu0 %v3897
    %v3939 = vpop.f32.mrf.mxu0
    %v3940 = vadd.f32 %v3920, %v3939
    %3941 = vmatmul.f32.gmra.mxu0 %v3898
    %v3942 = vpop.f32.mrf.mxu0
    %v3943 = vadd.f32 %v3920, %v3942
    %3944 = vmatmul.f32.gmra.mxu0 %v3899
    %v3945 = vpop.f32.mrf.mxu0
    %v3946 = vadd.f32 %v3920, %v3945
    %3947 = vmatmul.f32.gmra.mxu0 %v3900
    %v3948 = vpop.f32.mrf.mxu0
    %v3949 = vadd.f32 %v3920, %v3948
    %3950 = vdwg.mxu0
    %vm3951 = vcmp.gt.f32.partialorder %v3901, 0.0
    %v3952 = vsel %vm3951, 1, 0
    %v3953 = vperm.slane %v3952, 0
    %vm3954 = vcmp.eq.s32.totalorder %v3953, 1
    %v3955 = vsel %vm3954, %v3940, 0.0
    %v3956 = vsel %vm3954, %v3943, 0.0
    %v3957 = vsel %vm3954, %v3946, 0.0
    %v3958 = vsel %vm3954, %v3949, 0.0
    %v3959 = vpack.c.bf16 %v3956, %v3955
    %v3960 = vpack.c.bf16 %v3958, %v3957
    %v3961 = vld [vmem:[#allocation7] sm:$0xff]
    %v3962 = vld [vmem:[#allocation7 + $0x8] sm:$0xff]
    %v3963 = vld [vmem:[#allocation7 + $0x10] sm:$0xff]
    %v3964 = vld [vmem:[#allocation7 + $0x18] sm:$0xff]
    %v3965 = vld [vmem:[#allocation7 + $0x20] sm:$0xff]
    %v3966 = vld [vmem:[#allocation7 + $0x28] sm:$0xff]
    %v3967 = vld [vmem:[#allocation7 + $0x30] sm:$0xff]
    %v3968 = vld [vmem:[#allocation7 + $0x38] sm:$0xff]
    %v3969 = vld [vmem:[#allocation7 + $0x40] sm:$0xff]
    %v3970 = vld [vmem:[#allocation7 + $0x48] sm:$0xff]
    %v3971 = vld [vmem:[#allocation7 + $0x50] sm:$0xff]
    %v3972 = vld [vmem:[#allocation7 + $0x58] sm:$0xff]
    %v3973 = vld [vmem:[#allocation7 + $0x60] sm:$0xff]
    %v3974 = vld [vmem:[#allocation7 + $0x68] sm:$0xff]
    %v3975 = vld [vmem:[#allocation7 + $0x70] sm:$0xff]
    %v3976 = vld [vmem:[#allocation7 + $0x78] sm:$0xff]
    %v3977 = vld [vmem:[#allocation7 + $0x80] sm:$0xff]
    %v3978 = vld [vmem:[#allocation7 + $0x88] sm:$0xff]
    %v3979 = vld [vmem:[#allocation7 + $0x90] sm:$0xff]
    %v3980 = vld [vmem:[#allocation7 + $0x98] sm:$0xff]
    %v3981 = vld [vmem:[#allocation7 + $0xa0] sm:$0xff]
    %v3982 = vld [vmem:[#allocation7 + $0xa8] sm:$0xff]
    %v3983 = vld [vmem:[#allocation7 + $0xb0] sm:$0xff]
    %v3984 = vld [vmem:[#allocation7 + $0xb8] sm:$0xff]
    %v3985 = vld [vmem:[#allocation7 + $0xc0] sm:$0xff]
    %v3986 = vld [vmem:[#allocation7 + $0xc8] sm:$0xff]
    %v3987 = vld [vmem:[#allocation7 + $0xd0] sm:$0xff]
    %v3988 = vld [vmem:[#allocation7 + $0xd8] sm:$0xff]
    %v3989 = vld [vmem:[#allocation7 + $0xe0] sm:$0xff]
    %v3990 = vld [vmem:[#allocation7 + $0xe8] sm:$0xff]
    %v3991 = vld [vmem:[#allocation7 + $0xf0] sm:$0xff]
    %v3992 = vld [vmem:[#allocation7 + $0xf8] sm:$0xff]
    %v3993 = vld [vmem:[#allocation7 + $0x100] sm:$0xff]
    %v3994 = vld [vmem:[#allocation7 + $0x108] sm:$0xff]
    %v3995 = vld [vmem:[#allocation7 + $0x110] sm:$0xff]
    %v3996 = vld [vmem:[#allocation7 + $0x118] sm:$0xff]
    %v3997 = vld [vmem:[#allocation7 + $0x120] sm:$0xff]
    %v3998 = vld [vmem:[#allocation7 + $0x128] sm:$0xff]
    %v3999 = vld [vmem:[#allocation7 + $0x130] sm:$0xff]
    %v4000 = vld [vmem:[#allocation7 + $0x138] sm:$0xff]
    %v4001 = vld [vmem:[#allocation7 + $0x140] sm:$0xff]
    %v4002 = vld [vmem:[#allocation7 + $0x148] sm:$0xff]
    %v4003 = vld [vmem:[#allocation7 + $0x150] sm:$0xff]
    %v4004 = vld [vmem:[#allocation7 + $0x158] sm:$0xff]
    %v4005 = vld [vmem:[#allocation7 + $0x160] sm:$0xff]
    %v4006 = vld [vmem:[#allocation7 + $0x168] sm:$0xff]
    %v4007 = vld [vmem:[#allocation7 + $0x170] sm:$0xff]
    %v4008 = vld [vmem:[#allocation7 + $0x178] sm:$0xff]
    %v4009 = vld [vmem:[#allocation7 + $0x180] sm:$0xff]
    %v4010 = vld [vmem:[#allocation7 + $0x188] sm:$0xff]
    %v4011 = vld [vmem:[#allocation7 + $0x190] sm:$0xff]
    %v4012 = vld [vmem:[#allocation7 + $0x198] sm:$0xff]
    %v4013 = vld [vmem:[#allocation7 + $0x1a0] sm:$0xff]
    %v4014 = vld [vmem:[#allocation7 + $0x1a8] sm:$0xff]
    %v4015 = vld [vmem:[#allocation7 + $0x1b0] sm:$0xff]
    %v4016 = vld [vmem:[#allocation7 + $0x1b8] sm:$0xff]
    %v4017 = vld [vmem:[#allocation7 + $0x1c0] sm:$0xff]
    %v4018 = vld [vmem:[#allocation7 + $0x1c8] sm:$0xff]
    %v4019 = vld [vmem:[#allocation7 + $0x1d0] sm:$0xff]
    %v4020 = vld [vmem:[#allocation7 + $0x1d8] sm:$0xff]
    %v4021 = vld [vmem:[#allocation7 + $0x1e0] sm:$0xff]
    %v4022 = vld [vmem:[#allocation7 + $0x1e8] sm:$0xff]
    %v4023 = vld [vmem:[#allocation7 + $0x1f0] sm:$0xff]
    %v4024 = vld [vmem:[#allocation7 + $0x1f8] sm:$0xff]
    %v4089 = vunpack.c.l.b16 %v3961
    %v4090 = vunpack.c.h.b16 %v3961
    %v4091 = vunpack.c.l.b16 %v3962
    %v4092 = vunpack.c.h.b16 %v3962
    %v4093 = vunpack.c.l.b16 %v3963
    %v4094 = vunpack.c.h.b16 %v3963
    %v4095 = vunpack.c.l.b16 %v3964
    %v4096 = vunpack.c.h.b16 %v3964
    %v4097 = vunpack.c.l.b16 %v3965
    %v4098 = vunpack.c.h.b16 %v3965
    %v4099 = vunpack.c.l.b16 %v3966
    %v4100 = vunpack.c.h.b16 %v3966
    %v4101 = vunpack.c.l.b16 %v3967
    %v4102 = vunpack.c.h.b16 %v3967
    %v4103 = vunpack.c.l.b16 %v3968
    %v4104 = vunpack.c.h.b16 %v3968
    %v4105 = vunpack.c.l.b16 %v3969
    %v4106 = vunpack.c.h.b16 %v3969
    %v4107 = vunpack.c.l.b16 %v3970
    %v4108 = vunpack.c.h.b16 %v3970
    %v4109 = vunpack.c.l.b16 %v3971
    %v4110 = vunpack.c.h.b16 %v3971
    %v4111 = vunpack.c.l.b16 %v3972
    %v4112 = vunpack.c.h.b16 %v3972
    %v4113 = vunpack.c.l.b16 %v3973
    %v4114 = vunpack.c.h.b16 %v3973
    %v4115 = vunpack.c.l.b16 %v3974
    %v4116 = vunpack.c.h.b16 %v3974
    %v4117 = vunpack.c.l.b16 %v3975
    %v4118 = vunpack.c.h.b16 %v3975
    %v4119 = vunpack.c.l.b16 %v3976
    %v4120 = vunpack.c.h.b16 %v3976
    %v4121 = vunpack.c.l.b16 %v3977
    %v4122 = vunpack.c.h.b16 %v3977
    %v4123 = vunpack.c.l.b16 %v3978
    %v4124 = vunpack.c.h.b16 %v3978
    %v4125 = vunpack.c.l.b16 %v3979
    %v4126 = vunpack.c.h.b16 %v3979
    %v4127 = vunpack.c.l.b16 %v3980
    %v4128 = vunpack.c.h.b16 %v3980
    %v4129 = vunpack.c.l.b16 %v3981
    %v4130 = vunpack.c.h.b16 %v3981
    %v4131 = vunpack.c.l.b16 %v3982
    %v4132 = vunpack.c.h.b16 %v3982
    %v4133 = vunpack.c.l.b16 %v3983
    %v4134 = vunpack.c.h.b16 %v3983
    %v4135 = vunpack.c.l.b16 %v3984
    %v4136 = vunpack.c.h.b16 %v3984
    %v4137 = vunpack.c.l.b16 %v3985
    %v4138 = vunpack.c.h.b16 %v3985
    %v4139 = vunpack.c.l.b16 %v3986
    %v4140 = vunpack.c.h.b16 %v3986
    %v4141 = vunpack.c.l.b16 %v3987
    %v4142 = vunpack.c.h.b16 %v3987
    %v4143 = vunpack.c.l.b16 %v3988
    %v4144 = vunpack.c.h.b16 %v3988
    %v4145 = vunpack.c.l.b16 %v3989
    %v4146 = vunpack.c.h.b16 %v3989
    %v4147 = vunpack.c.l.b16 %v3990
    %v4148 = vunpack.c.h.b16 %v3990
    %v4149 = vunpack.c.l.b16 %v3991
    %v4150 = vunpack.c.h.b16 %v3991
    %v4151 = vunpack.c.l.b16 %v3992
    %v4152 = vunpack.c.h.b16 %v3992
    %v4153 = vunpack.c.l.b16 %v3993
    %v4154 = vunpack.c.h.b16 %v3993
    %v4155 = vunpack.c.l.b16 %v3994
    %v4156 = vunpack.c.h.b16 %v3994
    %v4157 = vunpack.c.l.b16 %v3995
    %v4158 = vunpack.c.h.b16 %v3995
    %v4159 = vunpack.c.l.b16 %v3996
    %v4160 = vunpack.c.h.b16 %v3996
    %v4161 = vunpack.c.l.b16 %v3997
    %v4162 = vunpack.c.h.b16 %v3997
    %v4163 = vunpack.c.l.b16 %v3998
    %v4164 = vunpack.c.h.b16 %v3998
    %v4165 = vunpack.c.l.b16 %v3999
    %v4166 = vunpack.c.h.b16 %v3999
    %v4167 = vunpack.c.l.b16 %v4000
    %v4168 = vunpack.c.h.b16 %v4000
    %v4169 = vunpack.c.l.b16 %v4001
    %v4170 = vunpack.c.h.b16 %v4001
    %v4171 = vunpack.c.l.b16 %v4002
    %v4172 = vunpack.c.h.b16 %v4002
    %v4173 = vunpack.c.l.b16 %v4003
    %v4174 = vunpack.c.h.b16 %v4003
    %v4175 = vunpack.c.l.b16 %v4004
    %v4176 = vunpack.c.h.b16 %v4004
    %v4177 = vunpack.c.l.b16 %v4005
    %v4178 = vunpack.c.h.b16 %v4005
    %v4179 = vunpack.c.l.b16 %v4006
    %v4180 = vunpack.c.h.b16 %v4006
    %v4181 = vunpack.c.l.b16 %v4007
    %v4182 = vunpack.c.h.b16 %v4007
    %v4183 = vunpack.c.l.b16 %v4008
    %v4184 = vunpack.c.h.b16 %v4008
    %v4185 = vunpack.c.l.b16 %v4009
    %v4186 = vunpack.c.h.b16 %v4009
    %v4187 = vunpack.c.l.b16 %v4010
    %v4188 = vunpack.c.h.b16 %v4010
    %v4189 = vunpack.c.l.b16 %v4011
    %v4190 = vunpack.c.h.b16 %v4011
    %v4191 = vunpack.c.l.b16 %v4012
    %v4192 = vunpack.c.h.b16 %v4012
    %v4193 = vunpack.c.l.b16 %v4013
    %v4194 = vunpack.c.h.b16 %v4013
    %v4195 = vunpack.c.l.b16 %v4014
    %v4196 = vunpack.c.h.b16 %v4014
    %v4197 = vunpack.c.l.b16 %v4015
    %v4198 = vunpack.c.h.b16 %v4015
    %v4199 = vunpack.c.l.b16 %v4016
    %v4200 = vunpack.c.h.b16 %v4016
    %v4201 = vunpack.c.l.b16 %v4017
    %v4202 = vunpack.c.h.b16 %v4017
    %v4203 = vunpack.c.l.b16 %v4018
    %v4204 = vunpack.c.h.b16 %v4018
    %v4205 = vunpack.c.l.b16 %v4019
    %v4206 = vunpack.c.h.b16 %v4019
    %v4207 = vunpack.c.l.b16 %v4020
    %v4208 = vunpack.c.h.b16 %v4020
    %v4209 = vunpack.c.l.b16 %v4021
    %v4210 = vunpack.c.h.b16 %v4021
    %v4211 = vunpack.c.l.b16 %v4022
    %v4212 = vunpack.c.h.b16 %v4022
    %v4213 = vunpack.c.l.b16 %v4023
    %v4214 = vunpack.c.h.b16 %v4023
    %v4215 = vunpack.c.l.b16 %v4024
    %v4216 = vunpack.c.h.b16 %v4024
    %v4217 = vpack.c.b16 %v4097, %v4089
    %v4218 = vpack.c.b16 %v4098, %v4090
    %v4219 = vpack.c.b16 %v4099, %v4091
    %v4220 = vpack.c.b16 %v4100, %v4092
    %v4221 = vpack.c.b16 %v4101, %v4093
    %v4222 = vpack.c.b16 %v4102, %v4094
    %v4223 = vpack.c.b16 %v4103, %v4095
    %v4224 = vpack.c.b16 %v4104, %v4096
    %v4225 = vpack.c.b16 %v4113, %v4105
    %v4226 = vpack.c.b16 %v4114, %v4106
    %v4227 = vpack.c.b16 %v4115, %v4107
    %v4228 = vpack.c.b16 %v4116, %v4108
    %v4229 = vpack.c.b16 %v4117, %v4109
    %v4230 = vpack.c.b16 %v4118, %v4110
    %v4231 = vpack.c.b16 %v4119, %v4111
    %v4232 = vpack.c.b16 %v4120, %v4112
    %v4233 = vpack.c.b16 %v4129, %v4121
    %v4234 = vpack.c.b16 %v4130, %v4122
    %v4235 = vpack.c.b16 %v4131, %v4123
    %v4236 = vpack.c.b16 %v4132, %v4124
    %v4237 = vpack.c.b16 %v4133, %v4125
    %v4238 = vpack.c.b16 %v4134, %v4126
    %v4239 = vpack.c.b16 %v4135, %v4127
    %v4240 = vpack.c.b16 %v4136, %v4128
    %v4241 = vpack.c.b16 %v4145, %v4137
    %v4242 = vpack.c.b16 %v4146, %v4138
    %v4243 = vpack.c.b16 %v4147, %v4139
    %v4244 = vpack.c.b16 %v4148, %v4140
    %v4245 = vpack.c.b16 %v4149, %v4141
    %v4246 = vpack.c.b16 %v4150, %v4142
    %v4247 = vpack.c.b16 %v4151, %v4143
    %v4248 = vpack.c.b16 %v4152, %v4144
    %v4249 = vpack.c.b16 %v4161, %v4153
    %v4250 = vpack.c.b16 %v4162, %v4154
    %v4251 = vpack.c.b16 %v4163, %v4155
    %v4252 = vpack.c.b16 %v4164, %v4156
    %v4253 = vpack.c.b16 %v4165, %v4157
    %v4254 = vpack.c.b16 %v4166, %v4158
    %v4255 = vpack.c.b16 %v4167, %v4159
    %v4256 = vpack.c.b16 %v4168, %v4160
    %v4257 = vpack.c.b16 %v4177, %v4169
    %v4258 = vpack.c.b16 %v4178, %v4170
    %v4259 = vpack.c.b16 %v4179, %v4171
    %v4260 = vpack.c.b16 %v4180, %v4172
    %v4261 = vpack.c.b16 %v4181, %v4173
    %v4262 = vpack.c.b16 %v4182, %v4174
    %v4263 = vpack.c.b16 %v4183, %v4175
    %v4264 = vpack.c.b16 %v4184, %v4176
    %v4265 = vpack.c.b16 %v4193, %v4185
    %v4266 = vpack.c.b16 %v4194, %v4186
    %v4267 = vpack.c.b16 %v4195, %v4187
    %v4268 = vpack.c.b16 %v4196, %v4188
    %v4269 = vpack.c.b16 %v4197, %v4189
    %v4270 = vpack.c.b16 %v4198, %v4190
    %v4271 = vpack.c.b16 %v4199, %v4191
    %v4272 = vpack.c.b16 %v4200, %v4192
    %v4273 = vpack.c.b16 %v4209, %v4201
    %v4274 = vpack.c.b16 %v4210, %v4202
    %v4275 = vpack.c.b16 %v4211, %v4203
    %v4276 = vpack.c.b16 %v4212, %v4204
    %v4277 = vpack.c.b16 %v4213, %v4205
    %v4278 = vpack.c.b16 %v4214, %v4206
    %v4279 = vpack.c.b16 %v4215, %v4207
    %v4280 = vpack.c.b16 %v4216, %v4208
    %4345 = vmatpush.bf16.msra.mxu0 %v4273
    %4346 = vmatpush.bf16.msra.mxu0 %v4265
    %4347 = vmatpush.bf16.msra.mxu0 %v4257
    %4348 = vmatpush.bf16.msra.mxu0 %v4249
    %4349 = vmatpush.bf16.msra.mxu0 %v4241
    %4350 = vmatpush.bf16.msra.mxu0 %v4233
    %4351 = vmatpush.bf16.msra.mxu0 %v4225
    %4352 = vmatpush.bf16.msra.mxu0 %v4217
    %4353 = vmatmul.bf16.gmra.mxu0 %v3959
    %v4354 = vpop.f32.mrf.mxu0
    %v4355 = vadd.f32 0.0, %v4354
    %v4356 = vpop.f32.mrf.mxu0
    %v4357 = vadd.f32 0.0, %v4356
    %4358 = vmatmul.bf16.gmra.mxu0 %v3960
    %v4359 = vpop.f32.mrf.mxu0
    %v4360 = vadd.f32 0.0, %v4359
    %v4361 = vpop.f32.mrf.mxu0
    %v4362 = vadd.f32 0.0, %v4361
    %4363 = vdwg.mxu0
    %4364 = vmatpush.bf16.msra.mxu0 %v4274
    %4365 = vmatpush.bf16.msra.mxu0 %v4266
    %4366 = vmatpush.bf16.msra.mxu0 %v4258
    %4367 = vmatpush.bf16.msra.mxu0 %v4250
    %4368 = vmatpush.bf16.msra.mxu0 %v4242
    %4369 = vmatpush.bf16.msra.mxu0 %v4234
    %4370 = vmatpush.bf16.msra.mxu0 %v4226
    %4371 = vmatpush.bf16.msra.mxu0 %v4218
    %4372 = vmatmul.bf16.gmra.mxu0 %v3959
    %v4373 = vpop.f32.mrf.mxu0
    %v4374 = vadd.f32 0.0, %v4373
    %v4375 = vpop.f32.mrf.mxu0
    %v4376 = vadd.f32 0.0, %v4375
    %4377 = vmatmul.bf16.gmra.mxu0 %v3960
    %v4378 = vpop.f32.mrf.mxu0
    %v4379 = vadd.f32 0.0, %v4378
    %v4380 = vpop.f32.mrf.mxu0
    %v4381 = vadd.f32 0.0, %v4380
    %4382 = vdwg.mxu0
    %4383 = vmatpush.bf16.msra.mxu0 %v4275
    %4384 = vmatpush.bf16.msra.mxu0 %v4267
    %4385 = vmatpush.bf16.msra.mxu0 %v4259
    %4386 = vmatpush.bf16.msra.mxu0 %v4251
    %4387 = vmatpush.bf16.msra.mxu0 %v4243
    %4388 = vmatpush.bf16.msra.mxu0 %v4235
    %4389 = vmatpush.bf16.msra.mxu0 %v4227
    %4390 = vmatpush.bf16.msra.mxu0 %v4219
    %4391 = vmatmul.bf16.gmra.mxu0 %v3959
    %v4392 = vpop.f32.mrf.mxu0
    %v4393 = vadd.f32 0.0, %v4392
    %v4394 = vpop.f32.mrf.mxu0
    %v4395 = vadd.f32 0.0, %v4394
    %4396 = vmatmul.bf16.gmra.mxu0 %v3960
    %v4397 = vpop.f32.mrf.mxu0
    %v4398 = vadd.f32 0.0, %v4397
    %v4399 = vpop.f32.mrf.mxu0
    %v4400 = vadd.f32 0.0, %v4399
    %4401 = vdwg.mxu0
    %4402 = vmatpush.bf16.msra.mxu0 %v4276
    %4403 = vmatpush.bf16.msra.mxu0 %v4268
    %4404 = vmatpush.bf16.msra.mxu0 %v4260
    %4405 = vmatpush.bf16.msra.mxu0 %v4252
    %4406 = vmatpush.bf16.msra.mxu0 %v4244
    %4407 = vmatpush.bf16.msra.mxu0 %v4236
    %4408 = vmatpush.bf16.msra.mxu0 %v4228
    %4409 = vmatpush.bf16.msra.mxu0 %v4220
    %4410 = vmatmul.bf16.gmra.mxu0 %v3959
    %v4411 = vpop.f32.mrf.mxu0
    %v4412 = vadd.f32 0.0, %v4411
    %v4413 = vpop.f32.mrf.mxu0
    %v4414 = vadd.f32 0.0, %v4413
    %4415 = vmatmul.bf16.gmra.mxu0 %v3960
    %v4416 = vpop.f32.mrf.mxu0
    %v4417 = vadd.f32 0.0, %v4416
    %v4418 = vpop.f32.mrf.mxu0
    %v4419 = vadd.f32 0.0, %v4418
    %4420 = vdwg.mxu0
    %4421 = vmatpush.bf16.msra.mxu0 %v4277
    %4422 = vmatpush.bf16.msra.mxu0 %v4269
    %4423 = vmatpush.bf16.msra.mxu0 %v4261
    %4424 = vmatpush.bf16.msra.mxu0 %v4253
    %4425 = vmatpush.bf16.msra.mxu0 %v4245
    %4426 = vmatpush.bf16.msra.mxu0 %v4237
    %4427 = vmatpush.bf16.msra.mxu0 %v4229
    %4428 = vmatpush.bf16.msra.mxu0 %v4221
    %4429 = vmatmul.bf16.gmra.mxu0 %v3959
    %v4430 = vpop.f32.mrf.mxu0
    %v4431 = vadd.f32 0.0, %v4430
    %v4432 = vpop.f32.mrf.mxu0
    %v4433 = vadd.f32 0.0, %v4432
    %4434 = vmatmul.bf16.gmra.mxu0 %v3960
    %v4435 = vpop.f32.mrf.mxu0
    %v4436 = vadd.f32 0.0, %v4435
    %v4437 = vpop.f32.mrf.mxu0
    %v4438 = vadd.f32 0.0, %v4437
    %4439 = vdwg.mxu0
    %4440 = vmatpush.bf16.msra.mxu0 %v4278
    %4441 = vmatpush.bf16.msra.mxu0 %v4270
    %4442 = vmatpush.bf16.msra.mxu0 %v4262
    %4443 = vmatpush.bf16.msra.mxu0 %v4254
    %4444 = vmatpush.bf16.msra.mxu0 %v4246
    %4445 = vmatpush.bf16.msra.mxu0 %v4238
    %4446 = vmatpush.bf16.msra.mxu0 %v4230
    %4447 = vmatpush.bf16.msra.mxu0 %v4222
    %4448 = vmatmul.bf16.gmra.mxu0 %v3959
    %v4449 = vpop.f32.mrf.mxu0
    %v4450 = vadd.f32 0.0, %v4449
    %v4451 = vpop.f32.mrf.mxu0
    %v4452 = vadd.f32 0.0, %v4451
    %4453 = vmatmul.bf16.gmra.mxu0 %v3960
    %v4454 = vpop.f32.mrf.mxu0
    %v4455 = vadd.f32 0.0, %v4454
    %v4456 = vpop.f32.mrf.mxu0
    %v4457 = vadd.f32 0.0, %v4456
    %4458 = vdwg.mxu0
    %4459 = vmatpush.bf16.msra.mxu0 %v4279
    %4460 = vmatpush.bf16.msra.mxu0 %v4271
    %4461 = vmatpush.bf16.msra.mxu0 %v4263
    %4462 = vmatpush.bf16.msra.mxu0 %v4255
    %4463 = vmatpush.bf16.msra.mxu0 %v4247
    %4464 = vmatpush.bf16.msra.mxu0 %v4239
    %4465 = vmatpush.bf16.msra.mxu0 %v4231
    %4466 = vmatpush.bf16.msra.mxu0 %v4223
    %4467 = vmatmul.bf16.gmra.mxu0 %v3959
    %v4468 = vpop.f32.mrf.mxu0
    %v4469 = vadd.f32 0.0, %v4468
    %v4470 = vpop.f32.mrf.mxu0
    %v4471 = vadd.f32 0.0, %v4470
    %4472 = vmatmul.bf16.gmra.mxu0 %v3960
    %v4473 = vpop.f32.mrf.mxu0
    %v4474 = vadd.f32 0.0, %v4473
    %v4475 = vpop.f32.mrf.mxu0
    %v4476 = vadd.f32 0.0, %v4475
    %4477 = vdwg.mxu0
    %4478 = vmatpush.bf16.msra.mxu0 %v4280
    %4479 = vmatpush.bf16.msra.mxu0 %v4272
    %4480 = vmatpush.bf16.msra.mxu0 %v4264
    %4481 = vmatpush.bf16.msra.mxu0 %v4256
    %4482 = vmatpush.bf16.msra.mxu0 %v4248
    %4483 = vmatpush.bf16.msra.mxu0 %v4240
    %4484 = vmatpush.bf16.msra.mxu0 %v4232
    %4485 = vmatpush.bf16.msra.mxu0 %v4224
    %4486 = vmatmul.bf16.gmra.mxu0 %v3959
    %v4487 = vpop.f32.mrf.mxu0
    %v4488 = vadd.f32 0.0, %v4487
    %v4489 = vpop.f32.mrf.mxu0
    %v4490 = vadd.f32 0.0, %v4489
    %4491 = vmatmul.bf16.gmra.mxu0 %v3960
    %v4492 = vpop.f32.mrf.mxu0
    %v4493 = vadd.f32 0.0, %v4492
    %v4494 = vpop.f32.mrf.mxu0
    %v4495 = vadd.f32 0.0, %v4494
    %4496 = vdwg.mxu0
    %v4497 = vld [vmem:[%s13] sm:$0xff]
    %v4498 = vld [vmem:[%s13 + $0x8] sm:$0xff]
    %v4499 = vld [vmem:[%s13 + $0x10] sm:$0xff]
    %v4500 = vld [vmem:[%s13 + $0x18] sm:$0xff]
    %s4501 = scalar_lea.vmem %s13, 32
    %v4502 = vld [vmem:[%s4501] sm:$0xff]
    %v4503 = vld [vmem:[%s4501 + $0x8] sm:$0xff]
    %v4504 = vld [vmem:[%s4501 + $0x10] sm:$0xff]
    %v4505 = vld [vmem:[%s4501 + $0x18] sm:$0xff]
    %vm4506 = vcmask 261120
    %v4508 = vsel %vm4506, %v4502, 0
    %v4511 = vsel %vm4506, %v4503, 0
    %v4514 = vsel %vm4506, %v4504, 0
    %v4517 = vsel %vm4506, %v4505, 0
    %4519 = vmatpush.msra.mxu0 0.0
    %4520 = vmatpush.msra.mxu0 0.0
    %4521 = vmatpush.msra.mxu0 0.0
    %4522 = vmatpush.msra.mxu0 0.0
    %4523 = vmatpush.msra.mxu0 0.0
    %4524 = vmatpush.msra.mxu0 0.0
    %4525 = vmatpush.msra.mxu0 0.0
    %4526 = vmatpush.msra.mxu0 0.0
    %4527 = vmatpush.msra.mxu0 0.0
    %4528 = vmatpush.msra.mxu0 0.0
    %4529 = vmatpush.msra.mxu0 0.0
    %4530 = vmatpush.msra.mxu0 0.0
    %4531 = vmatpush.msra.mxu0 %v4381
    %4532 = vmatpush.msra.mxu0 %v4379
    %4533 = vmatpush.msra.mxu0 %v4376
    %4534 = vmatpush.msra.mxu0 %v4374
    %4535 = vmatmul.f32.gmra.mxu0 %v4508
    %v4536 = vpop.f32.mrf.mxu0
    %v4537 = vadd.f32 0.0, %v4536
    %4538 = vmatmul.f32.gmra.mxu0 %v4511
    %v4539 = vpop.f32.mrf.mxu0
    %v4540 = vadd.f32 0.0, %v4539
    %4541 = vmatmul.f32.gmra.mxu0 %v4514
    %v4542 = vpop.f32.mrf.mxu0
    %v4543 = vadd.f32 0.0, %v4542
    %4544 = vmatmul.f32.gmra.mxu0 %v4517
    %v4545 = vpop.f32.mrf.mxu0
    %v4546 = vadd.f32 0.0, %v4545
    %4547 = vdwg.mxu0
    %v4549 = vsel %vm4506, %v4497, 0
    %v4552 = vsel %vm4506, %v4498, 0
    %v4555 = vsel %vm4506, %v4499, 0
    %v4558 = vsel %vm4506, %v4500, 0
    %4560 = vmatpush.msra.mxu0 0.0
    %4561 = vmatpush.msra.mxu0 0.0
    %4562 = vmatpush.msra.mxu0 0.0
    %4563 = vmatpush.msra.mxu0 0.0
    %4564 = vmatpush.msra.mxu0 0.0
    %4565 = vmatpush.msra.mxu0 0.0
    %4566 = vmatpush.msra.mxu0 0.0
    %4567 = vmatpush.msra.mxu0 0.0
    %4568 = vmatpush.msra.mxu0 0.0
    %4569 = vmatpush.msra.mxu0 0.0
    %4570 = vmatpush.msra.mxu0 0.0
    %4571 = vmatpush.msra.mxu0 0.0
    %4572 = vmatpush.msra.mxu0 %v4362
    %4573 = vmatpush.msra.mxu0 %v4360
    %4574 = vmatpush.msra.mxu0 %v4357
    %4575 = vmatpush.msra.mxu0 %v4355
    %4576 = vmatmul.f32.gmra.mxu0 %v4549
    %v4577 = vpop.f32.mrf.mxu0
    %v4578 = vadd.f32 %v4537, %v4577
    %4579 = vmatmul.f32.gmra.mxu0 %v4552
    %v4580 = vpop.f32.mrf.mxu0
    %v4581 = vadd.f32 %v4540, %v4580
    %4582 = vmatmul.f32.gmra.mxu0 %v4555
    %v4583 = vpop.f32.mrf.mxu0
    %v4584 = vadd.f32 %v4543, %v4583
    %4585 = vmatmul.f32.gmra.mxu0 %v4558
    %v4586 = vpop.f32.mrf.mxu0
    %v4587 = vadd.f32 %v4546, %v4586
    %4588 = vdwg.mxu0
    %s4589 = scalar_lea.vmem %s13, 64
    %v4590 = vld [vmem:[%s4589] sm:$0xff]
    %v4591 = vld [vmem:[%s4589 + $0x8] sm:$0xff]
    %v4592 = vld [vmem:[%s4589 + $0x10] sm:$0xff]
    %v4593 = vld [vmem:[%s4589 + $0x18] sm:$0xff]
    %v4595 = vsel %vm4506, %v4590, 0
    %v4598 = vsel %vm4506, %v4591, 0
    %v4601 = vsel %vm4506, %v4592, 0
    %v4604 = vsel %vm4506, %v4593, 0
    %4606 = vmatpush.msra.mxu0 0.0
    %4607 = vmatpush.msra.mxu0 0.0
    %4608 = vmatpush.msra.mxu0 0.0
    %4609 = vmatpush.msra.mxu0 0.0
    %4610 = vmatpush.msra.mxu0 0.0
    %4611 = vmatpush.msra.mxu0 0.0
    %4612 = vmatpush.msra.mxu0 0.0
    %4613 = vmatpush.msra.mxu0 0.0
    %4614 = vmatpush.msra.mxu0 0.0
    %4615 = vmatpush.msra.mxu0 0.0
    %4616 = vmatpush.msra.mxu0 0.0
    %4617 = vmatpush.msra.mxu0 0.0
    %4618 = vmatpush.msra.mxu0 %v4400
    %4619 = vmatpush.msra.mxu0 %v4398
    %4620 = vmatpush.msra.mxu0 %v4395
    %4621 = vmatpush.msra.mxu0 %v4393
    %4622 = vmatmul.f32.gmra.mxu0 %v4595
    %v4623 = vpop.f32.mrf.mxu0
    %v4624 = vadd.f32 0.0, %v4623
    %4625 = vmatmul.f32.gmra.mxu0 %v4598
    %v4626 = vpop.f32.mrf.mxu0
    %v4627 = vadd.f32 0.0, %v4626
    %4628 = vmatmul.f32.gmra.mxu0 %v4601
    %v4629 = vpop.f32.mrf.mxu0
    %v4630 = vadd.f32 0.0, %v4629
    %4631 = vmatmul.f32.gmra.mxu0 %v4604
    %v4632 = vpop.f32.mrf.mxu0
    %v4633 = vadd.f32 0.0, %v4632
    %4634 = vdwg.mxu0
    %v4635 = vadd.f32 %v4578, %v4624
    %v4636 = vadd.f32 %v4581, %v4627
    %v4637 = vadd.f32 %v4584, %v4630
    %v4638 = vadd.f32 %v4587, %v4633
    %s4639 = scalar_lea.vmem %s13, 96
    %v4640 = vld [vmem:[%s4639] sm:$0xff]
    %v4641 = vld [vmem:[%s4639 + $0x8] sm:$0xff]
    %v4642 = vld [vmem:[%s4639 + $0x10] sm:$0xff]
    %v4643 = vld [vmem:[%s4639 + $0x18] sm:$0xff]
    %v4645 = vsel %vm4506, %v4640, 0
    %v4648 = vsel %vm4506, %v4641, 0
    %v4651 = vsel %vm4506, %v4642, 0
    %v4654 = vsel %vm4506, %v4643, 0
    %4656 = vmatpush.msra.mxu0 0.0
    %4657 = vmatpush.msra.mxu0 0.0
    %4658 = vmatpush.msra.mxu0 0.0
    %4659 = vmatpush.msra.mxu0 0.0
    %4660 = vmatpush.msra.mxu0 0.0
    %4661 = vmatpush.msra.mxu0 0.0
    %4662 = vmatpush.msra.mxu0 0.0
    %4663 = vmatpush.msra.mxu0 0.0
    %4664 = vmatpush.msra.mxu0 0.0
    %4665 = vmatpush.msra.mxu0 0.0
    %4666 = vmatpush.msra.mxu0 0.0
    %4667 = vmatpush.msra.mxu0 0.0
    %4668 = vmatpush.msra.mxu0 %v4419
    %4669 = vmatpush.msra.mxu0 %v4417
    %4670 = vmatpush.msra.mxu0 %v4414
    %4671 = vmatpush.msra.mxu0 %v4412
    %4672 = vmatmul.f32.gmra.mxu0 %v4645
    %v4673 = vpop.f32.mrf.mxu0
    %v4674 = vadd.f32 0.0, %v4673
    %4675 = vmatmul.f32.gmra.mxu0 %v4648
    %v4676 = vpop.f32.mrf.mxu0
    %v4677 = vadd.f32 0.0, %v4676
    %4678 = vmatmul.f32.gmra.mxu0 %v4651
    %v4679 = vpop.f32.mrf.mxu0
    %v4680 = vadd.f32 0.0, %v4679
    %4681 = vmatmul.f32.gmra.mxu0 %v4654
    %v4682 = vpop.f32.mrf.mxu0
    %v4683 = vadd.f32 0.0, %v4682
    %4684 = vdwg.mxu0
    %v4685 = vadd.f32 %v4635, %v4674
    %v4686 = vadd.f32 %v4636, %v4677
    %v4687 = vadd.f32 %v4637, %v4680
    %v4688 = vadd.f32 %v4638, %v4683
    %s4689 = scalar_lea.vmem %s13, 128
    %v4690 = vld [vmem:[%s4689] sm:$0xff]
    %v4691 = vld [vmem:[%s4689 + $0x8] sm:$0xff]
    %v4692 = vld [vmem:[%s4689 + $0x10] sm:$0xff]
    %v4693 = vld [vmem:[%s4689 + $0x18] sm:$0xff]
    %v4695 = vsel %vm4506, %v4690, 0
    %v4698 = vsel %vm4506, %v4691, 0
    %v4701 = vsel %vm4506, %v4692, 0
    %v4704 = vsel %vm4506, %v4693, 0
    %4706 = vmatpush.msra.mxu0 0.0
    %4707 = vmatpush.msra.mxu0 0.0
    %4708 = vmatpush.msra.mxu0 0.0
    %4709 = vmatpush.msra.mxu0 0.0
    %4710 = vmatpush.msra.mxu0 0.0
    %4711 = vmatpush.msra.mxu0 0.0
    %4712 = vmatpush.msra.mxu0 0.0
    %4713 = vmatpush.msra.mxu0 0.0
    %4714 = vmatpush.msra.mxu0 0.0
    %4715 = vmatpush.msra.mxu0 0.0
    %4716 = vmatpush.msra.mxu0 0.0
    %4717 = vmatpush.msra.mxu0 0.0
    %4718 = vmatpush.msra.mxu0 %v4438
    %4719 = vmatpush.msra.mxu0 %v4436
    %4720 = vmatpush.msra.mxu0 %v4433
    %4721 = vmatpush.msra.mxu0 %v4431
    %4722 = vmatmul.f32.gmra.mxu0 %v4695
    %v4723 = vpop.f32.mrf.mxu0
    %v4724 = vadd.f32 0.0, %v4723
    %4725 = vmatmul.f32.gmra.mxu0 %v4698
    %v4726 = vpop.f32.mrf.mxu0
    %v4727 = vadd.f32 0.0, %v4726
    %4728 = vmatmul.f32.gmra.mxu0 %v4701
    %v4729 = vpop.f32.mrf.mxu0
    %v4730 = vadd.f32 0.0, %v4729
    %4731 = vmatmul.f32.gmra.mxu0 %v4704
    %v4732 = vpop.f32.mrf.mxu0
    %v4733 = vadd.f32 0.0, %v4732
    %4734 = vdwg.mxu0
    %v4735 = vadd.f32 %v4685, %v4724
    %v4736 = vadd.f32 %v4686, %v4727
    %v4737 = vadd.f32 %v4687, %v4730
    %v4738 = vadd.f32 %v4688, %v4733
    %s4739 = scalar_lea.vmem %s13, 160
    %v4740 = vld [vmem:[%s4739] sm:$0xff]
    %v4741 = vld [vmem:[%s4739 + $0x8] sm:$0xff]
    %v4742 = vld [vmem:[%s4739 + $0x10] sm:$0xff]
    %v4743 = vld [vmem:[%s4739 + $0x18] sm:$0xff]
    %v4745 = vsel %vm4506, %v4740, 0
    %v4748 = vsel %vm4506, %v4741, 0
    %v4751 = vsel %vm4506, %v4742, 0
    %v4754 = vsel %vm4506, %v4743, 0
    %4756 = vmatpush.msra.mxu0 0.0
    %4757 = vmatpush.msra.mxu0 0.0
    %4758 = vmatpush.msra.mxu0 0.0
    %4759 = vmatpush.msra.mxu0 0.0
    %4760 = vmatpush.msra.mxu0 0.0
    %4761 = vmatpush.msra.mxu0 0.0
    %4762 = vmatpush.msra.mxu0 0.0
    %4763 = vmatpush.msra.mxu0 0.0
    %4764 = vmatpush.msra.mxu0 0.0
    %4765 = vmatpush.msra.mxu0 0.0
    %4766 = vmatpush.msra.mxu0 0.0
    %4767 = vmatpush.msra.mxu0 0.0
    %4768 = vmatpush.msra.mxu0 %v4457
    %4769 = vmatpush.msra.mxu0 %v4455
    %4770 = vmatpush.msra.mxu0 %v4452
    %4771 = vmatpush.msra.mxu0 %v4450
    %4772 = vmatmul.f32.gmra.mxu0 %v4745
    %v4773 = vpop.f32.mrf.mxu0
    %v4774 = vadd.f32 0.0, %v4773
    %4775 = vmatmul.f32.gmra.mxu0 %v4748
    %v4776 = vpop.f32.mrf.mxu0
    %v4777 = vadd.f32 0.0, %v4776
    %4778 = vmatmul.f32.gmra.mxu0 %v4751
    %v4779 = vpop.f32.mrf.mxu0
    %v4780 = vadd.f32 0.0, %v4779
    %4781 = vmatmul.f32.gmra.mxu0 %v4754
    %v4782 = vpop.f32.mrf.mxu0
    %v4783 = vadd.f32 0.0, %v4782
    %4784 = vdwg.mxu0
    %v4785 = vadd.f32 %v4735, %v4774
    %v4786 = vadd.f32 %v4736, %v4777
    %v4787 = vadd.f32 %v4737, %v4780
    %v4788 = vadd.f32 %v4738, %v4783
    %s4789 = scalar_lea.vmem %s13, 192
    %v4790 = vld [vmem:[%s4789] sm:$0xff]
    %v4791 = vld [vmem:[%s4789 + $0x8] sm:$0xff]
    %v4792 = vld [vmem:[%s4789 + $0x10] sm:$0xff]
    %v4793 = vld [vmem:[%s4789 + $0x18] sm:$0xff]
    %v4795 = vsel %vm4506, %v4790, 0
    %v4798 = vsel %vm4506, %v4791, 0
    %v4801 = vsel %vm4506, %v4792, 0
    %v4804 = vsel %vm4506, %v4793, 0
    %4806 = vmatpush.msra.mxu0 0.0
    %4807 = vmatpush.msra.mxu0 0.0
    %4808 = vmatpush.msra.mxu0 0.0
    %4809 = vmatpush.msra.mxu0 0.0
    %4810 = vmatpush.msra.mxu0 0.0
    %4811 = vmatpush.msra.mxu0 0.0
    %4812 = vmatpush.msra.mxu0 0.0
    %4813 = vmatpush.msra.mxu0 0.0
    %4814 = vmatpush.msra.mxu0 0.0
    %4815 = vmatpush.msra.mxu0 0.0
    %4816 = vmatpush.msra.mxu0 0.0
    %4817 = vmatpush.msra.mxu0 0.0
    %4818 = vmatpush.msra.mxu0 %v4476
    %4819 = vmatpush.msra.mxu0 %v4474
    %4820 = vmatpush.msra.mxu0 %v4471
    %4821 = vmatpush.msra.mxu0 %v4469
    %4822 = vmatmul.f32.gmra.mxu0 %v4795
    %v4823 = vpop.f32.mrf.mxu0
    %v4824 = vadd.f32 0.0, %v4823
    %4825 = vmatmul.f32.gmra.mxu0 %v4798
    %v4826 = vpop.f32.mrf.mxu0
    %v4827 = vadd.f32 0.0, %v4826
    %4828 = vmatmul.f32.gmra.mxu0 %v4801
    %v4829 = vpop.f32.mrf.mxu0
    %v4830 = vadd.f32 0.0, %v4829
    %4831 = vmatmul.f32.gmra.mxu0 %v4804
    %v4832 = vpop.f32.mrf.mxu0
    %v4833 = vadd.f32 0.0, %v4832
    %4834 = vdwg.mxu0
    %v4835 = vadd.f32 %v4785, %v4824
    %v4836 = vadd.f32 %v4786, %v4827
    %v4837 = vadd.f32 %v4787, %v4830
    %v4838 = vadd.f32 %v4788, %v4833
    %s4839 = scalar_lea.vmem %s13, 224
    %v4840 = vld [vmem:[%s4839] sm:$0xff]
    %v4841 = vld [vmem:[%s4839 + $0x8] sm:$0xff]
    %v4842 = vld [vmem:[%s4839 + $0x10] sm:$0xff]
    %v4843 = vld [vmem:[%s4839 + $0x18] sm:$0xff]
    %v4845 = vsel %vm4506, %v4840, 0
    %v4848 = vsel %vm4506, %v4841, 0
    %v4851 = vsel %vm4506, %v4842, 0
    %v4854 = vsel %vm4506, %v4843, 0
    %4856 = vmatpush.msra.mxu0 0.0
    %4857 = vmatpush.msra.mxu0 0.0
    %4858 = vmatpush.msra.mxu0 0.0
    %4859 = vmatpush.msra.mxu0 0.0
    %4860 = vmatpush.msra.mxu0 0.0
    %4861 = vmatpush.msra.mxu0 0.0
    %4862 = vmatpush.msra.mxu0 0.0
    %4863 = vmatpush.msra.mxu0 0.0
    %4864 = vmatpush.msra.mxu0 0.0
    %4865 = vmatpush.msra.mxu0 0.0
    %4866 = vmatpush.msra.mxu0 0.0
    %4867 = vmatpush.msra.mxu0 0.0
    %4868 = vmatpush.msra.mxu0 %v4495
    %4869 = vmatpush.msra.mxu0 %v4493
    %4870 = vmatpush.msra.mxu0 %v4490
    %4871 = vmatpush.msra.mxu0 %v4488
    %4872 = vmatmul.f32.gmra.mxu0 %v4845
    %v4873 = vpop.f32.mrf.mxu0
    %v4874 = vadd.f32 0.0, %v4873
    %4875 = vmatmul.f32.gmra.mxu0 %v4848
    %v4876 = vpop.f32.mrf.mxu0
    %v4877 = vadd.f32 0.0, %v4876
    %4878 = vmatmul.f32.gmra.mxu0 %v4851
    %v4879 = vpop.f32.mrf.mxu0
    %v4880 = vadd.f32 0.0, %v4879
    %4881 = vmatmul.f32.gmra.mxu0 %v4854
    %v4882 = vpop.f32.mrf.mxu0
    %v4883 = vadd.f32 0.0, %v4882
    %4884 = vdwg.mxu0
    %v4885 = vadd.f32 %v4835, %v4874
    %v4886 = vadd.f32 %v4836, %v4877
    %v4887 = vadd.f32 %v4837, %v4880
    %v4888 = vadd.f32 %v4838, %v4883
    %vm4889 = vcmp.gt.f32.partialorder %v4885, 0.0
    %vm4890 = vcmp.gt.f32.partialorder %v4886, 0.0
    %vm4891 = vcmp.gt.f32.partialorder %v4887, 0.0
    %vm4892 = vcmp.gt.f32.partialorder %v4888, 0.0
    %v4893 = vmin.f32 %v4885, 0.0
    %v4894 = vmin.f32 %v4886, 0.0
    %v4895 = vmin.f32 %v4887, 0.0
    %v4896 = vmin.f32 %v4888, 0.0
    %v4897 = vmul.f32 %v4893, 1.442695
    %v4898 = vpow.pop %v4897
    %v4899 = vmul.f32 %v4894, 1.442695
    %v4900 = vpow.pop %v4899
    %v4901 = vmul.f32 %v4895, 1.442695
    %v4902 = vpow.pop %v4901
    %v4903 = vmul.f32 %v4896, 1.442695
    %v4904 = vpow.pop %v4903
    %v4905 = vsub.f32 %v4898, 1.0
    %v4906 = vsub.f32 %v4900, 1.0
    %v4907 = vsub.f32 %v4902, 1.0
    %v4908 = vsub.f32 %v4904, 1.0
    %v4909 = vsel %vm4889, %v4885, %v4905
    %v4910 = vsel %vm4890, %v4886, %v4906
    %v4911 = vsel %vm4891, %v4887, %v4907
    %v4912 = vsel %vm4892, %v4888, %v4908
    %v4914 = vperm.slane %v284, 0
    %v4916 = vmul.f32 %v4909, %v4914
    %v4917 = vmul.f32 %v4910, %v4914
    %v4918 = vmul.f32 %v4911, %v4914
    %v4919 = vmul.f32 %v4912, %v4914
    %4920 = vadd.xlane.f32.xlu0 %v4916
    %v4921 = vpop.xlane.xlu0 %4920
    %4922 = vadd.xlane.f32.xlu0 %v4917
    %v4923 = vpop.xlane.xlu0 %4922
    %4924 = vadd.xlane.f32.xlu0 %v4918
    %v4925 = vpop.xlane.xlu0 %4924
    %4926 = vadd.xlane.f32.xlu0 %v4919
    %v4927 = vpop.xlane.xlu0 %4926
    %v4928 = vstv %s366
    %v4929 = vmul.f32 %v4921, %v4928
    %v4930 = vmul.f32 %v4923, %v4928
    %v4931 = vmul.f32 %v4925, %v4928
    %v4932 = vmul.f32 %v4927, %v4928
    %v4933 = vsub.f32 %v4909, %v4929
    %v4934 = vsub.f32 %v4910, %v4930
    %v4935 = vsub.f32 %v4911, %v4931
    %v4936 = vsub.f32 %v4912, %v4932
    %v4937 = vmul.f32 %v4933, %v4933
    %v4938 = vmul.f32 %v4934, %v4934
    %v4939 = vmul.f32 %v4935, %v4935
    %v4940 = vmul.f32 %v4936, %v4936
    %v4941 = vmul.f32 %v4937, %v4914
    %v4942 = vmul.f32 %v4938, %v4914
    %v4943 = vmul.f32 %v4939, %v4914
    %v4944 = vmul.f32 %v4940, %v4914
    %4945 = vadd.xlane.f32.xlu0 %v4941
    %v4946 = vpop.xlane.xlu0 %4945
    %4947 = vadd.xlane.f32.xlu0 %v4942
    %v4948 = vpop.xlane.xlu0 %4947
    %4949 = vadd.xlane.f32.xlu0 %v4943
    %v4950 = vpop.xlane.xlu0 %4949
    %4951 = vadd.xlane.f32.xlu0 %v4944
    %v4952 = vpop.xlane.xlu0 %4951
    %v4953 = vmul.f32 %v4946, %v4928
    %v4954 = vmul.f32 %v4948, %v4928
    %v4955 = vmul.f32 %v4950, %v4928
    %v4956 = vmul.f32 %v4952, %v4928
    %v4957 = vadd.f32 %v4953, 1e-05
    %v4958 = vadd.f32 %v4954, 1e-05
    %v4959 = vadd.f32 %v4955, 1e-05
    %v4960 = vadd.f32 %v4956, 1e-05
    %v4961 = vrsqrt.pop %v4957
    %v4962 = vmul.f32 %v4961, %v4957
    %v4963 = vmul.f32 %v4962, %v4961
    %v4964 = vmul.f32 0.5, %v4963
    %v4965 = vsub.f32 1.5, %v4964
    %v4966 = vmul.f32 %v4961, %v4965
    %vm4967 = vweird.f32 %v4957
    %vm4968 = vweird.f32 %v4961
    %vm4969 = vmor %vm4967, %vm4968
    %v4970 = vsel %vm4969, %v4961, %v4966
    %v4971 = vrsqrt.pop %v4958
    %v4972 = vmul.f32 %v4971, %v4958
    %v4973 = vmul.f32 %v4972, %v4971
    %v4974 = vmul.f32 0.5, %v4973
    %v4975 = vsub.f32 1.5, %v4974
    %v4976 = vmul.f32 %v4971, %v4975
    %vm4977 = vweird.f32 %v4958
    %vm4978 = vweird.f32 %v4971
    %vm4979 = vmor %vm4977, %vm4978
    %v4980 = vsel %vm4979, %v4971, %v4976
    %v4981 = vrsqrt.pop %v4959
    %v4982 = vmul.f32 %v4981, %v4959
    %v4983 = vmul.f32 %v4982, %v4981
    %v4984 = vmul.f32 0.5, %v4983
    %v4985 = vsub.f32 1.5, %v4984
    %v4986 = vmul.f32 %v4981, %v4985
    %vm4987 = vweird.f32 %v4959
    %vm4988 = vweird.f32 %v4981
    %vm4989 = vmor %vm4987, %vm4988
    %v4990 = vsel %vm4989, %v4981, %v4986
    %v4991 = vrsqrt.pop %v4960
    %v4992 = vmul.f32 %v4991, %v4960
    %v4993 = vmul.f32 %v4992, %v4991
    %v4994 = vmul.f32 0.5, %v4993
    %v4995 = vsub.f32 1.5, %v4994
    %v4996 = vmul.f32 %v4991, %v4995
    %vm4997 = vweird.f32 %v4960
    %vm4998 = vweird.f32 %v4991
    %vm4999 = vmor %vm4997, %vm4998
    %v5000 = vsel %vm4999, %v4991, %v4996
    %v5001 = vmul.f32 %v4933, %v4970
    %v5002 = vmul.f32 %v4934, %v4980
    %v5003 = vmul.f32 %v4935, %v4990
    %v5004 = vmul.f32 %v4936, %v5000
    %v5005 = vmul.f32 %v5001, %v4914
    %v5006 = vmul.f32 %v5002, %v4914
    %v5007 = vmul.f32 %v5003, %v4914
    %v5008 = vmul.f32 %v5004, %v4914
    %v5009 = vpack.c.bf16 %v5006, %v5005
    %v5010 = vpack.c.bf16 %v5008, %v5007
    %5011 = vmatpush.bf16.msra.mxu0 %v4273
    %5012 = vmatpush.bf16.msra.mxu0 %v4265
    %5013 = vmatpush.bf16.msra.mxu0 %v4257
    %5014 = vmatpush.bf16.msra.mxu0 %v4249
    %5015 = vmatpush.bf16.msra.mxu0 %v4241
    %5016 = vmatpush.bf16.msra.mxu0 %v4233
    %5017 = vmatpush.bf16.msra.mxu0 %v4225
    %5018 = vmatpush.bf16.msra.mxu0 %v4217
    %5019 = vmatmul.bf16.gmra.mxu0 %v5009
    %v5020 = vpop.f32.mrf.mxu0
    %v5021 = vadd.f32 0.0, %v5020
    %v5022 = vpop.f32.mrf.mxu0
    %v5023 = vadd.f32 0.0, %v5022
    %5024 = vmatmul.bf16.gmra.mxu0 %v5010
    %v5025 = vpop.f32.mrf.mxu0
    %v5026 = vadd.f32 0.0, %v5025
    %v5027 = vpop.f32.mrf.mxu0
    %v5028 = vadd.f32 0.0, %v5027
    %5029 = vdwg.mxu0
    %5030 = vmatpush.bf16.msra.mxu0 %v4274
    %5031 = vmatpush.bf16.msra.mxu0 %v4266
    %5032 = vmatpush.bf16.msra.mxu0 %v4258
    %5033 = vmatpush.bf16.msra.mxu0 %v4250
    %5034 = vmatpush.bf16.msra.mxu0 %v4242
    %5035 = vmatpush.bf16.msra.mxu0 %v4234
    %5036 = vmatpush.bf16.msra.mxu0 %v4226
    %5037 = vmatpush.bf16.msra.mxu0 %v4218
    %5038 = vmatmul.bf16.gmra.mxu0 %v5009
    %v5039 = vpop.f32.mrf.mxu0
    %v5040 = vadd.f32 0.0, %v5039
    %v5041 = vpop.f32.mrf.mxu0
    %v5042 = vadd.f32 0.0, %v5041
    %5043 = vmatmul.bf16.gmra.mxu0 %v5010
    %v5044 = vpop.f32.mrf.mxu0
    %v5045 = vadd.f32 0.0, %v5044
    %v5046 = vpop.f32.mrf.mxu0
    %v5047 = vadd.f32 0.0, %v5046
    %5048 = vdwg.mxu0
    %5049 = vmatpush.bf16.msra.mxu0 %v4275
    %5050 = vmatpush.bf16.msra.mxu0 %v4267
    %5051 = vmatpush.bf16.msra.mxu0 %v4259
    %5052 = vmatpush.bf16.msra.mxu0 %v4251
    %5053 = vmatpush.bf16.msra.mxu0 %v4243
    %5054 = vmatpush.bf16.msra.mxu0 %v4235
    %5055 = vmatpush.bf16.msra.mxu0 %v4227
    %5056 = vmatpush.bf16.msra.mxu0 %v4219
    %5057 = vmatmul.bf16.gmra.mxu0 %v5009
    %v5058 = vpop.f32.mrf.mxu0
    %v5059 = vadd.f32 0.0, %v5058
    %v5060 = vpop.f32.mrf.mxu0
    %v5061 = vadd.f32 0.0, %v5060
    %5062 = vmatmul.bf16.gmra.mxu0 %v5010
    %v5063 = vpop.f32.mrf.mxu0
    %v5064 = vadd.f32 0.0, %v5063
    %v5065 = vpop.f32.mrf.mxu0
    %v5066 = vadd.f32 0.0, %v5065
    %5067 = vdwg.mxu0
    %5068 = vmatpush.bf16.msra.mxu0 %v4276
    %5069 = vmatpush.bf16.msra.mxu0 %v4268
    %5070 = vmatpush.bf16.msra.mxu0 %v4260
    %5071 = vmatpush.bf16.msra.mxu0 %v4252
    %5072 = vmatpush.bf16.msra.mxu0 %v4244
    %5073 = vmatpush.bf16.msra.mxu0 %v4236
    %5074 = vmatpush.bf16.msra.mxu0 %v4228
    %5075 = vmatpush.bf16.msra.mxu0 %v4220
    %5076 = vmatmul.bf16.gmra.mxu0 %v5009
    %v5077 = vpop.f32.mrf.mxu0
    %v5078 = vadd.f32 0.0, %v5077
    %v5079 = vpop.f32.mrf.mxu0
    %v5080 = vadd.f32 0.0, %v5079
    %5081 = vmatmul.bf16.gmra.mxu0 %v5010
    %v5082 = vpop.f32.mrf.mxu0
    %v5083 = vadd.f32 0.0, %v5082
    %v5084 = vpop.f32.mrf.mxu0
    %v5085 = vadd.f32 0.0, %v5084
    %5086 = vdwg.mxu0
    %5087 = vmatpush.bf16.msra.mxu0 %v4277
    %5088 = vmatpush.bf16.msra.mxu0 %v4269
    %5089 = vmatpush.bf16.msra.mxu0 %v4261
    %5090 = vmatpush.bf16.msra.mxu0 %v4253
    %5091 = vmatpush.bf16.msra.mxu0 %v4245
    %5092 = vmatpush.bf16.msra.mxu0 %v4237
    %5093 = vmatpush.bf16.msra.mxu0 %v4229
    %5094 = vmatpush.bf16.msra.mxu0 %v4221
    %5095 = vmatmul.bf16.gmra.mxu0 %v5009
    %v5096 = vpop.f32.mrf.mxu0
    %v5097 = vadd.f32 0.0, %v5096
    %v5098 = vpop.f32.mrf.mxu0
    %v5099 = vadd.f32 0.0, %v5098
    %5100 = vmatmul.bf16.gmra.mxu0 %v5010
    %v5101 = vpop.f32.mrf.mxu0
    %v5102 = vadd.f32 0.0, %v5101
    %v5103 = vpop.f32.mrf.mxu0
    %v5104 = vadd.f32 0.0, %v5103
    %5105 = vdwg.mxu0
    %5106 = vmatpush.bf16.msra.mxu0 %v4278
    %5107 = vmatpush.bf16.msra.mxu0 %v4270
    %5108 = vmatpush.bf16.msra.mxu0 %v4262
    %5109 = vmatpush.bf16.msra.mxu0 %v4254
    %5110 = vmatpush.bf16.msra.mxu0 %v4246
    %5111 = vmatpush.bf16.msra.mxu0 %v4238
    %5112 = vmatpush.bf16.msra.mxu0 %v4230
    %5113 = vmatpush.bf16.msra.mxu0 %v4222
    %5114 = vmatmul.bf16.gmra.mxu0 %v5009
    %v5115 = vpop.f32.mrf.mxu0
    %v5116 = vadd.f32 0.0, %v5115
    %v5117 = vpop.f32.mrf.mxu0
    %v5118 = vadd.f32 0.0, %v5117
    %5119 = vmatmul.bf16.gmra.mxu0 %v5010
    %v5120 = vpop.f32.mrf.mxu0
    %v5121 = vadd.f32 0.0, %v5120
    %v5122 = vpop.f32.mrf.mxu0
    %v5123 = vadd.f32 0.0, %v5122
    %5124 = vdwg.mxu0
    %5125 = vmatpush.bf16.msra.mxu0 %v4279
    %5126 = vmatpush.bf16.msra.mxu0 %v4271
    %5127 = vmatpush.bf16.msra.mxu0 %v4263
    %5128 = vmatpush.bf16.msra.mxu0 %v4255
    %5129 = vmatpush.bf16.msra.mxu0 %v4247
    %5130 = vmatpush.bf16.msra.mxu0 %v4239
    %5131 = vmatpush.bf16.msra.mxu0 %v4231
    %5132 = vmatpush.bf16.msra.mxu0 %v4223
    %5133 = vmatmul.bf16.gmra.mxu0 %v5009
    %v5134 = vpop.f32.mrf.mxu0
    %v5135 = vadd.f32 0.0, %v5134
    %v5136 = vpop.f32.mrf.mxu0
    %v5137 = vadd.f32 0.0, %v5136
    %5138 = vmatmul.bf16.gmra.mxu0 %v5010
    %v5139 = vpop.f32.mrf.mxu0
    %v5140 = vadd.f32 0.0, %v5139
    %v5141 = vpop.f32.mrf.mxu0
    %v5142 = vadd.f32 0.0, %v5141
    %5143 = vdwg.mxu0
    %5144 = vmatpush.bf16.msra.mxu0 %v4280
    %5145 = vmatpush.bf16.msra.mxu0 %v4272
    %5146 = vmatpush.bf16.msra.mxu0 %v4264
    %5147 = vmatpush.bf16.msra.mxu0 %v4256
    %5148 = vmatpush.bf16.msra.mxu0 %v4248
    %5149 = vmatpush.bf16.msra.mxu0 %v4240
    %5150 = vmatpush.bf16.msra.mxu0 %v4232
    %5151 = vmatpush.bf16.msra.mxu0 %v4224
    %5152 = vmatmul.bf16.gmra.mxu0 %v5009
    %v5153 = vpop.f32.mrf.mxu0
    %v5154 = vadd.f32 0.0, %v5153
    %v5155 = vpop.f32.mrf.mxu0
    %v5156 = vadd.f32 0.0, %v5155
    %5157 = vmatmul.bf16.gmra.mxu0 %v5010
    %v5158 = vpop.f32.mrf.mxu0
    %v5159 = vadd.f32 0.0, %v5158
    %v5160 = vpop.f32.mrf.mxu0
    %v5161 = vadd.f32 0.0, %v5160
    %5162 = vdwg.mxu0
    %v5163 = vld [vmem:[#allocation11] sm:$0xff]
    %v5164 = vld [vmem:[#allocation11 + $0x8] sm:$0xff]
    %v5165 = vld [vmem:[#allocation11 + $0x10] sm:$0xff]
    %v5166 = vld [vmem:[#allocation11 + $0x18] sm:$0xff]
    %s5167 = scalar_lea.vmem [#allocation11], 32
    %v5168 = vld [vmem:[%s5167] sm:$0xff]
    %v5169 = vld [vmem:[%s5167 + $0x8] sm:$0xff]
    %v5170 = vld [vmem:[%s5167 + $0x10] sm:$0xff]
    %v5171 = vld [vmem:[%s5167 + $0x18] sm:$0xff]
    %v5173 = vsel %vm4506, %v5168, 0
    %v5176 = vsel %vm4506, %v5169, 0
    %v5179 = vsel %vm4506, %v5170, 0
    %v5182 = vsel %vm4506, %v5171, 0
    %5184 = vmatpush.msra.mxu0 0.0
    %5185 = vmatpush.msra.mxu0 0.0
    %5186 = vmatpush.msra.mxu0 0.0
    %5187 = vmatpush.msra.mxu0 0.0
    %5188 = vmatpush.msra.mxu0 0.0
    %5189 = vmatpush.msra.mxu0 0.0
    %5190 = vmatpush.msra.mxu0 0.0
    %5191 = vmatpush.msra.mxu0 0.0
    %5192 = vmatpush.msra.mxu0 0.0
    %5193 = vmatpush.msra.mxu0 0.0
    %5194 = vmatpush.msra.mxu0 0.0
    %5195 = vmatpush.msra.mxu0 0.0
    %5196 = vmatpush.msra.mxu0 %v5047
    %5197 = vmatpush.msra.mxu0 %v5045
    %5198 = vmatpush.msra.mxu0 %v5042
    %5199 = vmatpush.msra.mxu0 %v5040
    %5200 = vmatmul.f32.gmra.mxu0 %v5173
    %v5201 = vpop.f32.mrf.mxu0
    %v5202 = vadd.f32 0.0, %v5201
    %5203 = vmatmul.f32.gmra.mxu0 %v5176
    %v5204 = vpop.f32.mrf.mxu0
    %v5205 = vadd.f32 0.0, %v5204
    %5206 = vmatmul.f32.gmra.mxu0 %v5179
    %v5207 = vpop.f32.mrf.mxu0
    %v5208 = vadd.f32 0.0, %v5207
    %5209 = vmatmul.f32.gmra.mxu0 %v5182
    %v5210 = vpop.f32.mrf.mxu0
    %v5211 = vadd.f32 0.0, %v5210
    %5212 = vdwg.mxu0
    %v5214 = vsel %vm4506, %v5163, 0
    %v5217 = vsel %vm4506, %v5164, 0
    %v5220 = vsel %vm4506, %v5165, 0
    %v5223 = vsel %vm4506, %v5166, 0
    %5225 = vmatpush.msra.mxu0 0.0
    %5226 = vmatpush.msra.mxu0 0.0
    %5227 = vmatpush.msra.mxu0 0.0
    %5228 = vmatpush.msra.mxu0 0.0
    %5229 = vmatpush.msra.mxu0 0.0
    %5230 = vmatpush.msra.mxu0 0.0
    %5231 = vmatpush.msra.mxu0 0.0
    %5232 = vmatpush.msra.mxu0 0.0
    %5233 = vmatpush.msra.mxu0 0.0
    %5234 = vmatpush.msra.mxu0 0.0
    %5235 = vmatpush.msra.mxu0 0.0
    %5236 = vmatpush.msra.mxu0 0.0
    %5237 = vmatpush.msra.mxu0 %v5028
    %5238 = vmatpush.msra.mxu0 %v5026
    %5239 = vmatpush.msra.mxu0 %v5023
    %5240 = vmatpush.msra.mxu0 %v5021
    %5241 = vmatmul.f32.gmra.mxu0 %v5214
    %v5242 = vpop.f32.mrf.mxu0
    %v5243 = vadd.f32 %v5202, %v5242
    %5244 = vmatmul.f32.gmra.mxu0 %v5217
    %v5245 = vpop.f32.mrf.mxu0
    %v5246 = vadd.f32 %v5205, %v5245
    %5247 = vmatmul.f32.gmra.mxu0 %v5220
    %v5248 = vpop.f32.mrf.mxu0
    %v5249 = vadd.f32 %v5208, %v5248
    %5250 = vmatmul.f32.gmra.mxu0 %v5223
    %v5251 = vpop.f32.mrf.mxu0
    %v5252 = vadd.f32 %v5211, %v5251
    %5253 = vdwg.mxu0
    %s5254 = scalar_lea.vmem [#allocation11], 64
    %v5255 = vld [vmem:[%s5254] sm:$0xff]
    %v5256 = vld [vmem:[%s5254 + $0x8] sm:$0xff]
    %v5257 = vld [vmem:[%s5254 + $0x10] sm:$0xff]
    %v5258 = vld [vmem:[%s5254 + $0x18] sm:$0xff]
    %v5260 = vsel %vm4506, %v5255, 0
    %v5263 = vsel %vm4506, %v5256, 0
    %v5266 = vsel %vm4506, %v5257, 0
    %v5269 = vsel %vm4506, %v5258, 0
    %5271 = vmatpush.msra.mxu0 0.0
    %5272 = vmatpush.msra.mxu0 0.0
    %5273 = vmatpush.msra.mxu0 0.0
    %5274 = vmatpush.msra.mxu0 0.0
    %5275 = vmatpush.msra.mxu0 0.0
    %5276 = vmatpush.msra.mxu0 0.0
    %5277 = vmatpush.msra.mxu0 0.0
    %5278 = vmatpush.msra.mxu0 0.0
    %5279 = vmatpush.msra.mxu0 0.0
    %5280 = vmatpush.msra.mxu0 0.0
    %5281 = vmatpush.msra.mxu0 0.0
    %5282 = vmatpush.msra.mxu0 0.0
    %5283 = vmatpush.msra.mxu0 %v5066
    %5284 = vmatpush.msra.mxu0 %v5064
    %5285 = vmatpush.msra.mxu0 %v5061
    %5286 = vmatpush.msra.mxu0 %v5059
    %5287 = vmatmul.f32.gmra.mxu0 %v5260
    %v5288 = vpop.f32.mrf.mxu0
    %v5289 = vadd.f32 0.0, %v5288
    %5290 = vmatmul.f32.gmra.mxu0 %v5263
    %v5291 = vpop.f32.mrf.mxu0
    %v5292 = vadd.f32 0.0, %v5291
    %5293 = vmatmul.f32.gmra.mxu0 %v5266
    %v5294 = vpop.f32.mrf.mxu0
    %v5295 = vadd.f32 0.0, %v5294
    %5296 = vmatmul.f32.gmra.mxu0 %v5269
    %v5297 = vpop.f32.mrf.mxu0
    %v5298 = vadd.f32 0.0, %v5297
    %5299 = vdwg.mxu0
    %v5300 = vadd.f32 %v5243, %v5289
    %v5301 = vadd.f32 %v5246, %v5292
    %v5302 = vadd.f32 %v5249, %v5295
    %v5303 = vadd.f32 %v5252, %v5298
    %s5304 = scalar_lea.vmem [#allocation11], 96
    %v5305 = vld [vmem:[%s5304] sm:$0xff]
    %v5306 = vld [vmem:[%s5304 + $0x8] sm:$0xff]
    %v5307 = vld [vmem:[%s5304 + $0x10] sm:$0xff]
    %v5308 = vld [vmem:[%s5304 + $0x18] sm:$0xff]
    %v5310 = vsel %vm4506, %v5305, 0
    %v5313 = vsel %vm4506, %v5306, 0
    %v5316 = vsel %vm4506, %v5307, 0
    %v5319 = vsel %vm4506, %v5308, 0
    %5321 = vmatpush.msra.mxu0 0.0
    %5322 = vmatpush.msra.mxu0 0.0
    %5323 = vmatpush.msra.mxu0 0.0
    %5324 = vmatpush.msra.mxu0 0.0
    %5325 = vmatpush.msra.mxu0 0.0
    %5326 = vmatpush.msra.mxu0 0.0
    %5327 = vmatpush.msra.mxu0 0.0
    %5328 = vmatpush.msra.mxu0 0.0
    %5329 = vmatpush.msra.mxu0 0.0
    %5330 = vmatpush.msra.mxu0 0.0
    %5331 = vmatpush.msra.mxu0 0.0
    %5332 = vmatpush.msra.mxu0 0.0
    %5333 = vmatpush.msra.mxu0 %v5085
    %5334 = vmatpush.msra.mxu0 %v5083
    %5335 = vmatpush.msra.mxu0 %v5080
    %5336 = vmatpush.msra.mxu0 %v5078
    %5337 = vmatmul.f32.gmra.mxu0 %v5310
    %v5338 = vpop.f32.mrf.mxu0
    %v5339 = vadd.f32 0.0, %v5338
    %5340 = vmatmul.f32.gmra.mxu0 %v5313
    %v5341 = vpop.f32.mrf.mxu0
    %v5342 = vadd.f32 0.0, %v5341
    %5343 = vmatmul.f32.gmra.mxu0 %v5316
    %v5344 = vpop.f32.mrf.mxu0
    %v5345 = vadd.f32 0.0, %v5344
    %5346 = vmatmul.f32.gmra.mxu0 %v5319
    %v5347 = vpop.f32.mrf.mxu0
    %v5348 = vadd.f32 0.0, %v5347
    %5349 = vdwg.mxu0
    %v5350 = vadd.f32 %v5300, %v5339
    %v5351 = vadd.f32 %v5301, %v5342
    %v5352 = vadd.f32 %v5302, %v5345
    %v5353 = vadd.f32 %v5303, %v5348
    %s5354 = scalar_lea.vmem [#allocation11], 128
    %v5355 = vld [vmem:[%s5354] sm:$0xff]
    %v5356 = vld [vmem:[%s5354 + $0x8] sm:$0xff]
    %v5357 = vld [vmem:[%s5354 + $0x10] sm:$0xff]
    %v5358 = vld [vmem:[%s5354 + $0x18] sm:$0xff]
    %v5360 = vsel %vm4506, %v5355, 0
    %v5363 = vsel %vm4506, %v5356, 0
    %v5366 = vsel %vm4506, %v5357, 0
    %v5369 = vsel %vm4506, %v5358, 0
    %5371 = vmatpush.msra.mxu0 0.0
    %5372 = vmatpush.msra.mxu0 0.0
    %5373 = vmatpush.msra.mxu0 0.0
    %5374 = vmatpush.msra.mxu0 0.0
    %5375 = vmatpush.msra.mxu0 0.0
    %5376 = vmatpush.msra.mxu0 0.0
    %5377 = vmatpush.msra.mxu0 0.0
    %5378 = vmatpush.msra.mxu0 0.0
    %5379 = vmatpush.msra.mxu0 0.0
    %5380 = vmatpush.msra.mxu0 0.0
    %5381 = vmatpush.msra.mxu0 0.0
    %5382 = vmatpush.msra.mxu0 0.0
    %5383 = vmatpush.msra.mxu0 %v5104
    %5384 = vmatpush.msra.mxu0 %v5102
    %5385 = vmatpush.msra.mxu0 %v5099
    %5386 = vmatpush.msra.mxu0 %v5097
    %5387 = vmatmul.f32.gmra.mxu0 %v5360
    %v5388 = vpop.f32.mrf.mxu0
    %v5389 = vadd.f32 0.0, %v5388
    %5390 = vmatmul.f32.gmra.mxu0 %v5363
    %v5391 = vpop.f32.mrf.mxu0
    %v5392 = vadd.f32 0.0, %v5391
    %5393 = vmatmul.f32.gmra.mxu0 %v5366
    %v5394 = vpop.f32.mrf.mxu0
    %v5395 = vadd.f32 0.0, %v5394
    %5396 = vmatmul.f32.gmra.mxu0 %v5369
    %v5397 = vpop.f32.mrf.mxu0
    %v5398 = vadd.f32 0.0, %v5397
    %5399 = vdwg.mxu0
    %v5400 = vadd.f32 %v5350, %v5389
    %v5401 = vadd.f32 %v5351, %v5392
    %v5402 = vadd.f32 %v5352, %v5395
    %v5403 = vadd.f32 %v5353, %v5398
    %s5404 = scalar_lea.vmem [#allocation11], 160
    %v5405 = vld [vmem:[%s5404] sm:$0xff]
    %v5406 = vld [vmem:[%s5404 + $0x8] sm:$0xff]
    %v5407 = vld [vmem:[%s5404 + $0x10] sm:$0xff]
    %v5408 = vld [vmem:[%s5404 + $0x18] sm:$0xff]
    %v5410 = vsel %vm4506, %v5405, 0
    %v5413 = vsel %vm4506, %v5406, 0
    %v5416 = vsel %vm4506, %v5407, 0
    %v5419 = vsel %vm4506, %v5408, 0
    %5421 = vmatpush.msra.mxu0 0.0
    %5422 = vmatpush.msra.mxu0 0.0
    %5423 = vmatpush.msra.mxu0 0.0
    %5424 = vmatpush.msra.mxu0 0.0
    %5425 = vmatpush.msra.mxu0 0.0
    %5426 = vmatpush.msra.mxu0 0.0
    %5427 = vmatpush.msra.mxu0 0.0
    %5428 = vmatpush.msra.mxu0 0.0
    %5429 = vmatpush.msra.mxu0 0.0
    %5430 = vmatpush.msra.mxu0 0.0
    %5431 = vmatpush.msra.mxu0 0.0
    %5432 = vmatpush.msra.mxu0 0.0
    %5433 = vmatpush.msra.mxu0 %v5123
    %5434 = vmatpush.msra.mxu0 %v5121
    %5435 = vmatpush.msra.mxu0 %v5118
    %5436 = vmatpush.msra.mxu0 %v5116
    %5437 = vmatmul.f32.gmra.mxu0 %v5410
    %v5438 = vpop.f32.mrf.mxu0
    %v5439 = vadd.f32 0.0, %v5438
    %5440 = vmatmul.f32.gmra.mxu0 %v5413
    %v5441 = vpop.f32.mrf.mxu0
    %v5442 = vadd.f32 0.0, %v5441
    %5443 = vmatmul.f32.gmra.mxu0 %v5416
    %v5444 = vpop.f32.mrf.mxu0
    %v5445 = vadd.f32 0.0, %v5444
    %5446 = vmatmul.f32.gmra.mxu0 %v5419
    %v5447 = vpop.f32.mrf.mxu0
    %v5448 = vadd.f32 0.0, %v5447
    %5449 = vdwg.mxu0
    %v5450 = vadd.f32 %v5400, %v5439
    %v5451 = vadd.f32 %v5401, %v5442
    %v5452 = vadd.f32 %v5402, %v5445
    %v5453 = vadd.f32 %v5403, %v5448
    %s5454 = scalar_lea.vmem [#allocation11], 192
    %v5455 = vld [vmem:[%s5454] sm:$0xff]
    %v5456 = vld [vmem:[%s5454 + $0x8] sm:$0xff]
    %v5457 = vld [vmem:[%s5454 + $0x10] sm:$0xff]
    %v5458 = vld [vmem:[%s5454 + $0x18] sm:$0xff]
    %v5460 = vsel %vm4506, %v5455, 0
    %v5463 = vsel %vm4506, %v5456, 0
    %v5466 = vsel %vm4506, %v5457, 0
    %v5469 = vsel %vm4506, %v5458, 0
    %5471 = vmatpush.msra.mxu0 0.0
    %5472 = vmatpush.msra.mxu0 0.0
    %5473 = vmatpush.msra.mxu0 0.0
    %5474 = vmatpush.msra.mxu0 0.0
    %5475 = vmatpush.msra.mxu0 0.0
    %5476 = vmatpush.msra.mxu0 0.0
    %5477 = vmatpush.msra.mxu0 0.0
    %5478 = vmatpush.msra.mxu0 0.0
    %5479 = vmatpush.msra.mxu0 0.0
    %5480 = vmatpush.msra.mxu0 0.0
    %5481 = vmatpush.msra.mxu0 0.0
    %5482 = vmatpush.msra.mxu0 0.0
    %5483 = vmatpush.msra.mxu0 %v5142
    %5484 = vmatpush.msra.mxu0 %v5140
    %5485 = vmatpush.msra.mxu0 %v5137
    %5486 = vmatpush.msra.mxu0 %v5135
    %5487 = vmatmul.f32.gmra.mxu0 %v5460
    %v5488 = vpop.f32.mrf.mxu0
    %v5489 = vadd.f32 0.0, %v5488
    %5490 = vmatmul.f32.gmra.mxu0 %v5463
    %v5491 = vpop.f32.mrf.mxu0
    %v5492 = vadd.f32 0.0, %v5491
    %5493 = vmatmul.f32.gmra.mxu0 %v5466
    %v5494 = vpop.f32.mrf.mxu0
    %v5495 = vadd.f32 0.0, %v5494
    %5496 = vmatmul.f32.gmra.mxu0 %v5469
    %v5497 = vpop.f32.mrf.mxu0
    %v5498 = vadd.f32 0.0, %v5497
    %5499 = vdwg.mxu0
    %v5500 = vadd.f32 %v5450, %v5489
    %v5501 = vadd.f32 %v5451, %v5492
    %v5502 = vadd.f32 %v5452, %v5495
    %v5503 = vadd.f32 %v5453, %v5498
    %s5504 = scalar_lea.vmem [#allocation11], 224
    %v5505 = vld [vmem:[%s5504] sm:$0xff]
    %v5506 = vld [vmem:[%s5504 + $0x8] sm:$0xff]
    %v5507 = vld [vmem:[%s5504 + $0x10] sm:$0xff]
    %v5508 = vld [vmem:[%s5504 + $0x18] sm:$0xff]
    %v5510 = vsel %vm4506, %v5505, 0
    %v5513 = vsel %vm4506, %v5506, 0
    %v5516 = vsel %vm4506, %v5507, 0
    %v5519 = vsel %vm4506, %v5508, 0
    %5521 = vmatpush.msra.mxu0 0.0
    %5522 = vmatpush.msra.mxu0 0.0
    %5523 = vmatpush.msra.mxu0 0.0
    %5524 = vmatpush.msra.mxu0 0.0
    %5525 = vmatpush.msra.mxu0 0.0
    %5526 = vmatpush.msra.mxu0 0.0
    %5527 = vmatpush.msra.mxu0 0.0
    %5528 = vmatpush.msra.mxu0 0.0
    %5529 = vmatpush.msra.mxu0 0.0
    %5530 = vmatpush.msra.mxu0 0.0
    %5531 = vmatpush.msra.mxu0 0.0
    %5532 = vmatpush.msra.mxu0 0.0
    %5533 = vmatpush.msra.mxu0 %v5161
    %5534 = vmatpush.msra.mxu0 %v5159
    %5535 = vmatpush.msra.mxu0 %v5156
    %5536 = vmatpush.msra.mxu0 %v5154
    %5537 = vmatmul.f32.gmra.mxu0 %v5510
    %v5538 = vpop.f32.mrf.mxu0
    %v5539 = vadd.f32 0.0, %v5538
    %5540 = vmatmul.f32.gmra.mxu0 %v5513
    %v5541 = vpop.f32.mrf.mxu0
    %v5542 = vadd.f32 0.0, %v5541
    %5543 = vmatmul.f32.gmra.mxu0 %v5516
    %v5544 = vpop.f32.mrf.mxu0
    %v5545 = vadd.f32 0.0, %v5544
    %5546 = vmatmul.f32.gmra.mxu0 %v5519
    %v5547 = vpop.f32.mrf.mxu0
    %v5548 = vadd.f32 0.0, %v5547
    %5549 = vdwg.mxu0
    %v5550 = vadd.f32 %v5500, %v5539
    %v5551 = vadd.f32 %v5501, %v5542
    %v5552 = vadd.f32 %v5502, %v5545
    %v5553 = vadd.f32 %v5503, %v5548
    %vm5554 = vcmp.gt.f32.partialorder %v5550, 0.0
    %vm5555 = vcmp.gt.f32.partialorder %v5551, 0.0
    %vm5556 = vcmp.gt.f32.partialorder %v5552, 0.0
    %vm5557 = vcmp.gt.f32.partialorder %v5553, 0.0
    %v5558 = vmin.f32 %v5550, 0.0
    %v5559 = vmin.f32 %v5551, 0.0
    %v5560 = vmin.f32 %v5552, 0.0
    %v5561 = vmin.f32 %v5553, 0.0
    %v5562 = vmul.f32 %v5558, 1.442695
    %v5563 = vpow.pop %v5562
    %v5564 = vmul.f32 %v5559, 1.442695
    %v5565 = vpow.pop %v5564
    %v5566 = vmul.f32 %v5560, 1.442695
    %v5567 = vpow.pop %v5566
    %v5568 = vmul.f32 %v5561, 1.442695
    %v5569 = vpow.pop %v5568
    %v5570 = vsub.f32 %v5563, 1.0
    %v5571 = vsub.f32 %v5565, 1.0
    %v5572 = vsub.f32 %v5567, 1.0
    %v5573 = vsub.f32 %v5569, 1.0
    %v5574 = vsel %vm5554, %v5550, %v5570
    %v5575 = vsel %vm5555, %v5551, %v5571
    %v5576 = vsel %vm5556, %v5552, %v5572
    %v5577 = vsel %vm5557, %v5553, %v5573
    %v5578 = vmul.f32 %v5574, %v4914
    %v5579 = vmul.f32 %v5575, %v4914
    %v5580 = vmul.f32 %v5576, %v4914
    %v5581 = vmul.f32 %v5577, %v4914
    %5582 = vadd.xlane.f32.xlu0 %v5578
    %v5583 = vpop.xlane.xlu0 %5582
    %5584 = vadd.xlane.f32.xlu0 %v5579
    %v5585 = vpop.xlane.xlu0 %5584
    %5586 = vadd.xlane.f32.xlu0 %v5580
    %v5587 = vpop.xlane.xlu0 %5586
    %5588 = vadd.xlane.f32.xlu0 %v5581
    %v5589 = vpop.xlane.xlu0 %5588
    %v5590 = vmul.f32 %v5583, %v4928
    %v5591 = vmul.f32 %v5585, %v4928
    %v5592 = vmul.f32 %v5587, %v4928
    %v5593 = vmul.f32 %v5589, %v4928
    %v5594 = vsub.f32 %v5574, %v5590
    %v5595 = vsub.f32 %v5575, %v5591
    %v5596 = vsub.f32 %v5576, %v5592
    %v5597 = vsub.f32 %v5577, %v5593
    %v5598 = vmul.f32 %v5594, %v5594
    %v5599 = vmul.f32 %v5595, %v5595
    %v5600 = vmul.f32 %v5596, %v5596
    %v5601 = vmul.f32 %v5597, %v5597
    %v5602 = vmul.f32 %v5598, %v4914
    %v5603 = vmul.f32 %v5599, %v4914
    %v5604 = vmul.f32 %v5600, %v4914
    %v5605 = vmul.f32 %v5601, %v4914
    %5606 = vadd.xlane.f32.xlu0 %v5602
    %v5607 = vpop.xlane.xlu0 %5606
    %5608 = vadd.xlane.f32.xlu0 %v5603
    %v5609 = vpop.xlane.xlu0 %5608
    %5610 = vadd.xlane.f32.xlu0 %v5604
    %v5611 = vpop.xlane.xlu0 %5610
    %5612 = vadd.xlane.f32.xlu0 %v5605
    %v5613 = vpop.xlane.xlu0 %5612
    %v5614 = vmul.f32 %v5607, %v4928
    %v5615 = vmul.f32 %v5609, %v4928
    %v5616 = vmul.f32 %v5611, %v4928
    %v5617 = vmul.f32 %v5613, %v4928
    %v5618 = vadd.f32 %v5614, 1e-05
    %v5619 = vadd.f32 %v5615, 1e-05
    %v5620 = vadd.f32 %v5616, 1e-05
    %v5621 = vadd.f32 %v5617, 1e-05
    %v5622 = vrsqrt.pop %v5618
    %v5623 = vmul.f32 %v5622, %v5618
    %v5624 = vmul.f32 %v5623, %v5622
    %v5625 = vmul.f32 0.5, %v5624
    %v5626 = vsub.f32 1.5, %v5625
    %v5627 = vmul.f32 %v5622, %v5626
    %vm5628 = vweird.f32 %v5618
    %vm5629 = vweird.f32 %v5622
    %vm5630 = vmor %vm5628, %vm5629
    %v5631 = vsel %vm5630, %v5622, %v5627
    %v5632 = vrsqrt.pop %v5619
    %v5633 = vmul.f32 %v5632, %v5619
    %v5634 = vmul.f32 %v5633, %v5632
    %v5635 = vmul.f32 0.5, %v5634
    %v5636 = vsub.f32 1.5, %v5635
    %v5637 = vmul.f32 %v5632, %v5636
    %vm5638 = vweird.f32 %v5619
    %vm5639 = vweird.f32 %v5632
    %vm5640 = vmor %vm5638, %vm5639
    %v5641 = vsel %vm5640, %v5632, %v5637
    %v5642 = vrsqrt.pop %v5620
    %v5643 = vmul.f32 %v5642, %v5620
    %v5644 = vmul.f32 %v5643, %v5642
    %v5645 = vmul.f32 0.5, %v5644
    %v5646 = vsub.f32 1.5, %v5645
    %v5647 = vmul.f32 %v5642, %v5646
    %vm5648 = vweird.f32 %v5620
    %vm5649 = vweird.f32 %v5642
    %vm5650 = vmor %vm5648, %vm5649
    %v5651 = vsel %vm5650, %v5642, %v5647
    %v5652 = vrsqrt.pop %v5621
    %v5653 = vmul.f32 %v5652, %v5621
    %v5654 = vmul.f32 %v5653, %v5652
    %v5655 = vmul.f32 0.5, %v5654
    %v5656 = vsub.f32 1.5, %v5655
    %v5657 = vmul.f32 %v5652, %v5656
    %vm5658 = vweird.f32 %v5621
    %vm5659 = vweird.f32 %v5652
    %vm5660 = vmor %vm5658, %vm5659
    %v5661 = vsel %vm5660, %v5652, %v5657
    %v5662 = vmul.f32 %v5594, %v5631
    %v5663 = vmul.f32 %v5595, %v5641
    %v5664 = vmul.f32 %v5596, %v5651
    %v5665 = vmul.f32 %v5597, %v5661
    %v5666 = vmul.f32 %v5662, %v4914
    %v5667 = vmul.f32 %v5663, %v4914
    %v5668 = vmul.f32 %v5664, %v4914
    %v5669 = vmul.f32 %v5665, %v4914
    %v5670 = vadd.f32 %v5666, %v3955
    %v5671 = vadd.f32 %v5667, %v3956
    %v5672 = vadd.f32 %v5668, %v3957
    %v5673 = vadd.f32 %v5669, %v3958
    %v5674 = vpack.c.bf16 %v5671, %v5670
    %v5675 = vpack.c.bf16 %v5673, %v5672
    %5676 = vmatpush.bf16.msra.mxu0 %v4273
    %5677 = vmatpush.bf16.msra.mxu0 %v4265
    %5678 = vmatpush.bf16.msra.mxu0 %v4257
    %5679 = vmatpush.bf16.msra.mxu0 %v4249
    %5680 = vmatpush.bf16.msra.mxu0 %v4241
    %5681 = vmatpush.bf16.msra.mxu0 %v4233
    %5682 = vmatpush.bf16.msra.mxu0 %v4225
    %5683 = vmatpush.bf16.msra.mxu0 %v4217
    %5684 = vmatmul.bf16.gmra.mxu0 %v5674
    %v5685 = vpop.f32.mrf.mxu0
    %v5686 = vadd.f32 0.0, %v5685
    %v5687 = vpop.f32.mrf.mxu0
    %v5688 = vadd.f32 0.0, %v5687
    %5689 = vmatmul.bf16.gmra.mxu0 %v5675
    %v5690 = vpop.f32.mrf.mxu0
    %v5691 = vadd.f32 0.0, %v5690
    %v5692 = vpop.f32.mrf.mxu0
    %v5693 = vadd.f32 0.0, %v5692
    %5694 = vdwg.mxu0
    %5695 = vmatpush.bf16.msra.mxu0 %v4274
    %5696 = vmatpush.bf16.msra.mxu0 %v4266
    %5697 = vmatpush.bf16.msra.mxu0 %v4258
    %5698 = vmatpush.bf16.msra.mxu0 %v4250
    %5699 = vmatpush.bf16.msra.mxu0 %v4242
    %5700 = vmatpush.bf16.msra.mxu0 %v4234
    %5701 = vmatpush.bf16.msra.mxu0 %v4226
    %5702 = vmatpush.bf16.msra.mxu0 %v4218
    %5703 = vmatmul.bf16.gmra.mxu0 %v5674
    %v5704 = vpop.f32.mrf.mxu0
    %v5705 = vadd.f32 0.0, %v5704
    %v5706 = vpop.f32.mrf.mxu0
    %v5707 = vadd.f32 0.0, %v5706
    %5708 = vmatmul.bf16.gmra.mxu0 %v5675
    %v5709 = vpop.f32.mrf.mxu0
    %v5710 = vadd.f32 0.0, %v5709
    %v5711 = vpop.f32.mrf.mxu0
    %v5712 = vadd.f32 0.0, %v5711
    %5713 = vdwg.mxu0
    %5714 = vmatpush.bf16.msra.mxu0 %v4275
    %5715 = vmatpush.bf16.msra.mxu0 %v4267
    %5716 = vmatpush.bf16.msra.mxu0 %v4259
    %5717 = vmatpush.bf16.msra.mxu0 %v4251
    %5718 = vmatpush.bf16.msra.mxu0 %v4243
    %5719 = vmatpush.bf16.msra.mxu0 %v4235
    %5720 = vmatpush.bf16.msra.mxu0 %v4227
    %5721 = vmatpush.bf16.msra.mxu0 %v4219
    %5722 = vmatmul.bf16.gmra.mxu0 %v5674
    %v5723 = vpop.f32.mrf.mxu0
    %v5724 = vadd.f32 0.0, %v5723
    %v5725 = vpop.f32.mrf.mxu0
    %v5726 = vadd.f32 0.0, %v5725
    %5727 = vmatmul.bf16.gmra.mxu0 %v5675
    %v5728 = vpop.f32.mrf.mxu0
    %v5729 = vadd.f32 0.0, %v5728
    %v5730 = vpop.f32.mrf.mxu0
    %v5731 = vadd.f32 0.0, %v5730
    %5732 = vdwg.mxu0
    %5733 = vmatpush.bf16.msra.mxu0 %v4276
    %5734 = vmatpush.bf16.msra.mxu0 %v4268
    %5735 = vmatpush.bf16.msra.mxu0 %v4260
    %5736 = vmatpush.bf16.msra.mxu0 %v4252
    %5737 = vmatpush.bf16.msra.mxu0 %v4244
    %5738 = vmatpush.bf16.msra.mxu0 %v4236
    %5739 = vmatpush.bf16.msra.mxu0 %v4228
    %5740 = vmatpush.bf16.msra.mxu0 %v4220
    %5741 = vmatmul.bf16.gmra.mxu0 %v5674
    %v5742 = vpop.f32.mrf.mxu0
    %v5743 = vadd.f32 0.0, %v5742
    %v5744 = vpop.f32.mrf.mxu0
    %v5745 = vadd.f32 0.0, %v5744
    %5746 = vmatmul.bf16.gmra.mxu0 %v5675
    %v5747 = vpop.f32.mrf.mxu0
    %v5748 = vadd.f32 0.0, %v5747
    %v5749 = vpop.f32.mrf.mxu0
    %v5750 = vadd.f32 0.0, %v5749
    %5751 = vdwg.mxu0
    %5752 = vmatpush.bf16.msra.mxu0 %v4277
    %5753 = vmatpush.bf16.msra.mxu0 %v4269
    %5754 = vmatpush.bf16.msra.mxu0 %v4261
    %5755 = vmatpush.bf16.msra.mxu0 %v4253
    %5756 = vmatpush.bf16.msra.mxu0 %v4245
    %5757 = vmatpush.bf16.msra.mxu0 %v4237
    %5758 = vmatpush.bf16.msra.mxu0 %v4229
    %5759 = vmatpush.bf16.msra.mxu0 %v4221
    %5760 = vmatmul.bf16.gmra.mxu0 %v5674
    %v5761 = vpop.f32.mrf.mxu0
    %v5762 = vadd.f32 0.0, %v5761
    %v5763 = vpop.f32.mrf.mxu0
    %v5764 = vadd.f32 0.0, %v5763
    %5765 = vmatmul.bf16.gmra.mxu0 %v5675
    %v5766 = vpop.f32.mrf.mxu0
    %v5767 = vadd.f32 0.0, %v5766
    %v5768 = vpop.f32.mrf.mxu0
    %v5769 = vadd.f32 0.0, %v5768
    %5770 = vdwg.mxu0
    %5771 = vmatpush.bf16.msra.mxu0 %v4278
    %5772 = vmatpush.bf16.msra.mxu0 %v4270
    %5773 = vmatpush.bf16.msra.mxu0 %v4262
    %5774 = vmatpush.bf16.msra.mxu0 %v4254
    %5775 = vmatpush.bf16.msra.mxu0 %v4246
    %5776 = vmatpush.bf16.msra.mxu0 %v4238
    %5777 = vmatpush.bf16.msra.mxu0 %v4230
    %5778 = vmatpush.bf16.msra.mxu0 %v4222
    %5779 = vmatmul.bf16.gmra.mxu0 %v5674
    %v5780 = vpop.f32.mrf.mxu0
    %v5781 = vadd.f32 0.0, %v5780
    %v5782 = vpop.f32.mrf.mxu0
    %v5783 = vadd.f32 0.0, %v5782
    %5784 = vmatmul.bf16.gmra.mxu0 %v5675
    %v5785 = vpop.f32.mrf.mxu0
    %v5786 = vadd.f32 0.0, %v5785
    %v5787 = vpop.f32.mrf.mxu0
    %v5788 = vadd.f32 0.0, %v5787
    %5789 = vdwg.mxu0
    %5790 = vmatpush.bf16.msra.mxu0 %v4279
    %5791 = vmatpush.bf16.msra.mxu0 %v4271
    %5792 = vmatpush.bf16.msra.mxu0 %v4263
    %5793 = vmatpush.bf16.msra.mxu0 %v4255
    %5794 = vmatpush.bf16.msra.mxu0 %v4247
    %5795 = vmatpush.bf16.msra.mxu0 %v4239
    %5796 = vmatpush.bf16.msra.mxu0 %v4231
    %5797 = vmatpush.bf16.msra.mxu0 %v4223
    %5798 = vmatmul.bf16.gmra.mxu0 %v5674
    %v5799 = vpop.f32.mrf.mxu0
    %v5800 = vadd.f32 0.0, %v5799
    %v5801 = vpop.f32.mrf.mxu0
    %v5802 = vadd.f32 0.0, %v5801
    %5803 = vmatmul.bf16.gmra.mxu0 %v5675
    %v5804 = vpop.f32.mrf.mxu0
    %v5805 = vadd.f32 0.0, %v5804
    %v5806 = vpop.f32.mrf.mxu0
    %v5807 = vadd.f32 0.0, %v5806
    %5808 = vdwg.mxu0
    %5809 = vmatpush.bf16.msra.mxu0 %v4280
    %5810 = vmatpush.bf16.msra.mxu0 %v4272
    %5811 = vmatpush.bf16.msra.mxu0 %v4264
    %5812 = vmatpush.bf16.msra.mxu0 %v4256
    %5813 = vmatpush.bf16.msra.mxu0 %v4248
    %5814 = vmatpush.bf16.msra.mxu0 %v4240
    %5815 = vmatpush.bf16.msra.mxu0 %v4232
    %5816 = vmatpush.bf16.msra.mxu0 %v4224
    %5817 = vmatmul.bf16.gmra.mxu0 %v5674
    %v5818 = vpop.f32.mrf.mxu0
    %v5819 = vadd.f32 0.0, %v5818
    %v5820 = vpop.f32.mrf.mxu0
    %v5821 = vadd.f32 0.0, %v5820
    %5822 = vmatmul.bf16.gmra.mxu0 %v5675
    %v5823 = vpop.f32.mrf.mxu0
    %v5824 = vadd.f32 0.0, %v5823
    %v5825 = vpop.f32.mrf.mxu0
    %v5826 = vadd.f32 0.0, %v5825
    %5827 = vdwg.mxu0
    %v5828 = vld [vmem:[#allocation13] sm:$0xff]
    %v5829 = vld [vmem:[#allocation13 + $0x8] sm:$0xff]
    %v5830 = vld [vmem:[#allocation13 + $0x10] sm:$0xff]
    %v5831 = vld [vmem:[#allocation13 + $0x18] sm:$0xff]
    %s5832 = scalar_lea.vmem [#allocation13], 32
    %v5833 = vld [vmem:[%s5832] sm:$0xff]
    %v5834 = vld [vmem:[%s5832 + $0x8] sm:$0xff]
    %v5835 = vld [vmem:[%s5832 + $0x10] sm:$0xff]
    %v5836 = vld [vmem:[%s5832 + $0x18] sm:$0xff]
    %v5838 = vsel %vm4506, %v5833, 0
    %v5841 = vsel %vm4506, %v5834, 0
    %v5844 = vsel %vm4506, %v5835, 0
    %v5847 = vsel %vm4506, %v5836, 0
    %5849 = vmatpush.msra.mxu0 0.0
    %5850 = vmatpush.msra.mxu0 0.0
    %5851 = vmatpush.msra.mxu0 0.0
    %5852 = vmatpush.msra.mxu0 0.0
    %5853 = vmatpush.msra.mxu0 0.0
    %5854 = vmatpush.msra.mxu0 0.0
    %5855 = vmatpush.msra.mxu0 0.0
    %5856 = vmatpush.msra.mxu0 0.0
    %5857 = vmatpush.msra.mxu0 0.0
    %5858 = vmatpush.msra.mxu0 0.0
    %5859 = vmatpush.msra.mxu0 0.0
    %5860 = vmatpush.msra.mxu0 0.0
    %5861 = vmatpush.msra.mxu0 %v5712
    %5862 = vmatpush.msra.mxu0 %v5710
    %5863 = vmatpush.msra.mxu0 %v5707
    %5864 = vmatpush.msra.mxu0 %v5705
    %5865 = vmatmul.f32.gmra.mxu0 %v5838
    %v5866 = vpop.f32.mrf.mxu0
    %v5867 = vadd.f32 0.0, %v5866
    %5868 = vmatmul.f32.gmra.mxu0 %v5841
    %v5869 = vpop.f32.mrf.mxu0
    %v5870 = vadd.f32 0.0, %v5869
    %5871 = vmatmul.f32.gmra.mxu0 %v5844
    %v5872 = vpop.f32.mrf.mxu0
    %v5873 = vadd.f32 0.0, %v5872
    %5874 = vmatmul.f32.gmra.mxu0 %v5847
    %v5875 = vpop.f32.mrf.mxu0
    %v5876 = vadd.f32 0.0, %v5875
    %5877 = vdwg.mxu0
    %v5879 = vsel %vm4506, %v5828, 0
    %v5882 = vsel %vm4506, %v5829, 0
    %v5885 = vsel %vm4506, %v5830, 0
    %v5888 = vsel %vm4506, %v5831, 0
    %5890 = vmatpush.msra.mxu0 0.0
    %5891 = vmatpush.msra.mxu0 0.0
    %5892 = vmatpush.msra.mxu0 0.0
    %5893 = vmatpush.msra.mxu0 0.0
    %5894 = vmatpush.msra.mxu0 0.0
    %5895 = vmatpush.msra.mxu0 0.0
    %5896 = vmatpush.msra.mxu0 0.0
    %5897 = vmatpush.msra.mxu0 0.0
    %5898 = vmatpush.msra.mxu0 0.0
    %5899 = vmatpush.msra.mxu0 0.0
    %5900 = vmatpush.msra.mxu0 0.0
    %5901 = vmatpush.msra.mxu0 0.0
    %5902 = vmatpush.msra.mxu0 %v5693
    %5903 = vmatpush.msra.mxu0 %v5691
    %5904 = vmatpush.msra.mxu0 %v5688
    %5905 = vmatpush.msra.mxu0 %v5686
    %5906 = vmatmul.f32.gmra.mxu0 %v5879
    %v5907 = vpop.f32.mrf.mxu0
    %v5908 = vadd.f32 %v5867, %v5907
    %5909 = vmatmul.f32.gmra.mxu0 %v5882
    %v5910 = vpop.f32.mrf.mxu0
    %v5911 = vadd.f32 %v5870, %v5910
    %5912 = vmatmul.f32.gmra.mxu0 %v5885
    %v5913 = vpop.f32.mrf.mxu0
    %v5914 = vadd.f32 %v5873, %v5913
    %5915 = vmatmul.f32.gmra.mxu0 %v5888
    %v5916 = vpop.f32.mrf.mxu0
    %v5917 = vadd.f32 %v5876, %v5916
    %5918 = vdwg.mxu0
    %s5919 = scalar_lea.vmem [#allocation13], 64
    %v5920 = vld [vmem:[%s5919] sm:$0xff]
    %v5921 = vld [vmem:[%s5919 + $0x8] sm:$0xff]
    %v5922 = vld [vmem:[%s5919 + $0x10] sm:$0xff]
    %v5923 = vld [vmem:[%s5919 + $0x18] sm:$0xff]
    %v5925 = vsel %vm4506, %v5920, 0
    %v5928 = vsel %vm4506, %v5921, 0
    %v5931 = vsel %vm4506, %v5922, 0
    %v5934 = vsel %vm4506, %v5923, 0
    %5936 = vmatpush.msra.mxu0 0.0
    %5937 = vmatpush.msra.mxu0 0.0
    %5938 = vmatpush.msra.mxu0 0.0
    %5939 = vmatpush.msra.mxu0 0.0
    %5940 = vmatpush.msra.mxu0 0.0
    %5941 = vmatpush.msra.mxu0 0.0
    %5942 = vmatpush.msra.mxu0 0.0
    %5943 = vmatpush.msra.mxu0 0.0
    %5944 = vmatpush.msra.mxu0 0.0
    %5945 = vmatpush.msra.mxu0 0.0
    %5946 = vmatpush.msra.mxu0 0.0
    %5947 = vmatpush.msra.mxu0 0.0
    %5948 = vmatpush.msra.mxu0 %v5731
    %5949 = vmatpush.msra.mxu0 %v5729
    %5950 = vmatpush.msra.mxu0 %v5726
    %5951 = vmatpush.msra.mxu0 %v5724
    %5952 = vmatmul.f32.gmra.mxu0 %v5925
    %v5953 = vpop.f32.mrf.mxu0
    %v5954 = vadd.f32 0.0, %v5953
    %5955 = vmatmul.f32.gmra.mxu0 %v5928
    %v5956 = vpop.f32.mrf.mxu0
    %v5957 = vadd.f32 0.0, %v5956
    %5958 = vmatmul.f32.gmra.mxu0 %v5931
    %v5959 = vpop.f32.mrf.mxu0
    %v5960 = vadd.f32 0.0, %v5959
    %5961 = vmatmul.f32.gmra.mxu0 %v5934
    %v5962 = vpop.f32.mrf.mxu0
    %v5963 = vadd.f32 0.0, %v5962
    %5964 = vdwg.mxu0
    %v5965 = vadd.f32 %v5908, %v5954
    %v5966 = vadd.f32 %v5911, %v5957
    %v5967 = vadd.f32 %v5914, %v5960
    %v5968 = vadd.f32 %v5917, %v5963
    %s5969 = scalar_lea.vmem [#allocation13], 96
    %v5970 = vld [vmem:[%s5969] sm:$0xff]
    %v5971 = vld [vmem:[%s5969 + $0x8] sm:$0xff]
    %v5972 = vld [vmem:[%s5969 + $0x10] sm:$0xff]
    %v5973 = vld [vmem:[%s5969 + $0x18] sm:$0xff]
    %v5975 = vsel %vm4506, %v5970, 0
    %v5978 = vsel %vm4506, %v5971, 0
    %v5981 = vsel %vm4506, %v5972, 0
    %v5984 = vsel %vm4506, %v5973, 0
    %5986 = vmatpush.msra.mxu0 0.0
    %5987 = vmatpush.msra.mxu0 0.0
    %5988 = vmatpush.msra.mxu0 0.0
    %5989 = vmatpush.msra.mxu0 0.0
    %5990 = vmatpush.msra.mxu0 0.0
    %5991 = vmatpush.msra.mxu0 0.0
    %5992 = vmatpush.msra.mxu0 0.0
    %5993 = vmatpush.msra.mxu0 0.0
    %5994 = vmatpush.msra.mxu0 0.0
    %5995 = vmatpush.msra.mxu0 0.0
    %5996 = vmatpush.msra.mxu0 0.0
    %5997 = vmatpush.msra.mxu0 0.0
    %5998 = vmatpush.msra.mxu0 %v5750
    %5999 = vmatpush.msra.mxu0 %v5748
    %6000 = vmatpush.msra.mxu0 %v5745
    %6001 = vmatpush.msra.mxu0 %v5743
    %6002 = vmatmul.f32.gmra.mxu0 %v5975
    %v6003 = vpop.f32.mrf.mxu0
    %v6004 = vadd.f32 0.0, %v6003
    %6005 = vmatmul.f32.gmra.mxu0 %v5978
    %v6006 = vpop.f32.mrf.mxu0
    %v6007 = vadd.f32 0.0, %v6006
    %6008 = vmatmul.f32.gmra.mxu0 %v5981
    %v6009 = vpop.f32.mrf.mxu0
    %v6010 = vadd.f32 0.0, %v6009
    %6011 = vmatmul.f32.gmra.mxu0 %v5984
    %v6012 = vpop.f32.mrf.mxu0
    %v6013 = vadd.f32 0.0, %v6012
    %6014 = vdwg.mxu0
    %v6015 = vadd.f32 %v5965, %v6004
    %v6016 = vadd.f32 %v5966, %v6007
    %v6017 = vadd.f32 %v5967, %v6010
    %v6018 = vadd.f32 %v5968, %v6013
    %s6019 = scalar_lea.vmem [#allocation13], 128
    %v6020 = vld [vmem:[%s6019] sm:$0xff]
    %v6021 = vld [vmem:[%s6019 + $0x8] sm:$0xff]
    %v6022 = vld [vmem:[%s6019 + $0x10] sm:$0xff]
    %v6023 = vld [vmem:[%s6019 + $0x18] sm:$0xff]
    %v6025 = vsel %vm4506, %v6020, 0
    %v6028 = vsel %vm4506, %v6021, 0
    %v6031 = vsel %vm4506, %v6022, 0
    %v6034 = vsel %vm4506, %v6023, 0
    %6036 = vmatpush.msra.mxu0 0.0
    %6037 = vmatpush.msra.mxu0 0.0
    %6038 = vmatpush.msra.mxu0 0.0
    %6039 = vmatpush.msra.mxu0 0.0
    %6040 = vmatpush.msra.mxu0 0.0
    %6041 = vmatpush.msra.mxu0 0.0
    %6042 = vmatpush.msra.mxu0 0.0
    %6043 = vmatpush.msra.mxu0 0.0
    %6044 = vmatpush.msra.mxu0 0.0
    %6045 = vmatpush.msra.mxu0 0.0
    %6046 = vmatpush.msra.mxu0 0.0
    %6047 = vmatpush.msra.mxu0 0.0
    %6048 = vmatpush.msra.mxu0 %v5769
    %6049 = vmatpush.msra.mxu0 %v5767
    %6050 = vmatpush.msra.mxu0 %v5764
    %6051 = vmatpush.msra.mxu0 %v5762
    %6052 = vmatmul.f32.gmra.mxu0 %v6025
    %v6053 = vpop.f32.mrf.mxu0
    %v6054 = vadd.f32 0.0, %v6053
    %6055 = vmatmul.f32.gmra.mxu0 %v6028
    %v6056 = vpop.f32.mrf.mxu0
    %v6057 = vadd.f32 0.0, %v6056
    %6058 = vmatmul.f32.gmra.mxu0 %v6031
    %v6059 = vpop.f32.mrf.mxu0
    %v6060 = vadd.f32 0.0, %v6059
    %6061 = vmatmul.f32.gmra.mxu0 %v6034
    %v6062 = vpop.f32.mrf.mxu0
    %v6063 = vadd.f32 0.0, %v6062
    %6064 = vdwg.mxu0
    %v6065 = vadd.f32 %v6015, %v6054
    %v6066 = vadd.f32 %v6016, %v6057
    %v6067 = vadd.f32 %v6017, %v6060
    %v6068 = vadd.f32 %v6018, %v6063
    %s6069 = scalar_lea.vmem [#allocation13], 160
    %v6070 = vld [vmem:[%s6069] sm:$0xff]
    %v6071 = vld [vmem:[%s6069 + $0x8] sm:$0xff]
    %v6072 = vld [vmem:[%s6069 + $0x10] sm:$0xff]
    %v6073 = vld [vmem:[%s6069 + $0x18] sm:$0xff]
    %v6075 = vsel %vm4506, %v6070, 0
    %v6078 = vsel %vm4506, %v6071, 0
    %v6081 = vsel %vm4506, %v6072, 0
    %v6084 = vsel %vm4506, %v6073, 0
    %6086 = vmatpush.msra.mxu0 0.0
    %6087 = vmatpush.msra.mxu0 0.0
    %6088 = vmatpush.msra.mxu0 0.0
    %6089 = vmatpush.msra.mxu0 0.0
    %6090 = vmatpush.msra.mxu0 0.0
    %6091 = vmatpush.msra.mxu0 0.0
    %6092 = vmatpush.msra.mxu0 0.0
    %6093 = vmatpush.msra.mxu0 0.0
    %6094 = vmatpush.msra.mxu0 0.0
    %6095 = vmatpush.msra.mxu0 0.0
    %6096 = vmatpush.msra.mxu0 0.0
    %6097 = vmatpush.msra.mxu0 0.0
    %6098 = vmatpush.msra.mxu0 %v5788
    %6099 = vmatpush.msra.mxu0 %v5786
    %6100 = vmatpush.msra.mxu0 %v5783
    %6101 = vmatpush.msra.mxu0 %v5781
    %6102 = vmatmul.f32.gmra.mxu0 %v6075
    %v6103 = vpop.f32.mrf.mxu0
    %v6104 = vadd.f32 0.0, %v6103
    %6105 = vmatmul.f32.gmra.mxu0 %v6078
    %v6106 = vpop.f32.mrf.mxu0
    %v6107 = vadd.f32 0.0, %v6106
    %6108 = vmatmul.f32.gmra.mxu0 %v6081
    %v6109 = vpop.f32.mrf.mxu0
    %v6110 = vadd.f32 0.0, %v6109
    %6111 = vmatmul.f32.gmra.mxu0 %v6084
    %v6112 = vpop.f32.mrf.mxu0
    %v6113 = vadd.f32 0.0, %v6112
    %6114 = vdwg.mxu0
    %v6115 = vadd.f32 %v6065, %v6104
    %v6116 = vadd.f32 %v6066, %v6107
    %v6117 = vadd.f32 %v6067, %v6110
    %v6118 = vadd.f32 %v6068, %v6113
    %s6119 = scalar_lea.vmem [#allocation13], 192
    %v6120 = vld [vmem:[%s6119] sm:$0xff]
    %v6121 = vld [vmem:[%s6119 + $0x8] sm:$0xff]
    %v6122 = vld [vmem:[%s6119 + $0x10] sm:$0xff]
    %v6123 = vld [vmem:[%s6119 + $0x18] sm:$0xff]
    %v6125 = vsel %vm4506, %v6120, 0
    %v6128 = vsel %vm4506, %v6121, 0
    %v6131 = vsel %vm4506, %v6122, 0
    %v6134 = vsel %vm4506, %v6123, 0
    %6136 = vmatpush.msra.mxu0 0.0
    %6137 = vmatpush.msra.mxu0 0.0
    %6138 = vmatpush.msra.mxu0 0.0
    %6139 = vmatpush.msra.mxu0 0.0
    %6140 = vmatpush.msra.mxu0 0.0
    %6141 = vmatpush.msra.mxu0 0.0
    %6142 = vmatpush.msra.mxu0 0.0
    %6143 = vmatpush.msra.mxu0 0.0
    %6144 = vmatpush.msra.mxu0 0.0
    %6145 = vmatpush.msra.mxu0 0.0
    %6146 = vmatpush.msra.mxu0 0.0
    %6147 = vmatpush.msra.mxu0 0.0
    %6148 = vmatpush.msra.mxu0 %v5807
    %6149 = vmatpush.msra.mxu0 %v5805
    %6150 = vmatpush.msra.mxu0 %v5802
    %6151 = vmatpush.msra.mxu0 %v5800
    %6152 = vmatmul.f32.gmra.mxu0 %v6125
    %v6153 = vpop.f32.mrf.mxu0
    %v6154 = vadd.f32 0.0, %v6153
    %6155 = vmatmul.f32.gmra.mxu0 %v6128
    %v6156 = vpop.f32.mrf.mxu0
    %v6157 = vadd.f32 0.0, %v6156
    %6158 = vmatmul.f32.gmra.mxu0 %v6131
    %v6159 = vpop.f32.mrf.mxu0
    %v6160 = vadd.f32 0.0, %v6159
    %6161 = vmatmul.f32.gmra.mxu0 %v6134
    %v6162 = vpop.f32.mrf.mxu0
    %v6163 = vadd.f32 0.0, %v6162
    %6164 = vdwg.mxu0
    %v6165 = vadd.f32 %v6115, %v6154
    %v6166 = vadd.f32 %v6116, %v6157
    %v6167 = vadd.f32 %v6117, %v6160
    %v6168 = vadd.f32 %v6118, %v6163
    %s6169 = scalar_lea.vmem [#allocation13], 224
    %v6170 = vld [vmem:[%s6169] sm:$0xff]
    %v6171 = vld [vmem:[%s6169 + $0x8] sm:$0xff]
    %v6172 = vld [vmem:[%s6169 + $0x10] sm:$0xff]
    %v6173 = vld [vmem:[%s6169 + $0x18] sm:$0xff]
    %v6175 = vsel %vm4506, %v6170, 0
    %v6178 = vsel %vm4506, %v6171, 0
    %v6181 = vsel %vm4506, %v6172, 0
    %v6184 = vsel %vm4506, %v6173, 0
    %6186 = vmatpush.msra.mxu0 0.0
    %6187 = vmatpush.msra.mxu0 0.0
    %6188 = vmatpush.msra.mxu0 0.0
    %6189 = vmatpush.msra.mxu0 0.0
    %6190 = vmatpush.msra.mxu0 0.0
    %6191 = vmatpush.msra.mxu0 0.0
    %6192 = vmatpush.msra.mxu0 0.0
    %6193 = vmatpush.msra.mxu0 0.0
    %6194 = vmatpush.msra.mxu0 0.0
    %6195 = vmatpush.msra.mxu0 0.0
    %6196 = vmatpush.msra.mxu0 0.0
    %6197 = vmatpush.msra.mxu0 0.0
    %6198 = vmatpush.msra.mxu0 %v5826
    %6199 = vmatpush.msra.mxu0 %v5824
    %6200 = vmatpush.msra.mxu0 %v5821
    %6201 = vmatpush.msra.mxu0 %v5819
    %6202 = vmatmul.f32.gmra.mxu0 %v6175
    %v6203 = vpop.f32.mrf.mxu0
    %v6204 = vadd.f32 0.0, %v6203
    %6205 = vmatmul.f32.gmra.mxu0 %v6178
    %v6206 = vpop.f32.mrf.mxu0
    %v6207 = vadd.f32 0.0, %v6206
    %6208 = vmatmul.f32.gmra.mxu0 %v6181
    %v6209 = vpop.f32.mrf.mxu0
    %v6210 = vadd.f32 0.0, %v6209
    %6211 = vmatmul.f32.gmra.mxu0 %v6184
    %v6212 = vpop.f32.mrf.mxu0
    %v6213 = vadd.f32 0.0, %v6212
    %6214 = vdwg.mxu0
    %v6215 = vadd.f32 %v6165, %v6204
    %v6216 = vadd.f32 %v6166, %v6207
    %v6217 = vadd.f32 %v6167, %v6210
    %v6218 = vadd.f32 %v6168, %v6213
    %vm6219 = vcmp.gt.f32.partialorder %v6215, 0.0
    %vm6220 = vcmp.gt.f32.partialorder %v6216, 0.0
    %vm6221 = vcmp.gt.f32.partialorder %v6217, 0.0
    %vm6222 = vcmp.gt.f32.partialorder %v6218, 0.0
    %v6223 = vmin.f32 %v6215, 0.0
    %v6224 = vmin.f32 %v6216, 0.0
    %v6225 = vmin.f32 %v6217, 0.0
    %v6226 = vmin.f32 %v6218, 0.0
    %v6227 = vmul.f32 %v6223, 1.442695
    %v6228 = vpow.pop %v6227
    %v6229 = vmul.f32 %v6224, 1.442695
    %v6230 = vpow.pop %v6229
    %v6231 = vmul.f32 %v6225, 1.442695
    %v6232 = vpow.pop %v6231
    %v6233 = vmul.f32 %v6226, 1.442695
    %v6234 = vpow.pop %v6233
    %v6235 = vsub.f32 %v6228, 1.0
    %v6236 = vsub.f32 %v6230, 1.0
    %v6237 = vsub.f32 %v6232, 1.0
    %v6238 = vsub.f32 %v6234, 1.0
    %v6239 = vsel %vm6219, %v6215, %v6235
    %v6240 = vsel %vm6220, %v6216, %v6236
    %v6241 = vsel %vm6221, %v6217, %v6237
    %v6242 = vsel %vm6222, %v6218, %v6238
    %v6243 = vmul.f32 %v6239, %v4914
    %v6244 = vmul.f32 %v6240, %v4914
    %v6245 = vmul.f32 %v6241, %v4914
    %v6246 = vmul.f32 %v6242, %v4914
    %6247 = vadd.xlane.f32.xlu0 %v6243
    %v6248 = vpop.xlane.xlu0 %6247
    %6249 = vadd.xlane.f32.xlu0 %v6244
    %v6250 = vpop.xlane.xlu0 %6249
    %6251 = vadd.xlane.f32.xlu0 %v6245
    %v6252 = vpop.xlane.xlu0 %6251
    %6253 = vadd.xlane.f32.xlu0 %v6246
    %v6254 = vpop.xlane.xlu0 %6253
    %v6255 = vmul.f32 %v6248, %v4928
    %v6256 = vmul.f32 %v6250, %v4928
    %v6257 = vmul.f32 %v6252, %v4928
    %v6258 = vmul.f32 %v6254, %v4928
    %v6259 = vsub.f32 %v6239, %v6255
    %v6260 = vsub.f32 %v6240, %v6256
    %v6261 = vsub.f32 %v6241, %v6257
    %v6262 = vsub.f32 %v6242, %v6258
    %v6263 = vmul.f32 %v6259, %v6259
    %v6264 = vmul.f32 %v6260, %v6260
    %v6265 = vmul.f32 %v6261, %v6261
    %v6266 = vmul.f32 %v6262, %v6262
    %v6267 = vmul.f32 %v6263, %v4914
    %v6268 = vmul.f32 %v6264, %v4914
    %v6269 = vmul.f32 %v6265, %v4914
    %v6270 = vmul.f32 %v6266, %v4914
    %6271 = vadd.xlane.f32.xlu0 %v6267
    %v6272 = vpop.xlane.xlu0 %6271
    %6273 = vadd.xlane.f32.xlu0 %v6268
    %v6274 = vpop.xlane.xlu0 %6273
    %6275 = vadd.xlane.f32.xlu0 %v6269
    %v6276 = vpop.xlane.xlu0 %6275
    %6277 = vadd.xlane.f32.xlu0 %v6270
    %v6278 = vpop.xlane.xlu0 %6277
    %v6279 = vmul.f32 %v6272, %v4928
    %v6280 = vmul.f32 %v6274, %v4928
    %v6281 = vmul.f32 %v6276, %v4928
    %v6282 = vmul.f32 %v6278, %v4928
    %v6283 = vadd.f32 %v6279, 1e-05
    %v6284 = vadd.f32 %v6280, 1e-05
    %v6285 = vadd.f32 %v6281, 1e-05
    %v6286 = vadd.f32 %v6282, 1e-05
    %v6287 = vrsqrt.pop %v6283
    %v6288 = vmul.f32 %v6287, %v6283
    %v6289 = vmul.f32 %v6288, %v6287
    %v6290 = vmul.f32 0.5, %v6289
    %v6291 = vsub.f32 1.5, %v6290
    %v6292 = vmul.f32 %v6287, %v6291
    %vm6293 = vweird.f32 %v6283
    %vm6294 = vweird.f32 %v6287
    %vm6295 = vmor %vm6293, %vm6294
    %v6296 = vsel %vm6295, %v6287, %v6292
    %v6297 = vrsqrt.pop %v6284
    %v6298 = vmul.f32 %v6297, %v6284
    %v6299 = vmul.f32 %v6298, %v6297
    %v6300 = vmul.f32 0.5, %v6299
    %v6301 = vsub.f32 1.5, %v6300
    %v6302 = vmul.f32 %v6297, %v6301
    %vm6303 = vweird.f32 %v6284
    %vm6304 = vweird.f32 %v6297
    %vm6305 = vmor %vm6303, %vm6304
    %v6306 = vsel %vm6305, %v6297, %v6302
    %v6307 = vrsqrt.pop %v6285
    %v6308 = vmul.f32 %v6307, %v6285
    %v6309 = vmul.f32 %v6308, %v6307
    %v6310 = vmul.f32 0.5, %v6309
    %v6311 = vsub.f32 1.5, %v6310
    %v6312 = vmul.f32 %v6307, %v6311
    %vm6313 = vweird.f32 %v6285
    %vm6314 = vweird.f32 %v6307
    %vm6315 = vmor %vm6313, %vm6314
    %v6316 = vsel %vm6315, %v6307, %v6312
    %v6317 = vrsqrt.pop %v6286
    %v6318 = vmul.f32 %v6317, %v6286
    %v6319 = vmul.f32 %v6318, %v6317
    %v6320 = vmul.f32 0.5, %v6319
    %v6321 = vsub.f32 1.5, %v6320
    %v6322 = vmul.f32 %v6317, %v6321
    %vm6323 = vweird.f32 %v6286
    %vm6324 = vweird.f32 %v6317
    %vm6325 = vmor %vm6323, %vm6324
    %v6326 = vsel %vm6325, %v6317, %v6322
    %v6327 = vmul.f32 %v6259, %v6296
    %v6328 = vmul.f32 %v6260, %v6306
    %v6329 = vmul.f32 %v6261, %v6316
    %v6330 = vmul.f32 %v6262, %v6326
    %v6331 = vmul.f32 %v6327, %v4914
    %v6332 = vmul.f32 %v6328, %v4914
    %v6333 = vmul.f32 %v6329, %v4914
    %v6334 = vmul.f32 %v6330, %v4914
    %v6335 = vpack.c.bf16 %v6332, %v6331
    %v6336 = vpack.c.bf16 %v6334, %v6333
    %6337 = vmatpush.bf16.msra.mxu0 %v4273
    %6338 = vmatpush.bf16.msra.mxu0 %v4265
    %6339 = vmatpush.bf16.msra.mxu0 %v4257
    %6340 = vmatpush.bf16.msra.mxu0 %v4249
    %6341 = vmatpush.bf16.msra.mxu0 %v4241
    %6342 = vmatpush.bf16.msra.mxu0 %v4233
    %6343 = vmatpush.bf16.msra.mxu0 %v4225
    %6344 = vmatpush.bf16.msra.mxu0 %v4217
    %6345 = vmatmul.bf16.gmra.mxu0 %v6335
    %v6346 = vpop.f32.mrf.mxu0
    %v6347 = vadd.f32 0.0, %v6346
    %v6348 = vpop.f32.mrf.mxu0
    %v6349 = vadd.f32 0.0, %v6348
    %6350 = vmatmul.bf16.gmra.mxu0 %v6336
    %v6351 = vpop.f32.mrf.mxu0
    %v6352 = vadd.f32 0.0, %v6351
    %v6353 = vpop.f32.mrf.mxu0
    %v6354 = vadd.f32 0.0, %v6353
    %6355 = vdwg.mxu0
    %6356 = vmatpush.bf16.msra.mxu0 %v4274
    %6357 = vmatpush.bf16.msra.mxu0 %v4266
    %6358 = vmatpush.bf16.msra.mxu0 %v4258
    %6359 = vmatpush.bf16.msra.mxu0 %v4250
    %6360 = vmatpush.bf16.msra.mxu0 %v4242
    %6361 = vmatpush.bf16.msra.mxu0 %v4234
    %6362 = vmatpush.bf16.msra.mxu0 %v4226
    %6363 = vmatpush.bf16.msra.mxu0 %v4218
    %6364 = vmatmul.bf16.gmra.mxu0 %v6335
    %v6365 = vpop.f32.mrf.mxu0
    %v6366 = vadd.f32 0.0, %v6365
    %v6367 = vpop.f32.mrf.mxu0
    %v6368 = vadd.f32 0.0, %v6367
    %6369 = vmatmul.bf16.gmra.mxu0 %v6336
    %v6370 = vpop.f32.mrf.mxu0
    %v6371 = vadd.f32 0.0, %v6370
    %v6372 = vpop.f32.mrf.mxu0
    %v6373 = vadd.f32 0.0, %v6372
    %6374 = vdwg.mxu0
    %6375 = vmatpush.bf16.msra.mxu0 %v4275
    %6376 = vmatpush.bf16.msra.mxu0 %v4267
    %6377 = vmatpush.bf16.msra.mxu0 %v4259
    %6378 = vmatpush.bf16.msra.mxu0 %v4251
    %6379 = vmatpush.bf16.msra.mxu0 %v4243
    %6380 = vmatpush.bf16.msra.mxu0 %v4235
    %6381 = vmatpush.bf16.msra.mxu0 %v4227
    %6382 = vmatpush.bf16.msra.mxu0 %v4219
    %6383 = vmatmul.bf16.gmra.mxu0 %v6335
    %v6384 = vpop.f32.mrf.mxu0
    %v6385 = vadd.f32 0.0, %v6384
    %v6386 = vpop.f32.mrf.mxu0
    %v6387 = vadd.f32 0.0, %v6386
    %6388 = vmatmul.bf16.gmra.mxu0 %v6336
    %v6389 = vpop.f32.mrf.mxu0
    %v6390 = vadd.f32 0.0, %v6389
    %v6391 = vpop.f32.mrf.mxu0
    %v6392 = vadd.f32 0.0, %v6391
    %6393 = vdwg.mxu0
    %6394 = vmatpush.bf16.msra.mxu0 %v4276
    %6395 = vmatpush.bf16.msra.mxu0 %v4268
    %6396 = vmatpush.bf16.msra.mxu0 %v4260
    %6397 = vmatpush.bf16.msra.mxu0 %v4252
    %6398 = vmatpush.bf16.msra.mxu0 %v4244
    %6399 = vmatpush.bf16.msra.mxu0 %v4236
    %6400 = vmatpush.bf16.msra.mxu0 %v4228
    %6401 = vmatpush.bf16.msra.mxu0 %v4220
    %6402 = vmatmul.bf16.gmra.mxu0 %v6335
    %v6403 = vpop.f32.mrf.mxu0
    %v6404 = vadd.f32 0.0, %v6403
    %v6405 = vpop.f32.mrf.mxu0
    %v6406 = vadd.f32 0.0, %v6405
    %6407 = vmatmul.bf16.gmra.mxu0 %v6336
    %v6408 = vpop.f32.mrf.mxu0
    %v6409 = vadd.f32 0.0, %v6408
    %v6410 = vpop.f32.mrf.mxu0
    %v6411 = vadd.f32 0.0, %v6410
    %6412 = vdwg.mxu0
    %6413 = vmatpush.bf16.msra.mxu0 %v4277
    %6414 = vmatpush.bf16.msra.mxu0 %v4269
    %6415 = vmatpush.bf16.msra.mxu0 %v4261
    %6416 = vmatpush.bf16.msra.mxu0 %v4253
    %6417 = vmatpush.bf16.msra.mxu0 %v4245
    %6418 = vmatpush.bf16.msra.mxu0 %v4237
    %6419 = vmatpush.bf16.msra.mxu0 %v4229
    %6420 = vmatpush.bf16.msra.mxu0 %v4221
    %6421 = vmatmul.bf16.gmra.mxu0 %v6335
    %v6422 = vpop.f32.mrf.mxu0
    %v6423 = vadd.f32 0.0, %v6422
    %v6424 = vpop.f32.mrf.mxu0
    %v6425 = vadd.f32 0.0, %v6424
    %6426 = vmatmul.bf16.gmra.mxu0 %v6336
    %v6427 = vpop.f32.mrf.mxu0
    %v6428 = vadd.f32 0.0, %v6427
    %v6429 = vpop.f32.mrf.mxu0
    %v6430 = vadd.f32 0.0, %v6429
    %6431 = vdwg.mxu0
    %6432 = vmatpush.bf16.msra.mxu0 %v4278
    %6433 = vmatpush.bf16.msra.mxu0 %v4270
    %6434 = vmatpush.bf16.msra.mxu0 %v4262
    %6435 = vmatpush.bf16.msra.mxu0 %v4254
    %6436 = vmatpush.bf16.msra.mxu0 %v4246
    %6437 = vmatpush.bf16.msra.mxu0 %v4238
    %6438 = vmatpush.bf16.msra.mxu0 %v4230
    %6439 = vmatpush.bf16.msra.mxu0 %v4222
    %6440 = vmatmul.bf16.gmra.mxu0 %v6335
    %v6441 = vpop.f32.mrf.mxu0
    %v6442 = vadd.f32 0.0, %v6441
    %v6443 = vpop.f32.mrf.mxu0
    %v6444 = vadd.f32 0.0, %v6443
    %6445 = vmatmul.bf16.gmra.mxu0 %v6336
    %v6446 = vpop.f32.mrf.mxu0
    %v6447 = vadd.f32 0.0, %v6446
    %v6448 = vpop.f32.mrf.mxu0
    %v6449 = vadd.f32 0.0, %v6448
    %6450 = vdwg.mxu0
    %6451 = vmatpush.bf16.msra.mxu0 %v4279
    %6452 = vmatpush.bf16.msra.mxu0 %v4271
    %6453 = vmatpush.bf16.msra.mxu0 %v4263
    %6454 = vmatpush.bf16.msra.mxu0 %v4255
    %6455 = vmatpush.bf16.msra.mxu0 %v4247
    %6456 = vmatpush.bf16.msra.mxu0 %v4239
    %6457 = vmatpush.bf16.msra.mxu0 %v4231
    %6458 = vmatpush.bf16.msra.mxu0 %v4223
    %6459 = vmatmul.bf16.gmra.mxu0 %v6335
    %v6460 = vpop.f32.mrf.mxu0
    %v6461 = vadd.f32 0.0, %v6460
    %v6462 = vpop.f32.mrf.mxu0
    %v6463 = vadd.f32 0.0, %v6462
    %6464 = vmatmul.bf16.gmra.mxu0 %v6336
    %v6465 = vpop.f32.mrf.mxu0
    %v6466 = vadd.f32 0.0, %v6465
    %v6467 = vpop.f32.mrf.mxu0
    %v6468 = vadd.f32 0.0, %v6467
    %6469 = vdwg.mxu0
    %6470 = vmatpush.bf16.msra.mxu0 %v4280
    %6471 = vmatpush.bf16.msra.mxu0 %v4272
    %6472 = vmatpush.bf16.msra.mxu0 %v4264
    %6473 = vmatpush.bf16.msra.mxu0 %v4256
    %6474 = vmatpush.bf16.msra.mxu0 %v4248
    %6475 = vmatpush.bf16.msra.mxu0 %v4240
    %6476 = vmatpush.bf16.msra.mxu0 %v4232
    %6477 = vmatpush.bf16.msra.mxu0 %v4224
    %6478 = vmatmul.bf16.gmra.mxu0 %v6335
    %v6479 = vpop.f32.mrf.mxu0
    %v6480 = vadd.f32 0.0, %v6479
    %v6481 = vpop.f32.mrf.mxu0
    %v6482 = vadd.f32 0.0, %v6481
    %6483 = vmatmul.bf16.gmra.mxu0 %v6336
    %v6484 = vpop.f32.mrf.mxu0
    %v6485 = vadd.f32 0.0, %v6484
    %v6486 = vpop.f32.mrf.mxu0
    %v6487 = vadd.f32 0.0, %v6486
    %6488 = vdwg.mxu0
    %v6489 = vld [vmem:[#allocation14] sm:$0xff]
    %v6490 = vld [vmem:[#allocation14 + $0x8] sm:$0xff]
    %v6491 = vld [vmem:[#allocation14 + $0x10] sm:$0xff]
    %v6492 = vld [vmem:[#allocation14 + $0x18] sm:$0xff]
    %s6493 = scalar_lea.vmem [#allocation14], 32
    %v6494 = vld [vmem:[%s6493] sm:$0xff]
    %v6495 = vld [vmem:[%s6493 + $0x8] sm:$0xff]
    %v6496 = vld [vmem:[%s6493 + $0x10] sm:$0xff]
    %v6497 = vld [vmem:[%s6493 + $0x18] sm:$0xff]
    %v6499 = vsel %vm4506, %v6494, 0
    %v6502 = vsel %vm4506, %v6495, 0
    %v6505 = vsel %vm4506, %v6496, 0
    %v6508 = vsel %vm4506, %v6497, 0
    %6510 = vmatpush.msra.mxu0 0.0
    %6511 = vmatpush.msra.mxu0 0.0
    %6512 = vmatpush.msra.mxu0 0.0
    %6513 = vmatpush.msra.mxu0 0.0
    %6514 = vmatpush.msra.mxu0 0.0
    %6515 = vmatpush.msra.mxu0 0.0
    %6516 = vmatpush.msra.mxu0 0.0
    %6517 = vmatpush.msra.mxu0 0.0
    %6518 = vmatpush.msra.mxu0 0.0
    %6519 = vmatpush.msra.mxu0 0.0
    %6520 = vmatpush.msra.mxu0 0.0
    %6521 = vmatpush.msra.mxu0 0.0
    %6522 = vmatpush.msra.mxu0 %v6373
    %6523 = vmatpush.msra.mxu0 %v6371
    %6524 = vmatpush.msra.mxu0 %v6368
    %6525 = vmatpush.msra.mxu0 %v6366
    %6526 = vmatmul.f32.gmra.mxu0 %v6499
    %v6527 = vpop.f32.mrf.mxu0
    %v6528 = vadd.f32 0.0, %v6527
    %6529 = vmatmul.f32.gmra.mxu0 %v6502
    %v6530 = vpop.f32.mrf.mxu0
    %v6531 = vadd.f32 0.0, %v6530
    %6532 = vmatmul.f32.gmra.mxu0 %v6505
    %v6533 = vpop.f32.mrf.mxu0
    %v6534 = vadd.f32 0.0, %v6533
    %6535 = vmatmul.f32.gmra.mxu0 %v6508
    %v6536 = vpop.f32.mrf.mxu0
    %v6537 = vadd.f32 0.0, %v6536
    %6538 = vdwg.mxu0
    %v6540 = vsel %vm4506, %v6489, 0
    %v6543 = vsel %vm4506, %v6490, 0
    %v6546 = vsel %vm4506, %v6491, 0
    %v6549 = vsel %vm4506, %v6492, 0
    %6551 = vmatpush.msra.mxu0 0.0
    %6552 = vmatpush.msra.mxu0 0.0
    %6553 = vmatpush.msra.mxu0 0.0
    %6554 = vmatpush.msra.mxu0 0.0
    %6555 = vmatpush.msra.mxu0 0.0
    %6556 = vmatpush.msra.mxu0 0.0
    %6557 = vmatpush.msra.mxu0 0.0
    %6558 = vmatpush.msra.mxu0 0.0
    %6559 = vmatpush.msra.mxu0 0.0
    %6560 = vmatpush.msra.mxu0 0.0
    %6561 = vmatpush.msra.mxu0 0.0
    %6562 = vmatpush.msra.mxu0 0.0
    %6563 = vmatpush.msra.mxu0 %v6354
    %6564 = vmatpush.msra.mxu0 %v6352
    %6565 = vmatpush.msra.mxu0 %v6349
    %6566 = vmatpush.msra.mxu0 %v6347
    %6567 = vmatmul.f32.gmra.mxu0 %v6540
    %v6568 = vpop.f32.mrf.mxu0
    %v6569 = vadd.f32 %v6528, %v6568
    %6570 = vmatmul.f32.gmra.mxu0 %v6543
    %v6571 = vpop.f32.mrf.mxu0
    %v6572 = vadd.f32 %v6531, %v6571
    %6573 = vmatmul.f32.gmra.mxu0 %v6546
    %v6574 = vpop.f32.mrf.mxu0
    %v6575 = vadd.f32 %v6534, %v6574
    %6576 = vmatmul.f32.gmra.mxu0 %v6549
    %v6577 = vpop.f32.mrf.mxu0
    %v6578 = vadd.f32 %v6537, %v6577
    %6579 = vdwg.mxu0
    %s6580 = scalar_lea.vmem [#allocation14], 64
    %v6581 = vld [vmem:[%s6580] sm:$0xff]
    %v6582 = vld [vmem:[%s6580 + $0x8] sm:$0xff]
    %v6583 = vld [vmem:[%s6580 + $0x10] sm:$0xff]
    %v6584 = vld [vmem:[%s6580 + $0x18] sm:$0xff]
    %v6586 = vsel %vm4506, %v6581, 0
    %v6589 = vsel %vm4506, %v6582, 0
    %v6592 = vsel %vm4506, %v6583, 0
    %v6595 = vsel %vm4506, %v6584, 0
    %6597 = vmatpush.msra.mxu0 0.0
    %6598 = vmatpush.msra.mxu0 0.0
    %6599 = vmatpush.msra.mxu0 0.0
    %6600 = vmatpush.msra.mxu0 0.0
    %6601 = vmatpush.msra.mxu0 0.0
    %6602 = vmatpush.msra.mxu0 0.0
    %6603 = vmatpush.msra.mxu0 0.0
    %6604 = vmatpush.msra.mxu0 0.0
    %6605 = vmatpush.msra.mxu0 0.0
    %6606 = vmatpush.msra.mxu0 0.0
    %6607 = vmatpush.msra.mxu0 0.0
    %6608 = vmatpush.msra.mxu0 0.0
    %6609 = vmatpush.msra.mxu0 %v6392
    %6610 = vmatpush.msra.mxu0 %v6390
    %6611 = vmatpush.msra.mxu0 %v6387
    %6612 = vmatpush.msra.mxu0 %v6385
    %6613 = vmatmul.f32.gmra.mxu0 %v6586
    %v6614 = vpop.f32.mrf.mxu0
    %v6615 = vadd.f32 0.0, %v6614
    %6616 = vmatmul.f32.gmra.mxu0 %v6589
    %v6617 = vpop.f32.mrf.mxu0
    %v6618 = vadd.f32 0.0, %v6617
    %6619 = vmatmul.f32.gmra.mxu0 %v6592
    %v6620 = vpop.f32.mrf.mxu0
    %v6621 = vadd.f32 0.0, %v6620
    %6622 = vmatmul.f32.gmra.mxu0 %v6595
    %v6623 = vpop.f32.mrf.mxu0
    %v6624 = vadd.f32 0.0, %v6623
    %6625 = vdwg.mxu0
    %v6626 = vadd.f32 %v6569, %v6615
    %v6627 = vadd.f32 %v6572, %v6618
    %v6628 = vadd.f32 %v6575, %v6621
    %v6629 = vadd.f32 %v6578, %v6624
    %s6630 = scalar_lea.vmem [#allocation14], 96
    %v6631 = vld [vmem:[%s6630] sm:$0xff]
    %v6632 = vld [vmem:[%s6630 + $0x8] sm:$0xff]
    %v6633 = vld [vmem:[%s6630 + $0x10] sm:$0xff]
    %v6634 = vld [vmem:[%s6630 + $0x18] sm:$0xff]
    %v6636 = vsel %vm4506, %v6631, 0
    %v6639 = vsel %vm4506, %v6632, 0
    %v6642 = vsel %vm4506, %v6633, 0
    %v6645 = vsel %vm4506, %v6634, 0
    %6647 = vmatpush.msra.mxu0 0.0
    %6648 = vmatpush.msra.mxu0 0.0
    %6649 = vmatpush.msra.mxu0 0.0
    %6650 = vmatpush.msra.mxu0 0.0
    %6651 = vmatpush.msra.mxu0 0.0
    %6652 = vmatpush.msra.mxu0 0.0
    %6653 = vmatpush.msra.mxu0 0.0
    %6654 = vmatpush.msra.mxu0 0.0
    %6655 = vmatpush.msra.mxu0 0.0
    %6656 = vmatpush.msra.mxu0 0.0
    %6657 = vmatpush.msra.mxu0 0.0
    %6658 = vmatpush.msra.mxu0 0.0
    %6659 = vmatpush.msra.mxu0 %v6411
    %6660 = vmatpush.msra.mxu0 %v6409
    %6661 = vmatpush.msra.mxu0 %v6406
    %6662 = vmatpush.msra.mxu0 %v6404
    %6663 = vmatmul.f32.gmra.mxu0 %v6636
    %v6664 = vpop.f32.mrf.mxu0
    %v6665 = vadd.f32 0.0, %v6664
    %6666 = vmatmul.f32.gmra.mxu0 %v6639
    %v6667 = vpop.f32.mrf.mxu0
    %v6668 = vadd.f32 0.0, %v6667
    %6669 = vmatmul.f32.gmra.mxu0 %v6642
    %v6670 = vpop.f32.mrf.mxu0
    %v6671 = vadd.f32 0.0, %v6670
    %6672 = vmatmul.f32.gmra.mxu0 %v6645
    %v6673 = vpop.f32.mrf.mxu0
    %v6674 = vadd.f32 0.0, %v6673
    %6675 = vdwg.mxu0
    %v6676 = vadd.f32 %v6626, %v6665
    %v6677 = vadd.f32 %v6627, %v6668
    %v6678 = vadd.f32 %v6628, %v6671
    %v6679 = vadd.f32 %v6629, %v6674
    %s6680 = scalar_lea.vmem [#allocation14], 128
    %v6681 = vld [vmem:[%s6680] sm:$0xff]
    %v6682 = vld [vmem:[%s6680 + $0x8] sm:$0xff]
    %v6683 = vld [vmem:[%s6680 + $0x10] sm:$0xff]
    %v6684 = vld [vmem:[%s6680 + $0x18] sm:$0xff]
    %v6686 = vsel %vm4506, %v6681, 0
    %v6689 = vsel %vm4506, %v6682, 0
    %v6692 = vsel %vm4506, %v6683, 0
    %v6695 = vsel %vm4506, %v6684, 0
    %6697 = vmatpush.msra.mxu0 0.0
    %6698 = vmatpush.msra.mxu0 0.0
    %6699 = vmatpush.msra.mxu0 0.0
    %6700 = vmatpush.msra.mxu0 0.0
    %6701 = vmatpush.msra.mxu0 0.0
    %6702 = vmatpush.msra.mxu0 0.0
    %6703 = vmatpush.msra.mxu0 0.0
    %6704 = vmatpush.msra.mxu0 0.0
    %6705 = vmatpush.msra.mxu0 0.0
    %6706 = vmatpush.msra.mxu0 0.0
    %6707 = vmatpush.msra.mxu0 0.0
    %6708 = vmatpush.msra.mxu0 0.0
    %6709 = vmatpush.msra.mxu0 %v6430
    %6710 = vmatpush.msra.mxu0 %v6428
    %6711 = vmatpush.msra.mxu0 %v6425
    %6712 = vmatpush.msra.mxu0 %v6423
    %6713 = vmatmul.f32.gmra.mxu0 %v6686
    %v6714 = vpop.f32.mrf.mxu0
    %v6715 = vadd.f32 0.0, %v6714
    %6716 = vmatmul.f32.gmra.mxu0 %v6689
    %v6717 = vpop.f32.mrf.mxu0
    %v6718 = vadd.f32 0.0, %v6717
    %6719 = vmatmul.f32.gmra.mxu0 %v6692
    %v6720 = vpop.f32.mrf.mxu0
    %v6721 = vadd.f32 0.0, %v6720
    %6722 = vmatmul.f32.gmra.mxu0 %v6695
    %v6723 = vpop.f32.mrf.mxu0
    %v6724 = vadd.f32 0.0, %v6723
    %6725 = vdwg.mxu0
    %v6726 = vadd.f32 %v6676, %v6715
    %v6727 = vadd.f32 %v6677, %v6718
    %v6728 = vadd.f32 %v6678, %v6721
    %v6729 = vadd.f32 %v6679, %v6724
    %s6730 = scalar_lea.vmem [#allocation14], 160
    %v6731 = vld [vmem:[%s6730] sm:$0xff]
    %v6732 = vld [vmem:[%s6730 + $0x8] sm:$0xff]
    %v6733 = vld [vmem:[%s6730 + $0x10] sm:$0xff]
    %v6734 = vld [vmem:[%s6730 + $0x18] sm:$0xff]
    %v6736 = vsel %vm4506, %v6731, 0
    %v6739 = vsel %vm4506, %v6732, 0
    %v6742 = vsel %vm4506, %v6733, 0
    %v6745 = vsel %vm4506, %v6734, 0
    %6747 = vmatpush.msra.mxu0 0.0
    %6748 = vmatpush.msra.mxu0 0.0
    %6749 = vmatpush.msra.mxu0 0.0
    %6750 = vmatpush.msra.mxu0 0.0
    %6751 = vmatpush.msra.mxu0 0.0
    %6752 = vmatpush.msra.mxu0 0.0
    %6753 = vmatpush.msra.mxu0 0.0
    %6754 = vmatpush.msra.mxu0 0.0
    %6755 = vmatpush.msra.mxu0 0.0
    %6756 = vmatpush.msra.mxu0 0.0
    %6757 = vmatpush.msra.mxu0 0.0
    %6758 = vmatpush.msra.mxu0 0.0
    %6759 = vmatpush.msra.mxu0 %v6449
    %6760 = vmatpush.msra.mxu0 %v6447
    %6761 = vmatpush.msra.mxu0 %v6444
    %6762 = vmatpush.msra.mxu0 %v6442
    %6763 = vmatmul.f32.gmra.mxu0 %v6736
    %v6764 = vpop.f32.mrf.mxu0
    %v6765 = vadd.f32 0.0, %v6764
    %6766 = vmatmul.f32.gmra.mxu0 %v6739
    %v6767 = vpop.f32.mrf.mxu0
    %v6768 = vadd.f32 0.0, %v6767
    %6769 = vmatmul.f32.gmra.mxu0 %v6742
    %v6770 = vpop.f32.mrf.mxu0
    %v6771 = vadd.f32 0.0, %v6770
    %6772 = vmatmul.f32.gmra.mxu0 %v6745
    %v6773 = vpop.f32.mrf.mxu0
    %v6774 = vadd.f32 0.0, %v6773
    %6775 = vdwg.mxu0
    %v6776 = vadd.f32 %v6726, %v6765
    %v6777 = vadd.f32 %v6727, %v6768
    %v6778 = vadd.f32 %v6728, %v6771
    %v6779 = vadd.f32 %v6729, %v6774
    %s6780 = scalar_lea.vmem [#allocation14], 192
    %v6781 = vld [vmem:[%s6780] sm:$0xff]
    %v6782 = vld [vmem:[%s6780 + $0x8] sm:$0xff]
    %v6783 = vld [vmem:[%s6780 + $0x10] sm:$0xff]
    %v6784 = vld [vmem:[%s6780 + $0x18] sm:$0xff]
    %v6786 = vsel %vm4506, %v6781, 0
    %v6789 = vsel %vm4506, %v6782, 0
    %v6792 = vsel %vm4506, %v6783, 0
    %v6795 = vsel %vm4506, %v6784, 0
    %6797 = vmatpush.msra.mxu0 0.0
    %6798 = vmatpush.msra.mxu0 0.0
    %6799 = vmatpush.msra.mxu0 0.0
    %6800 = vmatpush.msra.mxu0 0.0
    %6801 = vmatpush.msra.mxu0 0.0
    %6802 = vmatpush.msra.mxu0 0.0
    %6803 = vmatpush.msra.mxu0 0.0
    %6804 = vmatpush.msra.mxu0 0.0
    %6805 = vmatpush.msra.mxu0 0.0
    %6806 = vmatpush.msra.mxu0 0.0
    %6807 = vmatpush.msra.mxu0 0.0
    %6808 = vmatpush.msra.mxu0 0.0
    %6809 = vmatpush.msra.mxu0 %v6468
    %6810 = vmatpush.msra.mxu0 %v6466
    %6811 = vmatpush.msra.mxu0 %v6463
    %6812 = vmatpush.msra.mxu0 %v6461
    %6813 = vmatmul.f32.gmra.mxu0 %v6786
    %v6814 = vpop.f32.mrf.mxu0
    %v6815 = vadd.f32 0.0, %v6814
    %6816 = vmatmul.f32.gmra.mxu0 %v6789
    %v6817 = vpop.f32.mrf.mxu0
    %v6818 = vadd.f32 0.0, %v6817
    %6819 = vmatmul.f32.gmra.mxu0 %v6792
    %v6820 = vpop.f32.mrf.mxu0
    %v6821 = vadd.f32 0.0, %v6820
    %6822 = vmatmul.f32.gmra.mxu0 %v6795
    %v6823 = vpop.f32.mrf.mxu0
    %v6824 = vadd.f32 0.0, %v6823
    %6825 = vdwg.mxu0
    %v6826 = vadd.f32 %v6776, %v6815
    %v6827 = vadd.f32 %v6777, %v6818
    %v6828 = vadd.f32 %v6778, %v6821
    %v6829 = vadd.f32 %v6779, %v6824
    %s6830 = scalar_lea.vmem [#allocation14], 224
    %v6831 = vld [vmem:[%s6830] sm:$0xff]
    %v6832 = vld [vmem:[%s6830 + $0x8] sm:$0xff]
    %v6833 = vld [vmem:[%s6830 + $0x10] sm:$0xff]
    %v6834 = vld [vmem:[%s6830 + $0x18] sm:$0xff]
    %v6836 = vsel %vm4506, %v6831, 0
    %v6839 = vsel %vm4506, %v6832, 0
    %v6842 = vsel %vm4506, %v6833, 0
    %v6845 = vsel %vm4506, %v6834, 0
    %6847 = vmatpush.msra.mxu0 0.0
    %6848 = vmatpush.msra.mxu0 0.0
    %6849 = vmatpush.msra.mxu0 0.0
    %6850 = vmatpush.msra.mxu0 0.0
    %6851 = vmatpush.msra.mxu0 0.0
    %6852 = vmatpush.msra.mxu0 0.0
    %6853 = vmatpush.msra.mxu0 0.0
    %6854 = vmatpush.msra.mxu0 0.0
    %6855 = vmatpush.msra.mxu0 0.0
    %6856 = vmatpush.msra.mxu0 0.0
    %6857 = vmatpush.msra.mxu0 0.0
    %6858 = vmatpush.msra.mxu0 0.0
    %6859 = vmatpush.msra.mxu0 %v6487
    %6860 = vmatpush.msra.mxu0 %v6485
    %6861 = vmatpush.msra.mxu0 %v6482
    %6862 = vmatpush.msra.mxu0 %v6480
    %6863 = vmatmul.f32.gmra.mxu0 %v6836
    %v6864 = vpop.f32.mrf.mxu0
    %v6865 = vadd.f32 0.0, %v6864
    %6866 = vmatmul.f32.gmra.mxu0 %v6839
    %v6867 = vpop.f32.mrf.mxu0
    %v6868 = vadd.f32 0.0, %v6867
    %6869 = vmatmul.f32.gmra.mxu0 %v6842
    %v6870 = vpop.f32.mrf.mxu0
    %v6871 = vadd.f32 0.0, %v6870
    %6872 = vmatmul.f32.gmra.mxu0 %v6845
    %v6873 = vpop.f32.mrf.mxu0
    %v6874 = vadd.f32 0.0, %v6873
    %6875 = vdwg.mxu0
    %v6876 = vadd.f32 %v6826, %v6865
    %v6877 = vadd.f32 %v6827, %v6868
    %v6878 = vadd.f32 %v6828, %v6871
    %v6879 = vadd.f32 %v6829, %v6874
    %vm6880 = vcmp.gt.f32.partialorder %v6876, 0.0
    %vm6881 = vcmp.gt.f32.partialorder %v6877, 0.0
    %vm6882 = vcmp.gt.f32.partialorder %v6878, 0.0
    %vm6883 = vcmp.gt.f32.partialorder %v6879, 0.0
    %v6884 = vmin.f32 %v6876, 0.0
    %v6885 = vmin.f32 %v6877, 0.0
    %v6886 = vmin.f32 %v6878, 0.0
    %v6887 = vmin.f32 %v6879, 0.0
    %v6888 = vmul.f32 %v6884, 1.442695
    %v6889 = vpow.pop %v6888
    %v6890 = vmul.f32 %v6885, 1.442695
    %v6891 = vpow.pop %v6890
    %v6892 = vmul.f32 %v6886, 1.442695
    %v6893 = vpow.pop %v6892
    %v6894 = vmul.f32 %v6887, 1.442695
    %v6895 = vpow.pop %v6894
    %v6896 = vsub.f32 %v6889, 1.0
    %v6897 = vsub.f32 %v6891, 1.0
    %v6898 = vsub.f32 %v6893, 1.0
    %v6899 = vsub.f32 %v6895, 1.0
    %v6900 = vsel %vm6880, %v6876, %v6896
    %v6901 = vsel %vm6881, %v6877, %v6897
    %v6902 = vsel %vm6882, %v6878, %v6898
    %v6903 = vsel %vm6883, %v6879, %v6899
    %v6904 = vmul.f32 %v6900, %v4914
    %v6905 = vmul.f32 %v6901, %v4914
    %v6906 = vmul.f32 %v6902, %v4914
    %v6907 = vmul.f32 %v6903, %v4914
    %6908 = vadd.xlane.f32.xlu0 %v6904
    %v6909 = vpop.xlane.xlu0 %6908
    %6910 = vadd.xlane.f32.xlu0 %v6905
    %v6911 = vpop.xlane.xlu0 %6910
    %6912 = vadd.xlane.f32.xlu0 %v6906
    %v6913 = vpop.xlane.xlu0 %6912
    %6914 = vadd.xlane.f32.xlu0 %v6907
    %v6915 = vpop.xlane.xlu0 %6914
    %v6916 = vmul.f32 %v6909, %v4928
    %v6917 = vmul.f32 %v6911, %v4928
    %v6918 = vmul.f32 %v6913, %v4928
    %v6919 = vmul.f32 %v6915, %v4928
    %v6920 = vsub.f32 %v6900, %v6916
    %v6921 = vsub.f32 %v6901, %v6917
    %v6922 = vsub.f32 %v6902, %v6918
    %v6923 = vsub.f32 %v6903, %v6919
    %v6924 = vmul.f32 %v6920, %v6920
    %v6925 = vmul.f32 %v6921, %v6921
    %v6926 = vmul.f32 %v6922, %v6922
    %v6927 = vmul.f32 %v6923, %v6923
    %v6928 = vmul.f32 %v6924, %v4914
    %v6929 = vmul.f32 %v6925, %v4914
    %v6930 = vmul.f32 %v6926, %v4914
    %v6931 = vmul.f32 %v6927, %v4914
    %6932 = vadd.xlane.f32.xlu0 %v6928
    %v6933 = vpop.xlane.xlu0 %6932
    %6934 = vadd.xlane.f32.xlu0 %v6929
    %v6935 = vpop.xlane.xlu0 %6934
    %6936 = vadd.xlane.f32.xlu0 %v6930
    %v6937 = vpop.xlane.xlu0 %6936
    %6938 = vadd.xlane.f32.xlu0 %v6931
    %v6939 = vpop.xlane.xlu0 %6938
    %v6940 = vmul.f32 %v6933, %v4928
    %v6941 = vmul.f32 %v6935, %v4928
    %v6942 = vmul.f32 %v6937, %v4928
    %v6943 = vmul.f32 %v6939, %v4928
    %v6944 = vadd.f32 %v6940, 1e-05
    %v6945 = vadd.f32 %v6941, 1e-05
    %v6946 = vadd.f32 %v6942, 1e-05
    %v6947 = vadd.f32 %v6943, 1e-05
    %v6948 = vrsqrt.pop %v6944
    %v6949 = vmul.f32 %v6948, %v6944
    %v6950 = vmul.f32 %v6949, %v6948
    %v6951 = vmul.f32 0.5, %v6950
    %v6952 = vsub.f32 1.5, %v6951
    %v6953 = vmul.f32 %v6948, %v6952
    %vm6954 = vweird.f32 %v6944
    %vm6955 = vweird.f32 %v6948
    %vm6956 = vmor %vm6954, %vm6955
    %v6957 = vsel %vm6956, %v6948, %v6953
    %v6958 = vrsqrt.pop %v6945
    %v6959 = vmul.f32 %v6958, %v6945
    %v6960 = vmul.f32 %v6959, %v6958
    %v6961 = vmul.f32 0.5, %v6960
    %v6962 = vsub.f32 1.5, %v6961
    %v6963 = vmul.f32 %v6958, %v6962
    %vm6964 = vweird.f32 %v6945
    %vm6965 = vweird.f32 %v6958
    %vm6966 = vmor %vm6964, %vm6965
    %v6967 = vsel %vm6966, %v6958, %v6963
    %v6968 = vrsqrt.pop %v6946
    %v6969 = vmul.f32 %v6968, %v6946
    %v6970 = vmul.f32 %v6969, %v6968
    %v6971 = vmul.f32 0.5, %v6970
    %v6972 = vsub.f32 1.5, %v6971
    %v6973 = vmul.f32 %v6968, %v6972
    %vm6974 = vweird.f32 %v6946
    %vm6975 = vweird.f32 %v6968
    %vm6976 = vmor %vm6974, %vm6975
    %v6977 = vsel %vm6976, %v6968, %v6973
    %v6978 = vrsqrt.pop %v6947
    %v6979 = vmul.f32 %v6978, %v6947
    %v6980 = vmul.f32 %v6979, %v6978
    %v6981 = vmul.f32 0.5, %v6980
    %v6982 = vsub.f32 1.5, %v6981
    %v6983 = vmul.f32 %v6978, %v6982
    %vm6984 = vweird.f32 %v6947
    %vm6985 = vweird.f32 %v6978
    %vm6986 = vmor %vm6984, %vm6985
    %v6987 = vsel %vm6986, %v6978, %v6983
    %v6988 = vmul.f32 %v6920, %v6957
    %v6989 = vmul.f32 %v6921, %v6967
    %v6990 = vmul.f32 %v6922, %v6977
    %v6991 = vmul.f32 %v6923, %v6987
    %v6992 = vmul.f32 %v6988, %v4914
    %v6993 = vmul.f32 %v6989, %v4914
    %v6994 = vmul.f32 %v6990, %v4914
    %v6995 = vmul.f32 %v6991, %v4914
    %v6996 = vadd.f32 %v6992, %v3955
    %v6997 = vadd.f32 %v6993, %v3956
    %v6998 = vadd.f32 %v6994, %v3957
    %v6999 = vadd.f32 %v6995, %v3958
    %v7000 = vld [vmem:[#allocation22] sm:$0x1]
    %v7001 = vld [vmem:[#allocation20] sm:$0xff]
    %v7002 = vld [vmem:[#allocation20 + $0x8] sm:$0xff]
    %v7003 = vld [vmem:[#allocation20 + $0x10] sm:$0xff]
    %v7004 = vld [vmem:[#allocation20 + $0x18] sm:$0xff]
    %v7005 = vld [vmem:[#allocation20 + $0x20] sm:$0xff]
    %v7006 = vld [vmem:[#allocation20 + $0x28] sm:$0xff]
    %v7007 = vld [vmem:[#allocation20 + $0x30] sm:$0xff]
    %v7008 = vld [vmem:[#allocation20 + $0x38] sm:$0xff]
    %v7009 = vld [vmem:[#allocation20 + $0x40] sm:$0xff]
    %v7010 = vld [vmem:[#allocation20 + $0x48] sm:$0xff]
    %v7011 = vld [vmem:[#allocation20 + $0x50] sm:$0xff]
    %v7012 = vld [vmem:[#allocation20 + $0x58] sm:$0xff]
    %v7013 = vld [vmem:[#allocation20 + $0x60] sm:$0xff]
    %v7014 = vld [vmem:[#allocation20 + $0x68] sm:$0xff]
    %v7015 = vld [vmem:[#allocation20 + $0x70] sm:$0xff]
    %v7016 = vld [vmem:[#allocation20 + $0x78] sm:$0xff]
    %v7017 = vld [vmem:[#allocation20 + $0x80] sm:$0xff]
    %v7018 = vld [vmem:[#allocation20 + $0x88] sm:$0xff]
    %v7019 = vld [vmem:[#allocation20 + $0x90] sm:$0xff]
    %v7020 = vld [vmem:[#allocation20 + $0x98] sm:$0xff]
    %v7021 = vld [vmem:[#allocation20 + $0xa0] sm:$0xff]
    %v7022 = vld [vmem:[#allocation20 + $0xa8] sm:$0xff]
    %v7023 = vld [vmem:[#allocation20 + $0xb0] sm:$0xff]
    %v7024 = vld [vmem:[#allocation20 + $0xb8] sm:$0xff]
    %v7025 = vld [vmem:[#allocation20 + $0xc0] sm:$0xff]
    %v7026 = vld [vmem:[#allocation20 + $0xc8] sm:$0xff]
    %v7027 = vld [vmem:[#allocation20 + $0xd0] sm:$0xff]
    %v7028 = vld [vmem:[#allocation20 + $0xd8] sm:$0xff]
    %v7029 = vld [vmem:[#allocation20 + $0xe0] sm:$0xff]
    %v7030 = vld [vmem:[#allocation20 + $0xe8] sm:$0xff]
    %v7031 = vld [vmem:[#allocation20 + $0xf0] sm:$0xff]
    %v7032 = vld [vmem:[#allocation20 + $0xf8] sm:$0xff]
    %v7033 = vld [vmem:[#allocation20 + $0x100] sm:$0xff]
    %v7034 = vld [vmem:[#allocation20 + $0x108] sm:$0xff]
    %v7035 = vld [vmem:[#allocation20 + $0x110] sm:$0xff]
    %v7036 = vld [vmem:[#allocation20 + $0x118] sm:$0xff]
    %v7037 = vld [vmem:[#allocation20 + $0x120] sm:$0xff]
    %v7038 = vld [vmem:[#allocation20 + $0x128] sm:$0xff]
    %v7039 = vld [vmem:[#allocation20 + $0x130] sm:$0xff]
    %v7040 = vld [vmem:[#allocation20 + $0x138] sm:$0xff]
    %v7041 = vld [vmem:[#allocation20 + $0x140] sm:$0xff]
    %v7042 = vld [vmem:[#allocation20 + $0x148] sm:$0xff]
    %v7043 = vld [vmem:[#allocation20 + $0x150] sm:$0xff]
    %v7044 = vld [vmem:[#allocation20 + $0x158] sm:$0xff]
    %v7045 = vld [vmem:[#allocation20 + $0x160] sm:$0xff]
    %v7046 = vld [vmem:[#allocation20 + $0x168] sm:$0xff]
    %v7047 = vld [vmem:[#allocation20 + $0x170] sm:$0xff]
    %v7048 = vld [vmem:[#allocation20 + $0x178] sm:$0xff]
    %v7049 = vld [vmem:[#allocation20 + $0x180] sm:$0xff]
    %v7050 = vld [vmem:[#allocation20 + $0x188] sm:$0xff]
    %v7051 = vld [vmem:[#allocation20 + $0x190] sm:$0xff]
    %v7052 = vld [vmem:[#allocation20 + $0x198] sm:$0xff]
    %v7053 = vld [vmem:[#allocation20 + $0x1a0] sm:$0xff]
    %v7054 = vld [vmem:[#allocation20 + $0x1a8] sm:$0xff]
    %v7055 = vld [vmem:[#allocation20 + $0x1b0] sm:$0xff]
    %v7056 = vld [vmem:[#allocation20 + $0x1b8] sm:$0xff]
    %v7057 = vld [vmem:[#allocation20 + $0x1c0] sm:$0xff]
    %v7058 = vld [vmem:[#allocation20 + $0x1c8] sm:$0xff]
    %v7059 = vld [vmem:[#allocation20 + $0x1d0] sm:$0xff]
    %v7060 = vld [vmem:[#allocation20 + $0x1d8] sm:$0xff]
    %v7061 = vld [vmem:[#allocation20 + $0x1e0] sm:$0xff]
    %v7062 = vld [vmem:[#allocation20 + $0x1e8] sm:$0xff]
    %v7063 = vld [vmem:[#allocation20 + $0x1f0] sm:$0xff]
    %v7064 = vld [vmem:[#allocation20 + $0x1f8] sm:$0xff]
    %v7065 = vld [vmem:[#allocation20 + $0x200] sm:$0xff]
    %v7066 = vld [vmem:[#allocation20 + $0x208] sm:$0xff]
    %v7067 = vld [vmem:[#allocation20 + $0x210] sm:$0xff]
    %v7068 = vld [vmem:[#allocation20 + $0x218] sm:$0xff]
    %v7069 = vld [vmem:[#allocation20 + $0x220] sm:$0xff]
    %v7070 = vld [vmem:[#allocation20 + $0x228] sm:$0xff]
    %v7071 = vld [vmem:[#allocation20 + $0x230] sm:$0xff]
    %v7072 = vld [vmem:[#allocation20 + $0x238] sm:$0xff]
    %v7073 = vld [vmem:[#allocation20 + $0x240] sm:$0xff]
    %v7074 = vld [vmem:[#allocation20 + $0x248] sm:$0xff]
    %v7075 = vld [vmem:[#allocation20 + $0x250] sm:$0xff]
    %v7076 = vld [vmem:[#allocation20 + $0x258] sm:$0xff]
    %v7077 = vld [vmem:[#allocation20 + $0x260] sm:$0xff]
    %v7078 = vld [vmem:[#allocation20 + $0x268] sm:$0xff]
    %v7079 = vld [vmem:[#allocation20 + $0x270] sm:$0xff]
    %v7080 = vld [vmem:[#allocation20 + $0x278] sm:$0xff]
    %v7081 = vld [vmem:[#allocation20 + $0x280] sm:$0xff]
    %v7082 = vld [vmem:[#allocation20 + $0x288] sm:$0xff]
    %v7083 = vld [vmem:[#allocation20 + $0x290] sm:$0xff]
    %v7084 = vld [vmem:[#allocation20 + $0x298] sm:$0xff]
    %v7085 = vld [vmem:[#allocation20 + $0x2a0] sm:$0xff]
    %v7086 = vld [vmem:[#allocation20 + $0x2a8] sm:$0xff]
    %v7087 = vld [vmem:[#allocation20 + $0x2b0] sm:$0xff]
    %v7088 = vld [vmem:[#allocation20 + $0x2b8] sm:$0xff]
    %v7089 = vld [vmem:[#allocation20 + $0x2c0] sm:$0xff]
    %v7090 = vld [vmem:[#allocation20 + $0x2c8] sm:$0xff]
    %v7091 = vld [vmem:[#allocation20 + $0x2d0] sm:$0xff]
    %v7092 = vld [vmem:[#allocation20 + $0x2d8] sm:$0xff]
    %v7093 = vld [vmem:[#allocation20 + $0x2e0] sm:$0xff]
    %v7094 = vld [vmem:[#allocation20 + $0x2e8] sm:$0xff]
    %v7095 = vld [vmem:[#allocation20 + $0x2f0] sm:$0xff]
    %v7096 = vld [vmem:[#allocation20 + $0x2f8] sm:$0xff]
    %v7097 = vld [vmem:[%s24] sm:$0x3f]
    %v7099 = vperm.slane %v7097, 0
    %v7100 = vperm.slane %v7097, 1
    %v7101 = vperm.slane %v7097, 2
    %v7102 = vperm.slane %v7097, 3
    %v7103 = vperm.slane %v7097, 4
    %v7104 = vperm.slane %v7097, 5
    %7111 = vmatpush.msra.mxu0 %v7091
    %7112 = vmatpush.msra.mxu0 %v7085
    %7113 = vmatpush.msra.mxu0 %v7079
    %7114 = vmatpush.msra.mxu0 %v7073
    %7115 = vmatpush.msra.mxu0 %v7067
    %7116 = vmatpush.msra.mxu0 %v7061
    %7117 = vmatpush.msra.mxu0 %v7055
    %7118 = vmatpush.msra.mxu0 %v7049
    %7119 = vmatpush.msra.mxu0 %v7043
    %7120 = vmatpush.msra.mxu0 %v7037
    %7121 = vmatpush.msra.mxu0 %v7031
    %7122 = vmatpush.msra.mxu0 %v7025
    %7123 = vmatpush.msra.mxu0 %v7019
    %7124 = vmatpush.msra.mxu0 %v7013
    %7125 = vmatpush.msra.mxu0 %v7007
    %7126 = vmatpush.msra.mxu0 %v7001
    %7127 = vmatmul.f32.gmra.mxu0 %v6996
    %v7128 = vpop.f32.mrf.mxu0
    %v7129 = vadd.f32 %v7099, %v7128
    %7130 = vmatmul.f32.gmra.mxu0 %v6997
    %v7131 = vpop.f32.mrf.mxu0
    %v7132 = vadd.f32 %v7099, %v7131
    %7133 = vmatmul.f32.gmra.mxu0 %v6998
    %v7134 = vpop.f32.mrf.mxu0
    %v7135 = vadd.f32 %v7099, %v7134
    %7136 = vmatmul.f32.gmra.mxu0 %v6999
    %v7137 = vpop.f32.mrf.mxu0
    %v7138 = vadd.f32 %v7099, %v7137
    %7139 = vdwg.mxu0
    %7140 = vmatpush.msra.mxu0 %v7092
    %7141 = vmatpush.msra.mxu0 %v7086
    %7142 = vmatpush.msra.mxu0 %v7080
    %7143 = vmatpush.msra.mxu0 %v7074
    %7144 = vmatpush.msra.mxu0 %v7068
    %7145 = vmatpush.msra.mxu0 %v7062
    %7146 = vmatpush.msra.mxu0 %v7056
    %7147 = vmatpush.msra.mxu0 %v7050
    %7148 = vmatpush.msra.mxu0 %v7044
    %7149 = vmatpush.msra.mxu0 %v7038
    %7150 = vmatpush.msra.mxu0 %v7032
    %7151 = vmatpush.msra.mxu0 %v7026
    %7152 = vmatpush.msra.mxu0 %v7020
    %7153 = vmatpush.msra.mxu0 %v7014
    %7154 = vmatpush.msra.mxu0 %v7008
    %7155 = vmatpush.msra.mxu0 %v7002
    %7156 = vmatmul.f32.gmra.mxu0 %v6996
    %v7157 = vpop.f32.mrf.mxu0
    %v7158 = vadd.f32 %v7100, %v7157
    %7159 = vmatmul.f32.gmra.mxu0 %v6997
    %v7160 = vpop.f32.mrf.mxu0
    %v7161 = vadd.f32 %v7100, %v7160
    %7162 = vmatmul.f32.gmra.mxu0 %v6998
    %v7163 = vpop.f32.mrf.mxu0
    %v7164 = vadd.f32 %v7100, %v7163
    %7165 = vmatmul.f32.gmra.mxu0 %v6999
    %v7166 = vpop.f32.mrf.mxu0
    %v7167 = vadd.f32 %v7100, %v7166
    %7168 = vdwg.mxu0
    %7169 = vmatpush.msra.mxu0 %v7093
    %7170 = vmatpush.msra.mxu0 %v7087
    %7171 = vmatpush.msra.mxu0 %v7081
    %7172 = vmatpush.msra.mxu0 %v7075
    %7173 = vmatpush.msra.mxu0 %v7069
    %7174 = vmatpush.msra.mxu0 %v7063
    %7175 = vmatpush.msra.mxu0 %v7057
    %7176 = vmatpush.msra.mxu0 %v7051
    %7177 = vmatpush.msra.mxu0 %v7045
    %7178 = vmatpush.msra.mxu0 %v7039
    %7179 = vmatpush.msra.mxu0 %v7033
    %7180 = vmatpush.msra.mxu0 %v7027
    %7181 = vmatpush.msra.mxu0 %v7021
    %7182 = vmatpush.msra.mxu0 %v7015
    %7183 = vmatpush.msra.mxu0 %v7009
    %7184 = vmatpush.msra.mxu0 %v7003
    %7185 = vmatmul.f32.gmra.mxu0 %v6996
    %v7186 = vpop.f32.mrf.mxu0
    %v7187 = vadd.f32 %v7101, %v7186
    %7188 = vmatmul.f32.gmra.mxu0 %v6997
    %v7189 = vpop.f32.mrf.mxu0
    %v7190 = vadd.f32 %v7101, %v7189
    %7191 = vmatmul.f32.gmra.mxu0 %v6998
    %v7192 = vpop.f32.mrf.mxu0
    %v7193 = vadd.f32 %v7101, %v7192
    %7194 = vmatmul.f32.gmra.mxu0 %v6999
    %v7195 = vpop.f32.mrf.mxu0
    %v7196 = vadd.f32 %v7101, %v7195
    %7197 = vdwg.mxu0
    %7198 = vmatpush.msra.mxu0 %v7094
    %7199 = vmatpush.msra.mxu0 %v7088
    %7200 = vmatpush.msra.mxu0 %v7082
    %7201 = vmatpush.msra.mxu0 %v7076
    %7202 = vmatpush.msra.mxu0 %v7070
    %7203 = vmatpush.msra.mxu0 %v7064
    %7204 = vmatpush.msra.mxu0 %v7058
    %7205 = vmatpush.msra.mxu0 %v7052
    %7206 = vmatpush.msra.mxu0 %v7046
    %7207 = vmatpush.msra.mxu0 %v7040
    %7208 = vmatpush.msra.mxu0 %v7034
    %7209 = vmatpush.msra.mxu0 %v7028
    %7210 = vmatpush.msra.mxu0 %v7022
    %7211 = vmatpush.msra.mxu0 %v7016
    %7212 = vmatpush.msra.mxu0 %v7010
    %7213 = vmatpush.msra.mxu0 %v7004
    %7214 = vmatmul.f32.gmra.mxu0 %v6996
    %v7215 = vpop.f32.mrf.mxu0
    %v7216 = vadd.f32 %v7102, %v7215
    %7217 = vmatmul.f32.gmra.mxu0 %v6997
    %v7218 = vpop.f32.mrf.mxu0
    %v7219 = vadd.f32 %v7102, %v7218
    %7220 = vmatmul.f32.gmra.mxu0 %v6998
    %v7221 = vpop.f32.mrf.mxu0
    %v7222 = vadd.f32 %v7102, %v7221
    %7223 = vmatmul.f32.gmra.mxu0 %v6999
    %v7224 = vpop.f32.mrf.mxu0
    %v7225 = vadd.f32 %v7102, %v7224
    %7226 = vdwg.mxu0
    %7227 = vmatpush.msra.mxu0 %v7095
    %7228 = vmatpush.msra.mxu0 %v7089
    %7229 = vmatpush.msra.mxu0 %v7083
    %7230 = vmatpush.msra.mxu0 %v7077
    %7231 = vmatpush.msra.mxu0 %v7071
    %7232 = vmatpush.msra.mxu0 %v7065
    %7233 = vmatpush.msra.mxu0 %v7059
    %7234 = vmatpush.msra.mxu0 %v7053
    %7235 = vmatpush.msra.mxu0 %v7047
    %7236 = vmatpush.msra.mxu0 %v7041
    %7237 = vmatpush.msra.mxu0 %v7035
    %7238 = vmatpush.msra.mxu0 %v7029
    %7239 = vmatpush.msra.mxu0 %v7023
    %7240 = vmatpush.msra.mxu0 %v7017
    %7241 = vmatpush.msra.mxu0 %v7011
    %7242 = vmatpush.msra.mxu0 %v7005
    %7243 = vmatmul.f32.gmra.mxu0 %v6996
    %v7244 = vpop.f32.mrf.mxu0
    %v7245 = vadd.f32 %v7103, %v7244
    %7246 = vmatmul.f32.gmra.mxu0 %v6997
    %v7247 = vpop.f32.mrf.mxu0
    %v7248 = vadd.f32 %v7103, %v7247
    %7249 = vmatmul.f32.gmra.mxu0 %v6998
    %v7250 = vpop.f32.mrf.mxu0
    %v7251 = vadd.f32 %v7103, %v7250
    %7252 = vmatmul.f32.gmra.mxu0 %v6999
    %v7253 = vpop.f32.mrf.mxu0
    %v7254 = vadd.f32 %v7103, %v7253
    %7255 = vdwg.mxu0
    %7256 = vmatpush.msra.mxu0 %v7096
    %7257 = vmatpush.msra.mxu0 %v7090
    %7258 = vmatpush.msra.mxu0 %v7084
    %7259 = vmatpush.msra.mxu0 %v7078
    %7260 = vmatpush.msra.mxu0 %v7072
    %7261 = vmatpush.msra.mxu0 %v7066
    %7262 = vmatpush.msra.mxu0 %v7060
    %7263 = vmatpush.msra.mxu0 %v7054
    %7264 = vmatpush.msra.mxu0 %v7048
    %7265 = vmatpush.msra.mxu0 %v7042
    %7266 = vmatpush.msra.mxu0 %v7036
    %7267 = vmatpush.msra.mxu0 %v7030
    %7268 = vmatpush.msra.mxu0 %v7024
    %7269 = vmatpush.msra.mxu0 %v7018
    %7270 = vmatpush.msra.mxu0 %v7012
    %7271 = vmatpush.msra.mxu0 %v7006
    %7272 = vmatmul.f32.gmra.mxu0 %v6996
    %v7273 = vpop.f32.mrf.mxu0
    %v7274 = vadd.f32 %v7104, %v7273
    %7275 = vmatmul.f32.gmra.mxu0 %v6997
    %v7276 = vpop.f32.mrf.mxu0
    %v7277 = vadd.f32 %v7104, %v7276
    %7278 = vmatmul.f32.gmra.mxu0 %v6998
    %v7279 = vpop.f32.mrf.mxu0
    %v7280 = vadd.f32 %v7104, %v7279
    %7281 = vmatmul.f32.gmra.mxu0 %v6999
    %v7282 = vpop.f32.mrf.mxu0
    %v7283 = vadd.f32 %v7104, %v7282
    %7284 = vdwg.mxu0
    %v7285 = vmax.f32 %v7129, %v7158
    %v7286 = vmax.f32 %v7132, %v7161
    %v7287 = vmax.f32 %v7135, %v7164
    %v7288 = vmax.f32 %v7138, %v7167
    %v7289 = vmax.f32 %v7285, %v7187
    %v7290 = vmax.f32 %v7286, %v7190
    %v7291 = vmax.f32 %v7287, %v7193
    %v7292 = vmax.f32 %v7288, %v7196
    %v7293 = vmax.f32 %v7289, %v7216
    %v7294 = vmax.f32 %v7290, %v7219
    %v7295 = vmax.f32 %v7291, %v7222
    %v7296 = vmax.f32 %v7292, %v7225
    %v7297 = vmax.f32 %v7293, %v7245
    %v7298 = vmax.f32 %v7294, %v7248
    %v7299 = vmax.f32 %v7295, %v7251
    %v7300 = vmax.f32 %v7296, %v7254
    %v7301 = vmax.f32 %v7297, %v7274
    %v7302 = vmax.f32 %v7298, %v7277
    %v7303 = vmax.f32 %v7299, %v7280
    %v7304 = vmax.f32 %v7300, %v7283
    %vm7305 = vcmp.gt.f32.partialorder %v7000, 0.0
    %v7306 = vsel %vm7305, 1, 0
    %v7307 = vperm.slane %v7306, 0
    %vm7308 = vcmp.eq.s32.totalorder %v7307, 1
    %v7309 = vsel %vm7308, %v7301, 0.0
    %v7310 = vsel %vm7308, %v7302, 0.0
    %v7311 = vsel %vm7308, %v7303, 0.0
    %v7312 = vsel %vm7308, %v7304, 0.0
    %7313 = vst [vmem:[#allocation23] sm:$0xff] %v7309
    %7314 = vst [vmem:[#allocation23 + $0x8] sm:$0xff] %v7310
    %7315 = vst [vmem:[#allocation23 + $0x10] sm:$0xff] %v7311
    %7316 = vst [vmem:[#allocation23 + $0x18] sm:$0xff] %v7312
    // Predicated region
    $region158: #{tpu_custom_call.1} parent=1 // pred_check
      _
    $region159: #{tpu_custom_call.1} parent=1 // pred_check_branch
      %7318 = sbr.rel (0) target = $region161
    $region160: #{tpu_custom_call.1} parent=1 // pred_region
      %7320 = vsyncadd [#allocation4], 0
      %s7321 = sshll.u32 [#allocation23], 4
      %s7322 = int_to_ptr.vmem [resolvable:$true] %s7321
      %s7323 = sshll.u32 %s26, 4
      %s7324 = int_to_ptr.hbm [resolvable:$true] %s7323
      %7329 = dma.vmem_to_hbm [thread:$0]  %s7322, 512, %s7324, [#allocation4], 128, 128, 8
    $region161: #{tpu_custom_call.1} parent=1 // pred_fallthru
      _
    // Predicated region
    $region162: #{tpu_custom_call.1} parent=1 // pred_check
      _
    $region163: #{tpu_custom_call.1} parent=1 // pred_check_branch
      %7331 = sbr.rel (0) target = $region165
    $region164: #{tpu_custom_call.1} parent=1 // pred_region
      %7333 = dma.done [#allocation4], 512
    $region165: #{tpu_custom_call.1} parent=1 // pred_fallthru
      _
    %7334 = vsyncpa [#allocation3], 1
    %7335 = vsyncpa [#allocation6], 1
    %7336 = vsyncpa [#allocation9], 1
    %7337 = vsyncpa [#allocation12], 1
    %7338 = vsyncpa [#allocation15], 1
    %7339 = vsyncpa [#allocation18], 1
    %7340 = vsyncpa [#allocation21], 1
    %7341 = vsyncpa [#allocation4], 1

</llo_original>
